<compile_context>
chip_gen: v7x
topology: tpu7x:2x2x1
jax: 0.10.0
libtpu: 0.0.40
codegen_flags: <defaults>
</compile_context>

<pallas_src>
import functools

import jax
import jax.numpy as jnp
from jax import lax
from jax.experimental import pallas as pl
from jax.experimental.pallas import tpu as pltpu

EPS = 1e-5


def _default_vmem_limit():
    # ~3/4 of physical VMEM per TensorCore: ~48 MiB on v7x (64 MiB physical),
    # 96 MiB on v5e/v6e (128 MiB physical).
    try:
        cap = int(pltpu.get_tpu_info().vmem_capacity_bytes)
    except Exception:
        cap = 64 * 1024 * 1024
    return min(96 * 1024 * 1024, (cap * 3) // 4)


VMEM_LIMIT_BYTES = _default_vmem_limit()


def _compiler_params(semantics):
    return pltpu.CompilerParams(
        dimension_semantics=semantics, vmem_limit_bytes=VMEM_LIMIT_BYTES)


# ----------------------------------------------------------------------------
# In-kernel helpers (traced inside Pallas kernels)
# ----------------------------------------------------------------------------
def _im2col_dot(padded, H, W, w, b):
    """Single K=9*sum(Cin) matmul; im2col slab assembled in VMEM.

    padded: list of (H+2, W+2, Cin_i) bf16 tiles (fused concat along Cin).
    w: (9*sum(Cin), Cout) bf16 with row order (kh, kw, cin).  b: (1, Cout) f32.
    """
    cols = []
    for kh in range(3):
        for kw in range(3):
            for xp in padded:
                c = xp.shape[-1]
                cols.append(xp[kh:kh + H, kw:kw + W, :].reshape(H * W, c))
    patch = jnp.concatenate(cols, axis=-1)            # (H*W, 9*sum(Cin))
    return jnp.dot(patch, w, preferred_element_type=jnp.float32) + b


def _store_stats(acc, sum_ref, m2_ref):
    """Per-image centered BN partials: sum and sum((y - mean_img)^2)."""
    s = jnp.sum(acc, axis=0, keepdims=True)
    m = s * (1.0 / acc.shape[0])
    sum_ref[...] = s
    m2_ref[...] = jnp.sum(jnp.square(acc - m), axis=0, keepdims=True)


# ----------------------------------------------------------------------------
# Pallas kernels
# ----------------------------------------------------------------------------
def _upsample_kernel(x_ref, w_ref, b_ref, o_ref):
    """ConvTranspose2d(k=2, s=2) for one image.

    x_ref: (H, W, Cin) bf16; w_ref: (Cin, 4*Cout) bf16, columns (kh, kw, c);
    b_ref: (1, 4*Cout) f32; o_ref: (H, 2, W, 2*Cout) bf16 where dim1 is kh and
    the last dim packs (kw, c) -> flattening to (2H, 2W, Cout) is free.
    """
    H, W, Cin = x_ref.shape
    two_c = o_ref.shape[-1]
    x2d = x_ref[...].reshape(H * W, Cin)
    y = jnp.dot(x2d, w_ref[...], preferred_element_type=jnp.float32) + b_ref[...]
    y = y.astype(o_ref.dtype)
    o_ref[:, 0:1, :, :] = y[:, :two_c].reshape(H, 1, W, two_c)
    o_ref[:, 1:2, :, :] = y[:, two_c:].reshape(H, 1, W, two_c)


def _conv1_kernel(x2_ref, x1_ref, w_ref, b_ref, y_ref, sum_ref, m2_ref,
                  p2_ref, p1_ref, *, H, W, off1):
    """conv1 of DoubleConv with the skip concat and all zero-pads fused."""
    # Zero-pad both inputs in VMEM scratch (F.pad diff + conv border pad).
    p2_ref[...] = jnp.zeros(p2_ref.shape, p2_ref.dtype)
    p2_ref[1:H + 1, 1:W + 1, :] = x2_ref[...]
    p1_ref[...] = jnp.zeros(p1_ref.shape, p1_ref.dtype)
    top, left = off1
    h1, w1 = x1_ref.shape[0], x1_ref.shape[1]
    p1_ref[top:top + h1, left:left + w1, :] = x1_ref[...]
    # Fused concat: slab columns (kh, kw, [x2 ch, x1 ch]) == torch.cat order.
    acc = _im2col_dot([p2_ref[...], p1_ref[...]], H, W, w_ref[...], b_ref[...])
    y_ref[...] = acc.astype(y_ref.dtype)
    _store_stats(acc, sum_ref, m2_ref)


def _conv2_kernel(y1_ref, s_ref, t_ref, w_ref, b_ref, y_ref, sum_ref, m2_ref,
                  p_ref, *, H, W):
    """conv2 with BN1-apply + ReLU + zero-pad fused onto the input tile."""
    a = jnp.maximum(y1_ref[...] * s_ref[...] + t_ref[...], 0.0)   # f32
    p_ref[...] = jnp.zeros(p_ref.shape, p_ref.dtype)
    p_ref[1:H + 1, 1:W + 1, :] = a.astype(p_ref.dtype).reshape(H, W, a.shape[-1])
    acc = _im2col_dot([p_ref[...]], H, W, w_ref[...], b_ref[...])
    y_ref[...] = acc.astype(y_ref.dtype)
    _store_stats(acc, sum_ref, m2_ref)


def _scale_shift_relu_kernel(y_ref, s_ref, t_ref, o_ref):
    # Folded BN affine + ReLU: out = max(y * scale + shift, 0)
    o_ref[...] = jnp.maximum(y_ref[...] * s_ref[...] + t_ref[...], 0.0)


# ----------------------------------------------------------------------------
# pallas_call wrappers
# ----------------------------------------------------------------------------
def _upsample_2x2(x, w4, b4):
    """x: (N,H,W,Cin) bf16; w4: (Cin,4*Cout) bf16; returns (N,2H,2W,Cout) bf16."""
    N, H, W, Cin = x.shape
    C4 = w4.shape[-1]
    Cout = C4 // 4
    y = pl.pallas_call(
        _upsample_kernel,
        grid=(N,),
        out_shape=jax.ShapeDtypeStruct((N, H, 2, W, 2 * Cout), jnp.bfloat16),
        in_specs=[
            pl.BlockSpec((None, H, W, Cin), lambda n: (n, 0, 0, 0)),
            pl.BlockSpec((Cin, C4), lambda n: (0, 0)),
            pl.BlockSpec((1, C4), lambda n: (0, 0)),
        ],
        out_specs=pl.BlockSpec((None, H, 2, W, 2 * Cout),
                               lambda n: (n, 0, 0, 0, 0)),
        compiler_params=_compiler_params(("parallel",)),
    )(x, w4, b4)
    # (n, h, kh, w, (kw,c)) -> (n, 2h+kh, 2w+kw, c): pure (free) reshape.
    return y.reshape(N, 2 * H, 2 * W, Cout)


def _conv1(x2, x1u, w2d, b, off1):
    N, H, W, C2 = x2.shape
    _, H1u, W1u, C1 = x1u.shape
    Cout = w2d.shape[-1]
    kernel = functools.partial(_conv1_kernel, H=H, W=W, off1=off1)
    return pl.pallas_call(
        kernel,
        grid=(N,),
        out_shape=(jax.ShapeDtypeStruct((N, H * W, Cout), jnp.bfloat16),
                   jax.ShapeDtypeStruct((N, 1, Cout), jnp.float32),
                   jax.ShapeDtypeStruct((N, 1, Cout), jnp.float32)),
        in_specs=[
            pl.BlockSpec((None, H, W, C2), lambda n: (n, 0, 0, 0)),
            pl.BlockSpec((None, H1u, W1u, C1), lambda n: (n, 0, 0, 0)),
            pl.BlockSpec(w2d.shape, lambda n: (0, 0)),     # weight resident
            pl.BlockSpec((1, Cout), lambda n: (0, 0)),     # bias resident
        ],
        out_specs=(
            pl.BlockSpec((None, H * W, Cout), lambda n: (n, 0, 0)),
            pl.BlockSpec((None, 1, Cout), lambda n: (n, 0, 0)),
            pl.BlockSpec((None, 1, Cout), lambda n: (n, 0, 0)),
        ),
        scratch_shapes=[pltpu.VMEM((H + 2, W + 2, C2), jnp.bfloat16),
                        pltpu.VMEM((H + 2, W + 2, C1), jnp.bfloat16)],
        compiler_params=_compiler_params(("parallel",)),
    )(x2, x1u, w2d, b.reshape(1, Cout).astype(jnp.float32))


def _conv2(y1, H, W, scale, shift, w2d, b):
    N, HW, C = y1.shape
    Cout = w2d.shape[-1]
    kernel = functools.partial(_conv2_kernel, H=H, W=W)
    return pl.pallas_call(
        kernel,
        grid=(N,),
        out_shape=(jax.ShapeDtypeStruct((N, HW, Cout), jnp.float32),
                   jax.ShapeDtypeStruct((N, 1, Cout), jnp.float32),
                   jax.ShapeDtypeStruct((N, 1, Cout), jnp.float32)),
        in_specs=[
            pl.BlockSpec((None, HW, C), lambda n: (n, 0, 0)),
            pl.BlockSpec((1, C), lambda n: (0, 0)),        # BN1 scale
            pl.BlockSpec((1, C), lambda n: (0, 0)),        # BN1 shift
            pl.BlockSpec(w2d.shape, lambda n: (0, 0)),
            pl.BlockSpec((1, Cout), lambda n: (0, 0)),
        ],
        out_specs=(
            pl.BlockSpec((None, HW, Cout), lambda n: (n, 0, 0)),
            pl.BlockSpec((None, 1, Cout), lambda n: (n, 0, 0)),
            pl.BlockSpec((None, 1, Cout), lambda n: (n, 0, 0)),
        ),
        scratch_shapes=[pltpu.VMEM((H + 2, W + 2, C), jnp.bfloat16)],
        compiler_params=_compiler_params(("parallel",)),
    )(y1, scale.reshape(1, C), shift.reshape(1, C),
      w2d, b.reshape(1, Cout).astype(jnp.float32))


def _normalize_relu(y_flat, scale, shift):
    """Final BN affine + ReLU.  Lane-folded so the store is wide & unmasked."""
    M, C = y_flat.shape
    max_g = max(1, min(M, 2048 // max(C, 1)))
    G = 1
    for g in range(max_g, 0, -1):
        if M % g == 0:
            G = g
            break
    Mf, L = M // G, G * C
    y2 = y_flat.reshape(Mf, L)                              # free reshape
    s = jnp.tile(scale.astype(jnp.float32), G).reshape(1, L)
    t = jnp.tile(shift.astype(jnp.float32), G).reshape(1, L)
    # ~4 MiB row tiles (this pass is pure HBM bandwidth).
    target = max(8, ((4 * 1024 * 1024) // (L * 4)) // 8 * 8)
    if Mf <= target:
        TM = Mf
    else:
        TM = 8
        for tr in range(target, 7, -8):
            if Mf % tr == 0:
                TM = tr
                break
    out = pl.pallas_call(
        _scale_shift_relu_kernel,
        grid=(pl.cdiv(Mf, TM),),
        out_shape=jax.ShapeDtypeStruct((Mf, L), jnp.float32),
        in_specs=[pl.BlockSpec((TM, L), lambda i: (i, 0)),
                  pl.BlockSpec((1, L), lambda i: (0, 0)),
                  pl.BlockSpec((1, L), lambda i: (0, 0))],
        out_specs=pl.BlockSpec((TM, L), lambda i: (i, 0)),
        compiler_params=_compiler_params(("parallel",)),
    )(y2, s, t)
    return out.reshape(M, C)


def _finalize_bn(sums, m2s, count, gamma, beta):
    """Merge per-image centered partials (Chan) into folded BN scale/shift."""
    n = sums.shape[0]
    total_cnt = n * count
    s_i = sums[:, 0, :]                                    # (N, C)
    mean = jnp.sum(s_i, axis=0) / total_cnt
    m_i = s_i / count
    var = (jnp.sum(m2s[:, 0, :], axis=0)
           + count * jnp.sum(jnp.square(m_i - mean), axis=0)) / total_cnt
    scale = gamma * lax.rsqrt(var + EPS)
    shift = beta - mean * scale
    return scale.astype(jnp.float32), shift.astype(jnp.float32)


# ----------------------------------------------------------------------------
# DecoderBlock forward
# ----------------------------------------------------------------------------
def decoder_block_forward(params, x1_nchw, x2_nchw):
    """Mirrors DecoderBlock.forward (inputs NCHW f32, output NCHW f32)."""
    x1 = jnp.transpose(x1_nchw, (0, 2, 3, 1)).astype(jnp.bfloat16)
    x2 = jnp.transpose(x2_nchw, (0, 2, 3, 1)).astype(jnp.bfloat16)
    N, H2, W2, C2 = x2.shape
    C1 = x1.shape[-1]

    # self.up(x1): ConvTranspose2d(C1, C1, 2, 2); interleave emitted in-kernel.
    w4 = jnp.transpose(params["up_w"], (0, 2, 3, 1)).reshape(C1, -1)
    b4 = jnp.tile(params["up_b"], 4).reshape(1, -1).astype(jnp.float32)
    x1u = _upsample_2x2(x1, w4.astype(jnp.bfloat16), b4)   # (N,2H1,2W1,C1) bf16

    # F.pad offsets of x1 on the x2 grid, combined with the conv border pad.
    diffY = H2 - x1u.shape[1]
    diffX = W2 - x1u.shape[2]
    off1 = (1 + diffY // 2, 1 + diffX // 2)

    # conv1 (+ fused concat/pad) and BN1 partial stats.
    Cout = params["c1_w"].shape[0]
    w1 = jnp.transpose(params["c1_w"], (2, 3, 1, 0)).reshape(9 * (C2 + C1), Cout)
    y1, s1, m21 = _conv1(x2, x1u, w1.astype(jnp.bfloat16), params["c1_b"], off1)
    scale1, shift1 = _finalize_bn(s1, m21, H2 * W2,
                                  params["bn1_g"], params["bn1_b"])

    # conv2, with BN1-apply + ReLU + pad fused onto its input tile.
    w2 = jnp.transpose(params["c2_w"], (2, 3, 1, 0)).reshape(9 * Cout, Cout)
    y2, s2, m22 = _conv2(y1, H2, W2, scale1, shift1,
                         w2.astype(jnp.bfloat16), params["c2_b"])
    scale2, shift2 = _finalize_bn(s2, m22, H2 * W2,
                                  params["bn2_g"], params["bn2_b"])

    # BN2 + ReLU (final pass, lane-folded).
    out = _normalize_relu(y2.reshape(N * H2 * W2, Cout), scale2, shift2)
    out = out.reshape(N, H2, W2, Cout)
    return jnp.transpose(out, (0, 3, 1, 2))


# ----------------------------------------------------------------------------
# Pure-JAX f32 reference (correctness check)
# ----------------------------------------------------------------------------
def _ref_bn_relu(x_nchw, gamma, beta):
    mean = jnp.mean(x_nchw, axis=(0, 2, 3), keepdims=True)
    var = jnp.mean((x_nchw - mean) ** 2, axis=(0, 2, 3), keepdims=True)
    y = (x_nchw - mean) * lax.rsqrt(var + EPS)
    y = y * gamma[None, :, None, None] + beta[None, :, None, None]
    return jnp.maximum(y, 0.0)


def _ref_forward(params, x1, x2):
    N, Cin, H, W = x1.shape
    w = params["up_w"]
    y = jnp.einsum("nchw,cokl->nohwkl", x1, w)
    y = jnp.transpose(y, (0, 1, 2, 4, 3, 5)).reshape(N, w.shape[1], 2 * H, 2 * W)
    y = y + params["up_b"][None, :, None, None]

    diffY = x2.shape[2] - y.shape[2]
    diffX = x2.shape[3] - y.shape[3]
    y = jnp.pad(y, ((0, 0), (0, 0),
                    (diffY // 2, diffY - diffY // 2),
                    (diffX // 2, diffX - diffX // 2)))
    x = jnp.concatenate([x2, y], axis=1)

    def conv3(x, w, b):
        out = lax.conv_general_dilated(
            x, w, window_strides=(1, 1), padding=((1, 1), (1, 1)),
            dimension_numbers=("NCHW", "OIHW", "NCHW"))
        return out + b[None, :, None, None]

    x = _ref_bn_relu(conv3(x, params["c1_w"], params["c1_b"]),
                     params["bn1_g"], params["bn1_b"])
    x = _ref_bn_relu(conv3(x, params["c2_w"], params["c2_b"]),
                     params["bn2_g"], params["bn2_b"])
    return x


# ----------------------------------------------------------------------------
# Main
# ----------------------------------------------------------------------------
if __name__ == "__main__":
    key = jax.random.PRNGKey(0)
    in_channels, out_channels = 16, 16
    c_half = in_channels // 2
    N, H1, W1 = 2, 8, 8          # x1 spatial
    H2, W2 = 2 * H1, 2 * W1      # x2 spatial (16, 16)

    ks = jax.random.split(key, 12)
    params = {
        # ConvTranspose2d(c_half, c_half, 2, 2): weight (Cin, Cout, kH, kW)
        "up_w": 0.1 * jax.random.normal(ks[0], (c_half, c_half, 2, 2), jnp.float32),
        "up_b": 0.1 * jax.random.normal(ks[1], (c_half,), jnp.float32),
        # Conv2d(in_channels, out_channels, 3): weight (Cout, Cin, 3, 3)
        "c1_w": 0.1 * jax.random.normal(ks[2], (out_channels, in_channels, 3, 3), jnp.float32),
        "c1_b": 0.1 * jax.random.normal(ks[3], (out_channels,), jnp.float32),
        "bn1_g": 1.0 + 0.1 * jax.random.normal(ks[4], (out_channels,), jnp.float32),
        "bn1_b": 0.1 * jax.random.normal(ks[5], (out_channels,), jnp.float32),
        # Conv2d(out_channels, out_channels, 3)
        "c2_w": 0.1 * jax.random.normal(ks[6], (out_channels, out_channels, 3, 3), jnp.float32),
        "c2_b": 0.1 * jax.random.normal(ks[7], (out_channels,), jnp.float32),
        "bn2_g": 1.0 + 0.1 * jax.random.normal(ks[8], (out_channels,), jnp.float32),
        "bn2_b": 0.1 * jax.random.normal(ks[9], (out_channels,), jnp.float32),
    }

    x1 = jax.random.normal(ks[10], (N, c_half, H1, W1), jnp.float32)
    x2 = jax.random.normal(ks[11], (N, c_half, H2, W2), jnp.float32)

    fwd = jax.jit(functools.partial(decoder_block_forward, params))
    out = jax.block_until_ready(fwd(x1, x2))

    ref = _ref_forward(params, x1, x2)
    assert out.shape == (N, out_channels, H2, W2), out.shape
    max_err = float(jnp.max(jnp.abs(out - ref)))
    # bf16 MXU operands / bf16 activation storage with f32 accumulation.
    assert jnp.allclose(out, ref, rtol=5e-2, atol=5e-2), max_err

    print("KERNEL_OK")
</pallas_src>

<mosaic_0001>
module attributes {stable_mosaic.version = 11 : i64} {
  func.func @_upsample_kernel(%arg0: i32, %arg1: memref<1x8x8x8xbf16, #tpu.memory_space<vmem>>, %arg2: memref<8x32xbf16, #tpu.memory_space<vmem>>, %arg3: memref<1x32xf32, #tpu.memory_space<vmem>>, %arg4: memref<1x8x2x8x16xbf16, #tpu.memory_space<vmem>>) attributes {dimension_semantics = [#tpu.dimension_semantics<parallel>], iteration_bounds = array<i64: 2>, scalar_prefetch = 0 : i64, scratch_operands = 0 : i64, tpu.core_type = #tpu.core_type<tc>, window_params = [{transform_indices = @transform_0, window_bounds = array<i64: 1, 8, 8, 8>}, {pipeline_mode = #tpu.pipeline_mode<synchronous>, transform_indices = @transform_1, window_bounds = array<i64: 8, 32>}, {pipeline_mode = #tpu.pipeline_mode<synchronous>, transform_indices = @transform_2, window_bounds = array<i64: 1, 32>}, {transform_indices = @transform_3, window_bounds = array<i64: 1, 8, 2, 8, 16>}]} {
    %c0 = arith.constant 0 : index
    %c0_0 = arith.constant 0 : index
    %c0_1 = arith.constant 0 : index
    %c0_2 = arith.constant 0 : index
    %0 = vector.load %arg1[%c0, %c0_0, %c0_1, %c0_2] : memref<1x8x8x8xbf16, #tpu.memory_space<vmem>>, vector<1x8x8x8xbf16>
    %1 = vector.shape_cast %0 : vector<1x8x8x8xbf16> to vector<8x8x8xbf16>
    %2 = vector.shape_cast %1 : vector<8x8x8xbf16> to vector<64x8xbf16>
    %c0_3 = arith.constant 0 : index
    %c0_4 = arith.constant 0 : index
    %3 = vector.load %arg2[%c0_3, %c0_4] : memref<8x32xbf16, #tpu.memory_space<vmem>>, vector<8x32xbf16>
    %cst = arith.constant dense<0.000000e+00> : vector<64x32xf32>
    %4 = tpu.matmul %2, %3, %cst {dimension_numbers = #tpu.dot_dimension_numbers<[1], [0], [0], [1], [0, 0, 1, 1], [], []>} : vector<64x8xbf16>, vector<8x32xbf16>, vector<64x32xf32> -> vector<64x32xf32>
    %c0_5 = arith.constant 0 : index
    %c0_6 = arith.constant 0 : index
    %5 = vector.load %arg3[%c0_5, %c0_6] : memref<1x32xf32, #tpu.memory_space<vmem>>, vector<1x32xf32>
    %6 = vector.broadcast %5 : vector<1x32xf32> to vector<64x32xf32>
    %7 = arith.addf %4, %6 : vector<64x32xf32>
    %8 = arith.truncf %7 : vector<64x32xf32> to vector<64x32xbf16>
    %9 = vector.extract_strided_slice %8 {offsets = [0, 0], sizes = [64, 16], strides = [1, 1]} : vector<64x32xbf16> to vector<64x16xbf16>
    %10 = vector.shape_cast %9 : vector<64x16xbf16> to vector<8x1x8x16xbf16>
    %c0_7 = arith.constant 0 : index
    %c0_8 = arith.constant 0 : index
    %c0_9 = arith.constant 0 : index
    %c0_10 = arith.constant 0 : index
    %c0_11 = arith.constant 0 : index
    %11 = vector.load %arg4[%c0_7, %c0_8, %c0_9, %c0_10, %c0_11] : memref<1x8x2x8x16xbf16, #tpu.memory_space<vmem>>, vector<1x8x1x8x16xbf16>
    %12 = vector.shape_cast %11 : vector<1x8x1x8x16xbf16> to vector<8x1x8x16xbf16>
    %13 = vector.shape_cast %10 : vector<8x1x8x16xbf16> to vector<1x8x1x8x16xbf16>
    tpu.vector_store %arg4[%c0_7, %c0_8, %c0_9, %c0_10, %c0_11], %13 {strides = array<i32>} : memref<1x8x2x8x16xbf16, #tpu.memory_space<vmem>>, vector<1x8x1x8x16xbf16>,
    %14 = vector.extract_strided_slice %8 {offsets = [0, 16], sizes = [64, 16], strides = [1, 1]} : vector<64x32xbf16> to vector<64x16xbf16>
    %15 = vector.shape_cast %14 : vector<64x16xbf16> to vector<8x1x8x16xbf16>
    %c0_12 = arith.constant 0 : index
    %c0_13 = arith.constant 0 : index
    %c1 = arith.constant 1 : index
    %c0_14 = arith.constant 0 : index
    %c0_15 = arith.constant 0 : index
    %16 = vector.load %arg4[%c0_12, %c0_13, %c1, %c0_14, %c0_15] : memref<1x8x2x8x16xbf16, #tpu.memory_space<vmem>>, vector<1x8x1x8x16xbf16>
    %17 = vector.shape_cast %16 : vector<1x8x1x8x16xbf16> to vector<8x1x8x16xbf16>
    %18 = vector.shape_cast %15 : vector<8x1x8x16xbf16> to vector<1x8x1x8x16xbf16>
    tpu.vector_store %arg4[%c0_12, %c0_13, %c1, %c0_14, %c0_15], %18 {strides = array<i32>} : memref<1x8x2x8x16xbf16, #tpu.memory_space<vmem>>, vector<1x8x1x8x16xbf16>,
    return
  }
  func.func @transform_0(%arg0: i32) -> (i32, i32, i32, i32) {
    %c0_i32 = arith.constant 0 : i32
    %c0_i32_0 = arith.constant 0 : i32
    %c0_i32_1 = arith.constant 0 : i32
    %c0_i32_2 = arith.constant 0 : i32
    return %arg0, %c0_i32, %c0_i32_0, %c0_i32_1 : i32, i32, i32, i32
  }
  func.func @transform_1(%arg0: i32) -> (i32, i32) {
    %c0_i32 = arith.constant 0 : i32
    %c0_i32_0 = arith.constant 0 : i32
    %c0_i32_1 = arith.constant 0 : i32
    return %c0_i32, %c0_i32_0 : i32, i32
  }
  func.func @transform_2(%arg0: i32) -> (i32, i32) {
    %c0_i32 = arith.constant 0 : i32
    %c0_i32_0 = arith.constant 0 : i32
    %c0_i32_1 = arith.constant 0 : i32
    return %c0_i32, %c0_i32_0 : i32, i32
  }
  func.func @transform_3(%arg0: i32) -> (i32, i32, i32, i32, i32) {
    %c0_i32 = arith.constant 0 : i32
    %c0_i32_0 = arith.constant 0 : i32
    %c0_i32_1 = arith.constant 0 : i32
    %c0_i32_2 = arith.constant 0 : i32
    %c0_i32_3 = arith.constant 0 : i32
    return %arg0, %c0_i32, %c0_i32_0, %c0_i32_1, %c0_i32_2 : i32, i32, i32, i32, i32
  }
}

module attributes {stable_mosaic.version = 11 : i64} {
  func.func @_conv1_kernel(%arg0: i32, %arg1: memref<1x16x16x8xbf16, #tpu.memory_space<vmem>>, %arg2: memref<1x16x16x8xbf16, #tpu.memory_space<vmem>>, %arg3: memref<144x16xbf16, #tpu.memory_space<vmem>>, %arg4: memref<1x16xf32, #tpu.memory_space<vmem>>, %arg5: memref<1x256x16xbf16, #tpu.memory_space<vmem>>, %arg6: memref<1x1x16xf32, #tpu.memory_space<vmem>>, %arg7: memref<1x1x16xf32, #tpu.memory_space<vmem>>, %arg8: memref<18x18x8xbf16, #tpu.memory_space<vmem>>, %arg9: memref<18x18x8xbf16, #tpu.memory_space<vmem>>) attributes {dimension_semantics = [#tpu.dimension_semantics<parallel>], iteration_bounds = array<i64: 2>, scalar_prefetch = 0 : i64, scratch_operands = 2 : i64, tpu.core_type = #tpu.core_type<tc>, window_params = [{transform_indices = @transform_0, window_bounds = array<i64: 1, 16, 16, 8>}, {transform_indices = @transform_1, window_bounds = array<i64: 1, 16, 16, 8>}, {pipeline_mode = #tpu.pipeline_mode<synchronous>, transform_indices = @transform_2, window_bounds = array<i64: 144, 16>}, {pipeline_mode = #tpu.pipeline_mode<synchronous>, transform_indices = @transform_3, window_bounds = array<i64: 1, 16>}, {transform_indices = @transform_4, window_bounds = array<i64: 1, 256, 16>}, {transform_indices = @transform_5, window_bounds = array<i64: 1, 1, 16>}, {transform_indices = @transform_6, window_bounds = array<i64: 1, 1, 16>}]} {
    %cst = arith.constant 0.000000e+00 : bf16
    %0 = vector.broadcast %cst : bf16 to vector<18x18x8xbf16>
    %c0 = arith.constant 0 : index
    %c0_0 = arith.constant 0 : index
    %c0_1 = arith.constant 0 : index
    %1 = vector.load %arg8[%c0, %c0_0, %c0_1] : memref<18x18x8xbf16, #tpu.memory_space<vmem>>, vector<18x18x8xbf16>
    tpu.vector_store %arg8[%c0, %c0_0, %c0_1], %0 {strides = array<i32>} : memref<18x18x8xbf16, #tpu.memory_space<vmem>>, vector<18x18x8xbf16>,
    %c0_2 = arith.constant 0 : index
    %c0_3 = arith.constant 0 : index
    %c0_4 = arith.constant 0 : index
    %c0_5 = arith.constant 0 : index
    %2 = vector.load %arg1[%c0_2, %c0_3, %c0_4, %c0_5] : memref<1x16x16x8xbf16, #tpu.memory_space<vmem>>, vector<1x16x16x8xbf16>
    %3 = vector.shape_cast %2 : vector<1x16x16x8xbf16> to vector<16x16x8xbf16>
    %c1 = arith.constant 1 : index
    %c1_6 = arith.constant 1 : index
    %c0_7 = arith.constant 0 : index
    %4 = vector.load %arg8[%c1, %c1_6, %c0_7] : memref<18x18x8xbf16, #tpu.memory_space<vmem>>, vector<16x16x8xbf16>
    tpu.vector_store %arg8[%c1, %c1_6, %c0_7], %3 {strides = array<i32>} : memref<18x18x8xbf16, #tpu.memory_space<vmem>>, vector<16x16x8xbf16>,
    %cst_8 = arith.constant 0.000000e+00 : bf16
    %5 = vector.broadcast %cst_8 : bf16 to vector<18x18x8xbf16>
    %c0_9 = arith.constant 0 : index
    %c0_10 = arith.constant 0 : index
    %c0_11 = arith.constant 0 : index
    %6 = vector.load %arg9[%c0_9, %c0_10, %c0_11] : memref<18x18x8xbf16, #tpu.memory_space<vmem>>, vector<18x18x8xbf16>
    tpu.vector_store %arg9[%c0_9, %c0_10, %c0_11], %5 {strides = array<i32>} : memref<18x18x8xbf16, #tpu.memory_space<vmem>>, vector<18x18x8xbf16>,
    %c0_12 = arith.constant 0 : index
    %c0_13 = arith.constant 0 : index
    %c0_14 = arith.constant 0 : index
    %c0_15 = arith.constant 0 : index
    %7 = vector.load %arg2[%c0_12, %c0_13, %c0_14, %c0_15] : memref<1x16x16x8xbf16, #tpu.memory_space<vmem>>, vector<1x16x16x8xbf16>
    %8 = vector.shape_cast %7 : vector<1x16x16x8xbf16> to vector<16x16x8xbf16>
    %c1_16 = arith.constant 1 : index
    %c1_17 = arith.constant 1 : index
    %c0_18 = arith.constant 0 : index
    %9 = vector.load %arg9[%c1_16, %c1_17, %c0_18] : memref<18x18x8xbf16, #tpu.memory_space<vmem>>, vector<16x16x8xbf16>
    tpu.vector_store %arg9[%c1_16, %c1_17, %c0_18], %8 {strides = array<i32>} : memref<18x18x8xbf16, #tpu.memory_space<vmem>>, vector<16x16x8xbf16>,
    %c0_19 = arith.constant 0 : index
    %c0_20 = arith.constant 0 : index
    %c0_21 = arith.constant 0 : index
    %10 = vector.load %arg8[%c0_19, %c0_20, %c0_21] : memref<18x18x8xbf16, #tpu.memory_space<vmem>>, vector<18x18x8xbf16>
    %c0_22 = arith.constant 0 : index
    %c0_23 = arith.constant 0 : index
    %c0_24 = arith.constant 0 : index
    %11 = vector.load %arg9[%c0_22, %c0_23, %c0_24] : memref<18x18x8xbf16, #tpu.memory_space<vmem>>, vector<18x18x8xbf16>
    %c0_25 = arith.constant 0 : index
    %c0_26 = arith.constant 0 : index
    %12 = vector.load %arg3[%c0_25, %c0_26] : memref<144x16xbf16, #tpu.memory_space<vmem>>, vector<144x16xbf16>
    %c0_27 = arith.constant 0 : index
    %c0_28 = arith.constant 0 : index
    %13 = vector.load %arg4[%c0_27, %c0_28] : memref<1x16xf32, #tpu.memory_space<vmem>>, vector<1x16xf32>
    %14 = vector.extract_strided_slice %10 {offsets = [0, 0, 0], sizes = [16, 16, 8], strides = [1, 1, 1]} : vector<18x18x8xbf16> to vector<16x16x8xbf16>
    %15 = vector.shape_cast %14 : vector<16x16x8xbf16> to vector<256x8xbf16>
    %16 = vector.extract_strided_slice %11 {offsets = [0, 0, 0], sizes = [16, 16, 8], strides = [1, 1, 1]} : vector<18x18x8xbf16> to vector<16x16x8xbf16>
    %17 = vector.shape_cast %16 : vector<16x16x8xbf16> to vector<256x8xbf16>
    %18 = vector.extract_strided_slice %10 {offsets = [0, 1, 0], sizes = [16, 16, 8], strides = [1, 1, 1]} : vector<18x18x8xbf16> to vector<16x16x8xbf16>
    %19 = vector.shape_cast %18 : vector<16x16x8xbf16> to vector<256x8xbf16>
    %20 = vector.extract_strided_slice %11 {offsets = [0, 1, 0], sizes = [16, 16, 8], strides = [1, 1, 1]} : vector<18x18x8xbf16> to vector<16x16x8xbf16>
    %21 = vector.shape_cast %20 : vector<16x16x8xbf16> to vector<256x8xbf16>
    %22 = vector.extract_strided_slice %10 {offsets = [0, 2, 0], sizes = [16, 16, 8], strides = [1, 1, 1]} : vector<18x18x8xbf16> to vector<16x16x8xbf16>
    %23 = vector.shape_cast %22 : vector<16x16x8xbf16> to vector<256x8xbf16>
    %24 = vector.extract_strided_slice %11 {offsets = [0, 2, 0], sizes = [16, 16, 8], strides = [1, 1, 1]} : vector<18x18x8xbf16> to vector<16x16x8xbf16>
    %25 = vector.shape_cast %24 : vector<16x16x8xbf16> to vector<256x8xbf16>
    %26 = vector.extract_strided_slice %10 {offsets = [1, 0, 0], sizes = [16, 16, 8], strides = [1, 1, 1]} : vector<18x18x8xbf16> to vector<16x16x8xbf16>
    %27 = vector.shape_cast %26 : vector<16x16x8xbf16> to vector<256x8xbf16>
    %28 = vector.extract_strided_slice %11 {offsets = [1, 0, 0], sizes = [16, 16, 8], strides = [1, 1, 1]} : vector<18x18x8xbf16> to vector<16x16x8xbf16>
    %29 = vector.shape_cast %28 : vector<16x16x8xbf16> to vector<256x8xbf16>
    %30 = vector.extract_strided_slice %10 {offsets = [1, 1, 0], sizes = [16, 16, 8], strides = [1, 1, 1]} : vector<18x18x8xbf16> to vector<16x16x8xbf16>
    %31 = vector.shape_cast %30 : vector<16x16x8xbf16> to vector<256x8xbf16>
    %32 = vector.extract_strided_slice %11 {offsets = [1, 1, 0], sizes = [16, 16, 8], strides = [1, 1, 1]} : vector<18x18x8xbf16> to vector<16x16x8xbf16>
    %33 = vector.shape_cast %32 : vector<16x16x8xbf16> to vector<256x8xbf16>
    %34 = vector.extract_strided_slice %10 {offsets = [1, 2, 0], sizes = [16, 16, 8], strides = [1, 1, 1]} : vector<18x18x8xbf16> to vector<16x16x8xbf16>
    %35 = vector.shape_cast %34 : vector<16x16x8xbf16> to vector<256x8xbf16>
    %36 = vector.extract_strided_slice %11 {offsets = [1, 2, 0], sizes = [16, 16, 8], strides = [1, 1, 1]} : vector<18x18x8xbf16> to vector<16x16x8xbf16>
    %37 = vector.shape_cast %36 : vector<16x16x8xbf16> to vector<256x8xbf16>
    %38 = vector.extract_strided_slice %10 {offsets = [2, 0, 0], sizes = [16, 16, 8], strides = [1, 1, 1]} : vector<18x18x8xbf16> to vector<16x16x8xbf16>
    %39 = vector.shape_cast %38 : vector<16x16x8xbf16> to vector<256x8xbf16>
    %40 = vector.extract_strided_slice %11 {offsets = [2, 0, 0], sizes = [16, 16, 8], strides = [1, 1, 1]} : vector<18x18x8xbf16> to vector<16x16x8xbf16>
    %41 = vector.shape_cast %40 : vector<16x16x8xbf16> to vector<256x8xbf16>
    %42 = vector.extract_strided_slice %10 {offsets = [2, 1, 0], sizes = [16, 16, 8], strides = [1, 1, 1]} : vector<18x18x8xbf16> to vector<16x16x8xbf16>
    %43 = vector.shape_cast %42 : vector<16x16x8xbf16> to vector<256x8xbf16>
    %44 = vector.extract_strided_slice %11 {offsets = [2, 1, 0], sizes = [16, 16, 8], strides = [1, 1, 1]} : vector<18x18x8xbf16> to vector<16x16x8xbf16>
    %45 = vector.shape_cast %44 : vector<16x16x8xbf16> to vector<256x8xbf16>
    %46 = vector.extract_strided_slice %10 {offsets = [2, 2, 0], sizes = [16, 16, 8], strides = [1, 1, 1]} : vector<18x18x8xbf16> to vector<16x16x8xbf16>
    %47 = vector.shape_cast %46 : vector<16x16x8xbf16> to vector<256x8xbf16>
    %48 = vector.extract_strided_slice %11 {offsets = [2, 2, 0], sizes = [16, 16, 8], strides = [1, 1, 1]} : vector<18x18x8xbf16> to vector<16x16x8xbf16>
    %49 = vector.shape_cast %48 : vector<16x16x8xbf16> to vector<256x8xbf16>
    %50 = tpu.concatenate %15, %17, %19, %21, %23, %25, %27, %29, %31, %33, %35, %37, %39, %41, %43, %45 in 1 : vector<256x8xbf16>, vector<256x8xbf16>, vector<256x8xbf16>, vector<256x8xbf16>, vector<256x8xbf16>, vector<256x8xbf16>, vector<256x8xbf16>, vector<256x8xbf16>, vector<256x8xbf16>, vector<256x8xbf16>, vector<256x8xbf16>, vector<256x8xbf16>, vector<256x8xbf16>, vector<256x8xbf16>, vector<256x8xbf16>, vector<256x8xbf16> -> vector<256x128xbf16>
    %51 = tpu.concatenate %47, %49 in 1 : vector<256x8xbf16>, vector<256x8xbf16> -> vector<256x16xbf16>
    %52 = tpu.concatenate %50, %51 in 1 : vector<256x128xbf16>, vector<256x16xbf16> -> vector<256x144xbf16>
    %cst_29 = arith.constant dense<0.000000e+00> : vector<256x16xf32>
    %53 = tpu.matmul %52, %12, %cst_29 {dimension_numbers = #tpu.dot_dimension_numbers<[1], [0], [0], [1], [0, 0, 1, 1], [], []>} : vector<256x144xbf16>, vector<144x16xbf16>, vector<256x16xf32> -> vector<256x16xf32>
    %54 = vector.broadcast %13 : vector<1x16xf32> to vector<256x16xf32>
    %55 = arith.addf %53, %54 : vector<256x16xf32>
    %56 = arith.truncf %55 : vector<256x16xf32> to vector<256x16xbf16>
    %c0_30 = arith.constant 0 : index
    %c0_31 = arith.constant 0 : index
    %c0_32 = arith.constant 0 : index
    %57 = vector.load %arg5[%c0_30, %c0_31, %c0_32] : memref<1x256x16xbf16, #tpu.memory_space<vmem>>, vector<1x256x16xbf16>
    %58 = vector.shape_cast %57 : vector<1x256x16xbf16> to vector<256x16xbf16>
    %59 = vector.shape_cast %56 : vector<256x16xbf16> to vector<1x256x16xbf16>
    tpu.vector_store %arg5[%c0_30, %c0_31, %c0_32], %59 {strides = array<i32>} : memref<1x256x16xbf16, #tpu.memory_space<vmem>>, vector<1x256x16xbf16>,
    %cst_33 = arith.constant dense<0.000000e+00> : vector<16xf32>
    %60 = vector.multi_reduction <add>, %55, %cst_33 [0] : vector<256x16xf32> to vector<16xf32>
    %61 = vector.shape_cast %60 : vector<16xf32> to vector<1x16xf32>
    %cst_34 = arith.constant 3.906250e-03 : f32
    %62 = vector.broadcast %cst_34 : f32 to vector<1x16xf32>
    %63 = arith.mulf %61, %62 : vector<1x16xf32>
    %c0_35 = arith.constant 0 : index
    %c0_36 = arith.constant 0 : index
    %c0_37 = arith.constant 0 : index
    %64 = vector.load %arg6[%c0_35, %c0_36, %c0_37] : memref<1x1x16xf32, #tpu.memory_space<vmem>>, vector<1x1x16xf32>
    %65 = vector.shape_cast %64 : vector<1x1x16xf32> to vector<1x16xf32>
    %66 = vector.shape_cast %61 : vector<1x16xf32> to vector<1x1x16xf32>
    tpu.vector_store %arg6[%c0_35, %c0_36, %c0_37], %66 {strides = array<i32>} : memref<1x1x16xf32, #tpu.memory_space<vmem>>, vector<1x1x16xf32>,
    %67 = vector.broadcast %63 : vector<1x16xf32> to vector<256x16xf32>
    %68 = arith.subf %55, %67 : vector<256x16xf32>
    %69 = arith.mulf %68, %68 : vector<256x16xf32>
    %cst_38 = arith.constant dense<0.000000e+00> : vector<16xf32>
    %70 = vector.multi_reduction <add>, %69, %cst_38 [0] : vector<256x16xf32> to vector<16xf32>
    %71 = vector.shape_cast %70 : vector<16xf32> to vector<1x16xf32>
    %c0_39 = arith.constant 0 : index
    %c0_40 = arith.constant 0 : index
    %c0_41 = arith.constant 0 : index
    %72 = vector.load %arg7[%c0_39, %c0_40, %c0_41] : memref<1x1x16xf32, #tpu.memory_space<vmem>>, vector<1x1x16xf32>
    %73 = vector.shape_cast %72 : vector<1x1x16xf32> to vector<1x16xf32>
    %74 = vector.shape_cast %71 : vector<1x16xf32> to vector<1x1x16xf32>
    tpu.vector_store %arg7[%c0_39, %c0_40, %c0_41], %74 {strides = array<i32>} : memref<1x1x16xf32, #tpu.memory_space<vmem>>, vector<1x1x16xf32>,
    return
  }
  func.func @transform_0(%arg0: i32) -> (i32, i32, i32, i32) {
    %c0_i32 = arith.constant 0 : i32
    %c0_i32_0 = arith.constant 0 : i32
    %c0_i32_1 = arith.constant 0 : i32
    %c0_i32_2 = arith.constant 0 : i32
    return %arg0, %c0_i32, %c0_i32_0, %c0_i32_1 : i32, i32, i32, i32
  }
  func.func @transform_1(%arg0: i32) -> (i32, i32, i32, i32) {
    %c0_i32 = arith.constant 0 : i32
    %c0_i32_0 = arith.constant 0 : i32
    %c0_i32_1 = arith.constant 0 : i32
    %c0_i32_2 = arith.constant 0 : i32
    return %arg0, %c0_i32, %c0_i32_0, %c0_i32_1 : i32, i32, i32, i32
  }
  func.func @transform_2(%arg0: i32) -> (i32, i32) {
    %c0_i32 = arith.constant 0 : i32
    %c0_i32_0 = arith.constant 0 : i32
    %c0_i32_1 = arith.constant 0 : i32
    return %c0_i32, %c0_i32_0 : i32, i32
  }
  func.func @transform_3(%arg0: i32) -> (i32, i32) {
    %c0_i32 = arith.constant 0 : i32
    %c0_i32_0 = arith.constant 0 : i32
    %c0_i32_1 = arith.constant 0 : i32
    return %c0_i32, %c0_i32_0 : i32, i32
  }
  func.func @transform_4(%arg0: i32) -> (i32, i32, i32) {
    %c0_i32 = arith.constant 0 : i32
    %c0_i32_0 = arith.constant 0 : i32
    %c0_i32_1 = arith.constant 0 : i32
    return %arg0, %c0_i32, %c0_i32_0 : i32, i32, i32
  }
  func.func @transform_5(%arg0: i32) -> (i32, i32, i32) {
    %c0_i32 = arith.constant 0 : i32
    %c0_i32_0 = arith.constant 0 : i32
    %c0_i32_1 = arith.constant 0 : i32
    return %arg0, %c0_i32, %c0_i32_0 : i32, i32, i32
  }
  func.func @transform_6(%arg0: i32) -> (i32, i32, i32) {
    %c0_i32 = arith.constant 0 : i32
    %c0_i32_0 = arith.constant 0 : i32
    %c0_i32_1 = arith.constant 0 : i32
    return %arg0, %c0_i32, %c0_i32_0 : i32, i32, i32
  }
}

module attributes {stable_mosaic.version = 11 : i64} {
  func.func @_conv2_kernel(%arg0: i32, %arg1: memref<1x256x16xbf16, #tpu.memory_space<vmem>>, %arg2: memref<1x16xf32, #tpu.memory_space<vmem>>, %arg3: memref<1x16xf32, #tpu.memory_space<vmem>>, %arg4: memref<144x16xbf16, #tpu.memory_space<vmem>>, %arg5: memref<1x16xf32, #tpu.memory_space<vmem>>, %arg6: memref<1x256x16xf32, #tpu.memory_space<vmem>>, %arg7: memref<1x1x16xf32, #tpu.memory_space<vmem>>, %arg8: memref<1x1x16xf32, #tpu.memory_space<vmem>>, %arg9: memref<18x18x16xbf16, #tpu.memory_space<vmem>>) attributes {dimension_semantics = [#tpu.dimension_semantics<parallel>], iteration_bounds = array<i64: 2>, scalar_prefetch = 0 : i64, scratch_operands = 1 : i64, tpu.core_type = #tpu.core_type<tc>, window_params = [{transform_indices = @transform_0, window_bounds = array<i64: 1, 256, 16>}, {pipeline_mode = #tpu.pipeline_mode<synchronous>, transform_indices = @transform_1, window_bounds = array<i64: 1, 16>}, {pipeline_mode = #tpu.pipeline_mode<synchronous>, transform_indices = @transform_2, window_bounds = array<i64: 1, 16>}, {pipeline_mode = #tpu.pipeline_mode<synchronous>, transform_indices = @transform_3, window_bounds = array<i64: 144, 16>}, {pipeline_mode = #tpu.pipeline_mode<synchronous>, transform_indices = @transform_4, window_bounds = array<i64: 1, 16>}, {transform_indices = @transform_5, window_bounds = array<i64: 1, 256, 16>}, {transform_indices = @transform_6, window_bounds = array<i64: 1, 1, 16>}, {transform_indices = @transform_7, window_bounds = array<i64: 1, 1, 16>}]} {
    %c0 = arith.constant 0 : index
    %c0_0 = arith.constant 0 : index
    %c0_1 = arith.constant 0 : index
    %0 = vector.load %arg1[%c0, %c0_0, %c0_1] : memref<1x256x16xbf16, #tpu.memory_space<vmem>>, vector<1x256x16xbf16>
    %1 = vector.shape_cast %0 : vector<1x256x16xbf16> to vector<256x16xbf16>
    %c0_2 = arith.constant 0 : index
    %c0_3 = arith.constant 0 : index
    %2 = vector.load %arg2[%c0_2, %c0_3] : memref<1x16xf32, #tpu.memory_space<vmem>>, vector<1x16xf32>
    %3 = arith.extf %1 : vector<256x16xbf16> to vector<256x16xf32>
    %4 = vector.broadcast %2 : vector<1x16xf32> to vector<256x16xf32>
    %5 = arith.mulf %3, %4 : vector<256x16xf32>
    %c0_4 = arith.constant 0 : index
    %c0_5 = arith.constant 0 : index
    %6 = vector.load %arg3[%c0_4, %c0_5] : memref<1x16xf32, #tpu.memory_space<vmem>>, vector<1x16xf32>
    %7 = vector.broadcast %6 : vector<1x16xf32> to vector<256x16xf32>
    %8 = arith.addf %5, %7 : vector<256x16xf32>
    %cst = arith.constant 0.000000e+00 : f32
    %9 = vector.broadcast %cst : f32 to vector<256x16xf32>
    %10 = arith.maximumf %8, %9 : vector<256x16xf32>
    %cst_6 = arith.constant 0.000000e+00 : bf16
    %11 = vector.broadcast %cst_6 : bf16 to vector<18x18x16xbf16>
    %c0_7 = arith.constant 0 : index
    %c0_8 = arith.constant 0 : index
    %c0_9 = arith.constant 0 : index
    %12 = vector.load %arg9[%c0_7, %c0_8, %c0_9] : memref<18x18x16xbf16, #tpu.memory_space<vmem>>, vector<18x18x16xbf16>
    tpu.vector_store %arg9[%c0_7, %c0_8, %c0_9], %11 {strides = array<i32>} : memref<18x18x16xbf16, #tpu.memory_space<vmem>>, vector<18x18x16xbf16>,
    %13 = arith.truncf %10 : vector<256x16xf32> to vector<256x16xbf16>
    %14 = vector.shape_cast %13 : vector<256x16xbf16> to vector<16x16x16xbf16>
    %c1 = arith.constant 1 : index
    %c1_10 = arith.constant 1 : index
    %c0_11 = arith.constant 0 : index
    %15 = vector.load %arg9[%c1, %c1_10, %c0_11] : memref<18x18x16xbf16, #tpu.memory_space<vmem>>, vector<16x16x16xbf16>
    tpu.vector_store %arg9[%c1, %c1_10, %c0_11], %14 {strides = array<i32>} : memref<18x18x16xbf16, #tpu.memory_space<vmem>>, vector<16x16x16xbf16>,
    %c0_12 = arith.constant 0 : index
    %c0_13 = arith.constant 0 : index
    %c0_14 = arith.constant 0 : index
    %16 = vector.load %arg9[%c0_12, %c0_13, %c0_14] : memref<18x18x16xbf16, #tpu.memory_space<vmem>>, vector<18x18x16xbf16>
    %c0_15 = arith.constant 0 : index
    %c0_16 = arith.constant 0 : index
    %17 = vector.load %arg4[%c0_15, %c0_16] : memref<144x16xbf16, #tpu.memory_space<vmem>>, vector<144x16xbf16>
    %c0_17 = arith.constant 0 : index
    %c0_18 = arith.constant 0 : index
    %18 = vector.load %arg5[%c0_17, %c0_18] : memref<1x16xf32, #tpu.memory_space<vmem>>, vector<1x16xf32>
    %19 = vector.extract_strided_slice %16 {offsets = [0, 0, 0], sizes = [16, 16, 16], strides = [1, 1, 1]} : vector<18x18x16xbf16> to vector<16x16x16xbf16>
    %20 = vector.shape_cast %19 : vector<16x16x16xbf16> to vector<256x16xbf16>
    %21 = vector.extract_strided_slice %16 {offsets = [0, 1, 0], sizes = [16, 16, 16], strides = [1, 1, 1]} : vector<18x18x16xbf16> to vector<16x16x16xbf16>
    %22 = vector.shape_cast %21 : vector<16x16x16xbf16> to vector<256x16xbf16>
    %23 = vector.extract_strided_slice %16 {offsets = [0, 2, 0], sizes = [16, 16, 16], strides = [1, 1, 1]} : vector<18x18x16xbf16> to vector<16x16x16xbf16>
    %24 = vector.shape_cast %23 : vector<16x16x16xbf16> to vector<256x16xbf16>
    %25 = vector.extract_strided_slice %16 {offsets = [1, 0, 0], sizes = [16, 16, 16], strides = [1, 1, 1]} : vector<18x18x16xbf16> to vector<16x16x16xbf16>
    %26 = vector.shape_cast %25 : vector<16x16x16xbf16> to vector<256x16xbf16>
    %27 = vector.extract_strided_slice %16 {offsets = [1, 1, 0], sizes = [16, 16, 16], strides = [1, 1, 1]} : vector<18x18x16xbf16> to vector<16x16x16xbf16>
    %28 = vector.shape_cast %27 : vector<16x16x16xbf16> to vector<256x16xbf16>
    %29 = vector.extract_strided_slice %16 {offsets = [1, 2, 0], sizes = [16, 16, 16], strides = [1, 1, 1]} : vector<18x18x16xbf16> to vector<16x16x16xbf16>
    %30 = vector.shape_cast %29 : vector<16x16x16xbf16> to vector<256x16xbf16>
    %31 = vector.extract_strided_slice %16 {offsets = [2, 0, 0], sizes = [16, 16, 16], strides = [1, 1, 1]} : vector<18x18x16xbf16> to vector<16x16x16xbf16>
    %32 = vector.shape_cast %31 : vector<16x16x16xbf16> to vector<256x16xbf16>
    %33 = vector.extract_strided_slice %16 {offsets = [2, 1, 0], sizes = [16, 16, 16], strides = [1, 1, 1]} : vector<18x18x16xbf16> to vector<16x16x16xbf16>
    %34 = vector.shape_cast %33 : vector<16x16x16xbf16> to vector<256x16xbf16>
    %35 = vector.extract_strided_slice %16 {offsets = [2, 2, 0], sizes = [16, 16, 16], strides = [1, 1, 1]} : vector<18x18x16xbf16> to vector<16x16x16xbf16>
    %36 = vector.shape_cast %35 : vector<16x16x16xbf16> to vector<256x16xbf16>
    %37 = tpu.concatenate %20, %22, %24, %26, %28, %30, %32, %34, %36 in 1 : vector<256x16xbf16>, vector<256x16xbf16>, vector<256x16xbf16>, vector<256x16xbf16>, vector<256x16xbf16>, vector<256x16xbf16>, vector<256x16xbf16>, vector<256x16xbf16>, vector<256x16xbf16> -> vector<256x144xbf16>
    %cst_19 = arith.constant dense<0.000000e+00> : vector<256x16xf32>
    %38 = tpu.matmul %37, %17, %cst_19 {dimension_numbers = #tpu.dot_dimension_numbers<[1], [0], [0], [1], [0, 0, 1, 1], [], []>} : vector<256x144xbf16>, vector<144x16xbf16>, vector<256x16xf32> -> vector<256x16xf32>
    %39 = vector.broadcast %18 : vector<1x16xf32> to vector<256x16xf32>
    %40 = arith.addf %38, %39 : vector<256x16xf32>
    %c0_20 = arith.constant 0 : index
    %c0_21 = arith.constant 0 : index
    %c0_22 = arith.constant 0 : index
    %41 = vector.load %arg6[%c0_20, %c0_21, %c0_22] : memref<1x256x16xf32, #tpu.memory_space<vmem>>, vector<1x256x16xf32>
    %42 = vector.shape_cast %41 : vector<1x256x16xf32> to vector<256x16xf32>
    %43 = vector.shape_cast %40 : vector<256x16xf32> to vector<1x256x16xf32>
    tpu.vector_store %arg6[%c0_20, %c0_21, %c0_22], %43 {strides = array<i32>} : memref<1x256x16xf32, #tpu.memory_space<vmem>>, vector<1x256x16xf32>,
    %cst_23 = arith.constant dense<0.000000e+00> : vector<16xf32>
    %44 = vector.multi_reduction <add>, %40, %cst_23 [0] : vector<256x16xf32> to vector<16xf32>
    %45 = vector.shape_cast %44 : vector<16xf32> to vector<1x16xf32>
    %cst_24 = arith.constant 3.906250e-03 : f32
    %46 = vector.broadcast %cst_24 : f32 to vector<1x16xf32>
    %47 = arith.mulf %45, %46 : vector<1x16xf32>
    %c0_25 = arith.constant 0 : index
    %c0_26 = arith.constant 0 : index
    %c0_27 = arith.constant 0 : index
    %48 = vector.load %arg7[%c0_25, %c0_26, %c0_27] : memref<1x1x16xf32, #tpu.memory_space<vmem>>, vector<1x1x16xf32>
    %49 = vector.shape_cast %48 : vector<1x1x16xf32> to vector<1x16xf32>
    %50 = vector.shape_cast %45 : vector<1x16xf32> to vector<1x1x16xf32>
    tpu.vector_store %arg7[%c0_25, %c0_26, %c0_27], %50 {strides = array<i32>} : memref<1x1x16xf32, #tpu.memory_space<vmem>>, vector<1x1x16xf32>,
    %51 = vector.broadcast %47 : vector<1x16xf32> to vector<256x16xf32>
    %52 = arith.subf %40, %51 : vector<256x16xf32>
    %53 = arith.mulf %52, %52 : vector<256x16xf32>
    %cst_28 = arith.constant dense<0.000000e+00> : vector<16xf32>
    %54 = vector.multi_reduction <add>, %53, %cst_28 [0] : vector<256x16xf32> to vector<16xf32>
    %55 = vector.shape_cast %54 : vector<16xf32> to vector<1x16xf32>
    %c0_29 = arith.constant 0 : index
    %c0_30 = arith.constant 0 : index
    %c0_31 = arith.constant 0 : index
    %56 = vector.load %arg8[%c0_29, %c0_30, %c0_31] : memref<1x1x16xf32, #tpu.memory_space<vmem>>, vector<1x1x16xf32>
    %57 = vector.shape_cast %56 : vector<1x1x16xf32> to vector<1x16xf32>
    %58 = vector.shape_cast %55 : vector<1x16xf32> to vector<1x1x16xf32>
    tpu.vector_store %arg8[%c0_29, %c0_30, %c0_31], %58 {strides = array<i32>} : memref<1x1x16xf32, #tpu.memory_space<vmem>>, vector<1x1x16xf32>,
    return
  }
  func.func @transform_0(%arg0: i32) -> (i32, i32, i32) {
    %c0_i32 = arith.constant 0 : i32
    %c0_i32_0 = arith.constant 0 : i32
    %c0_i32_1 = arith.constant 0 : i32
    return %arg0, %c0_i32, %c0_i32_0 : i32, i32, i32
  }
  func.func @transform_1(%arg0: i32) -> (i32, i32) {
    %c0_i32 = arith.constant 0 : i32
    %c0_i32_0 = arith.constant 0 : i32
    %c0_i32_1 = arith.constant 0 : i32
    return %c0_i32, %c0_i32_0 : i32, i32
  }
  func.func @transform_2(%arg0: i32) -> (i32, i32) {
    %c0_i32 = arith.constant 0 : i32
    %c0_i32_0 = arith.constant 0 : i32
    %c0_i32_1 = arith.constant 0 : i32
    return %c0_i32, %c0_i32_0 : i32, i32
  }
  func.func @transform_3(%arg0: i32) -> (i32, i32) {
    %c0_i32 = arith.constant 0 : i32
    %c0_i32_0 = arith.constant 0 : i32
    %c0_i32_1 = arith.constant 0 : i32
    return %c0_i32, %c0_i32_0 : i32, i32
  }
  func.func @transform_4(%arg0: i32) -> (i32, i32) {
    %c0_i32 = arith.constant 0 : i32
    %c0_i32_0 = arith.constant 0 : i32
    %c0_i32_1 = arith.constant 0 : i32
    return %c0_i32, %c0_i32_0 : i32, i32
  }
  func.func @transform_5(%arg0: i32) -> (i32, i32, i32) {
    %c0_i32 = arith.constant 0 : i32
    %c0_i32_0 = arith.constant 0 : i32
    %c0_i32_1 = arith.constant 0 : i32
    return %arg0, %c0_i32, %c0_i32_0 : i32, i32, i32
  }
  func.func @transform_6(%arg0: i32) -> (i32, i32, i32) {
    %c0_i32 = arith.constant 0 : i32
    %c0_i32_0 = arith.constant 0 : i32
    %c0_i32_1 = arith.constant 0 : i32
    return %arg0, %c0_i32, %c0_i32_0 : i32, i32, i32
  }
  func.func @transform_7(%arg0: i32) -> (i32, i32, i32) {
    %c0_i32 = arith.constant 0 : i32
    %c0_i32_0 = arith.constant 0 : i32
    %c0_i32_1 = arith.constant 0 : i32
    return %arg0, %c0_i32, %c0_i32_0 : i32, i32, i32
  }
}

module attributes {stable_mosaic.version = 11 : i64} {
  func.func @_scale_shift_relu_kernel(%arg0: i32, %arg1: memref<4x2048xf32, #tpu.memory_space<vmem>>, %arg2: memref<1x2048xf32, #tpu.memory_space<vmem>>, %arg3: memref<1x2048xf32, #tpu.memory_space<vmem>>, %arg4: memref<4x2048xf32, #tpu.memory_space<vmem>>) attributes {dimension_semantics = [#tpu.dimension_semantics<parallel>], iteration_bounds = array<i64: 1>, scalar_prefetch = 0 : i64, scratch_operands = 0 : i64, tpu.core_type = #tpu.core_type<tc>, window_params = [{transform_indices = @transform_0, window_bounds = array<i64: 4, 2048>}, {pipeline_mode = #tpu.pipeline_mode<synchronous>, transform_indices = @transform_1, window_bounds = array<i64: 1, 2048>}, {pipeline_mode = #tpu.pipeline_mode<synchronous>, transform_indices = @transform_2, window_bounds = array<i64: 1, 2048>}, {transform_indices = @transform_3, window_bounds = array<i64: 4, 2048>}]} {
    %c0 = arith.constant 0 : index
    %c0_0 = arith.constant 0 : index
    %0 = vector.load %arg1[%c0, %c0_0] : memref<4x2048xf32, #tpu.memory_space<vmem>>, vector<4x2048xf32>
    %c0_1 = arith.constant 0 : index
    %c0_2 = arith.constant 0 : index
    %1 = vector.load %arg2[%c0_1, %c0_2] : memref<1x2048xf32, #tpu.memory_space<vmem>>, vector<1x2048xf32>
    %2 = vector.broadcast %1 : vector<1x2048xf32> to vector<4x2048xf32>
    %3 = arith.mulf %0, %2 : vector<4x2048xf32>
    %c0_3 = arith.constant 0 : index
    %c0_4 = arith.constant 0 : index
    %4 = vector.load %arg3[%c0_3, %c0_4] : memref<1x2048xf32, #tpu.memory_space<vmem>>, vector<1x2048xf32>
    %5 = vector.broadcast %4 : vector<1x2048xf32> to vector<4x2048xf32>
    %6 = arith.addf %3, %5 : vector<4x2048xf32>
    %cst = arith.constant 0.000000e+00 : f32
    %7 = vector.broadcast %cst : f32 to vector<4x2048xf32>
    %8 = arith.maximumf %6, %7 : vector<4x2048xf32>
    %c0_5 = arith.constant 0 : index
    %c0_6 = arith.constant 0 : index
    %9 = vector.load %arg4[%c0_5, %c0_6] : memref<4x2048xf32, #tpu.memory_space<vmem>>, vector<4x2048xf32>
    tpu.vector_store %arg4[%c0_5, %c0_6], %8 {strides = array<i32>} : memref<4x2048xf32, #tpu.memory_space<vmem>>, vector<4x2048xf32>,
    return
  }
  func.func @transform_0(%arg0: i32) -> (i32, i32) {
    %c0_i32 = arith.constant 0 : i32
    %c0_i32_0 = arith.constant 0 : i32
    return %arg0, %c0_i32 : i32, i32
  }
  func.func @transform_1(%arg0: i32) -> (i32, i32) {
    %c0_i32 = arith.constant 0 : i32
    %c0_i32_0 = arith.constant 0 : i32
    %c0_i32_1 = arith.constant 0 : i32
    return %c0_i32, %c0_i32_0 : i32, i32
  }
  func.func @transform_2(%arg0: i32) -> (i32, i32) {
    %c0_i32 = arith.constant 0 : i32
    %c0_i32_0 = arith.constant 0 : i32
    %c0_i32_1 = arith.constant 0 : i32
    return %c0_i32, %c0_i32_0 : i32, i32
  }
  func.func @transform_3(%arg0: i32) -> (i32, i32) {
    %c0_i32 = arith.constant 0 : i32
    %c0_i32_0 = arith.constant 0 : i32
    return %arg0, %c0_i32 : i32, i32
  }
}

</mosaic_0001>

<llo_original>
// kernel: tile.16
$region0: #{tile.16}
  #allocation0 [shape = 's32[1]{0}', space=sflag, size = 0x4, scoped, tag = 'scoped memory for tile.16']
  %s0 = inlined_call_operand.vmem [shape: f32[8], index: 0, kind: input, shape index: {}]
  %s1 = inlined_call_operand.vmem [shape: f32[4,8], index: 1, kind: output, shape index: {}]
  // Predicated region
  $region2: #{tile.16} parent=0 // pred_check
    _
  $region3: #{tile.16} parent=0 // pred_check_branch
    %3 = sbr.rel (0) target = $region5
  $region4: #{tile.16} parent=0 // pred_region
    _
  $region5: #{tile.16} parent=0 // pred_fallthru
    _
  %v4 = vld [vmem:[%s0] ss:$0 sm:$0xff]
  %5 = vst [vmem:[%s1] sm:$0xf] %v4

// kernel: tile.17
$region0: #{tile.17}
  %s0 = inlined_call_operand.vmem [shape: f32[4,8], index: 0, kind: input, shape index: {}]
  %s1 = inlined_call_operand.vmem [shape: f32[1,32], index: 1, kind: output, shape index: {}]
  $region1: #{tile.17} parent=0
    #allocation0 [shape = 'u8[4096]{0}', space=vmem, size = 0x1000, scoped, tag = 'scoped mem for output reshape']
    #allocation1 [shape = 'u8[4096]{0}', space=vmem, size = 0x1000, scoped, tag = 'scoped mem for input reshape']
    %s3 = sshllo.u32 0, 4
    %v4 = vld [vmem:[%s0] sm:%s3]
    %5 = vst [vmem:[#allocation1] sm:%s3] %v4
    %v6 = vld [vmem:[#allocation1] sm:$0x1]
    %vm7 = vcmask 64512
    %8 = vst.msk [vmem:[#allocation0] sm:$0x1] %vm7, %v6
    %s9 = scalar_lea.vmem [#allocation1], 3
    %v10 = vld [vmem:[%s9] sm:$0x1]
    %11 = vrot.lane.b32.xlu0 %v10, 24
    %v12 = vpop.permute.xlu0 %11
    %vm13 = vcmask 261312
    %14 = vst.msk [vmem:[#allocation0] sm:$0x1] %vm13, %v12
    %s15 = scalar_lea.vmem [#allocation1], 2
    %v16 = vld [vmem:[%s15] sm:$0x1]
    %17 = vrot.lane.b32.xlu0 %v16, 16
    %v18 = vpop.permute.xlu0 %17
    %vm19 = vcmask 195712
    %20 = vst.msk [vmem:[#allocation0] sm:$0x1] %vm19, %v18
    %s21 = scalar_lea.vmem [#allocation1], 1
    %v22 = vld [vmem:[%s21] sm:$0x1]
    %23 = vrot.lane.b32.xlu0 %v22, 8
    %v24 = vpop.permute.xlu0 %23
    %vm25 = vcmask 130112
    %26 = vst.msk [vmem:[#allocation0] sm:$0x1] %vm25, %v24
    %s28 = sshllo.u32 0, 1
    %v30 = vld [vmem:[#allocation0] sm:%s28]
    %s31 = sshllo.u32 0, 1
    %32 = vst [vmem:[%s1] sm:%s31] %v30

// kernel: decoder_block_forward.4
$region0: #{decoder_block_forward.4}
  #allocation0 [shape = 'u32[]', space=smem, size = 0x4, offset = 0x4, fixed_abs, tag = 'smem constant byte address 0x4 - core index']
  #allocation1 [shape = 'u32[144,128]{1,0:T(1,128)}', space=vmem, size = 0x12000, scoped, tag = 'internal scratch']
  %s0 = inlined_call_operand.vmem [shape: bf16[2,8,8,8], index: 0, kind: input, shape index: {}]
  %s1 = inlined_call_operand.vmem [shape: bf16[8,32], index: 1, kind: input, shape index: {}]
  %s2 = inlined_call_operand.vmem [shape: f32[1,32], index: 2, kind: input, shape index: {}]
  %s3 = inlined_call_operand.vmem [shape: bf16[2,8,2,8,16], index: 3, kind: output, shape index: {}]
  %s4 = sld [smem:[#allocation0]]
  $region45: #{decoder_block_forward.4} parent=0
    _
  %s6 = ssub.s32 1, %s4
  %s7 = scalar_select 0, %s6, %s4
  loop: start=0, step=1, limit=4
  $region2: #{decoder_block_forward.4} parent=0 // loop_pre_header
    _
  $region3: #{decoder_block_forward.4} parent=0 // loop_header
    %s9 = sphi 0, %s13
    %p10 = scmp.ge.s32.totalorder %s9, 4
    %s19 = sphi 0, %s21
    %s22 = sphi 0, %s19
    %s23 = sphi 0, %s22
    %s39 = sphi 0, %s23
    %s43 = sphi 0, %s43
    %s45 = sphi 0, %s43
    %s46 = sphi 0, %s45
    %s60 = sphi 0, %s46
    %s64 = sphi 0, %s64
    %s66 = sphi 0, %s64
    %s67 = sphi 0, %s66
    %s81 = sphi 0, %s67
    %s87 = sphi 0, %s89
    %s90 = sphi 0, %s87
    %s91 = sphi 0, %s90
    %s107 = sphi 0, %s91
  $region4: #{decoder_block_forward.4} parent=0 // loop_header_branch
    %12 = sbr.rel (%p10) target = $region8
  $region5: #{decoder_block_forward.4} parent=0 // loop_body
    %s14 = ssub.s32 %s9, 1
    %s15 = ssub.s32 %s9, 2
    %s16 = sadd.s32 %s9, 1
    %s17 = ssub.s32 %s9, %s16
    %p18 = scmp.eq.s32.totalorder %s17, 0
    %s20 = sadd.s32 %s19, 1
    %s21 = scalar_select %p18, %s19, %s20
    %p24 = pneg %p18
    %p25 = scmp.eq.s32.totalorder %s9, 1
    %p26 = por %p24, %p25
    %p27 = scmp.ne.s32.totalorder %s19, %s22
    %p28 = scmp.eq.s32.totalorder %s9, 0
    %p29 = por %p27, %p28
    %p30 = scmp.ne.s32.totalorder %s19, %s22
    %p31 = scmp.eq.s32.totalorder %s14, 1
    %p32 = por %p30, %p31
    %p33 = scmp.ne.s32.totalorder %s22, %s23
    %p34 = scmp.eq.s32.totalorder %s14, 0
    %p35 = por %p33, %p34
    %p36 = scmp.ne.s32.totalorder %s22, %s23
    %p37 = scmp.eq.s32.totalorder %s15, 1
    %p38 = por %p36, %p37
    %p40 = scmp.ne.s32.totalorder %s23, %s39
    %p41 = scmp.eq.s32.totalorder %s15, 0
    %p42 = por %p40, %p41
    %s44 = sadd.s32 %s43, 1
    %p47 = scmp.eq.s32.totalorder %s9, 1
    %p48 = scmp.ne.s32.totalorder %s43, %s45
    %p49 = scmp.eq.s32.totalorder %s9, 0
    %p50 = por %p48, %p49
    %p51 = scmp.ne.s32.totalorder %s43, %s45
    %p52 = scmp.eq.s32.totalorder %s14, 1
    %p53 = por %p51, %p52
    %p54 = scmp.ne.s32.totalorder %s45, %s46
    %p55 = scmp.eq.s32.totalorder %s14, 0
    %p56 = por %p54, %p55
    %p57 = scmp.ne.s32.totalorder %s45, %s46
    %p58 = scmp.eq.s32.totalorder %s15, 1
    %p59 = por %p57, %p58
    %p61 = scmp.ne.s32.totalorder %s46, %s60
    %p62 = scmp.eq.s32.totalorder %s15, 0
    %p63 = por %p61, %p62
    %s65 = sadd.s32 %s64, 1
    %p68 = scmp.eq.s32.totalorder %s9, 1
    %p69 = scmp.ne.s32.totalorder %s64, %s66
    %p70 = scmp.eq.s32.totalorder %s9, 0
    %p71 = por %p69, %p70
    %p72 = scmp.ne.s32.totalorder %s64, %s66
    %p73 = scmp.eq.s32.totalorder %s14, 1
    %p74 = por %p72, %p73
    %p75 = scmp.ne.s32.totalorder %s66, %s67
    %p76 = scmp.eq.s32.totalorder %s14, 0
    %p77 = por %p75, %p76
    %p78 = scmp.ne.s32.totalorder %s66, %s67
    %p79 = scmp.eq.s32.totalorder %s15, 1
    %p80 = por %p78, %p79
    %p82 = scmp.ne.s32.totalorder %s67, %s81
    %p83 = scmp.eq.s32.totalorder %s15, 0
    %p84 = por %p82, %p83
    %s85 = ssub.s32 %s9, %s16
    %p86 = scmp.eq.s32.totalorder %s85, 0
    %s88 = sadd.s32 %s87, 1
    %s89 = scalar_select %p86, %s87, %s88
    %p92 = pneg %p86
    %p93 = scmp.eq.s32.totalorder %s9, 1
    %p94 = por %p92, %p93
    %p95 = scmp.ne.s32.totalorder %s87, %s90
    %p96 = scmp.eq.s32.totalorder %s9, 0
    %p97 = por %p95, %p96
    %p98 = scmp.ne.s32.totalorder %s87, %s90
    %p99 = scmp.eq.s32.totalorder %s14, 1
    %p100 = por %p98, %p99
    %p101 = scmp.ne.s32.totalorder %s90, %s91
    %p102 = scmp.eq.s32.totalorder %s14, 0
    %p103 = por %p101, %p102
    %p104 = scmp.ne.s32.totalorder %s90, %s91
    %p105 = scmp.eq.s32.totalorder %s15, 1
    %p106 = por %p104, %p105
    %p108 = scmp.ne.s32.totalorder %s91, %s107
    %p109 = scmp.eq.s32.totalorder %s15, 0
    %p110 = por %p108, %p109
    %p111 = scmp.le.s32.totalorder 1, %s9
    %p112 = scmp.lt.s32.totalorder %s9, 3
    %p113 = pnand %p111, %p112
    %p114 = pneg %p113
    // Predicated region
    $region9: #{decoder_block_forward.4} parent=5 // pred_check
      _
    $region10: #{decoder_block_forward.4} parent=5 // pred_check_branch
      %116 = sbr.rel (%p113) target = $region12
    $region11: #{decoder_block_forward.4} parent=5 // pred_region
      %s117 = ssub.s32 %s9, 1
      // Predicated region
      $region13: #{decoder_block_forward.4} parent=11 // pred_check
        %p118 = pneg %p56
      $region14: #{decoder_block_forward.4} parent=11 // pred_check_branch
        %120 = sbr.rel (%p118) target = $region16
      $region15: #{decoder_block_forward.4} parent=11 // pred_region
        _
      $region16: #{decoder_block_forward.4} parent=11 // pred_fallthru
        _
      // Predicated region
      $region17: #{decoder_block_forward.4} parent=11 // pred_check
        %p121 = pneg %p77
      $region18: #{decoder_block_forward.4} parent=11 // pred_check_branch
        %123 = sbr.rel (%p121) target = $region20
      $region19: #{decoder_block_forward.4} parent=11 // pred_region
        _
      $region20: #{decoder_block_forward.4} parent=11 // pred_fallthru
        _
    $region12: #{decoder_block_forward.4} parent=5 // pred_fallthru
      _
    %p124 = scmp.lt.s32.totalorder %s9, 2
    // Predicated region
    $region21: #{decoder_block_forward.4} parent=5 // pred_check
      %p125 = pneg %p124
    $region22: #{decoder_block_forward.4} parent=5 // pred_check_branch
      %127 = sbr.rel (%p125) target = $region24
    $region23: #{decoder_block_forward.4} parent=5 // pred_region
      // Predicated region
      $region25: #{decoder_block_forward.4} parent=23 // pred_check
        %p128 = pneg %p29
      $region26: #{decoder_block_forward.4} parent=23 // pred_check_branch
        %130 = sbr.rel (%p128) target = $region28
      $region27: #{decoder_block_forward.4} parent=23 // pred_region
        %p131 = scmp.lt.s32.totalorder %s9, 1
        %s132 = scalar_select %p131, %s9, 1
        %s133 = smul.addr %s132, 8
        %s134 = smul.addr %s133, 4
        %s135 = scalar_lea.vmem %s0, %s134
      $region28: #{decoder_block_forward.4} parent=23 // pred_fallthru
        _
    $region24: #{decoder_block_forward.4} parent=5 // pred_fallthru
      _
    %p136 = scmp.le.s32.totalorder 1, %s9
    %p137 = scmp.lt.s32.totalorder %s9, 3
    %p138 = pnand %p136, %p137
    %p139 = pneg %p138
    // Predicated region
    $region29: #{decoder_block_forward.4} parent=5 // pred_check
      _
    $region30: #{decoder_block_forward.4} parent=5 // pred_check_branch
      %141 = sbr.rel (%p138) target = $region32
    $region31: #{decoder_block_forward.4} parent=5 // pred_region
      %s142 = ssub.s32 %s9, 1
      %p143 = scmp.lt.s32.totalorder %s14, 1
      %s144 = scalar_select %p143, %s14, 1
      %s145 = smul.addr %s144, 8
      %s146 = smul.addr %s145, 4
      %s147 = scalar_lea.vmem %s0, %s146
      %p148 = pneg %p35
      %p149 = pneg %p32
      %p150 = pneg %p56
      %p151 = pneg %p53
      %p152 = pneg %p77
      %p153 = pneg %p74
      %p154 = pneg %p103
      %p155 = pneg %p100
      %p156 = scmp.lt.s32.totalorder %s14, 1
      %s157 = scalar_select %p156, %s14, 1
      %s158 = smul.addr %s157, 16
      %s159 = smul.addr %s158, 4
      %s160 = scalar_lea.vmem %s3, %s159
      %p161 = scmp.lt.s32.totalorder %s14, 1
      %s162 = scalar_select %p161, %s14, 1
      %s163 = smul.addr %s162, 8
      %s164 = smul.addr %s163, 4
      %s165 = scalar_lea.vmem %s0, %s164
      %p166 = scmp.lt.s32.totalorder %s14, 1
      %s167 = scalar_select %p166, %s14, 1
      %s168 = smul.addr %s167, 16
      %s169 = smul.addr %s168, 4
      %s170 = scalar_lea.vmem %s3, %s169
      %v172 = vld [vmem:[%s165] sm:$0xf]
      %v173 = vld [vmem:[%s165 + $0x4] sm:$0xf]
      %v174 = vld [vmem:[%s165 + $0x8] sm:$0xf]
      %v175 = vld [vmem:[%s165 + $0xc] sm:$0xf]
      %v176 = vld [vmem:[%s165 + $0x10] sm:$0xf]
      %v177 = vld [vmem:[%s165 + $0x14] sm:$0xf]
      %v178 = vld [vmem:[%s165 + $0x18] sm:$0xf]
      %v179 = vld [vmem:[%s165 + $0x1c] sm:$0xf]
      %v180 = vld [vmem:[%s1] sm:$0xf]
      %v181 = vld [vmem:[%s2] sm:$0x1]
      %v183 = vlaneseq
      %v184 = vshrl.u32 %v183, 7
      %v185 = vsub.s32 0, %v184
      %v186 = vrot.slane %v181, %v185
      %v196 = vunpack.c.l.b16 %v172
      %v197 = vunpack.c.l.b16 %v173
      %v198 = vunpack.c.l.b16 %v174
      %v199 = vunpack.c.l.b16 %v175
      %v200 = vunpack.c.l.b16 %v176
      %v201 = vunpack.c.l.b16 %v177
      %v202 = vunpack.c.l.b16 %v178
      %v203 = vunpack.c.l.b16 %v179
      %v204 = vpack.c.b16 %v197, %v196
      %v205 = vpack.c.b16 %v199, %v198
      %v206 = vpack.c.b16 %v201, %v200
      %v207 = vpack.c.b16 %v203, %v202
      %vm208 = vcmask 64512
      %v210 = vsel %vm208, %v204, 0
      %v213 = vsel %vm208, %v205, 0
      %v216 = vsel %vm208, %v206, 0
      %v219 = vsel %vm208, %v207, 0
      %vm221 = vcmask 1043456
      %v223 = vsel %vm221, %v180, 0
      %225 = vmatprep.subr.bf16.mxu0 0
      %226 = vmatpush1.bf16.msra.mxu0 %v223
      %227 = vmatprep.subr.bf16.mxu0 0
      %228 = vmatpush1.bf16.msra.mxu0 0
      %229 = vmatprep.subr.bf16.mxu0 0
      %230 = vmatpush1.bf16.msra.mxu0 0
      %231 = vmatprep.subr.bf16.mxu0 0
      %232 = vmatpush1.bf16.msra.mxu0 0
      %233 = vmatprep.subr.bf16.mxu0 0
      %234 = vmatpush1.bf16.msra.mxu0 0
      %235 = vmatprep.subr.bf16.mxu0 0
      %236 = vmatpush1.bf16.msra.mxu0 0
      %237 = vmatprep.subr.bf16.mxu0 0
      %238 = vmatpush1.bf16.msra.mxu0 0
      %239 = vmatprep.subr.bf16.mxu0 0
      %240 = vmatpush1.bf16.msra.mxu0 0
      %241 = vmatprep.subr.bf16.mxu0 0
      %242 = vmatpush1.bf16.msra.mxu0 0
      %243 = vmatprep.subr.bf16.mxu0 0
      %244 = vmatpush1.bf16.msra.mxu0 0
      %245 = vmatprep.subr.bf16.mxu0 0
      %246 = vmatpush1.bf16.msra.mxu0 0
      %247 = vmatprep.subr.bf16.mxu0 0
      %248 = vmatpush1.bf16.msra.mxu0 0
      %249 = vmatprep.subr.bf16.mxu0 0
      %250 = vmatpush1.bf16.msra.mxu0 0
      %251 = vmatprep.subr.bf16.mxu0 0
      %252 = vmatpush1.bf16.msra.mxu0 0
      %253 = vmatprep.subr.bf16.mxu0 0
      %254 = vmatpush1.bf16.msra.mxu0 0
      %255 = vmatprep.subr.bf16.mxu0 0
      %256 = vmatpush1.bf16.msra.mxu0 0
      %257 = vmatprep.mubr.bf16.mxu0 0
      %258 = vmatmul.mubr.bf16.gmra.mrb[0].mxu0 %v210
      %v259 = vpop.f32.mrb[0].mxu0
      %v260 = vadd.f32 %v186, %v259
      %v261 = vpop.f32.mrb[0].mxu0
      %v262 = vpop.f32.mrb[0].mxu0
      %v263 = vadd.f32 %v186, %v262
      %v264 = vpop.f32.mrb[0].mxu0
      %265 = vmatprep.mubr.bf16.mxu0 0
      %266 = vmatmul.mubr.bf16.gmra.mrb[0].mxu0 %v213
      %v267 = vpop.f32.mrb[0].mxu0
      %v268 = vadd.f32 %v186, %v267
      %v269 = vpop.f32.mrb[0].mxu0
      %v270 = vpop.f32.mrb[0].mxu0
      %v271 = vadd.f32 %v186, %v270
      %v272 = vpop.f32.mrb[0].mxu0
      %273 = vmatprep.mubr.bf16.mxu0 0
      %274 = vmatmul.mubr.bf16.gmra.mrb[0].mxu0 %v216
      %v275 = vpop.f32.mrb[0].mxu0
      %v276 = vadd.f32 %v186, %v275
      %v277 = vpop.f32.mrb[0].mxu0
      %v278 = vpop.f32.mrb[0].mxu0
      %v279 = vadd.f32 %v186, %v278
      %v280 = vpop.f32.mrb[0].mxu0
      %281 = vmatprep.mubr.bf16.mxu0 0
      %282 = vmatmul.mubr.bf16.gmra.mrb[0].mxu0 %v219
      %v283 = vpop.f32.mrb[0].mxu0
      %v284 = vadd.f32 %v186, %v283
      %v285 = vpop.f32.mrb[0].mxu0
      %v286 = vpop.f32.mrb[0].mxu0
      %v287 = vadd.f32 %v186, %v286
      %v288 = vpop.f32.mrb[0].mxu0
      %289 = vdwg.mxu0
      %v290 = vpack.c.bf16 %v263, %v260
      %v291 = vpack.c.bf16 %v271, %v268
      %v292 = vpack.c.bf16 %v279, %v276
      %v293 = vpack.c.bf16 %v287, %v284
      %v298 = vunpack.c.l.b16 %v290
      %v299 = vunpack.c.h.b16 %v290
      %v300 = vunpack.c.l.b16 %v291
      %v301 = vunpack.c.h.b16 %v291
      %v302 = vunpack.c.l.b16 %v292
      %v303 = vunpack.c.h.b16 %v292
      %v304 = vunpack.c.l.b16 %v293
      %v305 = vunpack.c.h.b16 %v293
      %v306 = vpack.c.b16 %v298, %v298
      %v307 = vpack.c.b16 %v299, %v299
      %v308 = vpack.c.b16 %v300, %v300
      %v309 = vpack.c.b16 %v301, %v301
      %v310 = vpack.c.b16 %v302, %v302
      %v311 = vpack.c.b16 %v303, %v303
      %v312 = vpack.c.b16 %v304, %v304
      %v313 = vpack.c.b16 %v305, %v305
      %vm322 = vcmask 125952
      %323 = vst.msk [vmem:[%s170] sm:$0xf] %vm322, %v306
      %324 = vst.msk [vmem:[%s170 + $0x8] sm:$0xf] %vm322, %v307
      %325 = vst.msk [vmem:[%s170 + $0x10] sm:$0xf] %vm322, %v308
      %326 = vst.msk [vmem:[%s170 + $0x18] sm:$0xf] %vm322, %v309
      %327 = vst.msk [vmem:[%s170 + $0x20] sm:$0xf] %vm322, %v310
      %328 = vst.msk [vmem:[%s170 + $0x28] sm:$0xf] %vm322, %v311
      %329 = vst.msk [vmem:[%s170 + $0x30] sm:$0xf] %vm322, %v312
      %330 = vst.msk [vmem:[%s170 + $0x38] sm:$0xf] %vm322, %v313
      %331 = vrot.lane.b32.xlu0 %v306, 112
      %v332 = vpop.permute.xlu0 %331
      %333 = vrot.lane.b32.xlu0 %v307, 112
      %v334 = vpop.permute.xlu0 %333
      %335 = vrot.lane.b32.xlu0 %v308, 112
      %v336 = vpop.permute.xlu0 %335
      %337 = vrot.lane.b32.xlu0 %v309, 112
      %v338 = vpop.permute.xlu0 %337
      %339 = vrot.lane.b32.xlu0 %v310, 112
      %v340 = vpop.permute.xlu0 %339
      %341 = vrot.lane.b32.xlu0 %v311, 112
      %v342 = vpop.permute.xlu0 %341
      %343 = vrot.lane.b32.xlu0 %v312, 112
      %v344 = vpop.permute.xlu0 %343
      %345 = vrot.lane.b32.xlu0 %v313, 112
      %v346 = vpop.permute.xlu0 %345
      %s355 = scalar_lea.vmem %s170, 4
      %356 = vst.msk [vmem:[%s355] sm:$0xf] %vm322, %v332
      %357 = vst.msk [vmem:[%s355 + $0x8] sm:$0xf] %vm322, %v334
      %358 = vst.msk [vmem:[%s355 + $0x10] sm:$0xf] %vm322, %v336
      %359 = vst.msk [vmem:[%s355 + $0x18] sm:$0xf] %vm322, %v338
      %360 = vst.msk [vmem:[%s355 + $0x20] sm:$0xf] %vm322, %v340
      %361 = vst.msk [vmem:[%s355 + $0x28] sm:$0xf] %vm322, %v342
      %362 = vst.msk [vmem:[%s355 + $0x30] sm:$0xf] %vm322, %v344
      %363 = vst.msk [vmem:[%s355 + $0x38] sm:$0xf] %vm322, %v346
      %p364 = scmp.lt.s32.totalorder %s14, 1
      %s365 = scalar_select %p364, %s14, 1
      %s366 = smul.addr %s365, 16
      %s367 = smul.addr %s366, 4
      %s368 = scalar_lea.vmem %s3, %s367
      // Predicated region
      $region33: #{decoder_block_forward.4} parent=31 // pred_check
        %p369 = pneg %p100
      $region34: #{decoder_block_forward.4} parent=31 // pred_check_branch
        %371 = sbr.rel (%p369) target = $region36
      $region35: #{decoder_block_forward.4} parent=31 // pred_region
        _
      $region36: #{decoder_block_forward.4} parent=31 // pred_fallthru
        _
    $region32: #{decoder_block_forward.4} parent=5 // pred_fallthru
      _
    %p372 = scmp.le.s32.totalorder 2, %s9
    // Predicated region
    $region37: #{decoder_block_forward.4} parent=5 // pred_check
      %p373 = pneg %p372
    $region38: #{decoder_block_forward.4} parent=5 // pred_check_branch
      %375 = sbr.rel (%p373) target = $region40
    $region39: #{decoder_block_forward.4} parent=5 // pred_region
      %s376 = ssub.s32 %s9, 2
      // Predicated region
      $region41: #{decoder_block_forward.4} parent=39 // pred_check
        %p377 = pneg %p106
      $region42: #{decoder_block_forward.4} parent=39 // pred_check_branch
        %379 = sbr.rel (%p377) target = $region44
      $region43: #{decoder_block_forward.4} parent=39 // pred_region
        %p380 = scmp.lt.s32.totalorder %s15, 1
        %s381 = scalar_select %p380, %s15, 1
        %s382 = smul.addr %s381, 16
        %s383 = smul.addr %s382, 4
        %s384 = scalar_lea.vmem %s3, %s383
      $region44: #{decoder_block_forward.4} parent=39 // pred_fallthru
        _
    $region40: #{decoder_block_forward.4} parent=5 // pred_fallthru
      _
  $region6: #{decoder_block_forward.4} parent=0 // loop_footer
    %s13 = sadd.s32 1, %s9
  $region7: #{decoder_block_forward.4} parent=0 // loop_footer_branch
    %8 = sbr.rel target = $region3
  $region8: #{decoder_block_forward.4} parent=0 // loop_exit
    _

// kernel: tile.26
$region0: #{tile.26}
  #allocation0 [shape = 's32[1]{0}', space=sflag, size = 0x4, scoped, tag = 'scoped memory for tile.26']
  %s0 = inlined_call_operand.vmem [shape: f32[16], index: 0, kind: input, shape index: {}]
  %s1 = inlined_call_operand.vmem [shape: f32[128,16], index: 1, kind: output, shape index: {}]
  // Predicated region
  $region2: #{tile.26} parent=0 // pred_check
    _
  $region3: #{tile.26} parent=0 // pred_check_branch
    %3 = sbr.rel (0) target = $region5
  $region4: #{tile.26} parent=0 // pred_region
    _
  $region5: #{tile.26} parent=0 // pred_fallthru
    _
  %v4 = vld [vmem:[%s0] ss:$0 sm:$0xff]
  %5 = vst [vmem:[%s1] sm:$0xff] %v4
  %s6 = scalar_lea.vmem %s1, 8
  %7 = vst [vmem:[%s6] sm:$0xff] %v4
  %s8 = scalar_lea.vmem %s1, 16
  %9 = vst [vmem:[%s8] sm:$0xff] %v4
  %s10 = scalar_lea.vmem %s1, 24
  %11 = vst [vmem:[%s10] sm:$0xff] %v4
  %s12 = scalar_lea.vmem %s1, 32
  %13 = vst [vmem:[%s12] sm:$0xff] %v4
  %s14 = scalar_lea.vmem %s1, 40
  %15 = vst [vmem:[%s14] sm:$0xff] %v4
  %s16 = scalar_lea.vmem %s1, 48
  %17 = vst [vmem:[%s16] sm:$0xff] %v4
  %s18 = scalar_lea.vmem %s1, 56
  %19 = vst [vmem:[%s18] sm:$0xff] %v4
  %s20 = scalar_lea.vmem %s1, 64
  %21 = vst [vmem:[%s20] sm:$0xff] %v4
  %s22 = scalar_lea.vmem %s1, 72
  %23 = vst [vmem:[%s22] sm:$0xff] %v4
  %s24 = scalar_lea.vmem %s1, 80
  %25 = vst [vmem:[%s24] sm:$0xff] %v4
  %s26 = scalar_lea.vmem %s1, 88
  %27 = vst [vmem:[%s26] sm:$0xff] %v4
  %s28 = scalar_lea.vmem %s1, 96
  %29 = vst [vmem:[%s28] sm:$0xff] %v4
  %s30 = scalar_lea.vmem %s1, 104
  %31 = vst [vmem:[%s30] sm:$0xff] %v4
  %s32 = scalar_lea.vmem %s1, 112
  %33 = vst [vmem:[%s32] sm:$0xff] %v4
  %s34 = scalar_lea.vmem %s1, 120
  %35 = vst [vmem:[%s34] sm:$0xff] %v4

// kernel: tile.27
$region0: #{tile.27}
  %s0 = inlined_call_operand.vmem [shape: f32[128,16], index: 0, kind: input, shape index: {}]
  %s1 = inlined_call_operand.vmem [shape: f32[1,2048], index: 1, kind: output, shape index: {}]
  $region1: #{tile.27} parent=0
    #allocation0 [shape = 'u8[65536]{0}', space=vmem, size = 0x10000, scoped, tag = 'scoped mem for output reshape']
    %v2 = vld [vmem:[%s0] ss:$8 sm:$0xf]
    %v3 = vld [vmem:[%s0] ss:$8 sm:$0xf0]
    %vm4 = vcmask 1047556
    %v5 = vsel %vm4, %v3, %v2
    %vm6 = vcmask 130048
    %7 = vst.msk [vmem:[#allocation0] ss:$8 sm:$0xf] %vm6, %v5
    %8 = vst.msk [vmem:[#allocation0] ss:$8 sm:$0xf0] %vm6, %v5
    %s9 = scalar_lea.vmem %s0, 64
    %v10 = vld [vmem:[%s9] ss:$8 sm:$0xf]
    %s11 = scalar_lea.vmem %s0, 64
    %v12 = vld [vmem:[%s11] ss:$8 sm:$0xf0]
    %vm13 = vcmask 1047556
    %v14 = vsel %vm13, %v12, %v10
    %vm15 = vcmask 130048
    %s16 = scalar_lea.vmem [#allocation0], 64
    %17 = vst.msk [vmem:[%s16] ss:$8 sm:$0xf] %vm15, %v14
    %s18 = scalar_lea.vmem [#allocation0], 64
    %19 = vst.msk [vmem:[%s18] ss:$8 sm:$0xf0] %vm15, %v14
    %s20 = scalar_lea.vmem %s0, 7
    %v21 = vld [vmem:[%s20] ss:$8 sm:$0xf]
    %s22 = scalar_lea.vmem %s0, 7
    %v23 = vld [vmem:[%s22] ss:$8 sm:$0xf0]
    %vm24 = vcmask 1047556
    %v25 = vsel %vm24, %v23, %v21
    %26 = vrot.lane.b32.xlu0 %v25, 112
    %v27 = vpop.permute.xlu0 %26
    %vm28 = vcmask 1048448
    %29 = vst.msk [vmem:[#allocation0] ss:$8 sm:$0xf] %vm28, %v27
    %30 = vst.msk [vmem:[#allocation0] ss:$8 sm:$0xf0] %vm28, %v27
    %s31 = scalar_lea.vmem %s0, 71
    %v32 = vld [vmem:[%s31] ss:$8 sm:$0xf]
    %s33 = scalar_lea.vmem %s0, 71
    %v34 = vld [vmem:[%s33] ss:$8 sm:$0xf0]
    %vm35 = vcmask 1047556
    %v36 = vsel %vm35, %v34, %v32
    %37 = vrot.lane.b32.xlu0 %v36, 112
    %v38 = vpop.permute.xlu0 %37
    %vm39 = vcmask 1048448
    %s40 = scalar_lea.vmem [#allocation0], 64
    %41 = vst.msk [vmem:[%s40] ss:$8 sm:$0xf] %vm39, %v38
    %s42 = scalar_lea.vmem [#allocation0], 64
    %43 = vst.msk [vmem:[%s42] ss:$8 sm:$0xf0] %vm39, %v38
    %s44 = scalar_lea.vmem %s0, 6
    %v45 = vld [vmem:[%s44] ss:$8 sm:$0xf]
    %s46 = scalar_lea.vmem %s0, 6
    %v47 = vld [vmem:[%s46] ss:$8 sm:$0xf0]
    %vm48 = vcmask 1047556
    %v49 = vsel %vm48, %v47, %v45
    %50 = vrot.lane.b32.xlu0 %v49, 96
    %v51 = vpop.permute.xlu0 %50
    %vm52 = vcmask 917248
    %53 = vst.msk [vmem:[#allocation0] ss:$8 sm:$0xf] %vm52, %v51
    %54 = vst.msk [vmem:[#allocation0] ss:$8 sm:$0xf0] %vm52, %v51
    %s55 = scalar_lea.vmem %s0, 70
    %v56 = vld [vmem:[%s55] ss:$8 sm:$0xf]
    %s57 = scalar_lea.vmem %s0, 70
    %v58 = vld [vmem:[%s57] ss:$8 sm:$0xf0]
    %vm59 = vcmask 1047556
    %v60 = vsel %vm59, %v58, %v56
    %61 = vrot.lane.b32.xlu0 %v60, 96
    %v62 = vpop.permute.xlu0 %61
    %vm63 = vcmask 917248
    %s64 = scalar_lea.vmem [#allocation0], 64
    %65 = vst.msk [vmem:[%s64] ss:$8 sm:$0xf] %vm63, %v62
    %s66 = scalar_lea.vmem [#allocation0], 64
    %67 = vst.msk [vmem:[%s66] ss:$8 sm:$0xf0] %vm63, %v62
    %s68 = scalar_lea.vmem %s0, 5
    %v69 = vld [vmem:[%s68] ss:$8 sm:$0xf]
    %s70 = scalar_lea.vmem %s0, 5
    %v71 = vld [vmem:[%s70] ss:$8 sm:$0xf0]
    %vm72 = vcmask 1047556
    %v73 = vsel %vm72, %v71, %v69
    %74 = vrot.lane.b32.xlu0 %v73, 80
    %v75 = vpop.permute.xlu0 %74
    %vm76 = vcmask 786048
    %77 = vst.msk [vmem:[#allocation0] ss:$8 sm:$0xf] %vm76, %v75
    %78 = vst.msk [vmem:[#allocation0] ss:$8 sm:$0xf0] %vm76, %v75
    %s79 = scalar_lea.vmem %s0, 69
    %v80 = vld [vmem:[%s79] ss:$8 sm:$0xf]
    %s81 = scalar_lea.vmem %s0, 69
    %v82 = vld [vmem:[%s81] ss:$8 sm:$0xf0]
    %vm83 = vcmask 1047556
    %v84 = vsel %vm83, %v82, %v80
    %85 = vrot.lane.b32.xlu0 %v84, 80
    %v86 = vpop.permute.xlu0 %85
    %vm87 = vcmask 786048
    %s88 = scalar_lea.vmem [#allocation0], 64
    %89 = vst.msk [vmem:[%s88] ss:$8 sm:$0xf] %vm87, %v86
    %s90 = scalar_lea.vmem [#allocation0], 64
    %91 = vst.msk [vmem:[%s90] ss:$8 sm:$0xf0] %vm87, %v86
    %s92 = scalar_lea.vmem %s0, 4
    %v93 = vld [vmem:[%s92] ss:$8 sm:$0xf]
    %s94 = scalar_lea.vmem %s0, 4
    %v95 = vld [vmem:[%s94] ss:$8 sm:$0xf0]
    %vm96 = vcmask 1047556
    %v97 = vsel %vm96, %v95, %v93
    %98 = vrot.lane.b32.xlu0 %v97, 64
    %v99 = vpop.permute.xlu0 %98
    %vm100 = vcmask 654848
    %101 = vst.msk [vmem:[#allocation0] ss:$8 sm:$0xf] %vm100, %v99
    %102 = vst.msk [vmem:[#allocation0] ss:$8 sm:$0xf0] %vm100, %v99
    %s103 = scalar_lea.vmem %s0, 68
    %v104 = vld [vmem:[%s103] ss:$8 sm:$0xf]
    %s105 = scalar_lea.vmem %s0, 68
    %v106 = vld [vmem:[%s105] ss:$8 sm:$0xf0]
    %vm107 = vcmask 1047556
    %v108 = vsel %vm107, %v106, %v104
    %109 = vrot.lane.b32.xlu0 %v108, 64
    %v110 = vpop.permute.xlu0 %109
    %vm111 = vcmask 654848
    %s112 = scalar_lea.vmem [#allocation0], 64
    %113 = vst.msk [vmem:[%s112] ss:$8 sm:$0xf] %vm111, %v110
    %s114 = scalar_lea.vmem [#allocation0], 64
    %115 = vst.msk [vmem:[%s114] ss:$8 sm:$0xf0] %vm111, %v110
    %s116 = scalar_lea.vmem %s0, 3
    %v117 = vld [vmem:[%s116] ss:$8 sm:$0xf]
    %s118 = scalar_lea.vmem %s0, 3
    %v119 = vld [vmem:[%s118] ss:$8 sm:$0xf0]
    %vm120 = vcmask 1047556
    %v121 = vsel %vm120, %v119, %v117
    %122 = vrot.lane.b32.xlu0 %v121, 48
    %v123 = vpop.permute.xlu0 %122
    %vm124 = vcmask 523648
    %125 = vst.msk [vmem:[#allocation0] ss:$8 sm:$0xf] %vm124, %v123
    %126 = vst.msk [vmem:[#allocation0] ss:$8 sm:$0xf0] %vm124, %v123
    %s127 = scalar_lea.vmem %s0, 67
    %v128 = vld [vmem:[%s127] ss:$8 sm:$0xf]
    %s129 = scalar_lea.vmem %s0, 67
    %v130 = vld [vmem:[%s129] ss:$8 sm:$0xf0]
    %vm131 = vcmask 1047556
    %v132 = vsel %vm131, %v130, %v128
    %133 = vrot.lane.b32.xlu0 %v132, 48
    %v134 = vpop.permute.xlu0 %133
    %vm135 = vcmask 523648
    %s136 = scalar_lea.vmem [#allocation0], 64
    %137 = vst.msk [vmem:[%s136] ss:$8 sm:$0xf] %vm135, %v134
    %s138 = scalar_lea.vmem [#allocation0], 64
    %139 = vst.msk [vmem:[%s138] ss:$8 sm:$0xf0] %vm135, %v134
    %s140 = scalar_lea.vmem %s0, 2
    %v141 = vld [vmem:[%s140] ss:$8 sm:$0xf]
    %s142 = scalar_lea.vmem %s0, 2
    %v143 = vld [vmem:[%s142] ss:$8 sm:$0xf0]
    %vm144 = vcmask 1047556
    %v145 = vsel %vm144, %v143, %v141
    %146 = vrot.lane.b32.xlu0 %v145, 32
    %v147 = vpop.permute.xlu0 %146
    %vm148 = vcmask 392448
    %149 = vst.msk [vmem:[#allocation0] ss:$8 sm:$0xf] %vm148, %v147
    %150 = vst.msk [vmem:[#allocation0] ss:$8 sm:$0xf0] %vm148, %v147
    %s151 = scalar_lea.vmem %s0, 66
    %v152 = vld [vmem:[%s151] ss:$8 sm:$0xf]
    %s153 = scalar_lea.vmem %s0, 66
    %v154 = vld [vmem:[%s153] ss:$8 sm:$0xf0]
    %vm155 = vcmask 1047556
    %v156 = vsel %vm155, %v154, %v152
    %157 = vrot.lane.b32.xlu0 %v156, 32
    %v158 = vpop.permute.xlu0 %157
    %vm159 = vcmask 392448
    %s160 = scalar_lea.vmem [#allocation0], 64
    %161 = vst.msk [vmem:[%s160] ss:$8 sm:$0xf] %vm159, %v158
    %s162 = scalar_lea.vmem [#allocation0], 64
    %163 = vst.msk [vmem:[%s162] ss:$8 sm:$0xf0] %vm159, %v158
    %s164 = scalar_lea.vmem %s0, 1
    %v165 = vld [vmem:[%s164] ss:$8 sm:$0xf]
    %s166 = scalar_lea.vmem %s0, 1
    %v167 = vld [vmem:[%s166] ss:$8 sm:$0xf0]
    %vm168 = vcmask 1047556
    %v169 = vsel %vm168, %v167, %v165
    %170 = vrot.lane.b32.xlu0 %v169, 16
    %v171 = vpop.permute.xlu0 %170
    %vm172 = vcmask 261248
    %173 = vst.msk [vmem:[#allocation0] ss:$8 sm:$0xf] %vm172, %v171
    %174 = vst.msk [vmem:[#allocation0] ss:$8 sm:$0xf0] %vm172, %v171
    %s175 = scalar_lea.vmem %s0, 65
    %v176 = vld [vmem:[%s175] ss:$8 sm:$0xf]
    %s177 = scalar_lea.vmem %s0, 65
    %v178 = vld [vmem:[%s177] ss:$8 sm:$0xf0]
    %vm179 = vcmask 1047556
    %v180 = vsel %vm179, %v178, %v176
    %181 = vrot.lane.b32.xlu0 %v180, 16
    %v182 = vpop.permute.xlu0 %181
    %vm183 = vcmask 261248
    %s184 = scalar_lea.vmem [#allocation0], 64
    %185 = vst.msk [vmem:[%s184] ss:$8 sm:$0xf] %vm183, %v182
    %s186 = scalar_lea.vmem [#allocation0], 64
    %187 = vst.msk [vmem:[%s186] ss:$8 sm:$0xf0] %vm183, %v182
    %s189 = sshllo.u32 0, 1
    %v191 = vld [vmem:[#allocation0] sm:%s189]
    %s192 = sshllo.u32 0, 1
    %193 = vst [vmem:[%s1] sm:%s192] %v191
    %s194 = scalar_lea.vmem [#allocation0], 8
    %v195 = vld [vmem:[%s194] sm:%s189]
    %s196 = sshllo.u32 0, 1
    %s197 = scalar_lea.vmem %s1, 1
    %198 = vst [vmem:[%s197] sm:%s196] %v195
    %s199 = scalar_lea.vmem [#allocation0], 16
    %v200 = vld [vmem:[%s199] sm:%s189]
    %s201 = sshllo.u32 0, 1
    %s202 = smul.addr 1, 2
    %s203 = scalar_lea.vmem %s1, %s202
    %204 = vst [vmem:[%s203] sm:%s201] %v200
    %s205 = scalar_lea.vmem [#allocation0], 24
    %v206 = vld [vmem:[%s205] sm:%s189]
    %s207 = sshllo.u32 0, 1
    %s208 = smul.addr 1, 3
    %s209 = scalar_lea.vmem %s1, %s208
    %210 = vst [vmem:[%s209] sm:%s207] %v206
    %s211 = scalar_lea.vmem [#allocation0], 32
    %v212 = vld [vmem:[%s211] sm:%s189]
    %s213 = sshllo.u32 0, 1
    %s214 = smul.addr 1, 4
    %s215 = scalar_lea.vmem %s1, %s214
    %216 = vst [vmem:[%s215] sm:%s213] %v212
    %s217 = scalar_lea.vmem [#allocation0], 40
    %v218 = vld [vmem:[%s217] sm:%s189]
    %s219 = sshllo.u32 0, 1
    %s220 = smul.addr 1, 5
    %s221 = scalar_lea.vmem %s1, %s220
    %222 = vst [vmem:[%s221] sm:%s219] %v218
    %s223 = scalar_lea.vmem [#allocation0], 48
    %v224 = vld [vmem:[%s223] sm:%s189]
    %s225 = sshllo.u32 0, 1
    %s226 = smul.addr 1, 6
    %s227 = scalar_lea.vmem %s1, %s226
    %228 = vst [vmem:[%s227] sm:%s225] %v224
    %s229 = scalar_lea.vmem [#allocation0], 56
    %v230 = vld [vmem:[%s229] sm:%s189]
    %s231 = sshllo.u32 0, 1
    %s232 = smul.addr 1, 7
    %s233 = scalar_lea.vmem %s1, %s232
    %234 = vst [vmem:[%s233] sm:%s231] %v230
    %s235 = scalar_lea.vmem [#allocation0], 64
    %v236 = vld [vmem:[%s235] sm:%s189]
    %s237 = sshllo.u32 0, 1
    %s238 = smul.addr 1, 8
    %s239 = scalar_lea.vmem %s1, %s238
    %240 = vst [vmem:[%s239] sm:%s237] %v236
    %s241 = scalar_lea.vmem [#allocation0], 72
    %v242 = vld [vmem:[%s241] sm:%s189]
    %s243 = sshllo.u32 0, 1
    %s244 = smul.addr 1, 9
    %s245 = scalar_lea.vmem %s1, %s244
    %246 = vst [vmem:[%s245] sm:%s243] %v242
    %s247 = scalar_lea.vmem [#allocation0], 80
    %v248 = vld [vmem:[%s247] sm:%s189]
    %s249 = sshllo.u32 0, 1
    %s250 = smul.addr 1, 10
    %s251 = scalar_lea.vmem %s1, %s250
    %252 = vst [vmem:[%s251] sm:%s249] %v248
    %s253 = scalar_lea.vmem [#allocation0], 88
    %v254 = vld [vmem:[%s253] sm:%s189]
    %s255 = sshllo.u32 0, 1
    %s256 = smul.addr 1, 11
    %s257 = scalar_lea.vmem %s1, %s256
    %258 = vst [vmem:[%s257] sm:%s255] %v254
    %s259 = scalar_lea.vmem [#allocation0], 96
    %v260 = vld [vmem:[%s259] sm:%s189]
    %s261 = sshllo.u32 0, 1
    %s262 = smul.addr 1, 12
    %s263 = scalar_lea.vmem %s1, %s262
    %264 = vst [vmem:[%s263] sm:%s261] %v260
    %s265 = scalar_lea.vmem [#allocation0], 104
    %v266 = vld [vmem:[%s265] sm:%s189]
    %s267 = sshllo.u32 0, 1
    %s268 = smul.addr 1, 13
    %s269 = scalar_lea.vmem %s1, %s268
    %270 = vst [vmem:[%s269] sm:%s267] %v266
    %s271 = scalar_lea.vmem [#allocation0], 112
    %v272 = vld [vmem:[%s271] sm:%s189]
    %s273 = sshllo.u32 0, 1
    %s274 = smul.addr 1, 14
    %s275 = scalar_lea.vmem %s1, %s274
    %276 = vst [vmem:[%s275] sm:%s273] %v272
    %s277 = scalar_lea.vmem [#allocation0], 120
    %v278 = vld [vmem:[%s277] sm:%s189]
    %s279 = sshllo.u32 0, 1
    %s280 = smul.addr 1, 15
    %s281 = scalar_lea.vmem %s1, %s280
    %282 = vst [vmem:[%s281] sm:%s279] %v278

// kernel: decoder_block_forward.7
$region0: #{decoder_block_forward.7}
  #allocation0 [shape = 'u32[]', space=smem, size = 0x4, offset = 0x4, fixed_abs, tag = 'smem constant byte address 0x4 - core index']
  #allocation1 [shape = 'u32[144,128]{1,0:T(1,128)}', space=vmem, size = 0x12000, scoped, tag = 'internal scratch']
  %s0 = inlined_call_operand.vmem [shape: f32[4,2048], index: 0, kind: input, shape index: {}]
  %s1 = inlined_call_operand.vmem [shape: f32[1,2048], index: 1, kind: input, shape index: {}]
  %s2 = inlined_call_operand.vmem [shape: f32[1,2048], index: 2, kind: input, shape index: {}]
  %s3 = inlined_call_operand.vmem [shape: f32[4,2048], index: 3, kind: output, shape index: {}]
  %s4 = sld [smem:[#allocation0]]
  $region22: #{decoder_block_forward.7} parent=0
    _
  %s6 = ssub.s32 1, %s4
  %s7 = scalar_select 0, %s6, %s4
  // Predicated region
  $region2: #{decoder_block_forward.7} parent=0 // pred_check
    _
  $region3: #{decoder_block_forward.7} parent=0 // pred_check_branch
    %9 = sbr.rel (0) target = $region5
  $region4: #{decoder_block_forward.7} parent=0 // pred_region
    _
  $region5: #{decoder_block_forward.7} parent=0 // pred_fallthru
    _
  // Predicated region
  $region6: #{decoder_block_forward.7} parent=0 // pred_check
    _
  $region7: #{decoder_block_forward.7} parent=0 // pred_check_branch
    %11 = sbr.rel (0) target = $region9
  $region8: #{decoder_block_forward.7} parent=0 // pred_region
    _
  $region9: #{decoder_block_forward.7} parent=0 // pred_fallthru
    _
  // Predicated region
  $region10: #{decoder_block_forward.7} parent=0 // pred_check
    _
  $region11: #{decoder_block_forward.7} parent=0 // pred_check_branch
    %13 = sbr.rel (0) target = $region13
  $region12: #{decoder_block_forward.7} parent=0 // pred_region
    _
  $region13: #{decoder_block_forward.7} parent=0 // pred_fallthru
    _
  %v14 = vld [vmem:[%s0] sm:$0xff]
  %v15 = vld [vmem:[%s0 + $0x8] sm:$0xff]
  %v16 = vld [vmem:[%s0 + $0x10] sm:$0xff]
  %v17 = vld [vmem:[%s0 + $0x18] sm:$0xff]
  %v18 = vld [vmem:[%s0 + $0x20] sm:$0xff]
  %v19 = vld [vmem:[%s0 + $0x28] sm:$0xff]
  %v20 = vld [vmem:[%s0 + $0x30] sm:$0xff]
  %v21 = vld [vmem:[%s0 + $0x38] sm:$0xff]
  %v22 = vld [vmem:[%s1] sm:$0xff]
  %v23 = vld [vmem:[%s1 + $0x8] sm:$0xff]
  %v26 = vlaneseq
  %v27 = vshrl.u32 %v26, 7
  %v28 = vsub.s32 0, %v27
  %v29 = vrot.slane %v22, %v28
  %v30 = vlaneseq
  %v31 = vshrl.u32 %v30, 7
  %v32 = vsub.s32 1, %v31
  %v33 = vrot.slane %v22, %v32
  %v34 = vlaneseq
  %v35 = vshrl.u32 %v34, 7
  %v36 = vsub.s32 2, %v35
  %v37 = vrot.slane %v22, %v36
  %v38 = vlaneseq
  %v39 = vshrl.u32 %v38, 7
  %v40 = vsub.s32 3, %v39
  %v41 = vrot.slane %v22, %v40
  %v42 = vlaneseq
  %v43 = vshrl.u32 %v42, 7
  %v44 = vsub.s32 4, %v43
  %v45 = vrot.slane %v22, %v44
  %v46 = vlaneseq
  %v47 = vshrl.u32 %v46, 7
  %v48 = vsub.s32 5, %v47
  %v49 = vrot.slane %v22, %v48
  %v50 = vlaneseq
  %v51 = vshrl.u32 %v50, 7
  %v52 = vsub.s32 6, %v51
  %v53 = vrot.slane %v22, %v52
  %v54 = vlaneseq
  %v55 = vshrl.u32 %v54, 7
  %v56 = vsub.s32 7, %v55
  %v57 = vrot.slane %v22, %v56
  %v58 = vlaneseq
  %v59 = vshrl.u32 %v58, 7
  %v60 = vsub.s32 0, %v59
  %v61 = vrot.slane %v23, %v60
  %v62 = vlaneseq
  %v63 = vshrl.u32 %v62, 7
  %v64 = vsub.s32 1, %v63
  %v65 = vrot.slane %v23, %v64
  %v66 = vlaneseq
  %v67 = vshrl.u32 %v66, 7
  %v68 = vsub.s32 2, %v67
  %v69 = vrot.slane %v23, %v68
  %v70 = vlaneseq
  %v71 = vshrl.u32 %v70, 7
  %v72 = vsub.s32 3, %v71
  %v73 = vrot.slane %v23, %v72
  %v74 = vlaneseq
  %v75 = vshrl.u32 %v74, 7
  %v76 = vsub.s32 4, %v75
  %v77 = vrot.slane %v23, %v76
  %v78 = vlaneseq
  %v79 = vshrl.u32 %v78, 7
  %v80 = vsub.s32 5, %v79
  %v81 = vrot.slane %v23, %v80
  %v82 = vlaneseq
  %v83 = vshrl.u32 %v82, 7
  %v84 = vsub.s32 6, %v83
  %v85 = vrot.slane %v23, %v84
  %v86 = vlaneseq
  %v87 = vshrl.u32 %v86, 7
  %v88 = vsub.s32 7, %v87
  %v89 = vrot.slane %v23, %v88
  %v90 = vcombine.low %v29, %v33
  %v91 = vcombine.low %v37, %v41
  %v92 = vcombine.low %v45, %v49
  %v93 = vcombine.low %v53, %v57
  %v94 = vcombine.low %v61, %v65
  %v95 = vcombine.low %v69, %v73
  %v96 = vcombine.low %v77, %v81
  %v97 = vcombine.low %v85, %v89
  %v106 = vmul.f32 %v14, %v90
  %v107 = vmul.f32 %v15, %v91
  %v108 = vmul.f32 %v16, %v92
  %v109 = vmul.f32 %v17, %v93
  %v110 = vmul.f32 %v18, %v94
  %v111 = vmul.f32 %v19, %v95
  %v112 = vmul.f32 %v20, %v96
  %v113 = vmul.f32 %v21, %v97
  %v114 = vld [vmem:[%s2] sm:$0xff]
  %v115 = vld [vmem:[%s2 + $0x8] sm:$0xff]
  %v118 = vlaneseq
  %v119 = vshrl.u32 %v118, 7
  %v120 = vsub.s32 0, %v119
  %v121 = vrot.slane %v114, %v120
  %v122 = vlaneseq
  %v123 = vshrl.u32 %v122, 7
  %v124 = vsub.s32 1, %v123
  %v125 = vrot.slane %v114, %v124
  %v126 = vlaneseq
  %v127 = vshrl.u32 %v126, 7
  %v128 = vsub.s32 2, %v127
  %v129 = vrot.slane %v114, %v128
  %v130 = vlaneseq
  %v131 = vshrl.u32 %v130, 7
  %v132 = vsub.s32 3, %v131
  %v133 = vrot.slane %v114, %v132
  %v134 = vlaneseq
  %v135 = vshrl.u32 %v134, 7
  %v136 = vsub.s32 4, %v135
  %v137 = vrot.slane %v114, %v136
  %v138 = vlaneseq
  %v139 = vshrl.u32 %v138, 7
  %v140 = vsub.s32 5, %v139
  %v141 = vrot.slane %v114, %v140
  %v142 = vlaneseq
  %v143 = vshrl.u32 %v142, 7
  %v144 = vsub.s32 6, %v143
  %v145 = vrot.slane %v114, %v144
  %v146 = vlaneseq
  %v147 = vshrl.u32 %v146, 7
  %v148 = vsub.s32 7, %v147
  %v149 = vrot.slane %v114, %v148
  %v150 = vlaneseq
  %v151 = vshrl.u32 %v150, 7
  %v152 = vsub.s32 0, %v151
  %v153 = vrot.slane %v115, %v152
  %v154 = vlaneseq
  %v155 = vshrl.u32 %v154, 7
  %v156 = vsub.s32 1, %v155
  %v157 = vrot.slane %v115, %v156
  %v158 = vlaneseq
  %v159 = vshrl.u32 %v158, 7
  %v160 = vsub.s32 2, %v159
  %v161 = vrot.slane %v115, %v160
  %v162 = vlaneseq
  %v163 = vshrl.u32 %v162, 7
  %v164 = vsub.s32 3, %v163
  %v165 = vrot.slane %v115, %v164
  %v166 = vlaneseq
  %v167 = vshrl.u32 %v166, 7
  %v168 = vsub.s32 4, %v167
  %v169 = vrot.slane %v115, %v168
  %v170 = vlaneseq
  %v171 = vshrl.u32 %v170, 7
  %v172 = vsub.s32 5, %v171
  %v173 = vrot.slane %v115, %v172
  %v174 = vlaneseq
  %v175 = vshrl.u32 %v174, 7
  %v176 = vsub.s32 6, %v175
  %v177 = vrot.slane %v115, %v176
  %v178 = vlaneseq
  %v179 = vshrl.u32 %v178, 7
  %v180 = vsub.s32 7, %v179
  %v181 = vrot.slane %v115, %v180
  %v182 = vcombine.low %v121, %v125
  %v183 = vcombine.low %v129, %v133
  %v184 = vcombine.low %v137, %v141
  %v185 = vcombine.low %v145, %v149
  %v186 = vcombine.low %v153, %v157
  %v187 = vcombine.low %v161, %v165
  %v188 = vcombine.low %v169, %v173
  %v189 = vcombine.low %v177, %v181
  %v198 = vadd.f32 %v106, %v182
  %v199 = vadd.f32 %v107, %v183
  %v200 = vadd.f32 %v108, %v184
  %v201 = vadd.f32 %v109, %v185
  %v202 = vadd.f32 %v110, %v186
  %v203 = vadd.f32 %v111, %v187
  %v204 = vadd.f32 %v112, %v188
  %v205 = vadd.f32 %v113, %v189
  %v206 = vmax.f32 %v198, 0.0
  %v207 = vmax.f32 %v199, 0.0
  %v208 = vmax.f32 %v200, 0.0
  %v209 = vmax.f32 %v201, 0.0
  %v210 = vmax.f32 %v202, 0.0
  %v211 = vmax.f32 %v203, 0.0
  %v212 = vmax.f32 %v204, 0.0
  %v213 = vmax.f32 %v205, 0.0
  %214 = vst [vmem:[%s3] sm:$0xff] %v206
  %215 = vst [vmem:[%s3 + $0x8] sm:$0xff] %v207
  %216 = vst [vmem:[%s3 + $0x10] sm:$0xff] %v208
  %217 = vst [vmem:[%s3 + $0x18] sm:$0xff] %v209
  %218 = vst [vmem:[%s3 + $0x20] sm:$0xff] %v210
  %219 = vst [vmem:[%s3 + $0x28] sm:$0xff] %v211
  %220 = vst [vmem:[%s3 + $0x30] sm:$0xff] %v212
  %221 = vst [vmem:[%s3 + $0x38] sm:$0xff] %v213
  // Predicated region
  $region14: #{decoder_block_forward.7} parent=0 // pred_check
    _
  $region15: #{decoder_block_forward.7} parent=0 // pred_check_branch
    %223 = sbr.rel (0) target = $region17
  $region16: #{decoder_block_forward.7} parent=0 // pred_region
    _
  $region17: #{decoder_block_forward.7} parent=0 // pred_fallthru
    _
  // Predicated region
  $region18: #{decoder_block_forward.7} parent=0 // pred_check
    _
  $region19: #{decoder_block_forward.7} parent=0 // pred_check_branch
    %225 = sbr.rel (0) target = $region21
  $region20: #{decoder_block_forward.7} parent=0 // pred_region
    _
  $region21: #{decoder_block_forward.7} parent=0 // pred_fallthru
    _

// kernel: decoder_block_forward.6
$region0: #{decoder_block_forward.6}
  #allocation0 [shape = 'u32[]', space=smem, size = 0x4, offset = 0x4, fixed_abs, tag = 'smem constant byte address 0x4 - core index']
  #allocation1 [shape = 'u32[144,128]{1,0:T(1,128)}', space=vmem, size = 0x12000, scoped, tag = 'internal scratch']
  #allocation2 [shape = 'bf16[18,18,16]{2,1,0:T(8,128)(2,1)}', space=vmem, size = 0x1b000, scoped, tag = 'scratch operand']
  %s0 = inlined_call_operand.vmem [shape: bf16[2,256,16], index: 0, kind: input, shape index: {}]
  %s1 = inlined_call_operand.vmem [shape: f32[1,16], index: 1, kind: input, shape index: {}]
  %s2 = inlined_call_operand.vmem [shape: f32[1,16], index: 2, kind: input, shape index: {}]
  %s3 = inlined_call_operand.vmem [shape: bf16[144,16], index: 3, kind: input, shape index: {}]
  %s4 = inlined_call_operand.vmem [shape: f32[1,16], index: 4, kind: input, shape index: {}]
  %s5 = inlined_call_operand.vmem [shape: f32[2,256,16], index: 5, kind: output, shape index: {0}]
  %s6 = inlined_call_operand.vmem [shape: f32[2,1,16], index: 6, kind: output, shape index: {1}]
  %s7 = inlined_call_operand.vmem [shape: f32[2,1,16], index: 7, kind: output, shape index: {2}]
  %8 = xla_tuple %s5, %s6, %s7
  %s9 = sld [smem:[#allocation0]]
  $region69: #{decoder_block_forward.6} parent=0
    _
  %s11 = ssub.s32 1, %s9
  %s12 = scalar_select 0, %s11, %s9
  loop: start=0, step=1, limit=4
  $region2: #{decoder_block_forward.6} parent=0 // loop_pre_header
    _
  $region3: #{decoder_block_forward.6} parent=0 // loop_header
    %s14 = sphi 0, %s18
    %p15 = scmp.ge.s32.totalorder %s14, 4
    %s24 = sphi 0, %s26
    %s27 = sphi 0, %s24
    %s28 = sphi 0, %s27
    %s44 = sphi 0, %s28
    %s48 = sphi 0, %s48
    %s50 = sphi 0, %s48
    %s51 = sphi 0, %s50
    %s65 = sphi 0, %s51
    %s69 = sphi 0, %s69
    %s71 = sphi 0, %s69
    %s72 = sphi 0, %s71
    %s86 = sphi 0, %s72
    %s90 = sphi 0, %s90
    %s92 = sphi 0, %s90
    %s93 = sphi 0, %s92
    %s107 = sphi 0, %s93
    %s111 = sphi 0, %s111
    %s113 = sphi 0, %s111
    %s114 = sphi 0, %s113
    %s128 = sphi 0, %s114
    %s134 = sphi 0, %s136
    %s137 = sphi 0, %s134
    %s138 = sphi 0, %s137
    %s154 = sphi 0, %s138
    %s160 = sphi 0, %s162
    %s163 = sphi 0, %s160
    %s164 = sphi 0, %s163
    %s180 = sphi 0, %s164
    %s186 = sphi 0, %s188
    %s189 = sphi 0, %s186
    %s190 = sphi 0, %s189
    %s206 = sphi 0, %s190
  $region4: #{decoder_block_forward.6} parent=0 // loop_header_branch
    %17 = sbr.rel (%p15) target = $region8
  $region5: #{decoder_block_forward.6} parent=0 // loop_body
    %s19 = ssub.s32 %s14, 1
    %s20 = ssub.s32 %s14, 2
    %s21 = sadd.s32 %s14, 1
    %s22 = ssub.s32 %s14, %s21
    %p23 = scmp.eq.s32.totalorder %s22, 0
    %s25 = sadd.s32 %s24, 1
    %s26 = scalar_select %p23, %s24, %s25
    %p29 = pneg %p23
    %p30 = scmp.eq.s32.totalorder %s14, 1
    %p31 = por %p29, %p30
    %p32 = scmp.ne.s32.totalorder %s24, %s27
    %p33 = scmp.eq.s32.totalorder %s14, 0
    %p34 = por %p32, %p33
    %p35 = scmp.ne.s32.totalorder %s24, %s27
    %p36 = scmp.eq.s32.totalorder %s19, 1
    %p37 = por %p35, %p36
    %p38 = scmp.ne.s32.totalorder %s27, %s28
    %p39 = scmp.eq.s32.totalorder %s19, 0
    %p40 = por %p38, %p39
    %p41 = scmp.ne.s32.totalorder %s27, %s28
    %p42 = scmp.eq.s32.totalorder %s20, 1
    %p43 = por %p41, %p42
    %p45 = scmp.ne.s32.totalorder %s28, %s44
    %p46 = scmp.eq.s32.totalorder %s20, 0
    %p47 = por %p45, %p46
    %s49 = sadd.s32 %s48, 1
    %p52 = scmp.eq.s32.totalorder %s14, 1
    %p53 = scmp.ne.s32.totalorder %s48, %s50
    %p54 = scmp.eq.s32.totalorder %s14, 0
    %p55 = por %p53, %p54
    %p56 = scmp.ne.s32.totalorder %s48, %s50
    %p57 = scmp.eq.s32.totalorder %s19, 1
    %p58 = por %p56, %p57
    %p59 = scmp.ne.s32.totalorder %s50, %s51
    %p60 = scmp.eq.s32.totalorder %s19, 0
    %p61 = por %p59, %p60
    %p62 = scmp.ne.s32.totalorder %s50, %s51
    %p63 = scmp.eq.s32.totalorder %s20, 1
    %p64 = por %p62, %p63
    %p66 = scmp.ne.s32.totalorder %s51, %s65
    %p67 = scmp.eq.s32.totalorder %s20, 0
    %p68 = por %p66, %p67
    %s70 = sadd.s32 %s69, 1
    %p73 = scmp.eq.s32.totalorder %s14, 1
    %p74 = scmp.ne.s32.totalorder %s69, %s71
    %p75 = scmp.eq.s32.totalorder %s14, 0
    %p76 = por %p74, %p75
    %p77 = scmp.ne.s32.totalorder %s69, %s71
    %p78 = scmp.eq.s32.totalorder %s19, 1
    %p79 = por %p77, %p78
    %p80 = scmp.ne.s32.totalorder %s71, %s72
    %p81 = scmp.eq.s32.totalorder %s19, 0
    %p82 = por %p80, %p81
    %p83 = scmp.ne.s32.totalorder %s71, %s72
    %p84 = scmp.eq.s32.totalorder %s20, 1
    %p85 = por %p83, %p84
    %p87 = scmp.ne.s32.totalorder %s72, %s86
    %p88 = scmp.eq.s32.totalorder %s20, 0
    %p89 = por %p87, %p88
    %s91 = sadd.s32 %s90, 1
    %p94 = scmp.eq.s32.totalorder %s14, 1
    %p95 = scmp.ne.s32.totalorder %s90, %s92
    %p96 = scmp.eq.s32.totalorder %s14, 0
    %p97 = por %p95, %p96
    %p98 = scmp.ne.s32.totalorder %s90, %s92
    %p99 = scmp.eq.s32.totalorder %s19, 1
    %p100 = por %p98, %p99
    %p101 = scmp.ne.s32.totalorder %s92, %s93
    %p102 = scmp.eq.s32.totalorder %s19, 0
    %p103 = por %p101, %p102
    %p104 = scmp.ne.s32.totalorder %s92, %s93
    %p105 = scmp.eq.s32.totalorder %s20, 1
    %p106 = por %p104, %p105
    %p108 = scmp.ne.s32.totalorder %s93, %s107
    %p109 = scmp.eq.s32.totalorder %s20, 0
    %p110 = por %p108, %p109
    %s112 = sadd.s32 %s111, 1
    %p115 = scmp.eq.s32.totalorder %s14, 1
    %p116 = scmp.ne.s32.totalorder %s111, %s113
    %p117 = scmp.eq.s32.totalorder %s14, 0
    %p118 = por %p116, %p117
    %p119 = scmp.ne.s32.totalorder %s111, %s113
    %p120 = scmp.eq.s32.totalorder %s19, 1
    %p121 = por %p119, %p120
    %p122 = scmp.ne.s32.totalorder %s113, %s114
    %p123 = scmp.eq.s32.totalorder %s19, 0
    %p124 = por %p122, %p123
    %p125 = scmp.ne.s32.totalorder %s113, %s114
    %p126 = scmp.eq.s32.totalorder %s20, 1
    %p127 = por %p125, %p126
    %p129 = scmp.ne.s32.totalorder %s114, %s128
    %p130 = scmp.eq.s32.totalorder %s20, 0
    %p131 = por %p129, %p130
    %s132 = ssub.s32 %s14, %s21
    %p133 = scmp.eq.s32.totalorder %s132, 0
    %s135 = sadd.s32 %s134, 1
    %s136 = scalar_select %p133, %s134, %s135
    %p139 = pneg %p133
    %p140 = scmp.eq.s32.totalorder %s14, 1
    %p141 = por %p139, %p140
    %p142 = scmp.ne.s32.totalorder %s134, %s137
    %p143 = scmp.eq.s32.totalorder %s14, 0
    %p144 = por %p142, %p143
    %p145 = scmp.ne.s32.totalorder %s134, %s137
    %p146 = scmp.eq.s32.totalorder %s19, 1
    %p147 = por %p145, %p146
    %p148 = scmp.ne.s32.totalorder %s137, %s138
    %p149 = scmp.eq.s32.totalorder %s19, 0
    %p150 = por %p148, %p149
    %p151 = scmp.ne.s32.totalorder %s137, %s138
    %p152 = scmp.eq.s32.totalorder %s20, 1
    %p153 = por %p151, %p152
    %p155 = scmp.ne.s32.totalorder %s138, %s154
    %p156 = scmp.eq.s32.totalorder %s20, 0
    %p157 = por %p155, %p156
    %s158 = ssub.s32 %s14, %s21
    %p159 = scmp.eq.s32.totalorder %s158, 0
    %s161 = sadd.s32 %s160, 1
    %s162 = scalar_select %p159, %s160, %s161
    %p165 = pneg %p159
    %p166 = scmp.eq.s32.totalorder %s14, 1
    %p167 = por %p165, %p166
    %p168 = scmp.ne.s32.totalorder %s160, %s163
    %p169 = scmp.eq.s32.totalorder %s14, 0
    %p170 = por %p168, %p169
    %p171 = scmp.ne.s32.totalorder %s160, %s163
    %p172 = scmp.eq.s32.totalorder %s19, 1
    %p173 = por %p171, %p172
    %p174 = scmp.ne.s32.totalorder %s163, %s164
    %p175 = scmp.eq.s32.totalorder %s19, 0
    %p176 = por %p174, %p175
    %p177 = scmp.ne.s32.totalorder %s163, %s164
    %p178 = scmp.eq.s32.totalorder %s20, 1
    %p179 = por %p177, %p178
    %p181 = scmp.ne.s32.totalorder %s164, %s180
    %p182 = scmp.eq.s32.totalorder %s20, 0
    %p183 = por %p181, %p182
    %s184 = ssub.s32 %s14, %s21
    %p185 = scmp.eq.s32.totalorder %s184, 0
    %s187 = sadd.s32 %s186, 1
    %s188 = scalar_select %p185, %s186, %s187
    %p191 = pneg %p185
    %p192 = scmp.eq.s32.totalorder %s14, 1
    %p193 = por %p191, %p192
    %p194 = scmp.ne.s32.totalorder %s186, %s189
    %p195 = scmp.eq.s32.totalorder %s14, 0
    %p196 = por %p194, %p195
    %p197 = scmp.ne.s32.totalorder %s186, %s189
    %p198 = scmp.eq.s32.totalorder %s19, 1
    %p199 = por %p197, %p198
    %p200 = scmp.ne.s32.totalorder %s189, %s190
    %p201 = scmp.eq.s32.totalorder %s19, 0
    %p202 = por %p200, %p201
    %p203 = scmp.ne.s32.totalorder %s189, %s190
    %p204 = scmp.eq.s32.totalorder %s20, 1
    %p205 = por %p203, %p204
    %p207 = scmp.ne.s32.totalorder %s190, %s206
    %p208 = scmp.eq.s32.totalorder %s20, 0
    %p209 = por %p207, %p208
    %p210 = scmp.le.s32.totalorder 1, %s14
    %p211 = scmp.lt.s32.totalorder %s14, 3
    %p212 = pnand %p210, %p211
    %p213 = pneg %p212
    // Predicated region
    $region9: #{decoder_block_forward.6} parent=5 // pred_check
      _
    $region10: #{decoder_block_forward.6} parent=5 // pred_check_branch
      %215 = sbr.rel (%p212) target = $region12
    $region11: #{decoder_block_forward.6} parent=5 // pred_region
      %s216 = ssub.s32 %s14, 1
      // Predicated region
      $region13: #{decoder_block_forward.6} parent=11 // pred_check
        %p217 = pneg %p61
      $region14: #{decoder_block_forward.6} parent=11 // pred_check_branch
        %219 = sbr.rel (%p217) target = $region16
      $region15: #{decoder_block_forward.6} parent=11 // pred_region
        _
      $region16: #{decoder_block_forward.6} parent=11 // pred_fallthru
        _
      // Predicated region
      $region17: #{decoder_block_forward.6} parent=11 // pred_check
        %p220 = pneg %p82
      $region18: #{decoder_block_forward.6} parent=11 // pred_check_branch
        %222 = sbr.rel (%p220) target = $region20
      $region19: #{decoder_block_forward.6} parent=11 // pred_region
        _
      $region20: #{decoder_block_forward.6} parent=11 // pred_fallthru
        _
      // Predicated region
      $region21: #{decoder_block_forward.6} parent=11 // pred_check
        %p223 = pneg %p103
      $region22: #{decoder_block_forward.6} parent=11 // pred_check_branch
        %225 = sbr.rel (%p223) target = $region24
      $region23: #{decoder_block_forward.6} parent=11 // pred_region
        _
      $region24: #{decoder_block_forward.6} parent=11 // pred_fallthru
        _
      // Predicated region
      $region25: #{decoder_block_forward.6} parent=11 // pred_check
        %p226 = pneg %p124
      $region26: #{decoder_block_forward.6} parent=11 // pred_check_branch
        %228 = sbr.rel (%p226) target = $region28
      $region27: #{decoder_block_forward.6} parent=11 // pred_region
        _
      $region28: #{decoder_block_forward.6} parent=11 // pred_fallthru
        _
    $region12: #{decoder_block_forward.6} parent=5 // pred_fallthru
      _
    %p229 = scmp.lt.s32.totalorder %s14, 2
    // Predicated region
    $region29: #{decoder_block_forward.6} parent=5 // pred_check
      %p230 = pneg %p229
    $region30: #{decoder_block_forward.6} parent=5 // pred_check_branch
      %232 = sbr.rel (%p230) target = $region32
    $region31: #{decoder_block_forward.6} parent=5 // pred_region
      // Predicated region
      $region33: #{decoder_block_forward.6} parent=31 // pred_check
        %p233 = pneg %p34
      $region34: #{decoder_block_forward.6} parent=31 // pred_check_branch
        %235 = sbr.rel (%p233) target = $region36
      $region35: #{decoder_block_forward.6} parent=31 // pred_region
        %p236 = scmp.lt.s32.totalorder %s14, 1
        %s237 = scalar_select %p236, %s14, 1
        %s238 = smul.addr %s237, 32
        %s239 = smul.addr %s238, 4
        %s240 = scalar_lea.vmem %s0, %s239
      $region36: #{decoder_block_forward.6} parent=31 // pred_fallthru
        _
    $region32: #{decoder_block_forward.6} parent=5 // pred_fallthru
      _
    %p241 = scmp.le.s32.totalorder 1, %s14
    %p242 = scmp.lt.s32.totalorder %s14, 3
    %p243 = pnand %p241, %p242
    %p244 = pneg %p243
    // Predicated region
    $region37: #{decoder_block_forward.6} parent=5 // pred_check
      _
    $region38: #{decoder_block_forward.6} parent=5 // pred_check_branch
      %246 = sbr.rel (%p243) target = $region40
    $region39: #{decoder_block_forward.6} parent=5 // pred_region
      %s247 = ssub.s32 %s14, 1
      %p248 = scmp.lt.s32.totalorder %s19, 1
      %s249 = scalar_select %p248, %s19, 1
      %s250 = smul.addr %s249, 32
      %s251 = smul.addr %s250, 4
      %s252 = scalar_lea.vmem %s0, %s251
      %p253 = pneg %p40
      %p254 = pneg %p37
      %p255 = pneg %p61
      %p256 = pneg %p58
      %p257 = pneg %p82
      %p258 = pneg %p79
      %p259 = pneg %p103
      %p260 = pneg %p100
      %p261 = pneg %p124
      %p262 = pneg %p121
      %p263 = pneg %p150
      %p264 = pneg %p147
      %p265 = scmp.lt.s32.totalorder %s19, 1
      %s266 = scalar_select %p265, %s19, 1
      %s267 = smul.addr %s266, 32
      %s268 = smul.addr %s267, 8
      %s269 = scalar_lea.vmem %s5, %s268
      %p270 = pneg %p176
      %p271 = pneg %p173
      %p272 = scmp.lt.s32.totalorder %s19, 1
      %s273 = scalar_select %p272, %s19, 1
      %s274 = scalar_lea.vmem %s6, %s273
      %p275 = pneg %p202
      %p276 = pneg %p199
      %p277 = scmp.lt.s32.totalorder %s19, 1
      %s278 = scalar_select %p277, %s19, 1
      %s279 = scalar_lea.vmem %s7, %s278
      %p280 = scmp.lt.s32.totalorder %s19, 1
      %s281 = scalar_select %p280, %s19, 1
      %s282 = smul.addr %s281, 32
      %s283 = smul.addr %s282, 4
      %s284 = scalar_lea.vmem %s0, %s283
      %p285 = scmp.lt.s32.totalorder %s19, 1
      %s286 = scalar_select %p285, %s19, 1
      %s287 = smul.addr %s286, 32
      %s288 = smul.addr %s287, 8
      %s289 = scalar_lea.vmem %s5, %s288
      %p290 = scmp.lt.s32.totalorder %s19, 1
      %s291 = scalar_select %p290, %s19, 1
      %s292 = scalar_lea.vmem %s6, %s291
      %p293 = scmp.lt.s32.totalorder %s19, 1
      %s294 = scalar_select %p293, %s19, 1
      %s295 = scalar_lea.vmem %s7, %s294
      %v297 = vld [vmem:[%s284] sm:$0xf]
      %v298 = vld [vmem:[%s284 + $0x4] sm:$0xf]
      %v299 = vld [vmem:[%s284 + $0x8] sm:$0xf]
      %v300 = vld [vmem:[%s284 + $0xc] sm:$0xf]
      %v301 = vld [vmem:[%s284 + $0x10] sm:$0xf]
      %v302 = vld [vmem:[%s284 + $0x14] sm:$0xf]
      %v303 = vld [vmem:[%s284 + $0x18] sm:$0xf]
      %v304 = vld [vmem:[%s284 + $0x1c] sm:$0xf]
      %v305 = vld [vmem:[%s284 + $0x20] sm:$0xf]
      %v306 = vld [vmem:[%s284 + $0x24] sm:$0xf]
      %v307 = vld [vmem:[%s284 + $0x28] sm:$0xf]
      %v308 = vld [vmem:[%s284 + $0x2c] sm:$0xf]
      %v309 = vld [vmem:[%s284 + $0x30] sm:$0xf]
      %v310 = vld [vmem:[%s284 + $0x34] sm:$0xf]
      %v311 = vld [vmem:[%s284 + $0x38] sm:$0xf]
      %v312 = vld [vmem:[%s284 + $0x3c] sm:$0xf]
      %v313 = vld [vmem:[%s284 + $0x40] sm:$0xf]
      %v314 = vld [vmem:[%s284 + $0x44] sm:$0xf]
      %v315 = vld [vmem:[%s284 + $0x48] sm:$0xf]
      %v316 = vld [vmem:[%s284 + $0x4c] sm:$0xf]
      %v317 = vld [vmem:[%s284 + $0x50] sm:$0xf]
      %v318 = vld [vmem:[%s284 + $0x54] sm:$0xf]
      %v319 = vld [vmem:[%s284 + $0x58] sm:$0xf]
      %v320 = vld [vmem:[%s284 + $0x5c] sm:$0xf]
      %v321 = vld [vmem:[%s284 + $0x60] sm:$0xf]
      %v322 = vld [vmem:[%s284 + $0x64] sm:$0xf]
      %v323 = vld [vmem:[%s284 + $0x68] sm:$0xf]
      %v324 = vld [vmem:[%s284 + $0x6c] sm:$0xf]
      %v325 = vld [vmem:[%s284 + $0x70] sm:$0xf]
      %v326 = vld [vmem:[%s284 + $0x74] sm:$0xf]
      %v327 = vld [vmem:[%s284 + $0x78] sm:$0xf]
      %v328 = vld [vmem:[%s284 + $0x7c] sm:$0xf]
      %v329 = vld [vmem:[%s1] sm:$0x1]
      %v330 = vunpack.c.l.bf16 %v297
      %v331 = vunpack.c.l.bf16 %v298
      %v332 = vunpack.c.l.bf16 %v299
      %v333 = vunpack.c.l.bf16 %v300
      %v334 = vunpack.c.l.bf16 %v301
      %v335 = vunpack.c.l.bf16 %v302
      %v336 = vunpack.c.l.bf16 %v303
      %v337 = vunpack.c.l.bf16 %v304
      %v338 = vunpack.c.l.bf16 %v305
      %v339 = vunpack.c.l.bf16 %v306
      %v340 = vunpack.c.l.bf16 %v307
      %v341 = vunpack.c.l.bf16 %v308
      %v342 = vunpack.c.l.bf16 %v309
      %v343 = vunpack.c.l.bf16 %v310
      %v344 = vunpack.c.l.bf16 %v311
      %v345 = vunpack.c.l.bf16 %v312
      %v346 = vunpack.c.l.bf16 %v313
      %v347 = vunpack.c.l.bf16 %v314
      %v348 = vunpack.c.l.bf16 %v315
      %v349 = vunpack.c.l.bf16 %v316
      %v350 = vunpack.c.l.bf16 %v317
      %v351 = vunpack.c.l.bf16 %v318
      %v352 = vunpack.c.l.bf16 %v319
      %v353 = vunpack.c.l.bf16 %v320
      %v354 = vunpack.c.l.bf16 %v321
      %v355 = vunpack.c.l.bf16 %v322
      %v356 = vunpack.c.l.bf16 %v323
      %v357 = vunpack.c.l.bf16 %v324
      %v358 = vunpack.c.l.bf16 %v325
      %v359 = vunpack.c.l.bf16 %v326
      %v360 = vunpack.c.l.bf16 %v327
      %v361 = vunpack.c.l.bf16 %v328
      %v363 = vlaneseq
      %v364 = vshrl.u32 %v363, 7
      %v365 = vsub.s32 0, %v364
      %v366 = vrot.slane %v329, %v365
      %v368 = vmul.f32 %v330, %v366
      %v369 = vmul.f32 %v331, %v366
      %v370 = vmul.f32 %v332, %v366
      %v371 = vmul.f32 %v333, %v366
      %v372 = vmul.f32 %v334, %v366
      %v373 = vmul.f32 %v335, %v366
      %v374 = vmul.f32 %v336, %v366
      %v375 = vmul.f32 %v337, %v366
      %v376 = vmul.f32 %v338, %v366
      %v377 = vmul.f32 %v339, %v366
      %v378 = vmul.f32 %v340, %v366
      %v379 = vmul.f32 %v341, %v366
      %v380 = vmul.f32 %v342, %v366
      %v381 = vmul.f32 %v343, %v366
      %v382 = vmul.f32 %v344, %v366
      %v383 = vmul.f32 %v345, %v366
      %v384 = vmul.f32 %v346, %v366
      %v385 = vmul.f32 %v347, %v366
      %v386 = vmul.f32 %v348, %v366
      %v387 = vmul.f32 %v349, %v366
      %v388 = vmul.f32 %v350, %v366
      %v389 = vmul.f32 %v351, %v366
      %v390 = vmul.f32 %v352, %v366
      %v391 = vmul.f32 %v353, %v366
      %v392 = vmul.f32 %v354, %v366
      %v393 = vmul.f32 %v355, %v366
      %v394 = vmul.f32 %v356, %v366
      %v395 = vmul.f32 %v357, %v366
      %v396 = vmul.f32 %v358, %v366
      %v397 = vmul.f32 %v359, %v366
      %v398 = vmul.f32 %v360, %v366
      %v399 = vmul.f32 %v361, %v366
      %v400 = vld [vmem:[%s2] sm:$0x1]
      %v402 = vlaneseq
      %v403 = vshrl.u32 %v402, 7
      %v404 = vsub.s32 0, %v403
      %v405 = vrot.slane %v400, %v404
      %v407 = vadd.f32 %v368, %v405
      %v408 = vadd.f32 %v369, %v405
      %v409 = vadd.f32 %v370, %v405
      %v410 = vadd.f32 %v371, %v405
      %v411 = vadd.f32 %v372, %v405
      %v412 = vadd.f32 %v373, %v405
      %v413 = vadd.f32 %v374, %v405
      %v414 = vadd.f32 %v375, %v405
      %v415 = vadd.f32 %v376, %v405
      %v416 = vadd.f32 %v377, %v405
      %v417 = vadd.f32 %v378, %v405
      %v418 = vadd.f32 %v379, %v405
      %v419 = vadd.f32 %v380, %v405
      %v420 = vadd.f32 %v381, %v405
      %v421 = vadd.f32 %v382, %v405
      %v422 = vadd.f32 %v383, %v405
      %v423 = vadd.f32 %v384, %v405
      %v424 = vadd.f32 %v385, %v405
      %v425 = vadd.f32 %v386, %v405
      %v426 = vadd.f32 %v387, %v405
      %v427 = vadd.f32 %v388, %v405
      %v428 = vadd.f32 %v389, %v405
      %v429 = vadd.f32 %v390, %v405
      %v430 = vadd.f32 %v391, %v405
      %v431 = vadd.f32 %v392, %v405
      %v432 = vadd.f32 %v393, %v405
      %v433 = vadd.f32 %v394, %v405
      %v434 = vadd.f32 %v395, %v405
      %v435 = vadd.f32 %v396, %v405
      %v436 = vadd.f32 %v397, %v405
      %v437 = vadd.f32 %v398, %v405
      %v438 = vadd.f32 %v399, %v405
      %v439 = vmax.f32 %v407, 0.0
      %v440 = vmax.f32 %v408, 0.0
      %v441 = vmax.f32 %v409, 0.0
      %v442 = vmax.f32 %v410, 0.0
      %v443 = vmax.f32 %v411, 0.0
      %v444 = vmax.f32 %v412, 0.0
      %v445 = vmax.f32 %v413, 0.0
      %v446 = vmax.f32 %v414, 0.0
      %v447 = vmax.f32 %v415, 0.0
      %v448 = vmax.f32 %v416, 0.0
      %v449 = vmax.f32 %v417, 0.0
      %v450 = vmax.f32 %v418, 0.0
      %v451 = vmax.f32 %v419, 0.0
      %v452 = vmax.f32 %v420, 0.0
      %v453 = vmax.f32 %v421, 0.0
      %v454 = vmax.f32 %v422, 0.0
      %v455 = vmax.f32 %v423, 0.0
      %v456 = vmax.f32 %v424, 0.0
      %v457 = vmax.f32 %v425, 0.0
      %v458 = vmax.f32 %v426, 0.0
      %v459 = vmax.f32 %v427, 0.0
      %v460 = vmax.f32 %v428, 0.0
      %v461 = vmax.f32 %v429, 0.0
      %v462 = vmax.f32 %v430, 0.0
      %v463 = vmax.f32 %v431, 0.0
      %v464 = vmax.f32 %v432, 0.0
      %v465 = vmax.f32 %v433, 0.0
      %v466 = vmax.f32 %v434, 0.0
      %v467 = vmax.f32 %v435, 0.0
      %v468 = vmax.f32 %v436, 0.0
      %v469 = vmax.f32 %v437, 0.0
      %v470 = vmax.f32 %v438, 0.0
      %vm471 = vcmask 125952
      %472 = vst.msk [vmem:[#allocation2] sm:$0xf] %vm471, 0
      %473 = vst.msk [vmem:[#allocation2 + $0x4] sm:$0xf] %vm471, 0
      %vm474 = vcmask 122880
      %475 = vst.msk [vmem:[#allocation2 + $0x8] sm:$0x1] %vm474, 0
      %476 = vst.msk [vmem:[#allocation2 + $0xc] sm:$0xf] %vm471, 0
      %477 = vst.msk [vmem:[#allocation2 + $0x10] sm:$0xf] %vm471, 0
      %478 = vst.msk [vmem:[#allocation2 + $0x14] sm:$0x1] %vm474, 0
      %479 = vst.msk [vmem:[#allocation2 + $0x18] sm:$0xf] %vm471, 0
      %480 = vst.msk [vmem:[#allocation2 + $0x1c] sm:$0xf] %vm471, 0
      %481 = vst.msk [vmem:[#allocation2 + $0x20] sm:$0x1] %vm474, 0
      %482 = vst.msk [vmem:[#allocation2 + $0x24] sm:$0xf] %vm471, 0
      %483 = vst.msk [vmem:[#allocation2 + $0x28] sm:$0xf] %vm471, 0
      %484 = vst.msk [vmem:[#allocation2 + $0x2c] sm:$0x1] %vm474, 0
      %485 = vst.msk [vmem:[#allocation2 + $0x30] sm:$0xf] %vm471, 0
      %486 = vst.msk [vmem:[#allocation2 + $0x34] sm:$0xf] %vm471, 0
      %487 = vst.msk [vmem:[#allocation2 + $0x38] sm:$0x1] %vm474, 0
      %488 = vst.msk [vmem:[#allocation2 + $0x3c] sm:$0xf] %vm471, 0
      %489 = vst.msk [vmem:[#allocation2 + $0x40] sm:$0xf] %vm471, 0
      %490 = vst.msk [vmem:[#allocation2 + $0x44] sm:$0x1] %vm474, 0
      %491 = vst.msk [vmem:[#allocation2 + $0x48] sm:$0xf] %vm471, 0
      %492 = vst.msk [vmem:[#allocation2 + $0x4c] sm:$0xf] %vm471, 0
      %493 = vst.msk [vmem:[#allocation2 + $0x50] sm:$0x1] %vm474, 0
      %494 = vst.msk [vmem:[#allocation2 + $0x54] sm:$0xf] %vm471, 0
      %495 = vst.msk [vmem:[#allocation2 + $0x58] sm:$0xf] %vm471, 0
      %496 = vst.msk [vmem:[#allocation2 + $0x5c] sm:$0x1] %vm474, 0
      %497 = vst.msk [vmem:[#allocation2 + $0x60] sm:$0xf] %vm471, 0
      %498 = vst.msk [vmem:[#allocation2 + $0x64] sm:$0xf] %vm471, 0
      %499 = vst.msk [vmem:[#allocation2 + $0x68] sm:$0x1] %vm474, 0
      %500 = vst.msk [vmem:[#allocation2 + $0x6c] sm:$0xf] %vm471, 0
      %501 = vst.msk [vmem:[#allocation2 + $0x70] sm:$0xf] %vm471, 0
      %502 = vst.msk [vmem:[#allocation2 + $0x74] sm:$0x1] %vm474, 0
      %503 = vst.msk [vmem:[#allocation2 + $0x78] sm:$0xf] %vm471, 0
      %504 = vst.msk [vmem:[#allocation2 + $0x7c] sm:$0xf] %vm471, 0
      %505 = vst.msk [vmem:[#allocation2 + $0x80] sm:$0x1] %vm474, 0
      %506 = vst.msk [vmem:[#allocation2 + $0x84] sm:$0xf] %vm471, 0
      %507 = vst.msk [vmem:[#allocation2 + $0x88] sm:$0xf] %vm471, 0
      %508 = vst.msk [vmem:[#allocation2 + $0x8c] sm:$0x1] %vm474, 0
      %509 = vst.msk [vmem:[#allocation2 + $0x90] sm:$0xf] %vm471, 0
      %510 = vst.msk [vmem:[#allocation2 + $0x94] sm:$0xf] %vm471, 0
      %511 = vst.msk [vmem:[#allocation2 + $0x98] sm:$0x1] %vm474, 0
      %512 = vst.msk [vmem:[#allocation2 + $0x9c] sm:$0xf] %vm471, 0
      %513 = vst.msk [vmem:[#allocation2 + $0xa0] sm:$0xf] %vm471, 0
      %514 = vst.msk [vmem:[#allocation2 + $0xa4] sm:$0x1] %vm474, 0
      %515 = vst.msk [vmem:[#allocation2 + $0xa8] sm:$0xf] %vm471, 0
      %516 = vst.msk [vmem:[#allocation2 + $0xac] sm:$0xf] %vm471, 0
      %517 = vst.msk [vmem:[#allocation2 + $0xb0] sm:$0x1] %vm474, 0
      %518 = vst.msk [vmem:[#allocation2 + $0xb4] sm:$0xf] %vm471, 0
      %519 = vst.msk [vmem:[#allocation2 + $0xb8] sm:$0xf] %vm471, 0
      %520 = vst.msk [vmem:[#allocation2 + $0xbc] sm:$0x1] %vm474, 0
      %521 = vst.msk [vmem:[#allocation2 + $0xc0] sm:$0xf] %vm471, 0
      %522 = vst.msk [vmem:[#allocation2 + $0xc4] sm:$0xf] %vm471, 0
      %523 = vst.msk [vmem:[#allocation2 + $0xc8] sm:$0x1] %vm474, 0
      %524 = vst.msk [vmem:[#allocation2 + $0xcc] sm:$0xf] %vm471, 0
      %525 = vst.msk [vmem:[#allocation2 + $0xd0] sm:$0xf] %vm471, 0
      %526 = vst.msk [vmem:[#allocation2 + $0xd4] sm:$0x1] %vm474, 0
      %v527 = vpack.c.bf16 %v440, %v439
      %v528 = vpack.c.bf16 %v442, %v441
      %v529 = vpack.c.bf16 %v444, %v443
      %v530 = vpack.c.bf16 %v446, %v445
      %v531 = vpack.c.bf16 %v448, %v447
      %v532 = vpack.c.bf16 %v450, %v449
      %v533 = vpack.c.bf16 %v452, %v451
      %v534 = vpack.c.bf16 %v454, %v453
      %v535 = vpack.c.bf16 %v456, %v455
      %v536 = vpack.c.bf16 %v458, %v457
      %v537 = vpack.c.bf16 %v460, %v459
      %v538 = vpack.c.bf16 %v462, %v461
      %v539 = vpack.c.bf16 %v464, %v463
      %v540 = vpack.c.bf16 %v466, %v465
      %v541 = vpack.c.bf16 %v468, %v467
      %v542 = vpack.c.bf16 %v470, %v469
      %v559 = vunpack.c.l.b16 %v527
      %v560 = vunpack.c.h.b16 %v527
      %v561 = vunpack.c.l.b16 %v528
      %v562 = vunpack.c.h.b16 %v528
      %v563 = vunpack.c.l.b16 %v529
      %v564 = vunpack.c.h.b16 %v529
      %v565 = vunpack.c.l.b16 %v530
      %v566 = vunpack.c.h.b16 %v530
      %v567 = vunpack.c.l.b16 %v531
      %v568 = vunpack.c.h.b16 %v531
      %v569 = vunpack.c.l.b16 %v532
      %v570 = vunpack.c.h.b16 %v532
      %v571 = vunpack.c.l.b16 %v533
      %v572 = vunpack.c.h.b16 %v533
      %v573 = vunpack.c.l.b16 %v534
      %v574 = vunpack.c.h.b16 %v534
      %v575 = vunpack.c.l.b16 %v535
      %v576 = vunpack.c.h.b16 %v535
      %v577 = vunpack.c.l.b16 %v536
      %v578 = vunpack.c.h.b16 %v536
      %v579 = vunpack.c.l.b16 %v537
      %v580 = vunpack.c.h.b16 %v537
      %v581 = vunpack.c.l.b16 %v538
      %v582 = vunpack.c.h.b16 %v538
      %v583 = vunpack.c.l.b16 %v539
      %v584 = vunpack.c.h.b16 %v539
      %v585 = vunpack.c.l.b16 %v540
      %v586 = vunpack.c.h.b16 %v540
      %v587 = vunpack.c.l.b16 %v541
      %v588 = vunpack.c.h.b16 %v541
      %v589 = vunpack.c.l.b16 %v542
      %v590 = vunpack.c.h.b16 %v542
      %v591 = vpack.c.b16 %v559, %v559
      %v592 = vpack.c.b16 %v560, %v560
      %v593 = vpack.c.b16 %v561, %v561
      %v594 = vpack.c.b16 %v562, %v562
      %v595 = vpack.c.b16 %v563, %v563
      %v596 = vpack.c.b16 %v564, %v564
      %v597 = vpack.c.b16 %v565, %v565
      %v598 = vpack.c.b16 %v566, %v566
      %v599 = vpack.c.b16 %v567, %v567
      %v600 = vpack.c.b16 %v568, %v568
      %v601 = vpack.c.b16 %v569, %v569
      %v602 = vpack.c.b16 %v570, %v570
      %v603 = vpack.c.b16 %v571, %v571
      %v604 = vpack.c.b16 %v572, %v572
      %v605 = vpack.c.b16 %v573, %v573
      %v606 = vpack.c.b16 %v574, %v574
      %v607 = vpack.c.b16 %v575, %v575
      %v608 = vpack.c.b16 %v576, %v576
      %v609 = vpack.c.b16 %v577, %v577
      %v610 = vpack.c.b16 %v578, %v578
      %v611 = vpack.c.b16 %v579, %v579
      %v612 = vpack.c.b16 %v580, %v580
      %v613 = vpack.c.b16 %v581, %v581
      %v614 = vpack.c.b16 %v582, %v582
      %v615 = vpack.c.b16 %v583, %v583
      %v616 = vpack.c.b16 %v584, %v584
      %v617 = vpack.c.b16 %v585, %v585
      %v618 = vpack.c.b16 %v586, %v586
      %v619 = vpack.c.b16 %v587, %v587
      %v620 = vpack.c.b16 %v588, %v588
      %v621 = vpack.c.b16 %v589, %v589
      %v622 = vpack.c.b16 %v590, %v590
      %vm623 = vsmask.f32 256
      %vm624 = vsmask.f32 4368
      %vm625 = vmor %vm623, %vm624
      %v627 = vshrl.u32 %v591, 16
      %v629 = vrot.slane %v627, 7
      %v630 = vshll.u32 %v591, 16
      %v632 = vor.u32 %v629, %v630
      %v633 = vrot.slane %v629, 4
      %v635 = vshrl.u32 %v592, 16
      %v637 = vrot.slane %v635, 7
      %v638 = vshll.u32 %v592, 16
      %v640 = vor.u32 %v637, %v638
      %v641 = vsel %vm625, %v633, %v640
      %v642 = vrot.slane %v637, 4
      %v644 = vshrl.u32 %v593, 16
      %v646 = vrot.slane %v644, 7
      %v647 = vshll.u32 %v593, 16
      %v649 = vor.u32 %v646, %v647
      %v650 = vrot.slane %v646, 4
      %v652 = vshrl.u32 %v594, 16
      %v654 = vrot.slane %v652, 7
      %v655 = vshll.u32 %v594, 16
      %v657 = vor.u32 %v654, %v655
      %v658 = vsel %vm625, %v650, %v657
      %v659 = vrot.slane %v654, 4
      %v661 = vshrl.u32 %v595, 16
      %v663 = vrot.slane %v661, 7
      %v664 = vshll.u32 %v595, 16
      %v666 = vor.u32 %v663, %v664
      %v667 = vrot.slane %v663, 4
      %v669 = vshrl.u32 %v596, 16
      %v671 = vrot.slane %v669, 7
      %v672 = vshll.u32 %v596, 16
      %v674 = vor.u32 %v671, %v672
      %v675 = vsel %vm625, %v667, %v674
      %v676 = vrot.slane %v671, 4
      %v678 = vshrl.u32 %v597, 16
      %v680 = vrot.slane %v678, 7
      %v681 = vshll.u32 %v597, 16
      %v683 = vor.u32 %v680, %v681
      %v684 = vrot.slane %v680, 4
      %v686 = vshrl.u32 %v598, 16
      %v688 = vrot.slane %v686, 7
      %v689 = vshll.u32 %v598, 16
      %v691 = vor.u32 %v688, %v689
      %v692 = vsel %vm625, %v684, %v691
      %v693 = vrot.slane %v688, 4
      %v695 = vshrl.u32 %v599, 16
      %v697 = vrot.slane %v695, 7
      %v698 = vshll.u32 %v599, 16
      %v700 = vor.u32 %v697, %v698
      %v701 = vrot.slane %v697, 4
      %v703 = vshrl.u32 %v600, 16
      %v705 = vrot.slane %v703, 7
      %v706 = vshll.u32 %v600, 16
      %v708 = vor.u32 %v705, %v706
      %v709 = vsel %vm625, %v701, %v708
      %v710 = vrot.slane %v705, 4
      %v712 = vshrl.u32 %v601, 16
      %v714 = vrot.slane %v712, 7
      %v715 = vshll.u32 %v601, 16
      %v717 = vor.u32 %v714, %v715
      %v718 = vrot.slane %v714, 4
      %v720 = vshrl.u32 %v602, 16
      %v722 = vrot.slane %v720, 7
      %v723 = vshll.u32 %v602, 16
      %v725 = vor.u32 %v722, %v723
      %v726 = vsel %vm625, %v718, %v725
      %v727 = vrot.slane %v722, 4
      %v729 = vshrl.u32 %v603, 16
      %v731 = vrot.slane %v729, 7
      %v732 = vshll.u32 %v603, 16
      %v734 = vor.u32 %v731, %v732
      %v735 = vrot.slane %v731, 4
      %v737 = vshrl.u32 %v604, 16
      %v739 = vrot.slane %v737, 7
      %v740 = vshll.u32 %v604, 16
      %v742 = vor.u32 %v739, %v740
      %v743 = vsel %vm625, %v735, %v742
      %v744 = vrot.slane %v739, 4
      %v746 = vshrl.u32 %v605, 16
      %v748 = vrot.slane %v746, 7
      %v749 = vshll.u32 %v605, 16
      %v751 = vor.u32 %v748, %v749
      %v752 = vrot.slane %v748, 4
      %v754 = vshrl.u32 %v606, 16
      %v756 = vrot.slane %v754, 7
      %v757 = vshll.u32 %v606, 16
      %v759 = vor.u32 %v756, %v757
      %v760 = vsel %vm625, %v752, %v759
      %v761 = vrot.slane %v756, 4
      %v763 = vshrl.u32 %v607, 16
      %v765 = vrot.slane %v763, 7
      %v766 = vshll.u32 %v607, 16
      %v768 = vor.u32 %v765, %v766
      %v769 = vrot.slane %v765, 4
      %v771 = vshrl.u32 %v608, 16
      %v773 = vrot.slane %v771, 7
      %v774 = vshll.u32 %v608, 16
      %v776 = vor.u32 %v773, %v774
      %v777 = vsel %vm625, %v769, %v776
      %v778 = vrot.slane %v773, 4
      %v780 = vshrl.u32 %v609, 16
      %v782 = vrot.slane %v780, 7
      %v783 = vshll.u32 %v609, 16
      %v785 = vor.u32 %v782, %v783
      %v786 = vrot.slane %v782, 4
      %v788 = vshrl.u32 %v610, 16
      %v790 = vrot.slane %v788, 7
      %v791 = vshll.u32 %v610, 16
      %v793 = vor.u32 %v790, %v791
      %v794 = vsel %vm625, %v786, %v793
      %v795 = vrot.slane %v790, 4
      %v797 = vshrl.u32 %v611, 16
      %v799 = vrot.slane %v797, 7
      %v800 = vshll.u32 %v611, 16
      %v802 = vor.u32 %v799, %v800
      %v803 = vrot.slane %v799, 4
      %v805 = vshrl.u32 %v612, 16
      %v807 = vrot.slane %v805, 7
      %v808 = vshll.u32 %v612, 16
      %v810 = vor.u32 %v807, %v808
      %v811 = vsel %vm625, %v803, %v810
      %v812 = vrot.slane %v807, 4
      %v814 = vshrl.u32 %v613, 16
      %v816 = vrot.slane %v814, 7
      %v817 = vshll.u32 %v613, 16
      %v819 = vor.u32 %v816, %v817
      %v820 = vrot.slane %v816, 4
      %v822 = vshrl.u32 %v614, 16
      %v824 = vrot.slane %v822, 7
      %v825 = vshll.u32 %v614, 16
      %v827 = vor.u32 %v824, %v825
      %v828 = vsel %vm625, %v820, %v827
      %v829 = vrot.slane %v824, 4
      %v831 = vshrl.u32 %v615, 16
      %v833 = vrot.slane %v831, 7
      %v834 = vshll.u32 %v615, 16
      %v836 = vor.u32 %v833, %v834
      %v837 = vrot.slane %v833, 4
      %v839 = vshrl.u32 %v616, 16
      %v841 = vrot.slane %v839, 7
      %v842 = vshll.u32 %v616, 16
      %v844 = vor.u32 %v841, %v842
      %v845 = vsel %vm625, %v837, %v844
      %v846 = vrot.slane %v841, 4
      %v848 = vshrl.u32 %v617, 16
      %v850 = vrot.slane %v848, 7
      %v851 = vshll.u32 %v617, 16
      %v853 = vor.u32 %v850, %v851
      %v854 = vrot.slane %v850, 4
      %v856 = vshrl.u32 %v618, 16
      %v858 = vrot.slane %v856, 7
      %v859 = vshll.u32 %v618, 16
      %v861 = vor.u32 %v858, %v859
      %v862 = vsel %vm625, %v854, %v861
      %v863 = vrot.slane %v858, 4
      %v865 = vshrl.u32 %v619, 16
      %v867 = vrot.slane %v865, 7
      %v868 = vshll.u32 %v619, 16
      %v870 = vor.u32 %v867, %v868
      %v871 = vrot.slane %v867, 4
      %v873 = vshrl.u32 %v620, 16
      %v875 = vrot.slane %v873, 7
      %v876 = vshll.u32 %v620, 16
      %v878 = vor.u32 %v875, %v876
      %v879 = vsel %vm625, %v871, %v878
      %v880 = vrot.slane %v875, 4
      %v882 = vshrl.u32 %v621, 16
      %v884 = vrot.slane %v882, 7
      %v885 = vshll.u32 %v621, 16
      %v887 = vor.u32 %v884, %v885
      %v888 = vrot.slane %v884, 4
      %v890 = vshrl.u32 %v622, 16
      %v892 = vrot.slane %v890, 7
      %v893 = vshll.u32 %v622, 16
      %v895 = vor.u32 %v892, %v893
      %v896 = vsel %vm625, %v888, %v895
      %v897 = vrot.slane %v892, 4
      %s946 = scalar_lea.vmem [#allocation2], 12
      %vm947 = vcmask 125952
      %vm948 = vsmask.f32 7938
      %vm949 = vmand %vm947, %vm948
      %v950 = vld [vmem:[%s946] sm:$0xf]
      %v951 = vsel %vm949, %v632, %v950
      %952 = vst [vmem:[%s946] sm:$0xf] %v951
      %953 = vst.msk [vmem:[%s946 + $0x4] sm:$0xf] %vm471, %v641
      %vm954 = vcmask 122880
      %vm955 = vmand %vm954, %vm623
      %v956 = vld [vmem:[%s946 + $0x8] sm:$0x1]
      %v957 = vsel %vm955, %v642, %v956
      %958 = vst [vmem:[%s946 + $0x8] sm:$0x1] %v957
      %v959 = vld [vmem:[%s946 + $0xc] sm:$0xf]
      %v960 = vsel %vm949, %v649, %v959
      %961 = vst [vmem:[%s946 + $0xc] sm:$0xf] %v960
      %962 = vst.msk [vmem:[%s946 + $0x10] sm:$0xf] %vm471, %v658
      %v963 = vld [vmem:[%s946 + $0x14] sm:$0x1]
      %v964 = vsel %vm955, %v659, %v963
      %965 = vst [vmem:[%s946 + $0x14] sm:$0x1] %v964
      %v966 = vld [vmem:[%s946 + $0x18] sm:$0xf]
      %v967 = vsel %vm949, %v666, %v966
      %968 = vst [vmem:[%s946 + $0x18] sm:$0xf] %v967
      %969 = vst.msk [vmem:[%s946 + $0x1c] sm:$0xf] %vm471, %v675
      %v970 = vld [vmem:[%s946 + $0x20] sm:$0x1]
      %v971 = vsel %vm955, %v676, %v970
      %972 = vst [vmem:[%s946 + $0x20] sm:$0x1] %v971
      %v973 = vld [vmem:[%s946 + $0x24] sm:$0xf]
      %v974 = vsel %vm949, %v683, %v973
      %975 = vst [vmem:[%s946 + $0x24] sm:$0xf] %v974
      %976 = vst.msk [vmem:[%s946 + $0x28] sm:$0xf] %vm471, %v692
      %v977 = vld [vmem:[%s946 + $0x2c] sm:$0x1]
      %v978 = vsel %vm955, %v693, %v977
      %979 = vst [vmem:[%s946 + $0x2c] sm:$0x1] %v978
      %v980 = vld [vmem:[%s946 + $0x30] sm:$0xf]
      %v981 = vsel %vm949, %v700, %v980
      %982 = vst [vmem:[%s946 + $0x30] sm:$0xf] %v981
      %983 = vst.msk [vmem:[%s946 + $0x34] sm:$0xf] %vm471, %v709
      %v984 = vld [vmem:[%s946 + $0x38] sm:$0x1]
      %v985 = vsel %vm955, %v710, %v984
      %986 = vst [vmem:[%s946 + $0x38] sm:$0x1] %v985
      %v987 = vld [vmem:[%s946 + $0x3c] sm:$0xf]
      %v988 = vsel %vm949, %v717, %v987
      %989 = vst [vmem:[%s946 + $0x3c] sm:$0xf] %v988
      %990 = vst.msk [vmem:[%s946 + $0x40] sm:$0xf] %vm471, %v726
      %v991 = vld [vmem:[%s946 + $0x44] sm:$0x1]
      %v992 = vsel %vm955, %v727, %v991
      %993 = vst [vmem:[%s946 + $0x44] sm:$0x1] %v992
      %v994 = vld [vmem:[%s946 + $0x48] sm:$0xf]
      %v995 = vsel %vm949, %v734, %v994
      %996 = vst [vmem:[%s946 + $0x48] sm:$0xf] %v995
      %997 = vst.msk [vmem:[%s946 + $0x4c] sm:$0xf] %vm471, %v743
      %v998 = vld [vmem:[%s946 + $0x50] sm:$0x1]
      %v999 = vsel %vm955, %v744, %v998
      %1000 = vst [vmem:[%s946 + $0x50] sm:$0x1] %v999
      %v1001 = vld [vmem:[%s946 + $0x54] sm:$0xf]
      %v1002 = vsel %vm949, %v751, %v1001
      %1003 = vst [vmem:[%s946 + $0x54] sm:$0xf] %v1002
      %1004 = vst.msk [vmem:[%s946 + $0x58] sm:$0xf] %vm471, %v760
      %v1005 = vld [vmem:[%s946 + $0x5c] sm:$0x1]
      %v1006 = vsel %vm955, %v761, %v1005
      %1007 = vst [vmem:[%s946 + $0x5c] sm:$0x1] %v1006
      %v1008 = vld [vmem:[%s946 + $0x60] sm:$0xf]
      %v1009 = vsel %vm949, %v768, %v1008
      %1010 = vst [vmem:[%s946 + $0x60] sm:$0xf] %v1009
      %1011 = vst.msk [vmem:[%s946 + $0x64] sm:$0xf] %vm471, %v777
      %v1012 = vld [vmem:[%s946 + $0x68] sm:$0x1]
      %v1013 = vsel %vm955, %v778, %v1012
      %1014 = vst [vmem:[%s946 + $0x68] sm:$0x1] %v1013
      %v1015 = vld [vmem:[%s946 + $0x6c] sm:$0xf]
      %v1016 = vsel %vm949, %v785, %v1015
      %1017 = vst [vmem:[%s946 + $0x6c] sm:$0xf] %v1016
      %1018 = vst.msk [vmem:[%s946 + $0x70] sm:$0xf] %vm471, %v794
      %v1019 = vld [vmem:[%s946 + $0x74] sm:$0x1]
      %v1020 = vsel %vm955, %v795, %v1019
      %1021 = vst [vmem:[%s946 + $0x74] sm:$0x1] %v1020
      %v1022 = vld [vmem:[%s946 + $0x78] sm:$0xf]
      %v1023 = vsel %vm949, %v802, %v1022
      %1024 = vst [vmem:[%s946 + $0x78] sm:$0xf] %v1023
      %1025 = vst.msk [vmem:[%s946 + $0x7c] sm:$0xf] %vm471, %v811
      %v1026 = vld [vmem:[%s946 + $0x80] sm:$0x1]
      %v1027 = vsel %vm955, %v812, %v1026
      %1028 = vst [vmem:[%s946 + $0x80] sm:$0x1] %v1027
      %v1029 = vld [vmem:[%s946 + $0x84] sm:$0xf]
      %v1030 = vsel %vm949, %v819, %v1029
      %1031 = vst [vmem:[%s946 + $0x84] sm:$0xf] %v1030
      %1032 = vst.msk [vmem:[%s946 + $0x88] sm:$0xf] %vm471, %v828
      %v1033 = vld [vmem:[%s946 + $0x8c] sm:$0x1]
      %v1034 = vsel %vm955, %v829, %v1033
      %1035 = vst [vmem:[%s946 + $0x8c] sm:$0x1] %v1034
      %v1036 = vld [vmem:[%s946 + $0x90] sm:$0xf]
      %v1037 = vsel %vm949, %v836, %v1036
      %1038 = vst [vmem:[%s946 + $0x90] sm:$0xf] %v1037
      %1039 = vst.msk [vmem:[%s946 + $0x94] sm:$0xf] %vm471, %v845
      %v1040 = vld [vmem:[%s946 + $0x98] sm:$0x1]
      %v1041 = vsel %vm955, %v846, %v1040
      %1042 = vst [vmem:[%s946 + $0x98] sm:$0x1] %v1041
      %v1043 = vld [vmem:[%s946 + $0x9c] sm:$0xf]
      %v1044 = vsel %vm949, %v853, %v1043
      %1045 = vst [vmem:[%s946 + $0x9c] sm:$0xf] %v1044
      %1046 = vst.msk [vmem:[%s946 + $0xa0] sm:$0xf] %vm471, %v862
      %v1047 = vld [vmem:[%s946 + $0xa4] sm:$0x1]
      %v1048 = vsel %vm955, %v863, %v1047
      %1049 = vst [vmem:[%s946 + $0xa4] sm:$0x1] %v1048
      %v1050 = vld [vmem:[%s946 + $0xa8] sm:$0xf]
      %v1051 = vsel %vm949, %v870, %v1050
      %1052 = vst [vmem:[%s946 + $0xa8] sm:$0xf] %v1051
      %1053 = vst.msk [vmem:[%s946 + $0xac] sm:$0xf] %vm471, %v879
      %v1054 = vld [vmem:[%s946 + $0xb0] sm:$0x1]
      %v1055 = vsel %vm955, %v880, %v1054
      %1056 = vst [vmem:[%s946 + $0xb0] sm:$0x1] %v1055
      %v1057 = vld [vmem:[%s946 + $0xb4] sm:$0xf]
      %v1058 = vsel %vm949, %v887, %v1057
      %1059 = vst [vmem:[%s946 + $0xb4] sm:$0xf] %v1058
      %1060 = vst.msk [vmem:[%s946 + $0xb8] sm:$0xf] %vm471, %v896
      %v1061 = vld [vmem:[%s946 + $0xbc] sm:$0x1]
      %v1062 = vsel %vm955, %v897, %v1061
      %1063 = vst [vmem:[%s946 + $0xbc] sm:$0x1] %v1062
      %v1064 = vld [vmem:[#allocation2] sm:$0xf]
      %v1065 = vld [vmem:[#allocation2 + $0x4] sm:$0xf]
      %v1066 = vld [vmem:[#allocation2 + $0x8] sm:$0x1]
      %v1067 = vld [vmem:[#allocation2 + $0xc] sm:$0xf]
      %v1068 = vld [vmem:[#allocation2 + $0x10] sm:$0xf]
      %v1069 = vld [vmem:[#allocation2 + $0x14] sm:$0x1]
      %v1070 = vld [vmem:[#allocation2 + $0x18] sm:$0xf]
      %v1071 = vld [vmem:[#allocation2 + $0x1c] sm:$0xf]
      %v1072 = vld [vmem:[#allocation2 + $0x20] sm:$0x1]
      %v1073 = vld [vmem:[#allocation2 + $0x24] sm:$0xf]
      %v1074 = vld [vmem:[#allocation2 + $0x28] sm:$0xf]
      %v1075 = vld [vmem:[#allocation2 + $0x2c] sm:$0x1]
      %v1076 = vld [vmem:[#allocation2 + $0x30] sm:$0xf]
      %v1077 = vld [vmem:[#allocation2 + $0x34] sm:$0xf]
      %v1078 = vld [vmem:[#allocation2 + $0x38] sm:$0x1]
      %v1079 = vld [vmem:[#allocation2 + $0x3c] sm:$0xf]
      %v1080 = vld [vmem:[#allocation2 + $0x40] sm:$0xf]
      %v1081 = vld [vmem:[#allocation2 + $0x44] sm:$0x1]
      %v1082 = vld [vmem:[#allocation2 + $0x48] sm:$0xf]
      %v1083 = vld [vmem:[#allocation2 + $0x4c] sm:$0xf]
      %v1084 = vld [vmem:[#allocation2 + $0x50] sm:$0x1]
      %v1085 = vld [vmem:[#allocation2 + $0x54] sm:$0xf]
      %v1086 = vld [vmem:[#allocation2 + $0x58] sm:$0xf]
      %v1087 = vld [vmem:[#allocation2 + $0x5c] sm:$0x1]
      %v1088 = vld [vmem:[#allocation2 + $0x60] sm:$0xf]
      %v1089 = vld [vmem:[#allocation2 + $0x64] sm:$0xf]
      %v1090 = vld [vmem:[#allocation2 + $0x68] sm:$0x1]
      %v1091 = vld [vmem:[#allocation2 + $0x6c] sm:$0xf]
      %v1092 = vld [vmem:[#allocation2 + $0x70] sm:$0xf]
      %v1093 = vld [vmem:[#allocation2 + $0x74] sm:$0x1]
      %v1094 = vld [vmem:[#allocation2 + $0x78] sm:$0xf]
      %v1095 = vld [vmem:[#allocation2 + $0x7c] sm:$0xf]
      %v1096 = vld [vmem:[#allocation2 + $0x80] sm:$0x1]
      %v1097 = vld [vmem:[#allocation2 + $0x84] sm:$0xf]
      %v1098 = vld [vmem:[#allocation2 + $0x88] sm:$0xf]
      %v1099 = vld [vmem:[#allocation2 + $0x8c] sm:$0x1]
      %v1100 = vld [vmem:[#allocation2 + $0x90] sm:$0xf]
      %v1101 = vld [vmem:[#allocation2 + $0x94] sm:$0xf]
      %v1102 = vld [vmem:[#allocation2 + $0x98] sm:$0x1]
      %v1103 = vld [vmem:[#allocation2 + $0x9c] sm:$0xf]
      %v1104 = vld [vmem:[#allocation2 + $0xa0] sm:$0xf]
      %v1105 = vld [vmem:[#allocation2 + $0xa4] sm:$0x1]
      %v1106 = vld [vmem:[#allocation2 + $0xa8] sm:$0xf]
      %v1107 = vld [vmem:[#allocation2 + $0xac] sm:$0xf]
      %v1108 = vld [vmem:[#allocation2 + $0xb0] sm:$0x1]
      %v1109 = vld [vmem:[#allocation2 + $0xb4] sm:$0xf]
      %v1110 = vld [vmem:[#allocation2 + $0xb8] sm:$0xf]
      %v1111 = vld [vmem:[#allocation2 + $0xbc] sm:$0x1]
      %v1112 = vld [vmem:[#allocation2 + $0xc0] sm:$0xf]
      %v1113 = vld [vmem:[#allocation2 + $0xc4] sm:$0xf]
      %v1114 = vld [vmem:[#allocation2 + $0xc8] sm:$0x1]
      %v1115 = vld [vmem:[#allocation2 + $0xcc] sm:$0xf]
      %v1116 = vld [vmem:[#allocation2 + $0xd0] sm:$0xf]
      %v1117 = vld [vmem:[#allocation2 + $0xd4] sm:$0x1]
      %v1118 = vld [vmem:[%s3] sm:$0xf]
      %v1119 = vld [vmem:[%s3 + $0x4] sm:$0xf]
      %v1120 = vld [vmem:[%s3 + $0x8] sm:$0xf]
      %v1121 = vld [vmem:[%s3 + $0xc] sm:$0xf]
      %v1122 = vld [vmem:[%s3 + $0x10] sm:$0xf]
      %v1123 = vld [vmem:[%s3 + $0x14] sm:$0xf]
      %v1124 = vld [vmem:[%s3 + $0x18] sm:$0xf]
      %v1125 = vld [vmem:[%s3 + $0x1c] sm:$0xf]
      %v1126 = vld [vmem:[%s3 + $0x20] sm:$0xf]
      %v1127 = vld [vmem:[%s3 + $0x24] sm:$0xf]
      %v1128 = vld [vmem:[%s3 + $0x28] sm:$0xf]
      %v1129 = vld [vmem:[%s3 + $0x2c] sm:$0xf]
      %v1130 = vld [vmem:[%s3 + $0x30] sm:$0xf]
      %v1131 = vld [vmem:[%s3 + $0x34] sm:$0xf]
      %v1132 = vld [vmem:[%s3 + $0x38] sm:$0xf]
      %v1133 = vld [vmem:[%s3 + $0x3c] sm:$0xf]
      %v1134 = vld [vmem:[%s3 + $0x40] sm:$0xf]
      %v1135 = vld [vmem:[%s3 + $0x44] sm:$0xf]
      %v1136 = vld [vmem:[%s4] sm:$0x1]
      %vm1137 = vsmask.f32 3328
      %vm1138 = vsmask.f32 7440
      %vm1139 = vmor %vm1137, %vm1138
      %v1141 = vshrl.u32 %v1064, 16
      %v1143 = vrot.slane %v1141, 4
      %v1144 = vshll.u32 %v1064, 16
      %v1146 = vrot.slane %v1144, 5
      %v1147 = vor.u32 %v1143, %v1146
      %v1148 = vrot.slane %v1147, 4
      %v1150 = vshll.u32 %v1065, 16
      %v1152 = vrot.slane %v1150, 5
      %v1153 = vsel %vm1139, %v1148, %v1152
      %v1154 = vshrl.u32 %v1065, 16
      %v1156 = vrot.slane %v1154, 4
      %v1157 = vor.u32 %v1156, %v1152
      %v1158 = vrot.slane %v1157, 4
      %v1160 = vshll.u32 %v1066, 16
      %v1162 = vrot.slane %v1160, 5
      %v1163 = vsel %vm1139, %v1158, %v1162
      %v1165 = vshrl.u32 %v1067, 16
      %v1167 = vrot.slane %v1165, 4
      %v1168 = vshll.u32 %v1067, 16
      %v1170 = vrot.slane %v1168, 5
      %v1171 = vor.u32 %v1167, %v1170
      %v1172 = vrot.slane %v1171, 4
      %v1174 = vshll.u32 %v1068, 16
      %v1176 = vrot.slane %v1174, 5
      %v1177 = vsel %vm1139, %v1172, %v1176
      %v1178 = vshrl.u32 %v1068, 16
      %v1180 = vrot.slane %v1178, 4
      %v1181 = vor.u32 %v1180, %v1176
      %v1182 = vrot.slane %v1181, 4
      %v1184 = vshll.u32 %v1069, 16
      %v1186 = vrot.slane %v1184, 5
      %v1187 = vsel %vm1139, %v1182, %v1186
      %v1189 = vshrl.u32 %v1070, 16
      %v1191 = vrot.slane %v1189, 4
      %v1192 = vshll.u32 %v1070, 16
      %v1194 = vrot.slane %v1192, 5
      %v1195 = vor.u32 %v1191, %v1194
      %v1196 = vrot.slane %v1195, 4
      %v1198 = vshll.u32 %v1071, 16
      %v1200 = vrot.slane %v1198, 5
      %v1201 = vsel %vm1139, %v1196, %v1200
      %v1202 = vshrl.u32 %v1071, 16
      %v1204 = vrot.slane %v1202, 4
      %v1205 = vor.u32 %v1204, %v1200
      %v1206 = vrot.slane %v1205, 4
      %v1208 = vshll.u32 %v1072, 16
      %v1210 = vrot.slane %v1208, 5
      %v1211 = vsel %vm1139, %v1206, %v1210
      %v1213 = vshrl.u32 %v1073, 16
      %v1215 = vrot.slane %v1213, 4
      %v1216 = vshll.u32 %v1073, 16
      %v1218 = vrot.slane %v1216, 5
      %v1219 = vor.u32 %v1215, %v1218
      %v1220 = vrot.slane %v1219, 4
      %v1222 = vshll.u32 %v1074, 16
      %v1224 = vrot.slane %v1222, 5
      %v1225 = vsel %vm1139, %v1220, %v1224
      %v1226 = vshrl.u32 %v1074, 16
      %v1228 = vrot.slane %v1226, 4
      %v1229 = vor.u32 %v1228, %v1224
      %v1230 = vrot.slane %v1229, 4
      %v1232 = vshll.u32 %v1075, 16
      %v1234 = vrot.slane %v1232, 5
      %v1235 = vsel %vm1139, %v1230, %v1234
      %v1237 = vshrl.u32 %v1076, 16
      %v1239 = vrot.slane %v1237, 4
      %v1240 = vshll.u32 %v1076, 16
      %v1242 = vrot.slane %v1240, 5
      %v1243 = vor.u32 %v1239, %v1242
      %v1244 = vrot.slane %v1243, 4
      %v1246 = vshll.u32 %v1077, 16
      %v1248 = vrot.slane %v1246, 5
      %v1249 = vsel %vm1139, %v1244, %v1248
      %v1250 = vshrl.u32 %v1077, 16
      %v1252 = vrot.slane %v1250, 4
      %v1253 = vor.u32 %v1252, %v1248
      %v1254 = vrot.slane %v1253, 4
      %v1256 = vshll.u32 %v1078, 16
      %v1258 = vrot.slane %v1256, 5
      %v1259 = vsel %vm1139, %v1254, %v1258
      %v1261 = vshrl.u32 %v1079, 16
      %v1263 = vrot.slane %v1261, 4
      %v1264 = vshll.u32 %v1079, 16
      %v1266 = vrot.slane %v1264, 5
      %v1267 = vor.u32 %v1263, %v1266
      %v1268 = vrot.slane %v1267, 4
      %v1270 = vshll.u32 %v1080, 16
      %v1272 = vrot.slane %v1270, 5
      %v1273 = vsel %vm1139, %v1268, %v1272
      %v1274 = vshrl.u32 %v1080, 16
      %v1276 = vrot.slane %v1274, 4
      %v1277 = vor.u32 %v1276, %v1272
      %v1278 = vrot.slane %v1277, 4
      %v1280 = vshll.u32 %v1081, 16
      %v1282 = vrot.slane %v1280, 5
      %v1283 = vsel %vm1139, %v1278, %v1282
      %v1285 = vshrl.u32 %v1082, 16
      %v1287 = vrot.slane %v1285, 4
      %v1288 = vshll.u32 %v1082, 16
      %v1290 = vrot.slane %v1288, 5
      %v1291 = vor.u32 %v1287, %v1290
      %v1292 = vrot.slane %v1291, 4
      %v1294 = vshll.u32 %v1083, 16
      %v1296 = vrot.slane %v1294, 5
      %v1297 = vsel %vm1139, %v1292, %v1296
      %v1298 = vshrl.u32 %v1083, 16
      %v1300 = vrot.slane %v1298, 4
      %v1301 = vor.u32 %v1300, %v1296
      %v1302 = vrot.slane %v1301, 4
      %v1304 = vshll.u32 %v1084, 16
      %v1306 = vrot.slane %v1304, 5
      %v1307 = vsel %vm1139, %v1302, %v1306
      %v1309 = vshrl.u32 %v1085, 16
      %v1311 = vrot.slane %v1309, 4
      %v1312 = vshll.u32 %v1085, 16
      %v1314 = vrot.slane %v1312, 5
      %v1315 = vor.u32 %v1311, %v1314
      %v1316 = vrot.slane %v1315, 4
      %v1318 = vshll.u32 %v1086, 16
      %v1320 = vrot.slane %v1318, 5
      %v1321 = vsel %vm1139, %v1316, %v1320
      %v1322 = vshrl.u32 %v1086, 16
      %v1324 = vrot.slane %v1322, 4
      %v1325 = vor.u32 %v1324, %v1320
      %v1326 = vrot.slane %v1325, 4
      %v1328 = vshll.u32 %v1087, 16
      %v1330 = vrot.slane %v1328, 5
      %v1331 = vsel %vm1139, %v1326, %v1330
      %v1333 = vshrl.u32 %v1088, 16
      %v1335 = vrot.slane %v1333, 4
      %v1336 = vshll.u32 %v1088, 16
      %v1338 = vrot.slane %v1336, 5
      %v1339 = vor.u32 %v1335, %v1338
      %v1340 = vrot.slane %v1339, 4
      %v1342 = vshll.u32 %v1089, 16
      %v1344 = vrot.slane %v1342, 5
      %v1345 = vsel %vm1139, %v1340, %v1344
      %v1346 = vshrl.u32 %v1089, 16
      %v1348 = vrot.slane %v1346, 4
      %v1349 = vor.u32 %v1348, %v1344
      %v1350 = vrot.slane %v1349, 4
      %v1352 = vshll.u32 %v1090, 16
      %v1354 = vrot.slane %v1352, 5
      %v1355 = vsel %vm1139, %v1350, %v1354
      %v1357 = vshrl.u32 %v1091, 16
      %v1359 = vrot.slane %v1357, 4
      %v1360 = vshll.u32 %v1091, 16
      %v1362 = vrot.slane %v1360, 5
      %v1363 = vor.u32 %v1359, %v1362
      %v1364 = vrot.slane %v1363, 4
      %v1366 = vshll.u32 %v1092, 16
      %v1368 = vrot.slane %v1366, 5
      %v1369 = vsel %vm1139, %v1364, %v1368
      %v1370 = vshrl.u32 %v1092, 16
      %v1372 = vrot.slane %v1370, 4
      %v1373 = vor.u32 %v1372, %v1368
      %v1374 = vrot.slane %v1373, 4
      %v1376 = vshll.u32 %v1093, 16
      %v1378 = vrot.slane %v1376, 5
      %v1379 = vsel %vm1139, %v1374, %v1378
      %v1381 = vshrl.u32 %v1094, 16
      %v1383 = vrot.slane %v1381, 4
      %v1384 = vshll.u32 %v1094, 16
      %v1386 = vrot.slane %v1384, 5
      %v1387 = vor.u32 %v1383, %v1386
      %v1388 = vrot.slane %v1387, 4
      %v1390 = vshll.u32 %v1095, 16
      %v1392 = vrot.slane %v1390, 5
      %v1393 = vsel %vm1139, %v1388, %v1392
      %v1394 = vshrl.u32 %v1095, 16
      %v1396 = vrot.slane %v1394, 4
      %v1397 = vor.u32 %v1396, %v1392
      %v1398 = vrot.slane %v1397, 4
      %v1400 = vshll.u32 %v1096, 16
      %v1402 = vrot.slane %v1400, 5
      %v1403 = vsel %vm1139, %v1398, %v1402
      %v1405 = vshrl.u32 %v1097, 16
      %v1407 = vrot.slane %v1405, 4
      %v1408 = vshll.u32 %v1097, 16
      %v1410 = vrot.slane %v1408, 5
      %v1411 = vor.u32 %v1407, %v1410
      %v1412 = vrot.slane %v1411, 4
      %v1414 = vshll.u32 %v1098, 16
      %v1416 = vrot.slane %v1414, 5
      %v1417 = vsel %vm1139, %v1412, %v1416
      %v1418 = vshrl.u32 %v1098, 16
      %v1420 = vrot.slane %v1418, 4
      %v1421 = vor.u32 %v1420, %v1416
      %v1422 = vrot.slane %v1421, 4
      %v1424 = vshll.u32 %v1099, 16
      %v1426 = vrot.slane %v1424, 5
      %v1427 = vsel %vm1139, %v1422, %v1426
      %v1429 = vshrl.u32 %v1100, 16
      %v1431 = vrot.slane %v1429, 4
      %v1432 = vshll.u32 %v1100, 16
      %v1434 = vrot.slane %v1432, 5
      %v1435 = vor.u32 %v1431, %v1434
      %v1436 = vrot.slane %v1435, 4
      %v1438 = vshll.u32 %v1101, 16
      %v1440 = vrot.slane %v1438, 5
      %v1441 = vsel %vm1139, %v1436, %v1440
      %v1442 = vshrl.u32 %v1101, 16
      %v1444 = vrot.slane %v1442, 4
      %v1445 = vor.u32 %v1444, %v1440
      %v1446 = vrot.slane %v1445, 4
      %v1448 = vshll.u32 %v1102, 16
      %v1450 = vrot.slane %v1448, 5
      %v1451 = vsel %vm1139, %v1446, %v1450
      %v1453 = vshrl.u32 %v1103, 16
      %v1455 = vrot.slane %v1453, 4
      %v1456 = vshll.u32 %v1103, 16
      %v1458 = vrot.slane %v1456, 5
      %v1459 = vor.u32 %v1455, %v1458
      %v1460 = vrot.slane %v1459, 4
      %v1462 = vshll.u32 %v1104, 16
      %v1464 = vrot.slane %v1462, 5
      %v1465 = vsel %vm1139, %v1460, %v1464
      %v1466 = vshrl.u32 %v1104, 16
      %v1468 = vrot.slane %v1466, 4
      %v1469 = vor.u32 %v1468, %v1464
      %v1470 = vrot.slane %v1469, 4
      %v1472 = vshll.u32 %v1105, 16
      %v1474 = vrot.slane %v1472, 5
      %v1475 = vsel %vm1139, %v1470, %v1474
      %v1477 = vshrl.u32 %v1106, 16
      %v1479 = vrot.slane %v1477, 4
      %v1480 = vshll.u32 %v1106, 16
      %v1482 = vrot.slane %v1480, 5
      %v1483 = vor.u32 %v1479, %v1482
      %v1484 = vrot.slane %v1483, 4
      %v1486 = vshll.u32 %v1107, 16
      %v1488 = vrot.slane %v1486, 5
      %v1489 = vsel %vm1139, %v1484, %v1488
      %v1490 = vshrl.u32 %v1107, 16
      %v1492 = vrot.slane %v1490, 4
      %v1493 = vor.u32 %v1492, %v1488
      %v1494 = vrot.slane %v1493, 4
      %v1496 = vshll.u32 %v1108, 16
      %v1498 = vrot.slane %v1496, 5
      %v1499 = vsel %vm1139, %v1494, %v1498
      %v1501 = vshrl.u32 %v1109, 16
      %v1503 = vrot.slane %v1501, 4
      %v1504 = vshll.u32 %v1109, 16
      %v1506 = vrot.slane %v1504, 5
      %v1507 = vor.u32 %v1503, %v1506
      %v1508 = vrot.slane %v1507, 4
      %v1510 = vshll.u32 %v1110, 16
      %v1512 = vrot.slane %v1510, 5
      %v1513 = vsel %vm1139, %v1508, %v1512
      %v1514 = vshrl.u32 %v1110, 16
      %v1516 = vrot.slane %v1514, 4
      %v1517 = vor.u32 %v1516, %v1512
      %v1518 = vrot.slane %v1517, 4
      %v1520 = vshll.u32 %v1111, 16
      %v1522 = vrot.slane %v1520, 5
      %v1523 = vsel %vm1139, %v1518, %v1522
      %vm1572 = vcmask 1042432
      %vm1573 = vcmask 1046532
      %vm1574 = vmor %vm1572, %vm1573
      %v1575 = vrot.slane %v1064, 5
      %v1576 = vrot.slane %v1575, 4
      %v1577 = vrot.slane %v1065, 5
      %v1578 = vsel %vm1574, %v1576, %v1577
      %v1579 = vrot.slane %v1577, 4
      %v1580 = vrot.slane %v1066, 5
      %v1581 = vsel %vm1574, %v1579, %v1580
      %v1582 = vrot.slane %v1067, 5
      %v1583 = vrot.slane %v1582, 4
      %v1584 = vrot.slane %v1068, 5
      %v1585 = vsel %vm1574, %v1583, %v1584
      %v1586 = vrot.slane %v1584, 4
      %v1587 = vrot.slane %v1069, 5
      %v1588 = vsel %vm1574, %v1586, %v1587
      %v1589 = vrot.slane %v1070, 5
      %v1590 = vrot.slane %v1589, 4
      %v1591 = vrot.slane %v1071, 5
      %v1592 = vsel %vm1574, %v1590, %v1591
      %v1593 = vrot.slane %v1591, 4
      %v1594 = vrot.slane %v1072, 5
      %v1595 = vsel %vm1574, %v1593, %v1594
      %v1596 = vrot.slane %v1073, 5
      %v1597 = vrot.slane %v1596, 4
      %v1598 = vrot.slane %v1074, 5
      %v1599 = vsel %vm1574, %v1597, %v1598
      %v1600 = vrot.slane %v1598, 4
      %v1601 = vrot.slane %v1075, 5
      %v1602 = vsel %vm1574, %v1600, %v1601
      %v1603 = vrot.slane %v1076, 5
      %v1604 = vrot.slane %v1603, 4
      %v1605 = vrot.slane %v1077, 5
      %v1606 = vsel %vm1574, %v1604, %v1605
      %v1607 = vrot.slane %v1605, 4
      %v1608 = vrot.slane %v1078, 5
      %v1609 = vsel %vm1574, %v1607, %v1608
      %v1610 = vrot.slane %v1079, 5
      %v1611 = vrot.slane %v1610, 4
      %v1612 = vrot.slane %v1080, 5
      %v1613 = vsel %vm1574, %v1611, %v1612
      %v1614 = vrot.slane %v1612, 4
      %v1615 = vrot.slane %v1081, 5
      %v1616 = vsel %vm1574, %v1614, %v1615
      %v1617 = vrot.slane %v1082, 5
      %v1618 = vrot.slane %v1617, 4
      %v1619 = vrot.slane %v1083, 5
      %v1620 = vsel %vm1574, %v1618, %v1619
      %v1621 = vrot.slane %v1619, 4
      %v1622 = vrot.slane %v1084, 5
      %v1623 = vsel %vm1574, %v1621, %v1622
      %v1624 = vrot.slane %v1085, 5
      %v1625 = vrot.slane %v1624, 4
      %v1626 = vrot.slane %v1086, 5
      %v1627 = vsel %vm1574, %v1625, %v1626
      %v1628 = vrot.slane %v1626, 4
      %v1629 = vrot.slane %v1087, 5
      %v1630 = vsel %vm1574, %v1628, %v1629
      %v1631 = vrot.slane %v1088, 5
      %v1632 = vrot.slane %v1631, 4
      %v1633 = vrot.slane %v1089, 5
      %v1634 = vsel %vm1574, %v1632, %v1633
      %v1635 = vrot.slane %v1633, 4
      %v1636 = vrot.slane %v1090, 5
      %v1637 = vsel %vm1574, %v1635, %v1636
      %v1638 = vrot.slane %v1091, 5
      %v1639 = vrot.slane %v1638, 4
      %v1640 = vrot.slane %v1092, 5
      %v1641 = vsel %vm1574, %v1639, %v1640
      %v1642 = vrot.slane %v1640, 4
      %v1643 = vrot.slane %v1093, 5
      %v1644 = vsel %vm1574, %v1642, %v1643
      %v1645 = vrot.slane %v1094, 5
      %v1646 = vrot.slane %v1645, 4
      %v1647 = vrot.slane %v1095, 5
      %v1648 = vsel %vm1574, %v1646, %v1647
      %v1649 = vrot.slane %v1647, 4
      %v1650 = vrot.slane %v1096, 5
      %v1651 = vsel %vm1574, %v1649, %v1650
      %v1652 = vrot.slane %v1097, 5
      %v1653 = vrot.slane %v1652, 4
      %v1654 = vrot.slane %v1098, 5
      %v1655 = vsel %vm1574, %v1653, %v1654
      %v1656 = vrot.slane %v1654, 4
      %v1657 = vrot.slane %v1099, 5
      %v1658 = vsel %vm1574, %v1656, %v1657
      %v1659 = vrot.slane %v1100, 5
      %v1660 = vrot.slane %v1659, 4
      %v1661 = vrot.slane %v1101, 5
      %v1662 = vsel %vm1574, %v1660, %v1661
      %v1663 = vrot.slane %v1661, 4
      %v1664 = vrot.slane %v1102, 5
      %v1665 = vsel %vm1574, %v1663, %v1664
      %v1666 = vrot.slane %v1103, 5
      %v1667 = vrot.slane %v1666, 4
      %v1668 = vrot.slane %v1104, 5
      %v1669 = vsel %vm1574, %v1667, %v1668
      %v1670 = vrot.slane %v1668, 4
      %v1671 = vrot.slane %v1105, 5
      %v1672 = vsel %vm1574, %v1670, %v1671
      %v1673 = vrot.slane %v1106, 5
      %v1674 = vrot.slane %v1673, 4
      %v1675 = vrot.slane %v1107, 5
      %v1676 = vsel %vm1574, %v1674, %v1675
      %v1677 = vrot.slane %v1675, 4
      %v1678 = vrot.slane %v1108, 5
      %v1679 = vsel %vm1574, %v1677, %v1678
      %v1680 = vrot.slane %v1109, 5
      %v1681 = vrot.slane %v1680, 4
      %v1682 = vrot.slane %v1110, 5
      %v1683 = vsel %vm1574, %v1681, %v1682
      %v1684 = vrot.slane %v1682, 4
      %v1685 = vrot.slane %v1111, 5
      %v1686 = vsel %vm1574, %v1684, %v1685
      %v1688 = vshrl.u32 %v1112, 16
      %v1690 = vrot.slane %v1688, 4
      %v1691 = vshll.u32 %v1112, 16
      %v1693 = vrot.slane %v1691, 5
      %v1694 = vor.u32 %v1690, %v1693
      %v1695 = vrot.slane %v1694, 4
      %v1697 = vshll.u32 %v1113, 16
      %v1699 = vrot.slane %v1697, 5
      %v1700 = vsel %vm1139, %v1695, %v1699
      %v1701 = vshrl.u32 %v1113, 16
      %v1703 = vrot.slane %v1701, 4
      %v1704 = vor.u32 %v1703, %v1699
      %v1705 = vrot.slane %v1704, 4
      %v1707 = vshll.u32 %v1114, 16
      %v1709 = vrot.slane %v1707, 5
      %v1710 = vsel %vm1139, %v1705, %v1709
      %v1714 = vrot.slane %v1112, 5
      %v1715 = vrot.slane %v1714, 4
      %v1716 = vrot.slane %v1113, 5
      %v1717 = vsel %vm1574, %v1715, %v1716
      %v1718 = vrot.slane %v1716, 4
      %v1719 = vrot.slane %v1114, 5
      %v1720 = vsel %vm1574, %v1718, %v1719
      %v1722 = vshrl.u32 %v1115, 16
      %v1724 = vrot.slane %v1722, 4
      %v1725 = vshll.u32 %v1115, 16
      %v1727 = vrot.slane %v1725, 5
      %v1728 = vor.u32 %v1724, %v1727
      %v1729 = vrot.slane %v1728, 4
      %v1731 = vshll.u32 %v1116, 16
      %v1733 = vrot.slane %v1731, 5
      %v1734 = vsel %vm1139, %v1729, %v1733
      %v1735 = vshrl.u32 %v1116, 16
      %v1737 = vrot.slane %v1735, 4
      %v1738 = vor.u32 %v1737, %v1733
      %v1739 = vrot.slane %v1738, 4
      %v1741 = vshll.u32 %v1117, 16
      %v1743 = vrot.slane %v1741, 5
      %v1744 = vsel %vm1139, %v1739, %v1743
      %v1748 = vrot.slane %v1115, 5
      %v1749 = vrot.slane %v1748, 4
      %v1750 = vrot.slane %v1116, 5
      %v1751 = vsel %vm1574, %v1749, %v1750
      %v1752 = vrot.slane %v1750, 4
      %v1753 = vrot.slane %v1117, 5
      %v1754 = vsel %vm1574, %v1752, %v1753
      %v1755 = vunpack.c.l.b16 %v1064
      %v1756 = vunpack.c.l.b16 %v1065
      %v1757 = vunpack.c.l.b16 %v1067
      %v1758 = vunpack.c.l.b16 %v1068
      %v1759 = vunpack.c.l.b16 %v1070
      %v1760 = vunpack.c.l.b16 %v1071
      %v1761 = vunpack.c.l.b16 %v1073
      %v1762 = vunpack.c.l.b16 %v1074
      %v1763 = vunpack.c.l.b16 %v1076
      %v1764 = vunpack.c.l.b16 %v1077
      %v1765 = vunpack.c.l.b16 %v1079
      %v1766 = vunpack.c.l.b16 %v1080
      %v1767 = vunpack.c.l.b16 %v1082
      %v1768 = vunpack.c.l.b16 %v1083
      %v1769 = vunpack.c.l.b16 %v1085
      %v1770 = vunpack.c.l.b16 %v1086
      %v1771 = vunpack.c.l.b16 %v1088
      %v1772 = vunpack.c.l.b16 %v1089
      %v1773 = vunpack.c.l.b16 %v1091
      %v1774 = vunpack.c.l.b16 %v1092
      %v1775 = vunpack.c.l.b16 %v1094
      %v1776 = vunpack.c.l.b16 %v1095
      %v1777 = vunpack.c.l.b16 %v1097
      %v1778 = vunpack.c.l.b16 %v1098
      %v1779 = vunpack.c.l.b16 %v1100
      %v1780 = vunpack.c.l.b16 %v1101
      %v1781 = vunpack.c.l.b16 %v1103
      %v1782 = vunpack.c.l.b16 %v1104
      %v1783 = vunpack.c.l.b16 %v1106
      %v1784 = vunpack.c.l.b16 %v1107
      %v1785 = vunpack.c.l.b16 %v1109
      %v1786 = vunpack.c.l.b16 %v1110
      %v1787 = vpack.c.b16 %v1756, %v1755
      %v1788 = vpack.c.b16 %v1758, %v1757
      %v1789 = vpack.c.b16 %v1760, %v1759
      %v1790 = vpack.c.b16 %v1762, %v1761
      %v1791 = vpack.c.b16 %v1764, %v1763
      %v1792 = vpack.c.b16 %v1766, %v1765
      %v1793 = vpack.c.b16 %v1768, %v1767
      %v1794 = vpack.c.b16 %v1770, %v1769
      %v1795 = vpack.c.b16 %v1772, %v1771
      %v1796 = vpack.c.b16 %v1774, %v1773
      %v1797 = vpack.c.b16 %v1776, %v1775
      %v1798 = vpack.c.b16 %v1778, %v1777
      %v1799 = vpack.c.b16 %v1780, %v1779
      %v1800 = vpack.c.b16 %v1782, %v1781
      %v1801 = vpack.c.b16 %v1784, %v1783
      %v1802 = vpack.c.b16 %v1786, %v1785
      %v1803 = vunpack.c.l.b16 %v1153
      %v1804 = vunpack.c.l.b16 %v1163
      %v1805 = vunpack.c.l.b16 %v1177
      %v1806 = vunpack.c.l.b16 %v1187
      %v1807 = vunpack.c.l.b16 %v1201
      %v1808 = vunpack.c.l.b16 %v1211
      %v1809 = vunpack.c.l.b16 %v1225
      %v1810 = vunpack.c.l.b16 %v1235
      %v1811 = vunpack.c.l.b16 %v1249
      %v1812 = vunpack.c.l.b16 %v1259
      %v1813 = vunpack.c.l.b16 %v1273
      %v1814 = vunpack.c.l.b16 %v1283
      %v1815 = vunpack.c.l.b16 %v1297
      %v1816 = vunpack.c.l.b16 %v1307
      %v1817 = vunpack.c.l.b16 %v1321
      %v1818 = vunpack.c.l.b16 %v1331
      %v1819 = vunpack.c.l.b16 %v1345
      %v1820 = vunpack.c.l.b16 %v1355
      %v1821 = vunpack.c.l.b16 %v1369
      %v1822 = vunpack.c.l.b16 %v1379
      %v1823 = vunpack.c.l.b16 %v1393
      %v1824 = vunpack.c.l.b16 %v1403
      %v1825 = vunpack.c.l.b16 %v1417
      %v1826 = vunpack.c.l.b16 %v1427
      %v1827 = vunpack.c.l.b16 %v1441
      %v1828 = vunpack.c.l.b16 %v1451
      %v1829 = vunpack.c.l.b16 %v1465
      %v1830 = vunpack.c.l.b16 %v1475
      %v1831 = vunpack.c.l.b16 %v1489
      %v1832 = vunpack.c.l.b16 %v1499
      %v1833 = vunpack.c.l.b16 %v1513
      %v1834 = vunpack.c.l.b16 %v1523
      %v1835 = vpack.c.b16 %v1804, %v1803
      %v1836 = vpack.c.b16 %v1806, %v1805
      %v1837 = vpack.c.b16 %v1808, %v1807
      %v1838 = vpack.c.b16 %v1810, %v1809
      %v1839 = vpack.c.b16 %v1812, %v1811
      %v1840 = vpack.c.b16 %v1814, %v1813
      %v1841 = vpack.c.b16 %v1816, %v1815
      %v1842 = vpack.c.b16 %v1818, %v1817
      %v1843 = vpack.c.b16 %v1820, %v1819
      %v1844 = vpack.c.b16 %v1822, %v1821
      %v1845 = vpack.c.b16 %v1824, %v1823
      %v1846 = vpack.c.b16 %v1826, %v1825
      %v1847 = vpack.c.b16 %v1828, %v1827
      %v1848 = vpack.c.b16 %v1830, %v1829
      %v1849 = vpack.c.b16 %v1832, %v1831
      %v1850 = vpack.c.b16 %v1834, %v1833
      %1851 = vrot.lane.b32.xlu0 %v1835, 16
      %v1852 = vpop.permute.xlu0 %1851
      %1853 = vrot.lane.b32.xlu0 %v1836, 16
      %v1854 = vpop.permute.xlu0 %1853
      %1855 = vrot.lane.b32.xlu0 %v1837, 16
      %v1856 = vpop.permute.xlu0 %1855
      %1857 = vrot.lane.b32.xlu0 %v1838, 16
      %v1858 = vpop.permute.xlu0 %1857
      %1859 = vrot.lane.b32.xlu0 %v1839, 16
      %v1860 = vpop.permute.xlu0 %1859
      %1861 = vrot.lane.b32.xlu0 %v1840, 16
      %v1862 = vpop.permute.xlu0 %1861
      %1863 = vrot.lane.b32.xlu0 %v1841, 16
      %v1864 = vpop.permute.xlu0 %1863
      %1865 = vrot.lane.b32.xlu0 %v1842, 16
      %v1866 = vpop.permute.xlu0 %1865
      %1867 = vrot.lane.b32.xlu0 %v1843, 16
      %v1868 = vpop.permute.xlu0 %1867
      %1869 = vrot.lane.b32.xlu0 %v1844, 16
      %v1870 = vpop.permute.xlu0 %1869
      %1871 = vrot.lane.b32.xlu0 %v1845, 16
      %v1872 = vpop.permute.xlu0 %1871
      %1873 = vrot.lane.b32.xlu0 %v1846, 16
      %v1874 = vpop.permute.xlu0 %1873
      %1875 = vrot.lane.b32.xlu0 %v1847, 16
      %v1876 = vpop.permute.xlu0 %1875
      %1877 = vrot.lane.b32.xlu0 %v1848, 16
      %v1878 = vpop.permute.xlu0 %1877
      %1879 = vrot.lane.b32.xlu0 %v1849, 16
      %v1880 = vpop.permute.xlu0 %1879
      %1881 = vrot.lane.b32.xlu0 %v1850, 16
      %v1882 = vpop.permute.xlu0 %1881
      %v1883 = vunpack.c.l.b16 %v1578
      %v1884 = vunpack.c.l.b16 %v1581
      %v1885 = vunpack.c.l.b16 %v1585
      %v1886 = vunpack.c.l.b16 %v1588
      %v1887 = vunpack.c.l.b16 %v1592
      %v1888 = vunpack.c.l.b16 %v1595
      %v1889 = vunpack.c.l.b16 %v1599
      %v1890 = vunpack.c.l.b16 %v1602
      %v1891 = vunpack.c.l.b16 %v1606
      %v1892 = vunpack.c.l.b16 %v1609
      %v1893 = vunpack.c.l.b16 %v1613
      %v1894 = vunpack.c.l.b16 %v1616
      %v1895 = vunpack.c.l.b16 %v1620
      %v1896 = vunpack.c.l.b16 %v1623
      %v1897 = vunpack.c.l.b16 %v1627
      %v1898 = vunpack.c.l.b16 %v1630
      %v1899 = vunpack.c.l.b16 %v1634
      %v1900 = vunpack.c.l.b16 %v1637
      %v1901 = vunpack.c.l.b16 %v1641
      %v1902 = vunpack.c.l.b16 %v1644
      %v1903 = vunpack.c.l.b16 %v1648
      %v1904 = vunpack.c.l.b16 %v1651
      %v1905 = vunpack.c.l.b16 %v1655
      %v1906 = vunpack.c.l.b16 %v1658
      %v1907 = vunpack.c.l.b16 %v1662
      %v1908 = vunpack.c.l.b16 %v1665
      %v1909 = vunpack.c.l.b16 %v1669
      %v1910 = vunpack.c.l.b16 %v1672
      %v1911 = vunpack.c.l.b16 %v1676
      %v1912 = vunpack.c.l.b16 %v1679
      %v1913 = vunpack.c.l.b16 %v1683
      %v1914 = vunpack.c.l.b16 %v1686
      %v1915 = vpack.c.b16 %v1884, %v1883
      %v1916 = vpack.c.b16 %v1886, %v1885
      %v1917 = vpack.c.b16 %v1888, %v1887
      %v1918 = vpack.c.b16 %v1890, %v1889
      %v1919 = vpack.c.b16 %v1892, %v1891
      %v1920 = vpack.c.b16 %v1894, %v1893
      %v1921 = vpack.c.b16 %v1896, %v1895
      %v1922 = vpack.c.b16 %v1898, %v1897
      %v1923 = vpack.c.b16 %v1900, %v1899
      %v1924 = vpack.c.b16 %v1902, %v1901
      %v1925 = vpack.c.b16 %v1904, %v1903
      %v1926 = vpack.c.b16 %v1906, %v1905
      %v1927 = vpack.c.b16 %v1908, %v1907
      %v1928 = vpack.c.b16 %v1910, %v1909
      %v1929 = vpack.c.b16 %v1912, %v1911
      %v1930 = vpack.c.b16 %v1914, %v1913
      %1931 = vrot.lane.b32.xlu0 %v1915, 32
      %v1932 = vpop.permute.xlu0 %1931
      %1933 = vrot.lane.b32.xlu0 %v1916, 32
      %v1934 = vpop.permute.xlu0 %1933
      %1935 = vrot.lane.b32.xlu0 %v1917, 32
      %v1936 = vpop.permute.xlu0 %1935
      %1937 = vrot.lane.b32.xlu0 %v1918, 32
      %v1938 = vpop.permute.xlu0 %1937
      %1939 = vrot.lane.b32.xlu0 %v1919, 32
      %v1940 = vpop.permute.xlu0 %1939
      %1941 = vrot.lane.b32.xlu0 %v1920, 32
      %v1942 = vpop.permute.xlu0 %1941
      %1943 = vrot.lane.b32.xlu0 %v1921, 32
      %v1944 = vpop.permute.xlu0 %1943
      %1945 = vrot.lane.b32.xlu0 %v1922, 32
      %v1946 = vpop.permute.xlu0 %1945
      %1947 = vrot.lane.b32.xlu0 %v1923, 32
      %v1948 = vpop.permute.xlu0 %1947
      %1949 = vrot.lane.b32.xlu0 %v1924, 32
      %v1950 = vpop.permute.xlu0 %1949
      %1951 = vrot.lane.b32.xlu0 %v1925, 32
      %v1952 = vpop.permute.xlu0 %1951
      %1953 = vrot.lane.b32.xlu0 %v1926, 32
      %v1954 = vpop.permute.xlu0 %1953
      %1955 = vrot.lane.b32.xlu0 %v1927, 32
      %v1956 = vpop.permute.xlu0 %1955
      %1957 = vrot.lane.b32.xlu0 %v1928, 32
      %v1958 = vpop.permute.xlu0 %1957
      %1959 = vrot.lane.b32.xlu0 %v1929, 32
      %v1960 = vpop.permute.xlu0 %1959
      %1961 = vrot.lane.b32.xlu0 %v1930, 32
      %v1962 = vpop.permute.xlu0 %1961
      %v1963 = vunpack.c.l.b16 %v1112
      %v1964 = vunpack.c.l.b16 %v1113
      %v1965 = vpack.c.b16 %v1964, %v1963
      %1966 = vrot.lane.b32.xlu0 %v1788, 48
      %v1967 = vpop.permute.xlu0 %1966
      %1968 = vrot.lane.b32.xlu0 %v1789, 48
      %v1969 = vpop.permute.xlu0 %1968
      %1970 = vrot.lane.b32.xlu0 %v1790, 48
      %v1971 = vpop.permute.xlu0 %1970
      %1972 = vrot.lane.b32.xlu0 %v1791, 48
      %v1973 = vpop.permute.xlu0 %1972
      %1974 = vrot.lane.b32.xlu0 %v1792, 48
      %v1975 = vpop.permute.xlu0 %1974
      %1976 = vrot.lane.b32.xlu0 %v1793, 48
      %v1977 = vpop.permute.xlu0 %1976
      %1978 = vrot.lane.b32.xlu0 %v1794, 48
      %v1979 = vpop.permute.xlu0 %1978
      %1980 = vrot.lane.b32.xlu0 %v1795, 48
      %v1981 = vpop.permute.xlu0 %1980
      %1982 = vrot.lane.b32.xlu0 %v1796, 48
      %v1983 = vpop.permute.xlu0 %1982
      %1984 = vrot.lane.b32.xlu0 %v1797, 48
      %v1985 = vpop.permute.xlu0 %1984
      %1986 = vrot.lane.b32.xlu0 %v1798, 48
      %v1987 = vpop.permute.xlu0 %1986
      %1988 = vrot.lane.b32.xlu0 %v1799, 48
      %v1989 = vpop.permute.xlu0 %1988
      %1990 = vrot.lane.b32.xlu0 %v1800, 48
      %v1991 = vpop.permute.xlu0 %1990
      %1992 = vrot.lane.b32.xlu0 %v1801, 48
      %v1993 = vpop.permute.xlu0 %1992
      %1994 = vrot.lane.b32.xlu0 %v1802, 48
      %v1995 = vpop.permute.xlu0 %1994
      %1996 = vrot.lane.b32.xlu0 %v1965, 48
      %v1997 = vpop.permute.xlu0 %1996
      %v1998 = vunpack.c.l.b16 %v1700
      %v1999 = vunpack.c.l.b16 %v1710
      %v2000 = vpack.c.b16 %v1999, %v1998
      %2001 = vrot.lane.b32.xlu0 %v1836, 64
      %v2002 = vpop.permute.xlu0 %2001
      %2003 = vrot.lane.b32.xlu0 %v1837, 64
      %v2004 = vpop.permute.xlu0 %2003
      %2005 = vrot.lane.b32.xlu0 %v1838, 64
      %v2006 = vpop.permute.xlu0 %2005
      %2007 = vrot.lane.b32.xlu0 %v1839, 64
      %v2008 = vpop.permute.xlu0 %2007
      %2009 = vrot.lane.b32.xlu0 %v1840, 64
      %v2010 = vpop.permute.xlu0 %2009
      %2011 = vrot.lane.b32.xlu0 %v1841, 64
      %v2012 = vpop.permute.xlu0 %2011
      %2013 = vrot.lane.b32.xlu0 %v1842, 64
      %v2014 = vpop.permute.xlu0 %2013
      %2015 = vrot.lane.b32.xlu0 %v1843, 64
      %v2016 = vpop.permute.xlu0 %2015
      %2017 = vrot.lane.b32.xlu0 %v1844, 64
      %v2018 = vpop.permute.xlu0 %2017
      %2019 = vrot.lane.b32.xlu0 %v1845, 64
      %v2020 = vpop.permute.xlu0 %2019
      %2021 = vrot.lane.b32.xlu0 %v1846, 64
      %v2022 = vpop.permute.xlu0 %2021
      %2023 = vrot.lane.b32.xlu0 %v1847, 64
      %v2024 = vpop.permute.xlu0 %2023
      %2025 = vrot.lane.b32.xlu0 %v1848, 64
      %v2026 = vpop.permute.xlu0 %2025
      %2027 = vrot.lane.b32.xlu0 %v1849, 64
      %v2028 = vpop.permute.xlu0 %2027
      %2029 = vrot.lane.b32.xlu0 %v1850, 64
      %v2030 = vpop.permute.xlu0 %2029
      %2031 = vrot.lane.b32.xlu0 %v2000, 64
      %v2032 = vpop.permute.xlu0 %2031
      %v2033 = vunpack.c.l.b16 %v1717
      %v2034 = vunpack.c.l.b16 %v1720
      %v2035 = vpack.c.b16 %v2034, %v2033
      %2036 = vrot.lane.b32.xlu0 %v1916, 80
      %v2037 = vpop.permute.xlu0 %2036
      %2038 = vrot.lane.b32.xlu0 %v1917, 80
      %v2039 = vpop.permute.xlu0 %2038
      %2040 = vrot.lane.b32.xlu0 %v1918, 80
      %v2041 = vpop.permute.xlu0 %2040
      %2042 = vrot.lane.b32.xlu0 %v1919, 80
      %v2043 = vpop.permute.xlu0 %2042
      %2044 = vrot.lane.b32.xlu0 %v1920, 80
      %v2045 = vpop.permute.xlu0 %2044
      %2046 = vrot.lane.b32.xlu0 %v1921, 80
      %v2047 = vpop.permute.xlu0 %2046
      %2048 = vrot.lane.b32.xlu0 %v1922, 80
      %v2049 = vpop.permute.xlu0 %2048
      %2050 = vrot.lane.b32.xlu0 %v1923, 80
      %v2051 = vpop.permute.xlu0 %2050
      %2052 = vrot.lane.b32.xlu0 %v1924, 80
      %v2053 = vpop.permute.xlu0 %2052
      %2054 = vrot.lane.b32.xlu0 %v1925, 80
      %v2055 = vpop.permute.xlu0 %2054
      %2056 = vrot.lane.b32.xlu0 %v1926, 80
      %v2057 = vpop.permute.xlu0 %2056
      %2058 = vrot.lane.b32.xlu0 %v1927, 80
      %v2059 = vpop.permute.xlu0 %2058
      %2060 = vrot.lane.b32.xlu0 %v1928, 80
      %v2061 = vpop.permute.xlu0 %2060
      %2062 = vrot.lane.b32.xlu0 %v1929, 80
      %v2063 = vpop.permute.xlu0 %2062
      %2064 = vrot.lane.b32.xlu0 %v1930, 80
      %v2065 = vpop.permute.xlu0 %2064
      %2066 = vrot.lane.b32.xlu0 %v2035, 80
      %v2067 = vpop.permute.xlu0 %2066
      %v2068 = vunpack.c.l.b16 %v1115
      %v2069 = vunpack.c.l.b16 %v1116
      %v2070 = vpack.c.b16 %v2069, %v2068
      %2071 = vrot.lane.b32.xlu0 %v1789, 96
      %v2072 = vpop.permute.xlu0 %2071
      %2073 = vrot.lane.b32.xlu0 %v1790, 96
      %v2074 = vpop.permute.xlu0 %2073
      %2075 = vrot.lane.b32.xlu0 %v1791, 96
      %v2076 = vpop.permute.xlu0 %2075
      %2077 = vrot.lane.b32.xlu0 %v1792, 96
      %v2078 = vpop.permute.xlu0 %2077
      %2079 = vrot.lane.b32.xlu0 %v1793, 96
      %v2080 = vpop.permute.xlu0 %2079
      %2081 = vrot.lane.b32.xlu0 %v1794, 96
      %v2082 = vpop.permute.xlu0 %2081
      %2083 = vrot.lane.b32.xlu0 %v1795, 96
      %v2084 = vpop.permute.xlu0 %2083
      %2085 = vrot.lane.b32.xlu0 %v1796, 96
      %v2086 = vpop.permute.xlu0 %2085
      %2087 = vrot.lane.b32.xlu0 %v1797, 96
      %v2088 = vpop.permute.xlu0 %2087
      %2089 = vrot.lane.b32.xlu0 %v1798, 96
      %v2090 = vpop.permute.xlu0 %2089
      %2091 = vrot.lane.b32.xlu0 %v1799, 96
      %v2092 = vpop.permute.xlu0 %2091
      %2093 = vrot.lane.b32.xlu0 %v1800, 96
      %v2094 = vpop.permute.xlu0 %2093
      %2095 = vrot.lane.b32.xlu0 %v1801, 96
      %v2096 = vpop.permute.xlu0 %2095
      %2097 = vrot.lane.b32.xlu0 %v1802, 96
      %v2098 = vpop.permute.xlu0 %2097
      %2099 = vrot.lane.b32.xlu0 %v1965, 96
      %v2100 = vpop.permute.xlu0 %2099
      %2101 = vrot.lane.b32.xlu0 %v2070, 96
      %v2102 = vpop.permute.xlu0 %2101
      %v2103 = vunpack.c.l.b16 %v1734
      %v2104 = vunpack.c.l.b16 %v1744
      %v2105 = vpack.c.b16 %v2104, %v2103
      %2106 = vrot.lane.b32.xlu0 %v1837, 112
      %v2107 = vpop.permute.xlu0 %2106
      %2108 = vrot.lane.b32.xlu0 %v1838, 112
      %v2109 = vpop.permute.xlu0 %2108
      %2110 = vrot.lane.b32.xlu0 %v1839, 112
      %v2111 = vpop.permute.xlu0 %2110
      %2112 = vrot.lane.b32.xlu0 %v1840, 112
      %v2113 = vpop.permute.xlu0 %2112
      %2114 = vrot.lane.b32.xlu0 %v1841, 112
      %v2115 = vpop.permute.xlu0 %2114
      %2116 = vrot.lane.b32.xlu0 %v1842, 112
      %v2117 = vpop.permute.xlu0 %2116
      %2118 = vrot.lane.b32.xlu0 %v1843, 112
      %v2119 = vpop.permute.xlu0 %2118
      %2120 = vrot.lane.b32.xlu0 %v1844, 112
      %v2121 = vpop.permute.xlu0 %2120
      %2122 = vrot.lane.b32.xlu0 %v1845, 112
      %v2123 = vpop.permute.xlu0 %2122
      %2124 = vrot.lane.b32.xlu0 %v1846, 112
      %v2125 = vpop.permute.xlu0 %2124
      %2126 = vrot.lane.b32.xlu0 %v1847, 112
      %v2127 = vpop.permute.xlu0 %2126
      %2128 = vrot.lane.b32.xlu0 %v1848, 112
      %v2129 = vpop.permute.xlu0 %2128
      %2130 = vrot.lane.b32.xlu0 %v1849, 112
      %v2131 = vpop.permute.xlu0 %2130
      %2132 = vrot.lane.b32.xlu0 %v1850, 112
      %v2133 = vpop.permute.xlu0 %2132
      %2134 = vrot.lane.b32.xlu0 %v2000, 112
      %v2135 = vpop.permute.xlu0 %2134
      %2136 = vrot.lane.b32.xlu0 %v2105, 112
      %v2137 = vpop.permute.xlu0 %2136
      %v2138 = vunpack.c.l.b16 %v1751
      %v2139 = vunpack.c.l.b16 %v1754
      %v2140 = vpack.c.b16 %v2139, %v2138
      %vm2141 = vcmask 130048
      %v2144 = vsel %vm2141, %v1787, %v1852
      %v2147 = vsel %vm2141, %v1788, %v1854
      %v2150 = vsel %vm2141, %v1789, %v1856
      %v2153 = vsel %vm2141, %v1790, %v1858
      %v2156 = vsel %vm2141, %v1791, %v1860
      %v2159 = vsel %vm2141, %v1792, %v1862
      %v2162 = vsel %vm2141, %v1793, %v1864
      %v2165 = vsel %vm2141, %v1794, %v1866
      %v2168 = vsel %vm2141, %v1795, %v1868
      %v2171 = vsel %vm2141, %v1796, %v1870
      %v2174 = vsel %vm2141, %v1797, %v1872
      %v2177 = vsel %vm2141, %v1798, %v1874
      %v2180 = vsel %vm2141, %v1799, %v1876
      %v2183 = vsel %vm2141, %v1800, %v1878
      %v2186 = vsel %vm2141, %v1801, %v1880
      %v2189 = vsel %vm2141, %v1802, %v1882
      %vm2190 = vcmask 261120
      %v2192 = vsel %vm2190, %v2144, %v1932
      %v2194 = vsel %vm2190, %v2147, %v1934
      %v2196 = vsel %vm2190, %v2150, %v1936
      %v2198 = vsel %vm2190, %v2153, %v1938
      %v2200 = vsel %vm2190, %v2156, %v1940
      %v2202 = vsel %vm2190, %v2159, %v1942
      %v2204 = vsel %vm2190, %v2162, %v1944
      %v2206 = vsel %vm2190, %v2165, %v1946
      %v2208 = vsel %vm2190, %v2168, %v1948
      %v2210 = vsel %vm2190, %v2171, %v1950
      %v2212 = vsel %vm2190, %v2174, %v1952
      %v2214 = vsel %vm2190, %v2177, %v1954
      %v2216 = vsel %vm2190, %v2180, %v1956
      %v2218 = vsel %vm2190, %v2183, %v1958
      %v2220 = vsel %vm2190, %v2186, %v1960
      %v2222 = vsel %vm2190, %v2189, %v1962
      %vm2223 = vcmask 392192
      %v2225 = vsel %vm2223, %v2192, %v1967
      %v2227 = vsel %vm2223, %v2194, %v1969
      %v2229 = vsel %vm2223, %v2196, %v1971
      %v2231 = vsel %vm2223, %v2198, %v1973
      %v2233 = vsel %vm2223, %v2200, %v1975
      %v2235 = vsel %vm2223, %v2202, %v1977
      %v2237 = vsel %vm2223, %v2204, %v1979
      %v2239 = vsel %vm2223, %v2206, %v1981
      %v2241 = vsel %vm2223, %v2208, %v1983
      %v2243 = vsel %vm2223, %v2210, %v1985
      %v2245 = vsel %vm2223, %v2212, %v1987
      %v2247 = vsel %vm2223, %v2214, %v1989
      %v2249 = vsel %vm2223, %v2216, %v1991
      %v2251 = vsel %vm2223, %v2218, %v1993
      %v2253 = vsel %vm2223, %v2220, %v1995
      %v2255 = vsel %vm2223, %v2222, %v1997
      %vm2256 = vcmask 523264
      %v2258 = vsel %vm2256, %v2225, %v2002
      %v2260 = vsel %vm2256, %v2227, %v2004
      %v2262 = vsel %vm2256, %v2229, %v2006
      %v2264 = vsel %vm2256, %v2231, %v2008
      %v2266 = vsel %vm2256, %v2233, %v2010
      %v2268 = vsel %vm2256, %v2235, %v2012
      %v2270 = vsel %vm2256, %v2237, %v2014
      %v2272 = vsel %vm2256, %v2239, %v2016
      %v2274 = vsel %vm2256, %v2241, %v2018
      %v2276 = vsel %vm2256, %v2243, %v2020
      %v2278 = vsel %vm2256, %v2245, %v2022
      %v2280 = vsel %vm2256, %v2247, %v2024
      %v2282 = vsel %vm2256, %v2249, %v2026
      %v2284 = vsel %vm2256, %v2251, %v2028
      %v2286 = vsel %vm2256, %v2253, %v2030
      %v2288 = vsel %vm2256, %v2255, %v2032
      %vm2289 = vcmask 654336
      %v2291 = vsel %vm2289, %v2258, %v2037
      %v2293 = vsel %vm2289, %v2260, %v2039
      %v2295 = vsel %vm2289, %v2262, %v2041
      %v2297 = vsel %vm2289, %v2264, %v2043
      %v2299 = vsel %vm2289, %v2266, %v2045
      %v2301 = vsel %vm2289, %v2268, %v2047
      %v2303 = vsel %vm2289, %v2270, %v2049
      %v2305 = vsel %vm2289, %v2272, %v2051
      %v2307 = vsel %vm2289, %v2274, %v2053
      %v2309 = vsel %vm2289, %v2276, %v2055
      %v2311 = vsel %vm2289, %v2278, %v2057
      %v2313 = vsel %vm2289, %v2280, %v2059
      %v2315 = vsel %vm2289, %v2282, %v2061
      %v2317 = vsel %vm2289, %v2284, %v2063
      %v2319 = vsel %vm2289, %v2286, %v2065
      %v2321 = vsel %vm2289, %v2288, %v2067
      %vm2322 = vcmask 785408
      %v2324 = vsel %vm2322, %v2291, %v2072
      %v2326 = vsel %vm2322, %v2293, %v2074
      %v2328 = vsel %vm2322, %v2295, %v2076
      %v2330 = vsel %vm2322, %v2297, %v2078
      %v2332 = vsel %vm2322, %v2299, %v2080
      %v2334 = vsel %vm2322, %v2301, %v2082
      %v2336 = vsel %vm2322, %v2303, %v2084
      %v2338 = vsel %vm2322, %v2305, %v2086
      %v2340 = vsel %vm2322, %v2307, %v2088
      %v2342 = vsel %vm2322, %v2309, %v2090
      %v2344 = vsel %vm2322, %v2311, %v2092
      %v2346 = vsel %vm2322, %v2313, %v2094
      %v2348 = vsel %vm2322, %v2315, %v2096
      %v2350 = vsel %vm2322, %v2317, %v2098
      %v2352 = vsel %vm2322, %v2319, %v2100
      %v2354 = vsel %vm2322, %v2321, %v2102
      %vm2355 = vcmask 916480
      %v2357 = vsel %vm2355, %v2324, %v2107
      %v2360 = vsel %vm2355, %v2326, %v2109
      %v2363 = vsel %vm2355, %v2328, %v2111
      %v2366 = vsel %vm2355, %v2330, %v2113
      %v2369 = vsel %vm2355, %v2332, %v2115
      %v2372 = vsel %vm2355, %v2334, %v2117
      %v2375 = vsel %vm2355, %v2336, %v2119
      %v2378 = vsel %vm2355, %v2338, %v2121
      %v2381 = vsel %vm2355, %v2340, %v2123
      %v2384 = vsel %vm2355, %v2342, %v2125
      %v2387 = vsel %vm2355, %v2344, %v2127
      %v2390 = vsel %vm2355, %v2346, %v2129
      %v2393 = vsel %vm2355, %v2348, %v2131
      %v2396 = vsel %vm2355, %v2350, %v2133
      %v2399 = vsel %vm2355, %v2352, %v2135
      %v2402 = vsel %vm2355, %v2354, %v2137
      %v2405 = vlaneseq
      %v2406 = vshrl.u32 %v2405, 7
      %v2407 = vsub.s32 0, %v2406
      %v2408 = vrot.slane %v1136, %v2407
      %v2428 = vunpack.c.l.b16 %v1118
      %v2429 = vunpack.c.l.b16 %v1119
      %v2430 = vunpack.c.l.b16 %v1120
      %v2431 = vunpack.c.l.b16 %v1121
      %v2432 = vunpack.c.l.b16 %v1122
      %v2433 = vunpack.c.l.b16 %v1123
      %v2434 = vunpack.c.l.b16 %v1124
      %v2435 = vunpack.c.l.b16 %v1125
      %v2436 = vunpack.c.l.b16 %v1126
      %v2437 = vunpack.c.l.b16 %v1127
      %v2438 = vunpack.c.l.b16 %v1128
      %v2439 = vunpack.c.l.b16 %v1129
      %v2440 = vunpack.c.l.b16 %v1130
      %v2441 = vunpack.c.l.b16 %v1131
      %v2442 = vunpack.c.l.b16 %v1132
      %v2443 = vunpack.c.l.b16 %v1133
      %v2444 = vunpack.c.l.b16 %v1134
      %v2445 = vunpack.c.l.b16 %v1135
      %v2446 = vpack.c.b16 %v2429, %v2428
      %v2447 = vpack.c.b16 %v2431, %v2430
      %v2448 = vpack.c.b16 %v2433, %v2432
      %v2449 = vpack.c.b16 %v2435, %v2434
      %v2450 = vpack.c.b16 %v2437, %v2436
      %v2451 = vpack.c.b16 %v2439, %v2438
      %v2452 = vpack.c.b16 %v2441, %v2440
      %v2453 = vpack.c.b16 %v2443, %v2442
      %v2454 = vpack.c.b16 %v2445, %v2444
      %v2465 = vsel %vm2141, %v1917, 0
      %v2468 = vsel %vm2141, %v1918, 0
      %v2471 = vsel %vm2141, %v1919, 0
      %v2474 = vsel %vm2141, %v1920, 0
      %v2477 = vsel %vm2141, %v1921, 0
      %v2480 = vsel %vm2141, %v1922, 0
      %v2483 = vsel %vm2141, %v1923, 0
      %v2486 = vsel %vm2141, %v1924, 0
      %v2489 = vsel %vm2141, %v1925, 0
      %v2492 = vsel %vm2141, %v1926, 0
      %v2495 = vsel %vm2141, %v1927, 0
      %v2498 = vsel %vm2141, %v1928, 0
      %v2501 = vsel %vm2141, %v1929, 0
      %v2504 = vsel %vm2141, %v1930, 0
      %v2507 = vsel %vm2141, %v2035, 0
      %v2510 = vsel %vm2141, %v2140, 0
      %2512 = vmatprep.subr.bf16.mxu0 0
      %2513 = vmatpush1.bf16.msra.mxu0 %v2446
      %2514 = vmatprep.subr.bf16.mxu0 0
      %2515 = vmatpush1.bf16.msra.mxu0 %v2447
      %2516 = vmatprep.subr.bf16.mxu0 0
      %2517 = vmatpush1.bf16.msra.mxu0 %v2448
      %2518 = vmatprep.subr.bf16.mxu0 0
      %2519 = vmatpush1.bf16.msra.mxu0 %v2449
      %2520 = vmatprep.subr.bf16.mxu0 0
      %2521 = vmatpush1.bf16.msra.mxu0 %v2450
      %2522 = vmatprep.subr.bf16.mxu0 0
      %2523 = vmatpush1.bf16.msra.mxu0 %v2451
      %2524 = vmatprep.subr.bf16.mxu0 0
      %2525 = vmatpush1.bf16.msra.mxu0 %v2452
      %2526 = vmatprep.subr.bf16.mxu0 0
      %2527 = vmatpush1.bf16.msra.mxu0 %v2453
      %2528 = vmatprep.subr.bf16.mxu0 0
      %2529 = vmatpush1.bf16.msra.mxu0 %v2454
      %2530 = vmatprep.subr.bf16.mxu0 0
      %2531 = vmatpush1.bf16.msra.mxu0 0
      %2532 = vmatprep.subr.bf16.mxu0 0
      %2533 = vmatpush1.bf16.msra.mxu0 0
      %2534 = vmatprep.subr.bf16.mxu0 0
      %2535 = vmatpush1.bf16.msra.mxu0 0
      %2536 = vmatprep.subr.bf16.mxu0 0
      %2537 = vmatpush1.bf16.msra.mxu0 0
      %2538 = vmatprep.subr.bf16.mxu0 0
      %2539 = vmatpush1.bf16.msra.mxu0 0
      %2540 = vmatprep.subr.bf16.mxu0 0
      %2541 = vmatpush1.bf16.msra.mxu0 0
      %2542 = vmatprep.subr.bf16.mxu0 0
      %2543 = vmatpush1.bf16.msra.mxu0 0
      %2544 = vmatprep.mubr.bf16.mxu0 %v2465
      %2545 = vmatmul.mubr.bf16.gmra.mrb[0].mxu0 %v2357
      %v2546 = vpop.f32.mrb[0].mxu0
      %v2547 = vadd.f32 %v2408, %v2546
      %v2548 = vpop.f32.mrb[0].mxu0
      %v2549 = vpop.f32.mrb[0].mxu0
      %v2550 = vadd.f32 %v2408, %v2549
      %v2551 = vpop.f32.mrb[0].mxu0
      %2552 = vmatprep.mubr.bf16.mxu0 %v2468
      %2553 = vmatmul.mubr.bf16.gmra.mrb[0].mxu0 %v2360
      %v2554 = vpop.f32.mrb[0].mxu0
      %v2555 = vadd.f32 %v2408, %v2554
      %v2556 = vpop.f32.mrb[0].mxu0
      %v2557 = vpop.f32.mrb[0].mxu0
      %v2558 = vadd.f32 %v2408, %v2557
      %v2559 = vpop.f32.mrb[0].mxu0
      %2560 = vmatprep.mubr.bf16.mxu0 %v2471
      %2561 = vmatmul.mubr.bf16.gmra.mrb[0].mxu0 %v2363
      %v2562 = vpop.f32.mrb[0].mxu0
      %v2563 = vadd.f32 %v2408, %v2562
      %v2564 = vpop.f32.mrb[0].mxu0
      %v2565 = vpop.f32.mrb[0].mxu0
      %v2566 = vadd.f32 %v2408, %v2565
      %v2567 = vpop.f32.mrb[0].mxu0
      %2568 = vmatprep.mubr.bf16.mxu0 %v2474
      %2569 = vmatmul.mubr.bf16.gmra.mrb[0].mxu0 %v2366
      %v2570 = vpop.f32.mrb[0].mxu0
      %v2571 = vadd.f32 %v2408, %v2570
      %v2572 = vpop.f32.mrb[0].mxu0
      %v2573 = vpop.f32.mrb[0].mxu0
      %v2574 = vadd.f32 %v2408, %v2573
      %v2575 = vpop.f32.mrb[0].mxu0
      %2576 = vmatprep.mubr.bf16.mxu0 %v2477
      %2577 = vmatmul.mubr.bf16.gmra.mrb[0].mxu0 %v2369
      %v2578 = vpop.f32.mrb[0].mxu0
      %v2579 = vadd.f32 %v2408, %v2578
      %v2580 = vpop.f32.mrb[0].mxu0
      %v2581 = vpop.f32.mrb[0].mxu0
      %v2582 = vadd.f32 %v2408, %v2581
      %v2583 = vpop.f32.mrb[0].mxu0
      %2584 = vmatprep.mubr.bf16.mxu0 %v2480
      %2585 = vmatmul.mubr.bf16.gmra.mrb[0].mxu0 %v2372
      %v2586 = vpop.f32.mrb[0].mxu0
      %v2587 = vadd.f32 %v2408, %v2586
      %v2588 = vpop.f32.mrb[0].mxu0
      %v2589 = vpop.f32.mrb[0].mxu0
      %v2590 = vadd.f32 %v2408, %v2589
      %v2591 = vpop.f32.mrb[0].mxu0
      %2592 = vmatprep.mubr.bf16.mxu0 %v2483
      %2593 = vmatmul.mubr.bf16.gmra.mrb[0].mxu0 %v2375
      %v2594 = vpop.f32.mrb[0].mxu0
      %v2595 = vadd.f32 %v2408, %v2594
      %v2596 = vpop.f32.mrb[0].mxu0
      %v2597 = vpop.f32.mrb[0].mxu0
      %v2598 = vadd.f32 %v2408, %v2597
      %v2599 = vpop.f32.mrb[0].mxu0
      %2600 = vmatprep.mubr.bf16.mxu0 %v2486
      %2601 = vmatmul.mubr.bf16.gmra.mrb[0].mxu0 %v2378
      %v2602 = vpop.f32.mrb[0].mxu0
      %v2603 = vadd.f32 %v2408, %v2602
      %v2604 = vpop.f32.mrb[0].mxu0
      %v2605 = vpop.f32.mrb[0].mxu0
      %v2606 = vadd.f32 %v2408, %v2605
      %v2607 = vpop.f32.mrb[0].mxu0
      %2608 = vmatprep.mubr.bf16.mxu0 %v2489
      %2609 = vmatmul.mubr.bf16.gmra.mrb[0].mxu0 %v2381
      %v2610 = vpop.f32.mrb[0].mxu0
      %v2611 = vadd.f32 %v2408, %v2610
      %v2612 = vpop.f32.mrb[0].mxu0
      %v2613 = vpop.f32.mrb[0].mxu0
      %v2614 = vadd.f32 %v2408, %v2613
      %v2615 = vpop.f32.mrb[0].mxu0
      %2616 = vmatprep.mubr.bf16.mxu0 %v2492
      %2617 = vmatmul.mubr.bf16.gmra.mrb[0].mxu0 %v2384
      %v2618 = vpop.f32.mrb[0].mxu0
      %v2619 = vadd.f32 %v2408, %v2618
      %v2620 = vpop.f32.mrb[0].mxu0
      %v2621 = vpop.f32.mrb[0].mxu0
      %v2622 = vadd.f32 %v2408, %v2621
      %v2623 = vpop.f32.mrb[0].mxu0
      %2624 = vmatprep.mubr.bf16.mxu0 %v2495
      %2625 = vmatmul.mubr.bf16.gmra.mrb[0].mxu0 %v2387
      %v2626 = vpop.f32.mrb[0].mxu0
      %v2627 = vadd.f32 %v2408, %v2626
      %v2628 = vpop.f32.mrb[0].mxu0
      %v2629 = vpop.f32.mrb[0].mxu0
      %v2630 = vadd.f32 %v2408, %v2629
      %v2631 = vpop.f32.mrb[0].mxu0
      %2632 = vmatprep.mubr.bf16.mxu0 %v2498
      %2633 = vmatmul.mubr.bf16.gmra.mrb[0].mxu0 %v2390
      %v2634 = vpop.f32.mrb[0].mxu0
      %v2635 = vadd.f32 %v2408, %v2634
      %v2636 = vpop.f32.mrb[0].mxu0
      %v2637 = vpop.f32.mrb[0].mxu0
      %v2638 = vadd.f32 %v2408, %v2637
      %v2639 = vpop.f32.mrb[0].mxu0
      %2640 = vmatprep.mubr.bf16.mxu0 %v2501
      %2641 = vmatmul.mubr.bf16.gmra.mrb[0].mxu0 %v2393
      %v2642 = vpop.f32.mrb[0].mxu0
      %v2643 = vadd.f32 %v2408, %v2642
      %v2644 = vpop.f32.mrb[0].mxu0
      %v2645 = vpop.f32.mrb[0].mxu0
      %v2646 = vadd.f32 %v2408, %v2645
      %v2647 = vpop.f32.mrb[0].mxu0
      %2648 = vmatprep.mubr.bf16.mxu0 %v2504
      %2649 = vmatmul.mubr.bf16.gmra.mrb[0].mxu0 %v2396
      %v2650 = vpop.f32.mrb[0].mxu0
      %v2651 = vadd.f32 %v2408, %v2650
      %v2652 = vpop.f32.mrb[0].mxu0
      %v2653 = vpop.f32.mrb[0].mxu0
      %v2654 = vadd.f32 %v2408, %v2653
      %v2655 = vpop.f32.mrb[0].mxu0
      %2656 = vmatprep.mubr.bf16.mxu0 %v2507
      %2657 = vmatmul.mubr.bf16.gmra.mrb[0].mxu0 %v2399
      %v2658 = vpop.f32.mrb[0].mxu0
      %v2659 = vadd.f32 %v2408, %v2658
      %v2660 = vpop.f32.mrb[0].mxu0
      %v2661 = vpop.f32.mrb[0].mxu0
      %v2662 = vadd.f32 %v2408, %v2661
      %v2663 = vpop.f32.mrb[0].mxu0
      %2664 = vmatprep.mubr.bf16.mxu0 %v2510
      %2665 = vmatmul.mubr.bf16.gmra.mrb[0].mxu0 %v2402
      %v2666 = vpop.f32.mrb[0].mxu0
      %v2667 = vadd.f32 %v2408, %v2666
      %v2668 = vpop.f32.mrb[0].mxu0
      %v2669 = vpop.f32.mrb[0].mxu0
      %v2670 = vadd.f32 %v2408, %v2669
      %v2671 = vpop.f32.mrb[0].mxu0
      %2672 = vdwg.mxu0
      %2673 = vst.msk [vmem:[%s289] sm:$0xff] %vm2141, %v2547
      %2674 = vst.msk [vmem:[%s289 + $0x8] sm:$0xff] %vm2141, %v2550
      %2675 = vst.msk [vmem:[%s289 + $0x10] sm:$0xff] %vm2141, %v2555
      %2676 = vst.msk [vmem:[%s289 + $0x18] sm:$0xff] %vm2141, %v2558
      %2677 = vst.msk [vmem:[%s289 + $0x20] sm:$0xff] %vm2141, %v2563
      %2678 = vst.msk [vmem:[%s289 + $0x28] sm:$0xff] %vm2141, %v2566
      %2679 = vst.msk [vmem:[%s289 + $0x30] sm:$0xff] %vm2141, %v2571
      %2680 = vst.msk [vmem:[%s289 + $0x38] sm:$0xff] %vm2141, %v2574
      %2681 = vst.msk [vmem:[%s289 + $0x40] sm:$0xff] %vm2141, %v2579
      %2682 = vst.msk [vmem:[%s289 + $0x48] sm:$0xff] %vm2141, %v2582
      %2683 = vst.msk [vmem:[%s289 + $0x50] sm:$0xff] %vm2141, %v2587
      %2684 = vst.msk [vmem:[%s289 + $0x58] sm:$0xff] %vm2141, %v2590
      %2685 = vst.msk [vmem:[%s289 + $0x60] sm:$0xff] %vm2141, %v2595
      %2686 = vst.msk [vmem:[%s289 + $0x68] sm:$0xff] %vm2141, %v2598
      %2687 = vst.msk [vmem:[%s289 + $0x70] sm:$0xff] %vm2141, %v2603
      %2688 = vst.msk [vmem:[%s289 + $0x78] sm:$0xff] %vm2141, %v2606
      %2689 = vst.msk [vmem:[%s289 + $0x80] sm:$0xff] %vm2141, %v2611
      %2690 = vst.msk [vmem:[%s289 + $0x88] sm:$0xff] %vm2141, %v2614
      %2691 = vst.msk [vmem:[%s289 + $0x90] sm:$0xff] %vm2141, %v2619
      %2692 = vst.msk [vmem:[%s289 + $0x98] sm:$0xff] %vm2141, %v2622
      %2693 = vst.msk [vmem:[%s289 + $0xa0] sm:$0xff] %vm2141, %v2627
      %2694 = vst.msk [vmem:[%s289 + $0xa8] sm:$0xff] %vm2141, %v2630
      %2695 = vst.msk [vmem:[%s289 + $0xb0] sm:$0xff] %vm2141, %v2635
      %2696 = vst.msk [vmem:[%s289 + $0xb8] sm:$0xff] %vm2141, %v2638
      %2697 = vst.msk [vmem:[%s289 + $0xc0] sm:$0xff] %vm2141, %v2643
      %2698 = vst.msk [vmem:[%s289 + $0xc8] sm:$0xff] %vm2141, %v2646
      %2699 = vst.msk [vmem:[%s289 + $0xd0] sm:$0xff] %vm2141, %v2651
      %2700 = vst.msk [vmem:[%s289 + $0xd8] sm:$0xff] %vm2141, %v2654
      %2701 = vst.msk [vmem:[%s289 + $0xe0] sm:$0xff] %vm2141, %v2659
      %2702 = vst.msk [vmem:[%s289 + $0xe8] sm:$0xff] %vm2141, %v2662
      %2703 = vst.msk [vmem:[%s289 + $0xf0] sm:$0xff] %vm2141, %v2667
      %2704 = vst.msk [vmem:[%s289 + $0xf8] sm:$0xff] %vm2141, %v2670
      %v2705 = vsel %vm2141, %v2547, 0.0
      %v2706 = vsel %vm2141, %v2550, 0.0
      %v2707 = vadd.f32 %v2705, %v2706
      %v2708 = vsel %vm2141, %v2555, 0.0
      %v2709 = vadd.f32 %v2707, %v2708
      %v2710 = vsel %vm2141, %v2558, 0.0
      %v2711 = vadd.f32 %v2709, %v2710
      %v2712 = vsel %vm2141, %v2563, 0.0
      %v2713 = vadd.f32 %v2711, %v2712
      %v2714 = vsel %vm2141, %v2566, 0.0
      %v2715 = vadd.f32 %v2713, %v2714
      %v2716 = vsel %vm2141, %v2571, 0.0
      %v2717 = vadd.f32 %v2715, %v2716
      %v2718 = vsel %vm2141, %v2574, 0.0
      %v2719 = vadd.f32 %v2717, %v2718
      %v2720 = vsel %vm2141, %v2579, 0.0
      %v2721 = vadd.f32 %v2719, %v2720
      %v2722 = vsel %vm2141, %v2582, 0.0
      %v2723 = vadd.f32 %v2721, %v2722
      %v2724 = vsel %vm2141, %v2587, 0.0
      %v2725 = vadd.f32 %v2723, %v2724
      %v2726 = vsel %vm2141, %v2590, 0.0
      %v2727 = vadd.f32 %v2725, %v2726
      %v2728 = vsel %vm2141, %v2595, 0.0
      %v2729 = vadd.f32 %v2727, %v2728
      %v2730 = vsel %vm2141, %v2598, 0.0
      %v2731 = vadd.f32 %v2729, %v2730
      %v2732 = vsel %vm2141, %v2603, 0.0
      %v2733 = vadd.f32 %v2731, %v2732
      %v2734 = vsel %vm2141, %v2606, 0.0
      %v2735 = vadd.f32 %v2733, %v2734
      %v2736 = vsel %vm2141, %v2611, 0.0
      %v2737 = vadd.f32 %v2735, %v2736
      %v2738 = vsel %vm2141, %v2614, 0.0
      %v2739 = vadd.f32 %v2737, %v2738
      %v2740 = vsel %vm2141, %v2619, 0.0
      %v2741 = vadd.f32 %v2739, %v2740
      %v2742 = vsel %vm2141, %v2622, 0.0
      %v2743 = vadd.f32 %v2741, %v2742
      %v2744 = vsel %vm2141, %v2627, 0.0
      %v2745 = vadd.f32 %v2743, %v2744
      %v2746 = vsel %vm2141, %v2630, 0.0
      %v2747 = vadd.f32 %v2745, %v2746
      %v2748 = vsel %vm2141, %v2635, 0.0
      %v2749 = vadd.f32 %v2747, %v2748
      %v2750 = vsel %vm2141, %v2638, 0.0
      %v2751 = vadd.f32 %v2749, %v2750
      %v2752 = vsel %vm2141, %v2643, 0.0
      %v2753 = vadd.f32 %v2751, %v2752
      %v2754 = vsel %vm2141, %v2646, 0.0
      %v2755 = vadd.f32 %v2753, %v2754
      %v2756 = vsel %vm2141, %v2651, 0.0
      %v2757 = vadd.f32 %v2755, %v2756
      %v2758 = vsel %vm2141, %v2654, 0.0
      %v2759 = vadd.f32 %v2757, %v2758
      %v2760 = vsel %vm2141, %v2659, 0.0
      %v2761 = vadd.f32 %v2759, %v2760
      %v2762 = vsel %vm2141, %v2662, 0.0
      %v2763 = vadd.f32 %v2761, %v2762
      %v2764 = vsel %vm2141, %v2667, 0.0
      %v2765 = vadd.f32 %v2763, %v2764
      %v2766 = vsel %vm2141, %v2670, 0.0
      %v2767 = vadd.f32 %v2765, %v2766
      %v2768 = vrot.slane %v2767, 4
      %v2769 = vadd.f32 %v2767, %v2768
      %v2770 = vrot.slane %v2769, 2
      %v2771 = vadd.f32 %v2769, %v2770
      %v2772 = vrot.slane %v2771, 1
      %v2773 = vadd.f32 %v2771, %v2772
      %v2774 = vmul.f32 %v2773, 0.00390625
      %2775 = vst.msk [vmem:[%s292] sm:$0x1] %vm474, %v2773
      %v2776 = vsub.f32 %v2547, %v2774
      %v2777 = vsub.f32 %v2550, %v2774
      %v2778 = vsub.f32 %v2555, %v2774
      %v2779 = vsub.f32 %v2558, %v2774
      %v2780 = vsub.f32 %v2563, %v2774
      %v2781 = vsub.f32 %v2566, %v2774
      %v2782 = vsub.f32 %v2571, %v2774
      %v2783 = vsub.f32 %v2574, %v2774
      %v2784 = vsub.f32 %v2579, %v2774
      %v2785 = vsub.f32 %v2582, %v2774
      %v2786 = vsub.f32 %v2587, %v2774
      %v2787 = vsub.f32 %v2590, %v2774
      %v2788 = vsub.f32 %v2595, %v2774
      %v2789 = vsub.f32 %v2598, %v2774
      %v2790 = vsub.f32 %v2603, %v2774
      %v2791 = vsub.f32 %v2606, %v2774
      %v2792 = vsub.f32 %v2611, %v2774
      %v2793 = vsub.f32 %v2614, %v2774
      %v2794 = vsub.f32 %v2619, %v2774
      %v2795 = vsub.f32 %v2622, %v2774
      %v2796 = vsub.f32 %v2627, %v2774
      %v2797 = vsub.f32 %v2630, %v2774
      %v2798 = vsub.f32 %v2635, %v2774
      %v2799 = vsub.f32 %v2638, %v2774
      %v2800 = vsub.f32 %v2643, %v2774
      %v2801 = vsub.f32 %v2646, %v2774
      %v2802 = vsub.f32 %v2651, %v2774
      %v2803 = vsub.f32 %v2654, %v2774
      %v2804 = vsub.f32 %v2659, %v2774
      %v2805 = vsub.f32 %v2662, %v2774
      %v2806 = vsub.f32 %v2667, %v2774
      %v2807 = vsub.f32 %v2670, %v2774
      %v2808 = vmul.f32 %v2776, %v2776
      %v2809 = vmul.f32 %v2777, %v2777
      %v2810 = vmul.f32 %v2778, %v2778
      %v2811 = vmul.f32 %v2779, %v2779
      %v2812 = vmul.f32 %v2780, %v2780
      %v2813 = vmul.f32 %v2781, %v2781
      %v2814 = vmul.f32 %v2782, %v2782
      %v2815 = vmul.f32 %v2783, %v2783
      %v2816 = vmul.f32 %v2784, %v2784
      %v2817 = vmul.f32 %v2785, %v2785
      %v2818 = vmul.f32 %v2786, %v2786
      %v2819 = vmul.f32 %v2787, %v2787
      %v2820 = vmul.f32 %v2788, %v2788
      %v2821 = vmul.f32 %v2789, %v2789
      %v2822 = vmul.f32 %v2790, %v2790
      %v2823 = vmul.f32 %v2791, %v2791
      %v2824 = vmul.f32 %v2792, %v2792
      %v2825 = vmul.f32 %v2793, %v2793
      %v2826 = vmul.f32 %v2794, %v2794
      %v2827 = vmul.f32 %v2795, %v2795
      %v2828 = vmul.f32 %v2796, %v2796
      %v2829 = vmul.f32 %v2797, %v2797
      %v2830 = vmul.f32 %v2798, %v2798
      %v2831 = vmul.f32 %v2799, %v2799
      %v2832 = vmul.f32 %v2800, %v2800
      %v2833 = vmul.f32 %v2801, %v2801
      %v2834 = vmul.f32 %v2802, %v2802
      %v2835 = vmul.f32 %v2803, %v2803
      %v2836 = vmul.f32 %v2804, %v2804
      %v2837 = vmul.f32 %v2805, %v2805
      %v2838 = vmul.f32 %v2806, %v2806
      %v2839 = vmul.f32 %v2807, %v2807
      %v2840 = vsel %vm2141, %v2808, 0.0
      %v2841 = vsel %vm2141, %v2809, 0.0
      %v2842 = vadd.f32 %v2840, %v2841
      %v2843 = vsel %vm2141, %v2810, 0.0
      %v2844 = vadd.f32 %v2842, %v2843
      %v2845 = vsel %vm2141, %v2811, 0.0
      %v2846 = vadd.f32 %v2844, %v2845
      %v2847 = vsel %vm2141, %v2812, 0.0
      %v2848 = vadd.f32 %v2846, %v2847
      %v2849 = vsel %vm2141, %v2813, 0.0
      %v2850 = vadd.f32 %v2848, %v2849
      %v2851 = vsel %vm2141, %v2814, 0.0
      %v2852 = vadd.f32 %v2850, %v2851
      %v2853 = vsel %vm2141, %v2815, 0.0
      %v2854 = vadd.f32 %v2852, %v2853
      %v2855 = vsel %vm2141, %v2816, 0.0
      %v2856 = vadd.f32 %v2854, %v2855
      %v2857 = vsel %vm2141, %v2817, 0.0
      %v2858 = vadd.f32 %v2856, %v2857
      %v2859 = vsel %vm2141, %v2818, 0.0
      %v2860 = vadd.f32 %v2858, %v2859
      %v2861 = vsel %vm2141, %v2819, 0.0
      %v2862 = vadd.f32 %v2860, %v2861
      %v2863 = vsel %vm2141, %v2820, 0.0
      %v2864 = vadd.f32 %v2862, %v2863
      %v2865 = vsel %vm2141, %v2821, 0.0
      %v2866 = vadd.f32 %v2864, %v2865
      %v2867 = vsel %vm2141, %v2822, 0.0
      %v2868 = vadd.f32 %v2866, %v2867
      %v2869 = vsel %vm2141, %v2823, 0.0
      %v2870 = vadd.f32 %v2868, %v2869
      %v2871 = vsel %vm2141, %v2824, 0.0
      %v2872 = vadd.f32 %v2870, %v2871
      %v2873 = vsel %vm2141, %v2825, 0.0
      %v2874 = vadd.f32 %v2872, %v2873
      %v2875 = vsel %vm2141, %v2826, 0.0
      %v2876 = vadd.f32 %v2874, %v2875
      %v2877 = vsel %vm2141, %v2827, 0.0
      %v2878 = vadd.f32 %v2876, %v2877
      %v2879 = vsel %vm2141, %v2828, 0.0
      %v2880 = vadd.f32 %v2878, %v2879
      %v2881 = vsel %vm2141, %v2829, 0.0
      %v2882 = vadd.f32 %v2880, %v2881
      %v2883 = vsel %vm2141, %v2830, 0.0
      %v2884 = vadd.f32 %v2882, %v2883
      %v2885 = vsel %vm2141, %v2831, 0.0
      %v2886 = vadd.f32 %v2884, %v2885
      %v2887 = vsel %vm2141, %v2832, 0.0
      %v2888 = vadd.f32 %v2886, %v2887
      %v2889 = vsel %vm2141, %v2833, 0.0
      %v2890 = vadd.f32 %v2888, %v2889
      %v2891 = vsel %vm2141, %v2834, 0.0
      %v2892 = vadd.f32 %v2890, %v2891
      %v2893 = vsel %vm2141, %v2835, 0.0
      %v2894 = vadd.f32 %v2892, %v2893
      %v2895 = vsel %vm2141, %v2836, 0.0
      %v2896 = vadd.f32 %v2894, %v2895
      %v2897 = vsel %vm2141, %v2837, 0.0
      %v2898 = vadd.f32 %v2896, %v2897
      %v2899 = vsel %vm2141, %v2838, 0.0
      %v2900 = vadd.f32 %v2898, %v2899
      %v2901 = vsel %vm2141, %v2839, 0.0
      %v2902 = vadd.f32 %v2900, %v2901
      %v2903 = vrot.slane %v2902, 4
      %v2904 = vadd.f32 %v2902, %v2903
      %v2905 = vrot.slane %v2904, 2
      %v2906 = vadd.f32 %v2904, %v2905
      %v2907 = vrot.slane %v2906, 1
      %v2908 = vadd.f32 %v2906, %v2907
      %2909 = vst.msk [vmem:[%s295] sm:$0x1] %vm474, %v2908
      %p2910 = scmp.lt.s32.totalorder %s19, 1
      %s2911 = scalar_select %p2910, %s19, 1
      %s2912 = smul.addr %s2911, 32
      %s2913 = smul.addr %s2912, 8
      %s2914 = scalar_lea.vmem %s5, %s2913
      %p2915 = scmp.lt.s32.totalorder %s19, 1
      %s2916 = scalar_select %p2915, %s19, 1
      %s2917 = scalar_lea.vmem %s6, %s2916
      %p2918 = scmp.lt.s32.totalorder %s19, 1
      %s2919 = scalar_select %p2918, %s19, 1
      %s2920 = scalar_lea.vmem %s7, %s2919
      // Predicated region
      $region41: #{decoder_block_forward.6} parent=39 // pred_check
        %p2921 = pneg %p147
      $region42: #{decoder_block_forward.6} parent=39 // pred_check_branch
        %2923 = sbr.rel (%p2921) target = $region44
      $region43: #{decoder_block_forward.6} parent=39 // pred_region
        _
      $region44: #{decoder_block_forward.6} parent=39 // pred_fallthru
        _
      // Predicated region
      $region45: #{decoder_block_forward.6} parent=39 // pred_check
        %p2924 = pneg %p173
      $region46: #{decoder_block_forward.6} parent=39 // pred_check_branch
        %2926 = sbr.rel (%p2924) target = $region48
      $region47: #{decoder_block_forward.6} parent=39 // pred_region
        _
      $region48: #{decoder_block_forward.6} parent=39 // pred_fallthru
        _
      // Predicated region
      $region49: #{decoder_block_forward.6} parent=39 // pred_check
        %p2927 = pneg %p199
      $region50: #{decoder_block_forward.6} parent=39 // pred_check_branch
        %2929 = sbr.rel (%p2927) target = $region52
      $region51: #{decoder_block_forward.6} parent=39 // pred_region
        _
      $region52: #{decoder_block_forward.6} parent=39 // pred_fallthru
        _
    $region40: #{decoder_block_forward.6} parent=5 // pred_fallthru
      _
    %p2930 = scmp.le.s32.totalorder 2, %s14
    // Predicated region
    $region53: #{decoder_block_forward.6} parent=5 // pred_check
      %p2931 = pneg %p2930
    $region54: #{decoder_block_forward.6} parent=5 // pred_check_branch
      %2933 = sbr.rel (%p2931) target = $region56
    $region55: #{decoder_block_forward.6} parent=5 // pred_region
      %s2934 = ssub.s32 %s14, 2
      // Predicated region
      $region57: #{decoder_block_forward.6} parent=55 // pred_check
        %p2935 = pneg %p153
      $region58: #{decoder_block_forward.6} parent=55 // pred_check_branch
        %2937 = sbr.rel (%p2935) target = $region60
      $region59: #{decoder_block_forward.6} parent=55 // pred_region
        %p2938 = scmp.lt.s32.totalorder %s20, 1
        %s2939 = scalar_select %p2938, %s20, 1
        %s2940 = smul.addr %s2939, 32
        %s2941 = smul.addr %s2940, 8
        %s2942 = scalar_lea.vmem %s5, %s2941
      $region60: #{decoder_block_forward.6} parent=55 // pred_fallthru
        _
      // Predicated region
      $region61: #{decoder_block_forward.6} parent=55 // pred_check
        %p2943 = pneg %p179
      $region62: #{decoder_block_forward.6} parent=55 // pred_check_branch
        %2945 = sbr.rel (%p2943) target = $region64
      $region63: #{decoder_block_forward.6} parent=55 // pred_region
        %p2946 = scmp.lt.s32.totalorder %s20, 1
        %s2947 = scalar_select %p2946, %s20, 1
        %s2948 = scalar_lea.vmem %s6, %s2947
      $region64: #{decoder_block_forward.6} parent=55 // pred_fallthru
        _
      // Predicated region
      $region65: #{decoder_block_forward.6} parent=55 // pred_check
        %p2949 = pneg %p205
      $region66: #{decoder_block_forward.6} parent=55 // pred_check_branch
        %2951 = sbr.rel (%p2949) target = $region68
      $region67: #{decoder_block_forward.6} parent=55 // pred_region
        %p2952 = scmp.lt.s32.totalorder %s20, 1
        %s2953 = scalar_select %p2952, %s20, 1
        %s2954 = scalar_lea.vmem %s7, %s2953
      $region68: #{decoder_block_forward.6} parent=55 // pred_fallthru
        _
    $region56: #{decoder_block_forward.6} parent=5 // pred_fallthru
      _
  $region6: #{decoder_block_forward.6} parent=0 // loop_footer
    %s18 = sadd.s32 1, %s14
  $region7: #{decoder_block_forward.6} parent=0 // loop_footer_branch
    %13 = sbr.rel target = $region3
  $region8: #{decoder_block_forward.6} parent=0 // loop_exit
    _

// kernel: decoder_block_forward.5
$region0: #{decoder_block_forward.5}
  #allocation0 [shape = 'u32[]', space=smem, size = 0x4, offset = 0x4, fixed_abs, tag = 'smem constant byte address 0x4 - core index']
  #allocation1 [shape = 'u32[144,128]{1,0:T(1,128)}', space=vmem, size = 0x12000, scoped, tag = 'internal scratch']
  #allocation2 [shape = 'bf16[18,18,8]{2,1,0:T(8,128)(2,1)}', space=vmem, size = 0x1b000, scoped, tag = 'scratch operand']
  #allocation3 [shape = 'bf16[18,18,8]{2,1,0:T(8,128)(2,1)}', space=vmem, size = 0x1b000, scoped, tag = 'scratch operand']
  %s0 = inlined_call_operand.vmem [shape: bf16[2,16,16,8], index: 0, kind: input, shape index: {}]
  %s1 = inlined_call_operand.vmem [shape: bf16[2,16,16,8], index: 1, kind: input, shape index: {}]
  %s2 = inlined_call_operand.vmem [shape: bf16[144,16], index: 2, kind: input, shape index: {}]
  %s3 = inlined_call_operand.vmem [shape: f32[1,16], index: 3, kind: input, shape index: {}]
  %s4 = inlined_call_operand.vmem [shape: bf16[2,256,16], index: 4, kind: output, shape index: {0}]
  %s5 = inlined_call_operand.vmem [shape: f32[2,1,16], index: 5, kind: output, shape index: {1}]
  %s6 = inlined_call_operand.vmem [shape: f32[2,1,16], index: 6, kind: output, shape index: {2}]
  %7 = xla_tuple %s4, %s5, %s6
  %s8 = sld [smem:[#allocation0]]
  $region65: #{decoder_block_forward.5} parent=0
    _
  %s10 = ssub.s32 1, %s8
  %s11 = scalar_select 0, %s10, %s8
  loop: start=0, step=1, limit=4
  $region2: #{decoder_block_forward.5} parent=0 // loop_pre_header
    _
  $region3: #{decoder_block_forward.5} parent=0 // loop_header
    %s13 = sphi 0, %s17
    %p14 = scmp.ge.s32.totalorder %s13, 4
    %s23 = sphi 0, %s25
    %s26 = sphi 0, %s23
    %s27 = sphi 0, %s26
    %s43 = sphi 0, %s27
    %s49 = sphi 0, %s51
    %s52 = sphi 0, %s49
    %s53 = sphi 0, %s52
    %s69 = sphi 0, %s53
    %s73 = sphi 0, %s73
    %s75 = sphi 0, %s73
    %s76 = sphi 0, %s75
    %s90 = sphi 0, %s76
    %s94 = sphi 0, %s94
    %s96 = sphi 0, %s94
    %s97 = sphi 0, %s96
    %s111 = sphi 0, %s97
    %s117 = sphi 0, %s119
    %s120 = sphi 0, %s117
    %s121 = sphi 0, %s120
    %s137 = sphi 0, %s121
    %s143 = sphi 0, %s145
    %s146 = sphi 0, %s143
    %s147 = sphi 0, %s146
    %s163 = sphi 0, %s147
    %s169 = sphi 0, %s171
    %s172 = sphi 0, %s169
    %s173 = sphi 0, %s172
    %s189 = sphi 0, %s173
  $region4: #{decoder_block_forward.5} parent=0 // loop_header_branch
    %16 = sbr.rel (%p14) target = $region8
  $region5: #{decoder_block_forward.5} parent=0 // loop_body
    %s18 = ssub.s32 %s13, 1
    %s19 = ssub.s32 %s13, 2
    %s20 = sadd.s32 %s13, 1
    %s21 = ssub.s32 %s13, %s20
    %p22 = scmp.eq.s32.totalorder %s21, 0
    %s24 = sadd.s32 %s23, 1
    %s25 = scalar_select %p22, %s23, %s24
    %p28 = pneg %p22
    %p29 = scmp.eq.s32.totalorder %s13, 1
    %p30 = por %p28, %p29
    %p31 = scmp.ne.s32.totalorder %s23, %s26
    %p32 = scmp.eq.s32.totalorder %s13, 0
    %p33 = por %p31, %p32
    %p34 = scmp.ne.s32.totalorder %s23, %s26
    %p35 = scmp.eq.s32.totalorder %s18, 1
    %p36 = por %p34, %p35
    %p37 = scmp.ne.s32.totalorder %s26, %s27
    %p38 = scmp.eq.s32.totalorder %s18, 0
    %p39 = por %p37, %p38
    %p40 = scmp.ne.s32.totalorder %s26, %s27
    %p41 = scmp.eq.s32.totalorder %s19, 1
    %p42 = por %p40, %p41
    %p44 = scmp.ne.s32.totalorder %s27, %s43
    %p45 = scmp.eq.s32.totalorder %s19, 0
    %p46 = por %p44, %p45
    %s47 = ssub.s32 %s13, %s20
    %p48 = scmp.eq.s32.totalorder %s47, 0
    %s50 = sadd.s32 %s49, 1
    %s51 = scalar_select %p48, %s49, %s50
    %p54 = pneg %p48
    %p55 = scmp.eq.s32.totalorder %s13, 1
    %p56 = por %p54, %p55
    %p57 = scmp.ne.s32.totalorder %s49, %s52
    %p58 = scmp.eq.s32.totalorder %s13, 0
    %p59 = por %p57, %p58
    %p60 = scmp.ne.s32.totalorder %s49, %s52
    %p61 = scmp.eq.s32.totalorder %s18, 1
    %p62 = por %p60, %p61
    %p63 = scmp.ne.s32.totalorder %s52, %s53
    %p64 = scmp.eq.s32.totalorder %s18, 0
    %p65 = por %p63, %p64
    %p66 = scmp.ne.s32.totalorder %s52, %s53
    %p67 = scmp.eq.s32.totalorder %s19, 1
    %p68 = por %p66, %p67
    %p70 = scmp.ne.s32.totalorder %s53, %s69
    %p71 = scmp.eq.s32.totalorder %s19, 0
    %p72 = por %p70, %p71
    %s74 = sadd.s32 %s73, 1
    %p77 = scmp.eq.s32.totalorder %s13, 1
    %p78 = scmp.ne.s32.totalorder %s73, %s75
    %p79 = scmp.eq.s32.totalorder %s13, 0
    %p80 = por %p78, %p79
    %p81 = scmp.ne.s32.totalorder %s73, %s75
    %p82 = scmp.eq.s32.totalorder %s18, 1
    %p83 = por %p81, %p82
    %p84 = scmp.ne.s32.totalorder %s75, %s76
    %p85 = scmp.eq.s32.totalorder %s18, 0
    %p86 = por %p84, %p85
    %p87 = scmp.ne.s32.totalorder %s75, %s76
    %p88 = scmp.eq.s32.totalorder %s19, 1
    %p89 = por %p87, %p88
    %p91 = scmp.ne.s32.totalorder %s76, %s90
    %p92 = scmp.eq.s32.totalorder %s19, 0
    %p93 = por %p91, %p92
    %s95 = sadd.s32 %s94, 1
    %p98 = scmp.eq.s32.totalorder %s13, 1
    %p99 = scmp.ne.s32.totalorder %s94, %s96
    %p100 = scmp.eq.s32.totalorder %s13, 0
    %p101 = por %p99, %p100
    %p102 = scmp.ne.s32.totalorder %s94, %s96
    %p103 = scmp.eq.s32.totalorder %s18, 1
    %p104 = por %p102, %p103
    %p105 = scmp.ne.s32.totalorder %s96, %s97
    %p106 = scmp.eq.s32.totalorder %s18, 0
    %p107 = por %p105, %p106
    %p108 = scmp.ne.s32.totalorder %s96, %s97
    %p109 = scmp.eq.s32.totalorder %s19, 1
    %p110 = por %p108, %p109
    %p112 = scmp.ne.s32.totalorder %s97, %s111
    %p113 = scmp.eq.s32.totalorder %s19, 0
    %p114 = por %p112, %p113
    %s115 = ssub.s32 %s13, %s20
    %p116 = scmp.eq.s32.totalorder %s115, 0
    %s118 = sadd.s32 %s117, 1
    %s119 = scalar_select %p116, %s117, %s118
    %p122 = pneg %p116
    %p123 = scmp.eq.s32.totalorder %s13, 1
    %p124 = por %p122, %p123
    %p125 = scmp.ne.s32.totalorder %s117, %s120
    %p126 = scmp.eq.s32.totalorder %s13, 0
    %p127 = por %p125, %p126
    %p128 = scmp.ne.s32.totalorder %s117, %s120
    %p129 = scmp.eq.s32.totalorder %s18, 1
    %p130 = por %p128, %p129
    %p131 = scmp.ne.s32.totalorder %s120, %s121
    %p132 = scmp.eq.s32.totalorder %s18, 0
    %p133 = por %p131, %p132
    %p134 = scmp.ne.s32.totalorder %s120, %s121
    %p135 = scmp.eq.s32.totalorder %s19, 1
    %p136 = por %p134, %p135
    %p138 = scmp.ne.s32.totalorder %s121, %s137
    %p139 = scmp.eq.s32.totalorder %s19, 0
    %p140 = por %p138, %p139
    %s141 = ssub.s32 %s13, %s20
    %p142 = scmp.eq.s32.totalorder %s141, 0
    %s144 = sadd.s32 %s143, 1
    %s145 = scalar_select %p142, %s143, %s144
    %p148 = pneg %p142
    %p149 = scmp.eq.s32.totalorder %s13, 1
    %p150 = por %p148, %p149
    %p151 = scmp.ne.s32.totalorder %s143, %s146
    %p152 = scmp.eq.s32.totalorder %s13, 0
    %p153 = por %p151, %p152
    %p154 = scmp.ne.s32.totalorder %s143, %s146
    %p155 = scmp.eq.s32.totalorder %s18, 1
    %p156 = por %p154, %p155
    %p157 = scmp.ne.s32.totalorder %s146, %s147
    %p158 = scmp.eq.s32.totalorder %s18, 0
    %p159 = por %p157, %p158
    %p160 = scmp.ne.s32.totalorder %s146, %s147
    %p161 = scmp.eq.s32.totalorder %s19, 1
    %p162 = por %p160, %p161
    %p164 = scmp.ne.s32.totalorder %s147, %s163
    %p165 = scmp.eq.s32.totalorder %s19, 0
    %p166 = por %p164, %p165
    %s167 = ssub.s32 %s13, %s20
    %p168 = scmp.eq.s32.totalorder %s167, 0
    %s170 = sadd.s32 %s169, 1
    %s171 = scalar_select %p168, %s169, %s170
    %p174 = pneg %p168
    %p175 = scmp.eq.s32.totalorder %s13, 1
    %p176 = por %p174, %p175
    %p177 = scmp.ne.s32.totalorder %s169, %s172
    %p178 = scmp.eq.s32.totalorder %s13, 0
    %p179 = por %p177, %p178
    %p180 = scmp.ne.s32.totalorder %s169, %s172
    %p181 = scmp.eq.s32.totalorder %s18, 1
    %p182 = por %p180, %p181
    %p183 = scmp.ne.s32.totalorder %s172, %s173
    %p184 = scmp.eq.s32.totalorder %s18, 0
    %p185 = por %p183, %p184
    %p186 = scmp.ne.s32.totalorder %s172, %s173
    %p187 = scmp.eq.s32.totalorder %s19, 1
    %p188 = por %p186, %p187
    %p190 = scmp.ne.s32.totalorder %s173, %s189
    %p191 = scmp.eq.s32.totalorder %s19, 0
    %p192 = por %p190, %p191
    %p193 = scmp.le.s32.totalorder 1, %s13
    %p194 = scmp.lt.s32.totalorder %s13, 3
    %p195 = pnand %p193, %p194
    %p196 = pneg %p195
    // Predicated region
    $region9: #{decoder_block_forward.5} parent=5 // pred_check
      _
    $region10: #{decoder_block_forward.5} parent=5 // pred_check_branch
      %198 = sbr.rel (%p195) target = $region12
    $region11: #{decoder_block_forward.5} parent=5 // pred_region
      %s199 = ssub.s32 %s13, 1
      // Predicated region
      $region13: #{decoder_block_forward.5} parent=11 // pred_check
        %p200 = pneg %p86
      $region14: #{decoder_block_forward.5} parent=11 // pred_check_branch
        %202 = sbr.rel (%p200) target = $region16
      $region15: #{decoder_block_forward.5} parent=11 // pred_region
        _
      $region16: #{decoder_block_forward.5} parent=11 // pred_fallthru
        _
      // Predicated region
      $region17: #{decoder_block_forward.5} parent=11 // pred_check
        %p203 = pneg %p107
      $region18: #{decoder_block_forward.5} parent=11 // pred_check_branch
        %205 = sbr.rel (%p203) target = $region20
      $region19: #{decoder_block_forward.5} parent=11 // pred_region
        _
      $region20: #{decoder_block_forward.5} parent=11 // pred_fallthru
        _
    $region12: #{decoder_block_forward.5} parent=5 // pred_fallthru
      _
    %p206 = scmp.lt.s32.totalorder %s13, 2
    // Predicated region
    $region21: #{decoder_block_forward.5} parent=5 // pred_check
      %p207 = pneg %p206
    $region22: #{decoder_block_forward.5} parent=5 // pred_check_branch
      %209 = sbr.rel (%p207) target = $region24
    $region23: #{decoder_block_forward.5} parent=5 // pred_region
      // Predicated region
      $region25: #{decoder_block_forward.5} parent=23 // pred_check
        %p210 = pneg %p33
      $region26: #{decoder_block_forward.5} parent=23 // pred_check_branch
        %212 = sbr.rel (%p210) target = $region28
      $region27: #{decoder_block_forward.5} parent=23 // pred_region
        %p213 = scmp.lt.s32.totalorder %s13, 1
        %s214 = scalar_select %p213, %s13, 1
        %s215 = smul.addr %s214, 32
        %s216 = smul.addr %s215, 4
        %s217 = scalar_lea.vmem %s0, %s216
      $region28: #{decoder_block_forward.5} parent=23 // pred_fallthru
        _
      // Predicated region
      $region29: #{decoder_block_forward.5} parent=23 // pred_check
        %p218 = pneg %p59
      $region30: #{decoder_block_forward.5} parent=23 // pred_check_branch
        %220 = sbr.rel (%p218) target = $region32
      $region31: #{decoder_block_forward.5} parent=23 // pred_region
        %p221 = scmp.lt.s32.totalorder %s13, 1
        %s222 = scalar_select %p221, %s13, 1
        %s223 = smul.addr %s222, 32
        %s224 = smul.addr %s223, 4
        %s225 = scalar_lea.vmem %s1, %s224
      $region32: #{decoder_block_forward.5} parent=23 // pred_fallthru
        _
    $region24: #{decoder_block_forward.5} parent=5 // pred_fallthru
      _
    %p226 = scmp.le.s32.totalorder 1, %s13
    %p227 = scmp.lt.s32.totalorder %s13, 3
    %p228 = pnand %p226, %p227
    %p229 = pneg %p228
    // Predicated region
    $region33: #{decoder_block_forward.5} parent=5 // pred_check
      _
    $region34: #{decoder_block_forward.5} parent=5 // pred_check_branch
      %231 = sbr.rel (%p228) target = $region36
    $region35: #{decoder_block_forward.5} parent=5 // pred_region
      %s232 = ssub.s32 %s13, 1
      %p233 = scmp.lt.s32.totalorder %s18, 1
      %s234 = scalar_select %p233, %s18, 1
      %s235 = smul.addr %s234, 32
      %s236 = smul.addr %s235, 4
      %s237 = scalar_lea.vmem %s0, %s236
      %p238 = pneg %p39
      %p239 = pneg %p36
      %p240 = scmp.lt.s32.totalorder %s18, 1
      %s241 = scalar_select %p240, %s18, 1
      %s242 = smul.addr %s241, 32
      %s243 = smul.addr %s242, 4
      %s244 = scalar_lea.vmem %s1, %s243
      %p245 = pneg %p65
      %p246 = pneg %p62
      %p247 = pneg %p86
      %p248 = pneg %p83
      %p249 = pneg %p107
      %p250 = pneg %p104
      %p251 = pneg %p133
      %p252 = pneg %p130
      %p253 = scmp.lt.s32.totalorder %s18, 1
      %s254 = scalar_select %p253, %s18, 1
      %s255 = smul.addr %s254, 32
      %s256 = smul.addr %s255, 4
      %s257 = scalar_lea.vmem %s4, %s256
      %p258 = pneg %p159
      %p259 = pneg %p156
      %p260 = scmp.lt.s32.totalorder %s18, 1
      %s261 = scalar_select %p260, %s18, 1
      %s262 = scalar_lea.vmem %s5, %s261
      %p263 = pneg %p185
      %p264 = pneg %p182
      %p265 = scmp.lt.s32.totalorder %s18, 1
      %s266 = scalar_select %p265, %s18, 1
      %s267 = scalar_lea.vmem %s6, %s266
      %p268 = scmp.lt.s32.totalorder %s18, 1
      %s269 = scalar_select %p268, %s18, 1
      %s270 = smul.addr %s269, 32
      %s271 = smul.addr %s270, 4
      %s272 = scalar_lea.vmem %s0, %s271
      %p273 = scmp.lt.s32.totalorder %s18, 1
      %s274 = scalar_select %p273, %s18, 1
      %s275 = smul.addr %s274, 32
      %s276 = smul.addr %s275, 4
      %s277 = scalar_lea.vmem %s1, %s276
      %p278 = scmp.lt.s32.totalorder %s18, 1
      %s279 = scalar_select %p278, %s18, 1
      %s280 = smul.addr %s279, 32
      %s281 = smul.addr %s280, 4
      %s282 = scalar_lea.vmem %s4, %s281
      %p283 = scmp.lt.s32.totalorder %s18, 1
      %s284 = scalar_select %p283, %s18, 1
      %s285 = scalar_lea.vmem %s5, %s284
      %p286 = scmp.lt.s32.totalorder %s18, 1
      %s287 = scalar_select %p286, %s18, 1
      %s288 = scalar_lea.vmem %s6, %s287
      %vm290 = vcmask 60416
      %291 = vst.msk [vmem:[#allocation2] sm:$0xf] %vm290, 0
      %292 = vst.msk [vmem:[#allocation2 + $0x4] sm:$0xf] %vm290, 0
      %vm293 = vcmask 57344
      %294 = vst.msk [vmem:[#allocation2 + $0x8] sm:$0x1] %vm293, 0
      %295 = vst.msk [vmem:[#allocation2 + $0xc] sm:$0xf] %vm290, 0
      %296 = vst.msk [vmem:[#allocation2 + $0x10] sm:$0xf] %vm290, 0
      %297 = vst.msk [vmem:[#allocation2 + $0x14] sm:$0x1] %vm293, 0
      %298 = vst.msk [vmem:[#allocation2 + $0x18] sm:$0xf] %vm290, 0
      %299 = vst.msk [vmem:[#allocation2 + $0x1c] sm:$0xf] %vm290, 0
      %300 = vst.msk [vmem:[#allocation2 + $0x20] sm:$0x1] %vm293, 0
      %301 = vst.msk [vmem:[#allocation2 + $0x24] sm:$0xf] %vm290, 0
      %302 = vst.msk [vmem:[#allocation2 + $0x28] sm:$0xf] %vm290, 0
      %303 = vst.msk [vmem:[#allocation2 + $0x2c] sm:$0x1] %vm293, 0
      %304 = vst.msk [vmem:[#allocation2 + $0x30] sm:$0xf] %vm290, 0
      %305 = vst.msk [vmem:[#allocation2 + $0x34] sm:$0xf] %vm290, 0
      %306 = vst.msk [vmem:[#allocation2 + $0x38] sm:$0x1] %vm293, 0
      %307 = vst.msk [vmem:[#allocation2 + $0x3c] sm:$0xf] %vm290, 0
      %308 = vst.msk [vmem:[#allocation2 + $0x40] sm:$0xf] %vm290, 0
      %309 = vst.msk [vmem:[#allocation2 + $0x44] sm:$0x1] %vm293, 0
      %310 = vst.msk [vmem:[#allocation2 + $0x48] sm:$0xf] %vm290, 0
      %311 = vst.msk [vmem:[#allocation2 + $0x4c] sm:$0xf] %vm290, 0
      %312 = vst.msk [vmem:[#allocation2 + $0x50] sm:$0x1] %vm293, 0
      %313 = vst.msk [vmem:[#allocation2 + $0x54] sm:$0xf] %vm290, 0
      %314 = vst.msk [vmem:[#allocation2 + $0x58] sm:$0xf] %vm290, 0
      %315 = vst.msk [vmem:[#allocation2 + $0x5c] sm:$0x1] %vm293, 0
      %316 = vst.msk [vmem:[#allocation2 + $0x60] sm:$0xf] %vm290, 0
      %317 = vst.msk [vmem:[#allocation2 + $0x64] sm:$0xf] %vm290, 0
      %318 = vst.msk [vmem:[#allocation2 + $0x68] sm:$0x1] %vm293, 0
      %319 = vst.msk [vmem:[#allocation2 + $0x6c] sm:$0xf] %vm290, 0
      %320 = vst.msk [vmem:[#allocation2 + $0x70] sm:$0xf] %vm290, 0
      %321 = vst.msk [vmem:[#allocation2 + $0x74] sm:$0x1] %vm293, 0
      %322 = vst.msk [vmem:[#allocation2 + $0x78] sm:$0xf] %vm290, 0
      %323 = vst.msk [vmem:[#allocation2 + $0x7c] sm:$0xf] %vm290, 0
      %324 = vst.msk [vmem:[#allocation2 + $0x80] sm:$0x1] %vm293, 0
      %325 = vst.msk [vmem:[#allocation2 + $0x84] sm:$0xf] %vm290, 0
      %326 = vst.msk [vmem:[#allocation2 + $0x88] sm:$0xf] %vm290, 0
      %327 = vst.msk [vmem:[#allocation2 + $0x8c] sm:$0x1] %vm293, 0
      %328 = vst.msk [vmem:[#allocation2 + $0x90] sm:$0xf] %vm290, 0
      %329 = vst.msk [vmem:[#allocation2 + $0x94] sm:$0xf] %vm290, 0
      %330 = vst.msk [vmem:[#allocation2 + $0x98] sm:$0x1] %vm293, 0
      %331 = vst.msk [vmem:[#allocation2 + $0x9c] sm:$0xf] %vm290, 0
      %332 = vst.msk [vmem:[#allocation2 + $0xa0] sm:$0xf] %vm290, 0
      %333 = vst.msk [vmem:[#allocation2 + $0xa4] sm:$0x1] %vm293, 0
      %334 = vst.msk [vmem:[#allocation2 + $0xa8] sm:$0xf] %vm290, 0
      %335 = vst.msk [vmem:[#allocation2 + $0xac] sm:$0xf] %vm290, 0
      %336 = vst.msk [vmem:[#allocation2 + $0xb0] sm:$0x1] %vm293, 0
      %337 = vst.msk [vmem:[#allocation2 + $0xb4] sm:$0xf] %vm290, 0
      %338 = vst.msk [vmem:[#allocation2 + $0xb8] sm:$0xf] %vm290, 0
      %339 = vst.msk [vmem:[#allocation2 + $0xbc] sm:$0x1] %vm293, 0
      %340 = vst.msk [vmem:[#allocation2 + $0xc0] sm:$0xf] %vm290, 0
      %341 = vst.msk [vmem:[#allocation2 + $0xc4] sm:$0xf] %vm290, 0
      %342 = vst.msk [vmem:[#allocation2 + $0xc8] sm:$0x1] %vm293, 0
      %343 = vst.msk [vmem:[#allocation2 + $0xcc] sm:$0xf] %vm290, 0
      %344 = vst.msk [vmem:[#allocation2 + $0xd0] sm:$0xf] %vm290, 0
      %345 = vst.msk [vmem:[#allocation2 + $0xd4] sm:$0x1] %vm293, 0
      %v346 = vld [vmem:[%s272] sm:$0xf]
      %v347 = vld [vmem:[%s272 + $0x4] sm:$0xf]
      %v348 = vld [vmem:[%s272 + $0x8] sm:$0xf]
      %v349 = vld [vmem:[%s272 + $0xc] sm:$0xf]
      %v350 = vld [vmem:[%s272 + $0x10] sm:$0xf]
      %v351 = vld [vmem:[%s272 + $0x14] sm:$0xf]
      %v352 = vld [vmem:[%s272 + $0x18] sm:$0xf]
      %v353 = vld [vmem:[%s272 + $0x1c] sm:$0xf]
      %v354 = vld [vmem:[%s272 + $0x20] sm:$0xf]
      %v355 = vld [vmem:[%s272 + $0x24] sm:$0xf]
      %v356 = vld [vmem:[%s272 + $0x28] sm:$0xf]
      %v357 = vld [vmem:[%s272 + $0x2c] sm:$0xf]
      %v358 = vld [vmem:[%s272 + $0x30] sm:$0xf]
      %v359 = vld [vmem:[%s272 + $0x34] sm:$0xf]
      %v360 = vld [vmem:[%s272 + $0x38] sm:$0xf]
      %v361 = vld [vmem:[%s272 + $0x3c] sm:$0xf]
      %v362 = vld [vmem:[%s272 + $0x40] sm:$0xf]
      %v363 = vld [vmem:[%s272 + $0x44] sm:$0xf]
      %v364 = vld [vmem:[%s272 + $0x48] sm:$0xf]
      %v365 = vld [vmem:[%s272 + $0x4c] sm:$0xf]
      %v366 = vld [vmem:[%s272 + $0x50] sm:$0xf]
      %v367 = vld [vmem:[%s272 + $0x54] sm:$0xf]
      %v368 = vld [vmem:[%s272 + $0x58] sm:$0xf]
      %v369 = vld [vmem:[%s272 + $0x5c] sm:$0xf]
      %v370 = vld [vmem:[%s272 + $0x60] sm:$0xf]
      %v371 = vld [vmem:[%s272 + $0x64] sm:$0xf]
      %v372 = vld [vmem:[%s272 + $0x68] sm:$0xf]
      %v373 = vld [vmem:[%s272 + $0x6c] sm:$0xf]
      %v374 = vld [vmem:[%s272 + $0x70] sm:$0xf]
      %v375 = vld [vmem:[%s272 + $0x74] sm:$0xf]
      %v376 = vld [vmem:[%s272 + $0x78] sm:$0xf]
      %v377 = vld [vmem:[%s272 + $0x7c] sm:$0xf]
      %vm378 = vsmask.f32 256
      %vm379 = vsmask.f32 4368
      %vm380 = vmor %vm378, %vm379
      %v382 = vshrl.u32 %v346, 16
      %v384 = vrot.slane %v382, 7
      %v385 = vshll.u32 %v346, 16
      %v387 = vor.u32 %v384, %v385
      %v388 = vrot.slane %v384, 4
      %v390 = vshrl.u32 %v347, 16
      %v392 = vrot.slane %v390, 7
      %v393 = vshll.u32 %v347, 16
      %v395 = vor.u32 %v392, %v393
      %v396 = vsel %vm380, %v388, %v395
      %v397 = vrot.slane %v392, 4
      %v399 = vshrl.u32 %v348, 16
      %v401 = vrot.slane %v399, 7
      %v402 = vshll.u32 %v348, 16
      %v404 = vor.u32 %v401, %v402
      %v405 = vrot.slane %v401, 4
      %v407 = vshrl.u32 %v349, 16
      %v409 = vrot.slane %v407, 7
      %v410 = vshll.u32 %v349, 16
      %v412 = vor.u32 %v409, %v410
      %v413 = vsel %vm380, %v405, %v412
      %v414 = vrot.slane %v409, 4
      %v416 = vshrl.u32 %v350, 16
      %v418 = vrot.slane %v416, 7
      %v419 = vshll.u32 %v350, 16
      %v421 = vor.u32 %v418, %v419
      %v422 = vrot.slane %v418, 4
      %v424 = vshrl.u32 %v351, 16
      %v426 = vrot.slane %v424, 7
      %v427 = vshll.u32 %v351, 16
      %v429 = vor.u32 %v426, %v427
      %v430 = vsel %vm380, %v422, %v429
      %v431 = vrot.slane %v426, 4
      %v433 = vshrl.u32 %v352, 16
      %v435 = vrot.slane %v433, 7
      %v436 = vshll.u32 %v352, 16
      %v438 = vor.u32 %v435, %v436
      %v439 = vrot.slane %v435, 4
      %v441 = vshrl.u32 %v353, 16
      %v443 = vrot.slane %v441, 7
      %v444 = vshll.u32 %v353, 16
      %v446 = vor.u32 %v443, %v444
      %v447 = vsel %vm380, %v439, %v446
      %v448 = vrot.slane %v443, 4
      %v450 = vshrl.u32 %v354, 16
      %v452 = vrot.slane %v450, 7
      %v453 = vshll.u32 %v354, 16
      %v455 = vor.u32 %v452, %v453
      %v456 = vrot.slane %v452, 4
      %v458 = vshrl.u32 %v355, 16
      %v460 = vrot.slane %v458, 7
      %v461 = vshll.u32 %v355, 16
      %v463 = vor.u32 %v460, %v461
      %v464 = vsel %vm380, %v456, %v463
      %v465 = vrot.slane %v460, 4
      %v467 = vshrl.u32 %v356, 16
      %v469 = vrot.slane %v467, 7
      %v470 = vshll.u32 %v356, 16
      %v472 = vor.u32 %v469, %v470
      %v473 = vrot.slane %v469, 4
      %v475 = vshrl.u32 %v357, 16
      %v477 = vrot.slane %v475, 7
      %v478 = vshll.u32 %v357, 16
      %v480 = vor.u32 %v477, %v478
      %v481 = vsel %vm380, %v473, %v480
      %v482 = vrot.slane %v477, 4
      %v484 = vshrl.u32 %v358, 16
      %v486 = vrot.slane %v484, 7
      %v487 = vshll.u32 %v358, 16
      %v489 = vor.u32 %v486, %v487
      %v490 = vrot.slane %v486, 4
      %v492 = vshrl.u32 %v359, 16
      %v494 = vrot.slane %v492, 7
      %v495 = vshll.u32 %v359, 16
      %v497 = vor.u32 %v494, %v495
      %v498 = vsel %vm380, %v490, %v497
      %v499 = vrot.slane %v494, 4
      %v501 = vshrl.u32 %v360, 16
      %v503 = vrot.slane %v501, 7
      %v504 = vshll.u32 %v360, 16
      %v506 = vor.u32 %v503, %v504
      %v507 = vrot.slane %v503, 4
      %v509 = vshrl.u32 %v361, 16
      %v511 = vrot.slane %v509, 7
      %v512 = vshll.u32 %v361, 16
      %v514 = vor.u32 %v511, %v512
      %v515 = vsel %vm380, %v507, %v514
      %v516 = vrot.slane %v511, 4
      %v518 = vshrl.u32 %v362, 16
      %v520 = vrot.slane %v518, 7
      %v521 = vshll.u32 %v362, 16
      %v523 = vor.u32 %v520, %v521
      %v524 = vrot.slane %v520, 4
      %v526 = vshrl.u32 %v363, 16
      %v528 = vrot.slane %v526, 7
      %v529 = vshll.u32 %v363, 16
      %v531 = vor.u32 %v528, %v529
      %v532 = vsel %vm380, %v524, %v531
      %v533 = vrot.slane %v528, 4
      %v535 = vshrl.u32 %v364, 16
      %v537 = vrot.slane %v535, 7
      %v538 = vshll.u32 %v364, 16
      %v540 = vor.u32 %v537, %v538
      %v541 = vrot.slane %v537, 4
      %v543 = vshrl.u32 %v365, 16
      %v545 = vrot.slane %v543, 7
      %v546 = vshll.u32 %v365, 16
      %v548 = vor.u32 %v545, %v546
      %v549 = vsel %vm380, %v541, %v548
      %v550 = vrot.slane %v545, 4
      %v552 = vshrl.u32 %v366, 16
      %v554 = vrot.slane %v552, 7
      %v555 = vshll.u32 %v366, 16
      %v557 = vor.u32 %v554, %v555
      %v558 = vrot.slane %v554, 4
      %v560 = vshrl.u32 %v367, 16
      %v562 = vrot.slane %v560, 7
      %v563 = vshll.u32 %v367, 16
      %v565 = vor.u32 %v562, %v563
      %v566 = vsel %vm380, %v558, %v565
      %v567 = vrot.slane %v562, 4
      %v569 = vshrl.u32 %v368, 16
      %v571 = vrot.slane %v569, 7
      %v572 = vshll.u32 %v368, 16
      %v574 = vor.u32 %v571, %v572
      %v575 = vrot.slane %v571, 4
      %v577 = vshrl.u32 %v369, 16
      %v579 = vrot.slane %v577, 7
      %v580 = vshll.u32 %v369, 16
      %v582 = vor.u32 %v579, %v580
      %v583 = vsel %vm380, %v575, %v582
      %v584 = vrot.slane %v579, 4
      %v586 = vshrl.u32 %v370, 16
      %v588 = vrot.slane %v586, 7
      %v589 = vshll.u32 %v370, 16
      %v591 = vor.u32 %v588, %v589
      %v592 = vrot.slane %v588, 4
      %v594 = vshrl.u32 %v371, 16
      %v596 = vrot.slane %v594, 7
      %v597 = vshll.u32 %v371, 16
      %v599 = vor.u32 %v596, %v597
      %v600 = vsel %vm380, %v592, %v599
      %v601 = vrot.slane %v596, 4
      %v603 = vshrl.u32 %v372, 16
      %v605 = vrot.slane %v603, 7
      %v606 = vshll.u32 %v372, 16
      %v608 = vor.u32 %v605, %v606
      %v609 = vrot.slane %v605, 4
      %v611 = vshrl.u32 %v373, 16
      %v613 = vrot.slane %v611, 7
      %v614 = vshll.u32 %v373, 16
      %v616 = vor.u32 %v613, %v614
      %v617 = vsel %vm380, %v609, %v616
      %v618 = vrot.slane %v613, 4
      %v620 = vshrl.u32 %v374, 16
      %v622 = vrot.slane %v620, 7
      %v623 = vshll.u32 %v374, 16
      %v625 = vor.u32 %v622, %v623
      %v626 = vrot.slane %v622, 4
      %v628 = vshrl.u32 %v375, 16
      %v630 = vrot.slane %v628, 7
      %v631 = vshll.u32 %v375, 16
      %v633 = vor.u32 %v630, %v631
      %v634 = vsel %vm380, %v626, %v633
      %v635 = vrot.slane %v630, 4
      %v637 = vshrl.u32 %v376, 16
      %v639 = vrot.slane %v637, 7
      %v640 = vshll.u32 %v376, 16
      %v642 = vor.u32 %v639, %v640
      %v643 = vrot.slane %v639, 4
      %v645 = vshrl.u32 %v377, 16
      %v647 = vrot.slane %v645, 7
      %v648 = vshll.u32 %v377, 16
      %v650 = vor.u32 %v647, %v648
      %v651 = vsel %vm380, %v643, %v650
      %v652 = vrot.slane %v647, 4
      %s701 = scalar_lea.vmem [#allocation2], 12
      %vm702 = vcmask 60416
      %vm703 = vsmask.f32 7938
      %vm704 = vmand %vm702, %vm703
      %v705 = vld [vmem:[%s701] sm:$0xf]
      %v706 = vsel %vm704, %v387, %v705
      %707 = vst [vmem:[%s701] sm:$0xf] %v706
      %708 = vst.msk [vmem:[%s701 + $0x4] sm:$0xf] %vm290, %v396
      %vm709 = vcmask 57344
      %vm710 = vmand %vm709, %vm378
      %v711 = vld [vmem:[%s701 + $0x8] sm:$0x1]
      %v712 = vsel %vm710, %v397, %v711
      %713 = vst [vmem:[%s701 + $0x8] sm:$0x1] %v712
      %v714 = vld [vmem:[%s701 + $0xc] sm:$0xf]
      %v715 = vsel %vm704, %v404, %v714
      %716 = vst [vmem:[%s701 + $0xc] sm:$0xf] %v715
      %717 = vst.msk [vmem:[%s701 + $0x10] sm:$0xf] %vm290, %v413
      %v718 = vld [vmem:[%s701 + $0x14] sm:$0x1]
      %v719 = vsel %vm710, %v414, %v718
      %720 = vst [vmem:[%s701 + $0x14] sm:$0x1] %v719
      %v721 = vld [vmem:[%s701 + $0x18] sm:$0xf]
      %v722 = vsel %vm704, %v421, %v721
      %723 = vst [vmem:[%s701 + $0x18] sm:$0xf] %v722
      %724 = vst.msk [vmem:[%s701 + $0x1c] sm:$0xf] %vm290, %v430
      %v725 = vld [vmem:[%s701 + $0x20] sm:$0x1]
      %v726 = vsel %vm710, %v431, %v725
      %727 = vst [vmem:[%s701 + $0x20] sm:$0x1] %v726
      %v728 = vld [vmem:[%s701 + $0x24] sm:$0xf]
      %v729 = vsel %vm704, %v438, %v728
      %730 = vst [vmem:[%s701 + $0x24] sm:$0xf] %v729
      %731 = vst.msk [vmem:[%s701 + $0x28] sm:$0xf] %vm290, %v447
      %v732 = vld [vmem:[%s701 + $0x2c] sm:$0x1]
      %v733 = vsel %vm710, %v448, %v732
      %734 = vst [vmem:[%s701 + $0x2c] sm:$0x1] %v733
      %v735 = vld [vmem:[%s701 + $0x30] sm:$0xf]
      %v736 = vsel %vm704, %v455, %v735
      %737 = vst [vmem:[%s701 + $0x30] sm:$0xf] %v736
      %738 = vst.msk [vmem:[%s701 + $0x34] sm:$0xf] %vm290, %v464
      %v739 = vld [vmem:[%s701 + $0x38] sm:$0x1]
      %v740 = vsel %vm710, %v465, %v739
      %741 = vst [vmem:[%s701 + $0x38] sm:$0x1] %v740
      %v742 = vld [vmem:[%s701 + $0x3c] sm:$0xf]
      %v743 = vsel %vm704, %v472, %v742
      %744 = vst [vmem:[%s701 + $0x3c] sm:$0xf] %v743
      %745 = vst.msk [vmem:[%s701 + $0x40] sm:$0xf] %vm290, %v481
      %v746 = vld [vmem:[%s701 + $0x44] sm:$0x1]
      %v747 = vsel %vm710, %v482, %v746
      %748 = vst [vmem:[%s701 + $0x44] sm:$0x1] %v747
      %v749 = vld [vmem:[%s701 + $0x48] sm:$0xf]
      %v750 = vsel %vm704, %v489, %v749
      %751 = vst [vmem:[%s701 + $0x48] sm:$0xf] %v750
      %752 = vst.msk [vmem:[%s701 + $0x4c] sm:$0xf] %vm290, %v498
      %v753 = vld [vmem:[%s701 + $0x50] sm:$0x1]
      %v754 = vsel %vm710, %v499, %v753
      %755 = vst [vmem:[%s701 + $0x50] sm:$0x1] %v754
      %v756 = vld [vmem:[%s701 + $0x54] sm:$0xf]
      %v757 = vsel %vm704, %v506, %v756
      %758 = vst [vmem:[%s701 + $0x54] sm:$0xf] %v757
      %759 = vst.msk [vmem:[%s701 + $0x58] sm:$0xf] %vm290, %v515
      %v760 = vld [vmem:[%s701 + $0x5c] sm:$0x1]
      %v761 = vsel %vm710, %v516, %v760
      %762 = vst [vmem:[%s701 + $0x5c] sm:$0x1] %v761
      %v763 = vld [vmem:[%s701 + $0x60] sm:$0xf]
      %v764 = vsel %vm704, %v523, %v763
      %765 = vst [vmem:[%s701 + $0x60] sm:$0xf] %v764
      %766 = vst.msk [vmem:[%s701 + $0x64] sm:$0xf] %vm290, %v532
      %v767 = vld [vmem:[%s701 + $0x68] sm:$0x1]
      %v768 = vsel %vm710, %v533, %v767
      %769 = vst [vmem:[%s701 + $0x68] sm:$0x1] %v768
      %v770 = vld [vmem:[%s701 + $0x6c] sm:$0xf]
      %v771 = vsel %vm704, %v540, %v770
      %772 = vst [vmem:[%s701 + $0x6c] sm:$0xf] %v771
      %773 = vst.msk [vmem:[%s701 + $0x70] sm:$0xf] %vm290, %v549
      %v774 = vld [vmem:[%s701 + $0x74] sm:$0x1]
      %v775 = vsel %vm710, %v550, %v774
      %776 = vst [vmem:[%s701 + $0x74] sm:$0x1] %v775
      %v777 = vld [vmem:[%s701 + $0x78] sm:$0xf]
      %v778 = vsel %vm704, %v557, %v777
      %779 = vst [vmem:[%s701 + $0x78] sm:$0xf] %v778
      %780 = vst.msk [vmem:[%s701 + $0x7c] sm:$0xf] %vm290, %v566
      %v781 = vld [vmem:[%s701 + $0x80] sm:$0x1]
      %v782 = vsel %vm710, %v567, %v781
      %783 = vst [vmem:[%s701 + $0x80] sm:$0x1] %v782
      %v784 = vld [vmem:[%s701 + $0x84] sm:$0xf]
      %v785 = vsel %vm704, %v574, %v784
      %786 = vst [vmem:[%s701 + $0x84] sm:$0xf] %v785
      %787 = vst.msk [vmem:[%s701 + $0x88] sm:$0xf] %vm290, %v583
      %v788 = vld [vmem:[%s701 + $0x8c] sm:$0x1]
      %v789 = vsel %vm710, %v584, %v788
      %790 = vst [vmem:[%s701 + $0x8c] sm:$0x1] %v789
      %v791 = vld [vmem:[%s701 + $0x90] sm:$0xf]
      %v792 = vsel %vm704, %v591, %v791
      %793 = vst [vmem:[%s701 + $0x90] sm:$0xf] %v792
      %794 = vst.msk [vmem:[%s701 + $0x94] sm:$0xf] %vm290, %v600
      %v795 = vld [vmem:[%s701 + $0x98] sm:$0x1]
      %v796 = vsel %vm710, %v601, %v795
      %797 = vst [vmem:[%s701 + $0x98] sm:$0x1] %v796
      %v798 = vld [vmem:[%s701 + $0x9c] sm:$0xf]
      %v799 = vsel %vm704, %v608, %v798
      %800 = vst [vmem:[%s701 + $0x9c] sm:$0xf] %v799
      %801 = vst.msk [vmem:[%s701 + $0xa0] sm:$0xf] %vm290, %v617
      %v802 = vld [vmem:[%s701 + $0xa4] sm:$0x1]
      %v803 = vsel %vm710, %v618, %v802
      %804 = vst [vmem:[%s701 + $0xa4] sm:$0x1] %v803
      %v805 = vld [vmem:[%s701 + $0xa8] sm:$0xf]
      %v806 = vsel %vm704, %v625, %v805
      %807 = vst [vmem:[%s701 + $0xa8] sm:$0xf] %v806
      %808 = vst.msk [vmem:[%s701 + $0xac] sm:$0xf] %vm290, %v634
      %v809 = vld [vmem:[%s701 + $0xb0] sm:$0x1]
      %v810 = vsel %vm710, %v635, %v809
      %811 = vst [vmem:[%s701 + $0xb0] sm:$0x1] %v810
      %v812 = vld [vmem:[%s701 + $0xb4] sm:$0xf]
      %v813 = vsel %vm704, %v642, %v812
      %814 = vst [vmem:[%s701 + $0xb4] sm:$0xf] %v813
      %815 = vst.msk [vmem:[%s701 + $0xb8] sm:$0xf] %vm290, %v651
      %v816 = vld [vmem:[%s701 + $0xbc] sm:$0x1]
      %v817 = vsel %vm710, %v652, %v816
      %818 = vst [vmem:[%s701 + $0xbc] sm:$0x1] %v817
      %819 = vst.msk [vmem:[#allocation3] sm:$0xf] %vm290, 0
      %820 = vst.msk [vmem:[#allocation3 + $0x4] sm:$0xf] %vm290, 0
      %821 = vst.msk [vmem:[#allocation3 + $0x8] sm:$0x1] %vm293, 0
      %822 = vst.msk [vmem:[#allocation3 + $0xc] sm:$0xf] %vm290, 0
      %823 = vst.msk [vmem:[#allocation3 + $0x10] sm:$0xf] %vm290, 0
      %824 = vst.msk [vmem:[#allocation3 + $0x14] sm:$0x1] %vm293, 0
      %825 = vst.msk [vmem:[#allocation3 + $0x18] sm:$0xf] %vm290, 0
      %826 = vst.msk [vmem:[#allocation3 + $0x1c] sm:$0xf] %vm290, 0
      %827 = vst.msk [vmem:[#allocation3 + $0x20] sm:$0x1] %vm293, 0
      %828 = vst.msk [vmem:[#allocation3 + $0x24] sm:$0xf] %vm290, 0
      %829 = vst.msk [vmem:[#allocation3 + $0x28] sm:$0xf] %vm290, 0
      %830 = vst.msk [vmem:[#allocation3 + $0x2c] sm:$0x1] %vm293, 0
      %831 = vst.msk [vmem:[#allocation3 + $0x30] sm:$0xf] %vm290, 0
      %832 = vst.msk [vmem:[#allocation3 + $0x34] sm:$0xf] %vm290, 0
      %833 = vst.msk [vmem:[#allocation3 + $0x38] sm:$0x1] %vm293, 0
      %834 = vst.msk [vmem:[#allocation3 + $0x3c] sm:$0xf] %vm290, 0
      %835 = vst.msk [vmem:[#allocation3 + $0x40] sm:$0xf] %vm290, 0
      %836 = vst.msk [vmem:[#allocation3 + $0x44] sm:$0x1] %vm293, 0
      %837 = vst.msk [vmem:[#allocation3 + $0x48] sm:$0xf] %vm290, 0
      %838 = vst.msk [vmem:[#allocation3 + $0x4c] sm:$0xf] %vm290, 0
      %839 = vst.msk [vmem:[#allocation3 + $0x50] sm:$0x1] %vm293, 0
      %840 = vst.msk [vmem:[#allocation3 + $0x54] sm:$0xf] %vm290, 0
      %841 = vst.msk [vmem:[#allocation3 + $0x58] sm:$0xf] %vm290, 0
      %842 = vst.msk [vmem:[#allocation3 + $0x5c] sm:$0x1] %vm293, 0
      %843 = vst.msk [vmem:[#allocation3 + $0x60] sm:$0xf] %vm290, 0
      %844 = vst.msk [vmem:[#allocation3 + $0x64] sm:$0xf] %vm290, 0
      %845 = vst.msk [vmem:[#allocation3 + $0x68] sm:$0x1] %vm293, 0
      %846 = vst.msk [vmem:[#allocation3 + $0x6c] sm:$0xf] %vm290, 0
      %847 = vst.msk [vmem:[#allocation3 + $0x70] sm:$0xf] %vm290, 0
      %848 = vst.msk [vmem:[#allocation3 + $0x74] sm:$0x1] %vm293, 0
      %849 = vst.msk [vmem:[#allocation3 + $0x78] sm:$0xf] %vm290, 0
      %850 = vst.msk [vmem:[#allocation3 + $0x7c] sm:$0xf] %vm290, 0
      %851 = vst.msk [vmem:[#allocation3 + $0x80] sm:$0x1] %vm293, 0
      %852 = vst.msk [vmem:[#allocation3 + $0x84] sm:$0xf] %vm290, 0
      %853 = vst.msk [vmem:[#allocation3 + $0x88] sm:$0xf] %vm290, 0
      %854 = vst.msk [vmem:[#allocation3 + $0x8c] sm:$0x1] %vm293, 0
      %855 = vst.msk [vmem:[#allocation3 + $0x90] sm:$0xf] %vm290, 0
      %856 = vst.msk [vmem:[#allocation3 + $0x94] sm:$0xf] %vm290, 0
      %857 = vst.msk [vmem:[#allocation3 + $0x98] sm:$0x1] %vm293, 0
      %858 = vst.msk [vmem:[#allocation3 + $0x9c] sm:$0xf] %vm290, 0
      %859 = vst.msk [vmem:[#allocation3 + $0xa0] sm:$0xf] %vm290, 0
      %860 = vst.msk [vmem:[#allocation3 + $0xa4] sm:$0x1] %vm293, 0
      %861 = vst.msk [vmem:[#allocation3 + $0xa8] sm:$0xf] %vm290, 0
      %862 = vst.msk [vmem:[#allocation3 + $0xac] sm:$0xf] %vm290, 0
      %863 = vst.msk [vmem:[#allocation3 + $0xb0] sm:$0x1] %vm293, 0
      %864 = vst.msk [vmem:[#allocation3 + $0xb4] sm:$0xf] %vm290, 0
      %865 = vst.msk [vmem:[#allocation3 + $0xb8] sm:$0xf] %vm290, 0
      %866 = vst.msk [vmem:[#allocation3 + $0xbc] sm:$0x1] %vm293, 0
      %867 = vst.msk [vmem:[#allocation3 + $0xc0] sm:$0xf] %vm290, 0
      %868 = vst.msk [vmem:[#allocation3 + $0xc4] sm:$0xf] %vm290, 0
      %869 = vst.msk [vmem:[#allocation3 + $0xc8] sm:$0x1] %vm293, 0
      %870 = vst.msk [vmem:[#allocation3 + $0xcc] sm:$0xf] %vm290, 0
      %871 = vst.msk [vmem:[#allocation3 + $0xd0] sm:$0xf] %vm290, 0
      %872 = vst.msk [vmem:[#allocation3 + $0xd4] sm:$0x1] %vm293, 0
      %v873 = vld [vmem:[%s277] sm:$0xf]
      %v874 = vld [vmem:[%s277 + $0x4] sm:$0xf]
      %v875 = vld [vmem:[%s277 + $0x8] sm:$0xf]
      %v876 = vld [vmem:[%s277 + $0xc] sm:$0xf]
      %v877 = vld [vmem:[%s277 + $0x10] sm:$0xf]
      %v878 = vld [vmem:[%s277 + $0x14] sm:$0xf]
      %v879 = vld [vmem:[%s277 + $0x18] sm:$0xf]
      %v880 = vld [vmem:[%s277 + $0x1c] sm:$0xf]
      %v881 = vld [vmem:[%s277 + $0x20] sm:$0xf]
      %v882 = vld [vmem:[%s277 + $0x24] sm:$0xf]
      %v883 = vld [vmem:[%s277 + $0x28] sm:$0xf]
      %v884 = vld [vmem:[%s277 + $0x2c] sm:$0xf]
      %v885 = vld [vmem:[%s277 + $0x30] sm:$0xf]
      %v886 = vld [vmem:[%s277 + $0x34] sm:$0xf]
      %v887 = vld [vmem:[%s277 + $0x38] sm:$0xf]
      %v888 = vld [vmem:[%s277 + $0x3c] sm:$0xf]
      %v889 = vld [vmem:[%s277 + $0x40] sm:$0xf]
      %v890 = vld [vmem:[%s277 + $0x44] sm:$0xf]
      %v891 = vld [vmem:[%s277 + $0x48] sm:$0xf]
      %v892 = vld [vmem:[%s277 + $0x4c] sm:$0xf]
      %v893 = vld [vmem:[%s277 + $0x50] sm:$0xf]
      %v894 = vld [vmem:[%s277 + $0x54] sm:$0xf]
      %v895 = vld [vmem:[%s277 + $0x58] sm:$0xf]
      %v896 = vld [vmem:[%s277 + $0x5c] sm:$0xf]
      %v897 = vld [vmem:[%s277 + $0x60] sm:$0xf]
      %v898 = vld [vmem:[%s277 + $0x64] sm:$0xf]
      %v899 = vld [vmem:[%s277 + $0x68] sm:$0xf]
      %v900 = vld [vmem:[%s277 + $0x6c] sm:$0xf]
      %v901 = vld [vmem:[%s277 + $0x70] sm:$0xf]
      %v902 = vld [vmem:[%s277 + $0x74] sm:$0xf]
      %v903 = vld [vmem:[%s277 + $0x78] sm:$0xf]
      %v904 = vld [vmem:[%s277 + $0x7c] sm:$0xf]
      %v906 = vshrl.u32 %v873, 16
      %v908 = vrot.slane %v906, 7
      %v909 = vshll.u32 %v873, 16
      %v911 = vor.u32 %v908, %v909
      %v912 = vrot.slane %v908, 4
      %v914 = vshrl.u32 %v874, 16
      %v916 = vrot.slane %v914, 7
      %v917 = vshll.u32 %v874, 16
      %v919 = vor.u32 %v916, %v917
      %v920 = vsel %vm380, %v912, %v919
      %v921 = vrot.slane %v916, 4
      %v923 = vshrl.u32 %v875, 16
      %v925 = vrot.slane %v923, 7
      %v926 = vshll.u32 %v875, 16
      %v928 = vor.u32 %v925, %v926
      %v929 = vrot.slane %v925, 4
      %v931 = vshrl.u32 %v876, 16
      %v933 = vrot.slane %v931, 7
      %v934 = vshll.u32 %v876, 16
      %v936 = vor.u32 %v933, %v934
      %v937 = vsel %vm380, %v929, %v936
      %v938 = vrot.slane %v933, 4
      %v940 = vshrl.u32 %v877, 16
      %v942 = vrot.slane %v940, 7
      %v943 = vshll.u32 %v877, 16
      %v945 = vor.u32 %v942, %v943
      %v946 = vrot.slane %v942, 4
      %v948 = vshrl.u32 %v878, 16
      %v950 = vrot.slane %v948, 7
      %v951 = vshll.u32 %v878, 16
      %v953 = vor.u32 %v950, %v951
      %v954 = vsel %vm380, %v946, %v953
      %v955 = vrot.slane %v950, 4
      %v957 = vshrl.u32 %v879, 16
      %v959 = vrot.slane %v957, 7
      %v960 = vshll.u32 %v879, 16
      %v962 = vor.u32 %v959, %v960
      %v963 = vrot.slane %v959, 4
      %v965 = vshrl.u32 %v880, 16
      %v967 = vrot.slane %v965, 7
      %v968 = vshll.u32 %v880, 16
      %v970 = vor.u32 %v967, %v968
      %v971 = vsel %vm380, %v963, %v970
      %v972 = vrot.slane %v967, 4
      %v974 = vshrl.u32 %v881, 16
      %v976 = vrot.slane %v974, 7
      %v977 = vshll.u32 %v881, 16
      %v979 = vor.u32 %v976, %v977
      %v980 = vrot.slane %v976, 4
      %v982 = vshrl.u32 %v882, 16
      %v984 = vrot.slane %v982, 7
      %v985 = vshll.u32 %v882, 16
      %v987 = vor.u32 %v984, %v985
      %v988 = vsel %vm380, %v980, %v987
      %v989 = vrot.slane %v984, 4
      %v991 = vshrl.u32 %v883, 16
      %v993 = vrot.slane %v991, 7
      %v994 = vshll.u32 %v883, 16
      %v996 = vor.u32 %v993, %v994
      %v997 = vrot.slane %v993, 4
      %v999 = vshrl.u32 %v884, 16
      %v1001 = vrot.slane %v999, 7
      %v1002 = vshll.u32 %v884, 16
      %v1004 = vor.u32 %v1001, %v1002
      %v1005 = vsel %vm380, %v997, %v1004
      %v1006 = vrot.slane %v1001, 4
      %v1008 = vshrl.u32 %v885, 16
      %v1010 = vrot.slane %v1008, 7
      %v1011 = vshll.u32 %v885, 16
      %v1013 = vor.u32 %v1010, %v1011
      %v1014 = vrot.slane %v1010, 4
      %v1016 = vshrl.u32 %v886, 16
      %v1018 = vrot.slane %v1016, 7
      %v1019 = vshll.u32 %v886, 16
      %v1021 = vor.u32 %v1018, %v1019
      %v1022 = vsel %vm380, %v1014, %v1021
      %v1023 = vrot.slane %v1018, 4
      %v1025 = vshrl.u32 %v887, 16
      %v1027 = vrot.slane %v1025, 7
      %v1028 = vshll.u32 %v887, 16
      %v1030 = vor.u32 %v1027, %v1028
      %v1031 = vrot.slane %v1027, 4
      %v1033 = vshrl.u32 %v888, 16
      %v1035 = vrot.slane %v1033, 7
      %v1036 = vshll.u32 %v888, 16
      %v1038 = vor.u32 %v1035, %v1036
      %v1039 = vsel %vm380, %v1031, %v1038
      %v1040 = vrot.slane %v1035, 4
      %v1042 = vshrl.u32 %v889, 16
      %v1044 = vrot.slane %v1042, 7
      %v1045 = vshll.u32 %v889, 16
      %v1047 = vor.u32 %v1044, %v1045
      %v1048 = vrot.slane %v1044, 4
      %v1050 = vshrl.u32 %v890, 16
      %v1052 = vrot.slane %v1050, 7
      %v1053 = vshll.u32 %v890, 16
      %v1055 = vor.u32 %v1052, %v1053
      %v1056 = vsel %vm380, %v1048, %v1055
      %v1057 = vrot.slane %v1052, 4
      %v1059 = vshrl.u32 %v891, 16
      %v1061 = vrot.slane %v1059, 7
      %v1062 = vshll.u32 %v891, 16
      %v1064 = vor.u32 %v1061, %v1062
      %v1065 = vrot.slane %v1061, 4
      %v1067 = vshrl.u32 %v892, 16
      %v1069 = vrot.slane %v1067, 7
      %v1070 = vshll.u32 %v892, 16
      %v1072 = vor.u32 %v1069, %v1070
      %v1073 = vsel %vm380, %v1065, %v1072
      %v1074 = vrot.slane %v1069, 4
      %v1076 = vshrl.u32 %v893, 16
      %v1078 = vrot.slane %v1076, 7
      %v1079 = vshll.u32 %v893, 16
      %v1081 = vor.u32 %v1078, %v1079
      %v1082 = vrot.slane %v1078, 4
      %v1084 = vshrl.u32 %v894, 16
      %v1086 = vrot.slane %v1084, 7
      %v1087 = vshll.u32 %v894, 16
      %v1089 = vor.u32 %v1086, %v1087
      %v1090 = vsel %vm380, %v1082, %v1089
      %v1091 = vrot.slane %v1086, 4
      %v1093 = vshrl.u32 %v895, 16
      %v1095 = vrot.slane %v1093, 7
      %v1096 = vshll.u32 %v895, 16
      %v1098 = vor.u32 %v1095, %v1096
      %v1099 = vrot.slane %v1095, 4
      %v1101 = vshrl.u32 %v896, 16
      %v1103 = vrot.slane %v1101, 7
      %v1104 = vshll.u32 %v896, 16
      %v1106 = vor.u32 %v1103, %v1104
      %v1107 = vsel %vm380, %v1099, %v1106
      %v1108 = vrot.slane %v1103, 4
      %v1110 = vshrl.u32 %v897, 16
      %v1112 = vrot.slane %v1110, 7
      %v1113 = vshll.u32 %v897, 16
      %v1115 = vor.u32 %v1112, %v1113
      %v1116 = vrot.slane %v1112, 4
      %v1118 = vshrl.u32 %v898, 16
      %v1120 = vrot.slane %v1118, 7
      %v1121 = vshll.u32 %v898, 16
      %v1123 = vor.u32 %v1120, %v1121
      %v1124 = vsel %vm380, %v1116, %v1123
      %v1125 = vrot.slane %v1120, 4
      %v1127 = vshrl.u32 %v899, 16
      %v1129 = vrot.slane %v1127, 7
      %v1130 = vshll.u32 %v899, 16
      %v1132 = vor.u32 %v1129, %v1130
      %v1133 = vrot.slane %v1129, 4
      %v1135 = vshrl.u32 %v900, 16
      %v1137 = vrot.slane %v1135, 7
      %v1138 = vshll.u32 %v900, 16
      %v1140 = vor.u32 %v1137, %v1138
      %v1141 = vsel %vm380, %v1133, %v1140
      %v1142 = vrot.slane %v1137, 4
      %v1144 = vshrl.u32 %v901, 16
      %v1146 = vrot.slane %v1144, 7
      %v1147 = vshll.u32 %v901, 16
      %v1149 = vor.u32 %v1146, %v1147
      %v1150 = vrot.slane %v1146, 4
      %v1152 = vshrl.u32 %v902, 16
      %v1154 = vrot.slane %v1152, 7
      %v1155 = vshll.u32 %v902, 16
      %v1157 = vor.u32 %v1154, %v1155
      %v1158 = vsel %vm380, %v1150, %v1157
      %v1159 = vrot.slane %v1154, 4
      %v1161 = vshrl.u32 %v903, 16
      %v1163 = vrot.slane %v1161, 7
      %v1164 = vshll.u32 %v903, 16
      %v1166 = vor.u32 %v1163, %v1164
      %v1167 = vrot.slane %v1163, 4
      %v1169 = vshrl.u32 %v904, 16
      %v1171 = vrot.slane %v1169, 7
      %v1172 = vshll.u32 %v904, 16
      %v1174 = vor.u32 %v1171, %v1172
      %v1175 = vsel %vm380, %v1167, %v1174
      %v1176 = vrot.slane %v1171, 4
      %s1225 = scalar_lea.vmem [#allocation3], 12
      %v1226 = vld [vmem:[%s1225] sm:$0xf]
      %v1227 = vsel %vm704, %v911, %v1226
      %1228 = vst [vmem:[%s1225] sm:$0xf] %v1227
      %1229 = vst.msk [vmem:[%s1225 + $0x4] sm:$0xf] %vm290, %v920
      %v1230 = vld [vmem:[%s1225 + $0x8] sm:$0x1]
      %v1231 = vsel %vm710, %v921, %v1230
      %1232 = vst [vmem:[%s1225 + $0x8] sm:$0x1] %v1231
      %v1233 = vld [vmem:[%s1225 + $0xc] sm:$0xf]
      %v1234 = vsel %vm704, %v928, %v1233
      %1235 = vst [vmem:[%s1225 + $0xc] sm:$0xf] %v1234
      %1236 = vst.msk [vmem:[%s1225 + $0x10] sm:$0xf] %vm290, %v937
      %v1237 = vld [vmem:[%s1225 + $0x14] sm:$0x1]
      %v1238 = vsel %vm710, %v938, %v1237
      %1239 = vst [vmem:[%s1225 + $0x14] sm:$0x1] %v1238
      %v1240 = vld [vmem:[%s1225 + $0x18] sm:$0xf]
      %v1241 = vsel %vm704, %v945, %v1240
      %1242 = vst [vmem:[%s1225 + $0x18] sm:$0xf] %v1241
      %1243 = vst.msk [vmem:[%s1225 + $0x1c] sm:$0xf] %vm290, %v954
      %v1244 = vld [vmem:[%s1225 + $0x20] sm:$0x1]
      %v1245 = vsel %vm710, %v955, %v1244
      %1246 = vst [vmem:[%s1225 + $0x20] sm:$0x1] %v1245
      %v1247 = vld [vmem:[%s1225 + $0x24] sm:$0xf]
      %v1248 = vsel %vm704, %v962, %v1247
      %1249 = vst [vmem:[%s1225 + $0x24] sm:$0xf] %v1248
      %1250 = vst.msk [vmem:[%s1225 + $0x28] sm:$0xf] %vm290, %v971
      %v1251 = vld [vmem:[%s1225 + $0x2c] sm:$0x1]
      %v1252 = vsel %vm710, %v972, %v1251
      %1253 = vst [vmem:[%s1225 + $0x2c] sm:$0x1] %v1252
      %v1254 = vld [vmem:[%s1225 + $0x30] sm:$0xf]
      %v1255 = vsel %vm704, %v979, %v1254
      %1256 = vst [vmem:[%s1225 + $0x30] sm:$0xf] %v1255
      %1257 = vst.msk [vmem:[%s1225 + $0x34] sm:$0xf] %vm290, %v988
      %v1258 = vld [vmem:[%s1225 + $0x38] sm:$0x1]
      %v1259 = vsel %vm710, %v989, %v1258
      %1260 = vst [vmem:[%s1225 + $0x38] sm:$0x1] %v1259
      %v1261 = vld [vmem:[%s1225 + $0x3c] sm:$0xf]
      %v1262 = vsel %vm704, %v996, %v1261
      %1263 = vst [vmem:[%s1225 + $0x3c] sm:$0xf] %v1262
      %1264 = vst.msk [vmem:[%s1225 + $0x40] sm:$0xf] %vm290, %v1005
      %v1265 = vld [vmem:[%s1225 + $0x44] sm:$0x1]
      %v1266 = vsel %vm710, %v1006, %v1265
      %1267 = vst [vmem:[%s1225 + $0x44] sm:$0x1] %v1266
      %v1268 = vld [vmem:[%s1225 + $0x48] sm:$0xf]
      %v1269 = vsel %vm704, %v1013, %v1268
      %1270 = vst [vmem:[%s1225 + $0x48] sm:$0xf] %v1269
      %1271 = vst.msk [vmem:[%s1225 + $0x4c] sm:$0xf] %vm290, %v1022
      %v1272 = vld [vmem:[%s1225 + $0x50] sm:$0x1]
      %v1273 = vsel %vm710, %v1023, %v1272
      %1274 = vst [vmem:[%s1225 + $0x50] sm:$0x1] %v1273
      %v1275 = vld [vmem:[%s1225 + $0x54] sm:$0xf]
      %v1276 = vsel %vm704, %v1030, %v1275
      %1277 = vst [vmem:[%s1225 + $0x54] sm:$0xf] %v1276
      %1278 = vst.msk [vmem:[%s1225 + $0x58] sm:$0xf] %vm290, %v1039
      %v1279 = vld [vmem:[%s1225 + $0x5c] sm:$0x1]
      %v1280 = vsel %vm710, %v1040, %v1279
      %1281 = vst [vmem:[%s1225 + $0x5c] sm:$0x1] %v1280
      %v1282 = vld [vmem:[%s1225 + $0x60] sm:$0xf]
      %v1283 = vsel %vm704, %v1047, %v1282
      %1284 = vst [vmem:[%s1225 + $0x60] sm:$0xf] %v1283
      %1285 = vst.msk [vmem:[%s1225 + $0x64] sm:$0xf] %vm290, %v1056
      %v1286 = vld [vmem:[%s1225 + $0x68] sm:$0x1]
      %v1287 = vsel %vm710, %v1057, %v1286
      %1288 = vst [vmem:[%s1225 + $0x68] sm:$0x1] %v1287
      %v1289 = vld [vmem:[%s1225 + $0x6c] sm:$0xf]
      %v1290 = vsel %vm704, %v1064, %v1289
      %1291 = vst [vmem:[%s1225 + $0x6c] sm:$0xf] %v1290
      %1292 = vst.msk [vmem:[%s1225 + $0x70] sm:$0xf] %vm290, %v1073
      %v1293 = vld [vmem:[%s1225 + $0x74] sm:$0x1]
      %v1294 = vsel %vm710, %v1074, %v1293
      %1295 = vst [vmem:[%s1225 + $0x74] sm:$0x1] %v1294
      %v1296 = vld [vmem:[%s1225 + $0x78] sm:$0xf]
      %v1297 = vsel %vm704, %v1081, %v1296
      %1298 = vst [vmem:[%s1225 + $0x78] sm:$0xf] %v1297
      %1299 = vst.msk [vmem:[%s1225 + $0x7c] sm:$0xf] %vm290, %v1090
      %v1300 = vld [vmem:[%s1225 + $0x80] sm:$0x1]
      %v1301 = vsel %vm710, %v1091, %v1300
      %1302 = vst [vmem:[%s1225 + $0x80] sm:$0x1] %v1301
      %v1303 = vld [vmem:[%s1225 + $0x84] sm:$0xf]
      %v1304 = vsel %vm704, %v1098, %v1303
      %1305 = vst [vmem:[%s1225 + $0x84] sm:$0xf] %v1304
      %1306 = vst.msk [vmem:[%s1225 + $0x88] sm:$0xf] %vm290, %v1107
      %v1307 = vld [vmem:[%s1225 + $0x8c] sm:$0x1]
      %v1308 = vsel %vm710, %v1108, %v1307
      %1309 = vst [vmem:[%s1225 + $0x8c] sm:$0x1] %v1308
      %v1310 = vld [vmem:[%s1225 + $0x90] sm:$0xf]
      %v1311 = vsel %vm704, %v1115, %v1310
      %1312 = vst [vmem:[%s1225 + $0x90] sm:$0xf] %v1311
      %1313 = vst.msk [vmem:[%s1225 + $0x94] sm:$0xf] %vm290, %v1124
      %v1314 = vld [vmem:[%s1225 + $0x98] sm:$0x1]
      %v1315 = vsel %vm710, %v1125, %v1314
      %1316 = vst [vmem:[%s1225 + $0x98] sm:$0x1] %v1315
      %v1317 = vld [vmem:[%s1225 + $0x9c] sm:$0xf]
      %v1318 = vsel %vm704, %v1132, %v1317
      %1319 = vst [vmem:[%s1225 + $0x9c] sm:$0xf] %v1318
      %1320 = vst.msk [vmem:[%s1225 + $0xa0] sm:$0xf] %vm290, %v1141
      %v1321 = vld [vmem:[%s1225 + $0xa4] sm:$0x1]
      %v1322 = vsel %vm710, %v1142, %v1321
      %1323 = vst [vmem:[%s1225 + $0xa4] sm:$0x1] %v1322
      %v1324 = vld [vmem:[%s1225 + $0xa8] sm:$0xf]
      %v1325 = vsel %vm704, %v1149, %v1324
      %1326 = vst [vmem:[%s1225 + $0xa8] sm:$0xf] %v1325
      %1327 = vst.msk [vmem:[%s1225 + $0xac] sm:$0xf] %vm290, %v1158
      %v1328 = vld [vmem:[%s1225 + $0xb0] sm:$0x1]
      %v1329 = vsel %vm710, %v1159, %v1328
      %1330 = vst [vmem:[%s1225 + $0xb0] sm:$0x1] %v1329
      %v1331 = vld [vmem:[%s1225 + $0xb4] sm:$0xf]
      %v1332 = vsel %vm704, %v1166, %v1331
      %1333 = vst [vmem:[%s1225 + $0xb4] sm:$0xf] %v1332
      %1334 = vst.msk [vmem:[%s1225 + $0xb8] sm:$0xf] %vm290, %v1175
      %v1335 = vld [vmem:[%s1225 + $0xbc] sm:$0x1]
      %v1336 = vsel %vm710, %v1176, %v1335
      %1337 = vst [vmem:[%s1225 + $0xbc] sm:$0x1] %v1336
      %v1338 = vld [vmem:[#allocation2] sm:$0xf]
      %v1339 = vld [vmem:[#allocation2 + $0x4] sm:$0xf]
      %v1340 = vld [vmem:[#allocation2 + $0x8] sm:$0x1]
      %v1341 = vld [vmem:[#allocation2 + $0xc] sm:$0xf]
      %v1342 = vld [vmem:[#allocation2 + $0x10] sm:$0xf]
      %v1343 = vld [vmem:[#allocation2 + $0x14] sm:$0x1]
      %v1344 = vld [vmem:[#allocation2 + $0x18] sm:$0xf]
      %v1345 = vld [vmem:[#allocation2 + $0x1c] sm:$0xf]
      %v1346 = vld [vmem:[#allocation2 + $0x20] sm:$0x1]
      %v1347 = vld [vmem:[#allocation2 + $0x24] sm:$0xf]
      %v1348 = vld [vmem:[#allocation2 + $0x28] sm:$0xf]
      %v1349 = vld [vmem:[#allocation2 + $0x2c] sm:$0x1]
      %v1350 = vld [vmem:[#allocation2 + $0x30] sm:$0xf]
      %v1351 = vld [vmem:[#allocation2 + $0x34] sm:$0xf]
      %v1352 = vld [vmem:[#allocation2 + $0x38] sm:$0x1]
      %v1353 = vld [vmem:[#allocation2 + $0x3c] sm:$0xf]
      %v1354 = vld [vmem:[#allocation2 + $0x40] sm:$0xf]
      %v1355 = vld [vmem:[#allocation2 + $0x44] sm:$0x1]
      %v1356 = vld [vmem:[#allocation2 + $0x48] sm:$0xf]
      %v1357 = vld [vmem:[#allocation2 + $0x4c] sm:$0xf]
      %v1358 = vld [vmem:[#allocation2 + $0x50] sm:$0x1]
      %v1359 = vld [vmem:[#allocation2 + $0x54] sm:$0xf]
      %v1360 = vld [vmem:[#allocation2 + $0x58] sm:$0xf]
      %v1361 = vld [vmem:[#allocation2 + $0x5c] sm:$0x1]
      %v1362 = vld [vmem:[#allocation2 + $0x60] sm:$0xf]
      %v1363 = vld [vmem:[#allocation2 + $0x64] sm:$0xf]
      %v1364 = vld [vmem:[#allocation2 + $0x68] sm:$0x1]
      %v1365 = vld [vmem:[#allocation2 + $0x6c] sm:$0xf]
      %v1366 = vld [vmem:[#allocation2 + $0x70] sm:$0xf]
      %v1367 = vld [vmem:[#allocation2 + $0x74] sm:$0x1]
      %v1368 = vld [vmem:[#allocation2 + $0x78] sm:$0xf]
      %v1369 = vld [vmem:[#allocation2 + $0x7c] sm:$0xf]
      %v1370 = vld [vmem:[#allocation2 + $0x80] sm:$0x1]
      %v1371 = vld [vmem:[#allocation2 + $0x84] sm:$0xf]
      %v1372 = vld [vmem:[#allocation2 + $0x88] sm:$0xf]
      %v1373 = vld [vmem:[#allocation2 + $0x8c] sm:$0x1]
      %v1374 = vld [vmem:[#allocation2 + $0x90] sm:$0xf]
      %v1375 = vld [vmem:[#allocation2 + $0x94] sm:$0xf]
      %v1376 = vld [vmem:[#allocation2 + $0x98] sm:$0x1]
      %v1377 = vld [vmem:[#allocation2 + $0x9c] sm:$0xf]
      %v1378 = vld [vmem:[#allocation2 + $0xa0] sm:$0xf]
      %v1379 = vld [vmem:[#allocation2 + $0xa4] sm:$0x1]
      %v1380 = vld [vmem:[#allocation2 + $0xa8] sm:$0xf]
      %v1381 = vld [vmem:[#allocation2 + $0xac] sm:$0xf]
      %v1382 = vld [vmem:[#allocation2 + $0xb0] sm:$0x1]
      %v1383 = vld [vmem:[#allocation2 + $0xb4] sm:$0xf]
      %v1384 = vld [vmem:[#allocation2 + $0xb8] sm:$0xf]
      %v1385 = vld [vmem:[#allocation2 + $0xbc] sm:$0x1]
      %v1386 = vld [vmem:[#allocation2 + $0xc0] sm:$0xf]
      %v1387 = vld [vmem:[#allocation2 + $0xc4] sm:$0xf]
      %v1388 = vld [vmem:[#allocation2 + $0xc8] sm:$0x1]
      %v1389 = vld [vmem:[#allocation2 + $0xcc] sm:$0xf]
      %v1390 = vld [vmem:[#allocation2 + $0xd0] sm:$0xf]
      %v1391 = vld [vmem:[#allocation2 + $0xd4] sm:$0x1]
      %v1392 = vld [vmem:[#allocation3] sm:$0xf]
      %v1393 = vld [vmem:[#allocation3 + $0x4] sm:$0xf]
      %v1394 = vld [vmem:[#allocation3 + $0x8] sm:$0x1]
      %v1395 = vld [vmem:[#allocation3 + $0xc] sm:$0xf]
      %v1396 = vld [vmem:[#allocation3 + $0x10] sm:$0xf]
      %v1397 = vld [vmem:[#allocation3 + $0x14] sm:$0x1]
      %v1398 = vld [vmem:[#allocation3 + $0x18] sm:$0xf]
      %v1399 = vld [vmem:[#allocation3 + $0x1c] sm:$0xf]
      %v1400 = vld [vmem:[#allocation3 + $0x20] sm:$0x1]
      %v1401 = vld [vmem:[#allocation3 + $0x24] sm:$0xf]
      %v1402 = vld [vmem:[#allocation3 + $0x28] sm:$0xf]
      %v1403 = vld [vmem:[#allocation3 + $0x2c] sm:$0x1]
      %v1404 = vld [vmem:[#allocation3 + $0x30] sm:$0xf]
      %v1405 = vld [vmem:[#allocation3 + $0x34] sm:$0xf]
      %v1406 = vld [vmem:[#allocation3 + $0x38] sm:$0x1]
      %v1407 = vld [vmem:[#allocation3 + $0x3c] sm:$0xf]
      %v1408 = vld [vmem:[#allocation3 + $0x40] sm:$0xf]
      %v1409 = vld [vmem:[#allocation3 + $0x44] sm:$0x1]
      %v1410 = vld [vmem:[#allocation3 + $0x48] sm:$0xf]
      %v1411 = vld [vmem:[#allocation3 + $0x4c] sm:$0xf]
      %v1412 = vld [vmem:[#allocation3 + $0x50] sm:$0x1]
      %v1413 = vld [vmem:[#allocation3 + $0x54] sm:$0xf]
      %v1414 = vld [vmem:[#allocation3 + $0x58] sm:$0xf]
      %v1415 = vld [vmem:[#allocation3 + $0x5c] sm:$0x1]
      %v1416 = vld [vmem:[#allocation3 + $0x60] sm:$0xf]
      %v1417 = vld [vmem:[#allocation3 + $0x64] sm:$0xf]
      %v1418 = vld [vmem:[#allocation3 + $0x68] sm:$0x1]
      %v1419 = vld [vmem:[#allocation3 + $0x6c] sm:$0xf]
      %v1420 = vld [vmem:[#allocation3 + $0x70] sm:$0xf]
      %v1421 = vld [vmem:[#allocation3 + $0x74] sm:$0x1]
      %v1422 = vld [vmem:[#allocation3 + $0x78] sm:$0xf]
      %v1423 = vld [vmem:[#allocation3 + $0x7c] sm:$0xf]
      %v1424 = vld [vmem:[#allocation3 + $0x80] sm:$0x1]
      %v1425 = vld [vmem:[#allocation3 + $0x84] sm:$0xf]
      %v1426 = vld [vmem:[#allocation3 + $0x88] sm:$0xf]
      %v1427 = vld [vmem:[#allocation3 + $0x8c] sm:$0x1]
      %v1428 = vld [vmem:[#allocation3 + $0x90] sm:$0xf]
      %v1429 = vld [vmem:[#allocation3 + $0x94] sm:$0xf]
      %v1430 = vld [vmem:[#allocation3 + $0x98] sm:$0x1]
      %v1431 = vld [vmem:[#allocation3 + $0x9c] sm:$0xf]
      %v1432 = vld [vmem:[#allocation3 + $0xa0] sm:$0xf]
      %v1433 = vld [vmem:[#allocation3 + $0xa4] sm:$0x1]
      %v1434 = vld [vmem:[#allocation3 + $0xa8] sm:$0xf]
      %v1435 = vld [vmem:[#allocation3 + $0xac] sm:$0xf]
      %v1436 = vld [vmem:[#allocation3 + $0xb0] sm:$0x1]
      %v1437 = vld [vmem:[#allocation3 + $0xb4] sm:$0xf]
      %v1438 = vld [vmem:[#allocation3 + $0xb8] sm:$0xf]
      %v1439 = vld [vmem:[#allocation3 + $0xbc] sm:$0x1]
      %v1440 = vld [vmem:[#allocation3 + $0xc0] sm:$0xf]
      %v1441 = vld [vmem:[#allocation3 + $0xc4] sm:$0xf]
      %v1442 = vld [vmem:[#allocation3 + $0xc8] sm:$0x1]
      %v1443 = vld [vmem:[#allocation3 + $0xcc] sm:$0xf]
      %v1444 = vld [vmem:[#allocation3 + $0xd0] sm:$0xf]
      %v1445 = vld [vmem:[#allocation3 + $0xd4] sm:$0x1]
      %v1446 = vld [vmem:[%s2] sm:$0xf]
      %v1447 = vld [vmem:[%s2 + $0x4] sm:$0xf]
      %v1448 = vld [vmem:[%s2 + $0x8] sm:$0xf]
      %v1449 = vld [vmem:[%s2 + $0xc] sm:$0xf]
      %v1450 = vld [vmem:[%s2 + $0x10] sm:$0xf]
      %v1451 = vld [vmem:[%s2 + $0x14] sm:$0xf]
      %v1452 = vld [vmem:[%s2 + $0x18] sm:$0xf]
      %v1453 = vld [vmem:[%s2 + $0x1c] sm:$0xf]
      %v1454 = vld [vmem:[%s2 + $0x20] sm:$0xf]
      %v1455 = vld [vmem:[%s2 + $0x24] sm:$0xf]
      %v1456 = vld [vmem:[%s2 + $0x28] sm:$0xf]
      %v1457 = vld [vmem:[%s2 + $0x2c] sm:$0xf]
      %v1458 = vld [vmem:[%s2 + $0x30] sm:$0xf]
      %v1459 = vld [vmem:[%s2 + $0x34] sm:$0xf]
      %v1460 = vld [vmem:[%s2 + $0x38] sm:$0xf]
      %v1461 = vld [vmem:[%s2 + $0x3c] sm:$0xf]
      %v1462 = vld [vmem:[%s2 + $0x40] sm:$0xf]
      %v1463 = vld [vmem:[%s2 + $0x44] sm:$0xf]
      %v1464 = vld [vmem:[%s3] sm:$0x1]
      %vm1465 = vsmask.f32 3328
      %vm1466 = vsmask.f32 7440
      %vm1467 = vmor %vm1465, %vm1466
      %v1469 = vshrl.u32 %v1338, 16
      %v1471 = vrot.slane %v1469, 4
      %v1472 = vshll.u32 %v1338, 16
      %v1474 = vrot.slane %v1472, 5
      %v1475 = vor.u32 %v1471, %v1474
      %v1476 = vrot.slane %v1475, 4
      %v1478 = vshll.u32 %v1339, 16
      %v1480 = vrot.slane %v1478, 5
      %v1481 = vsel %vm1467, %v1476, %v1480
      %v1482 = vshrl.u32 %v1339, 16
      %v1484 = vrot.slane %v1482, 4
      %v1485 = vor.u32 %v1484, %v1480
      %v1486 = vrot.slane %v1485, 4
      %v1488 = vshll.u32 %v1340, 16
      %v1490 = vrot.slane %v1488, 5
      %v1491 = vsel %vm1467, %v1486, %v1490
      %v1493 = vshrl.u32 %v1341, 16
      %v1495 = vrot.slane %v1493, 4
      %v1496 = vshll.u32 %v1341, 16
      %v1498 = vrot.slane %v1496, 5
      %v1499 = vor.u32 %v1495, %v1498
      %v1500 = vrot.slane %v1499, 4
      %v1502 = vshll.u32 %v1342, 16
      %v1504 = vrot.slane %v1502, 5
      %v1505 = vsel %vm1467, %v1500, %v1504
      %v1506 = vshrl.u32 %v1342, 16
      %v1508 = vrot.slane %v1506, 4
      %v1509 = vor.u32 %v1508, %v1504
      %v1510 = vrot.slane %v1509, 4
      %v1512 = vshll.u32 %v1343, 16
      %v1514 = vrot.slane %v1512, 5
      %v1515 = vsel %vm1467, %v1510, %v1514
      %v1517 = vshrl.u32 %v1344, 16
      %v1519 = vrot.slane %v1517, 4
      %v1520 = vshll.u32 %v1344, 16
      %v1522 = vrot.slane %v1520, 5
      %v1523 = vor.u32 %v1519, %v1522
      %v1524 = vrot.slane %v1523, 4
      %v1526 = vshll.u32 %v1345, 16
      %v1528 = vrot.slane %v1526, 5
      %v1529 = vsel %vm1467, %v1524, %v1528
      %v1530 = vshrl.u32 %v1345, 16
      %v1532 = vrot.slane %v1530, 4
      %v1533 = vor.u32 %v1532, %v1528
      %v1534 = vrot.slane %v1533, 4
      %v1536 = vshll.u32 %v1346, 16
      %v1538 = vrot.slane %v1536, 5
      %v1539 = vsel %vm1467, %v1534, %v1538
      %v1541 = vshrl.u32 %v1347, 16
      %v1543 = vrot.slane %v1541, 4
      %v1544 = vshll.u32 %v1347, 16
      %v1546 = vrot.slane %v1544, 5
      %v1547 = vor.u32 %v1543, %v1546
      %v1548 = vrot.slane %v1547, 4
      %v1550 = vshll.u32 %v1348, 16
      %v1552 = vrot.slane %v1550, 5
      %v1553 = vsel %vm1467, %v1548, %v1552
      %v1554 = vshrl.u32 %v1348, 16
      %v1556 = vrot.slane %v1554, 4
      %v1557 = vor.u32 %v1556, %v1552
      %v1558 = vrot.slane %v1557, 4
      %v1560 = vshll.u32 %v1349, 16
      %v1562 = vrot.slane %v1560, 5
      %v1563 = vsel %vm1467, %v1558, %v1562
      %v1565 = vshrl.u32 %v1350, 16
      %v1567 = vrot.slane %v1565, 4
      %v1568 = vshll.u32 %v1350, 16
      %v1570 = vrot.slane %v1568, 5
      %v1571 = vor.u32 %v1567, %v1570
      %v1572 = vrot.slane %v1571, 4
      %v1574 = vshll.u32 %v1351, 16
      %v1576 = vrot.slane %v1574, 5
      %v1577 = vsel %vm1467, %v1572, %v1576
      %v1578 = vshrl.u32 %v1351, 16
      %v1580 = vrot.slane %v1578, 4
      %v1581 = vor.u32 %v1580, %v1576
      %v1582 = vrot.slane %v1581, 4
      %v1584 = vshll.u32 %v1352, 16
      %v1586 = vrot.slane %v1584, 5
      %v1587 = vsel %vm1467, %v1582, %v1586
      %v1589 = vshrl.u32 %v1353, 16
      %v1591 = vrot.slane %v1589, 4
      %v1592 = vshll.u32 %v1353, 16
      %v1594 = vrot.slane %v1592, 5
      %v1595 = vor.u32 %v1591, %v1594
      %v1596 = vrot.slane %v1595, 4
      %v1598 = vshll.u32 %v1354, 16
      %v1600 = vrot.slane %v1598, 5
      %v1601 = vsel %vm1467, %v1596, %v1600
      %v1602 = vshrl.u32 %v1354, 16
      %v1604 = vrot.slane %v1602, 4
      %v1605 = vor.u32 %v1604, %v1600
      %v1606 = vrot.slane %v1605, 4
      %v1608 = vshll.u32 %v1355, 16
      %v1610 = vrot.slane %v1608, 5
      %v1611 = vsel %vm1467, %v1606, %v1610
      %v1613 = vshrl.u32 %v1356, 16
      %v1615 = vrot.slane %v1613, 4
      %v1616 = vshll.u32 %v1356, 16
      %v1618 = vrot.slane %v1616, 5
      %v1619 = vor.u32 %v1615, %v1618
      %v1620 = vrot.slane %v1619, 4
      %v1622 = vshll.u32 %v1357, 16
      %v1624 = vrot.slane %v1622, 5
      %v1625 = vsel %vm1467, %v1620, %v1624
      %v1626 = vshrl.u32 %v1357, 16
      %v1628 = vrot.slane %v1626, 4
      %v1629 = vor.u32 %v1628, %v1624
      %v1630 = vrot.slane %v1629, 4
      %v1632 = vshll.u32 %v1358, 16
      %v1634 = vrot.slane %v1632, 5
      %v1635 = vsel %vm1467, %v1630, %v1634
      %v1637 = vshrl.u32 %v1359, 16
      %v1639 = vrot.slane %v1637, 4
      %v1640 = vshll.u32 %v1359, 16
      %v1642 = vrot.slane %v1640, 5
      %v1643 = vor.u32 %v1639, %v1642
      %v1644 = vrot.slane %v1643, 4
      %v1646 = vshll.u32 %v1360, 16
      %v1648 = vrot.slane %v1646, 5
      %v1649 = vsel %vm1467, %v1644, %v1648
      %v1650 = vshrl.u32 %v1360, 16
      %v1652 = vrot.slane %v1650, 4
      %v1653 = vor.u32 %v1652, %v1648
      %v1654 = vrot.slane %v1653, 4
      %v1656 = vshll.u32 %v1361, 16
      %v1658 = vrot.slane %v1656, 5
      %v1659 = vsel %vm1467, %v1654, %v1658
      %v1661 = vshrl.u32 %v1362, 16
      %v1663 = vrot.slane %v1661, 4
      %v1664 = vshll.u32 %v1362, 16
      %v1666 = vrot.slane %v1664, 5
      %v1667 = vor.u32 %v1663, %v1666
      %v1668 = vrot.slane %v1667, 4
      %v1670 = vshll.u32 %v1363, 16
      %v1672 = vrot.slane %v1670, 5
      %v1673 = vsel %vm1467, %v1668, %v1672
      %v1674 = vshrl.u32 %v1363, 16
      %v1676 = vrot.slane %v1674, 4
      %v1677 = vor.u32 %v1676, %v1672
      %v1678 = vrot.slane %v1677, 4
      %v1680 = vshll.u32 %v1364, 16
      %v1682 = vrot.slane %v1680, 5
      %v1683 = vsel %vm1467, %v1678, %v1682
      %v1685 = vshrl.u32 %v1365, 16
      %v1687 = vrot.slane %v1685, 4
      %v1688 = vshll.u32 %v1365, 16
      %v1690 = vrot.slane %v1688, 5
      %v1691 = vor.u32 %v1687, %v1690
      %v1692 = vrot.slane %v1691, 4
      %v1694 = vshll.u32 %v1366, 16
      %v1696 = vrot.slane %v1694, 5
      %v1697 = vsel %vm1467, %v1692, %v1696
      %v1698 = vshrl.u32 %v1366, 16
      %v1700 = vrot.slane %v1698, 4
      %v1701 = vor.u32 %v1700, %v1696
      %v1702 = vrot.slane %v1701, 4
      %v1704 = vshll.u32 %v1367, 16
      %v1706 = vrot.slane %v1704, 5
      %v1707 = vsel %vm1467, %v1702, %v1706
      %v1709 = vshrl.u32 %v1368, 16
      %v1711 = vrot.slane %v1709, 4
      %v1712 = vshll.u32 %v1368, 16
      %v1714 = vrot.slane %v1712, 5
      %v1715 = vor.u32 %v1711, %v1714
      %v1716 = vrot.slane %v1715, 4
      %v1718 = vshll.u32 %v1369, 16
      %v1720 = vrot.slane %v1718, 5
      %v1721 = vsel %vm1467, %v1716, %v1720
      %v1722 = vshrl.u32 %v1369, 16
      %v1724 = vrot.slane %v1722, 4
      %v1725 = vor.u32 %v1724, %v1720
      %v1726 = vrot.slane %v1725, 4
      %v1728 = vshll.u32 %v1370, 16
      %v1730 = vrot.slane %v1728, 5
      %v1731 = vsel %vm1467, %v1726, %v1730
      %v1733 = vshrl.u32 %v1371, 16
      %v1735 = vrot.slane %v1733, 4
      %v1736 = vshll.u32 %v1371, 16
      %v1738 = vrot.slane %v1736, 5
      %v1739 = vor.u32 %v1735, %v1738
      %v1740 = vrot.slane %v1739, 4
      %v1742 = vshll.u32 %v1372, 16
      %v1744 = vrot.slane %v1742, 5
      %v1745 = vsel %vm1467, %v1740, %v1744
      %v1746 = vshrl.u32 %v1372, 16
      %v1748 = vrot.slane %v1746, 4
      %v1749 = vor.u32 %v1748, %v1744
      %v1750 = vrot.slane %v1749, 4
      %v1752 = vshll.u32 %v1373, 16
      %v1754 = vrot.slane %v1752, 5
      %v1755 = vsel %vm1467, %v1750, %v1754
      %v1757 = vshrl.u32 %v1374, 16
      %v1759 = vrot.slane %v1757, 4
      %v1760 = vshll.u32 %v1374, 16
      %v1762 = vrot.slane %v1760, 5
      %v1763 = vor.u32 %v1759, %v1762
      %v1764 = vrot.slane %v1763, 4
      %v1766 = vshll.u32 %v1375, 16
      %v1768 = vrot.slane %v1766, 5
      %v1769 = vsel %vm1467, %v1764, %v1768
      %v1770 = vshrl.u32 %v1375, 16
      %v1772 = vrot.slane %v1770, 4
      %v1773 = vor.u32 %v1772, %v1768
      %v1774 = vrot.slane %v1773, 4
      %v1776 = vshll.u32 %v1376, 16
      %v1778 = vrot.slane %v1776, 5
      %v1779 = vsel %vm1467, %v1774, %v1778
      %v1781 = vshrl.u32 %v1377, 16
      %v1783 = vrot.slane %v1781, 4
      %v1784 = vshll.u32 %v1377, 16
      %v1786 = vrot.slane %v1784, 5
      %v1787 = vor.u32 %v1783, %v1786
      %v1788 = vrot.slane %v1787, 4
      %v1790 = vshll.u32 %v1378, 16
      %v1792 = vrot.slane %v1790, 5
      %v1793 = vsel %vm1467, %v1788, %v1792
      %v1794 = vshrl.u32 %v1378, 16
      %v1796 = vrot.slane %v1794, 4
      %v1797 = vor.u32 %v1796, %v1792
      %v1798 = vrot.slane %v1797, 4
      %v1800 = vshll.u32 %v1379, 16
      %v1802 = vrot.slane %v1800, 5
      %v1803 = vsel %vm1467, %v1798, %v1802
      %v1805 = vshrl.u32 %v1380, 16
      %v1807 = vrot.slane %v1805, 4
      %v1808 = vshll.u32 %v1380, 16
      %v1810 = vrot.slane %v1808, 5
      %v1811 = vor.u32 %v1807, %v1810
      %v1812 = vrot.slane %v1811, 4
      %v1814 = vshll.u32 %v1381, 16
      %v1816 = vrot.slane %v1814, 5
      %v1817 = vsel %vm1467, %v1812, %v1816
      %v1818 = vshrl.u32 %v1381, 16
      %v1820 = vrot.slane %v1818, 4
      %v1821 = vor.u32 %v1820, %v1816
      %v1822 = vrot.slane %v1821, 4
      %v1824 = vshll.u32 %v1382, 16
      %v1826 = vrot.slane %v1824, 5
      %v1827 = vsel %vm1467, %v1822, %v1826
      %v1829 = vshrl.u32 %v1383, 16
      %v1831 = vrot.slane %v1829, 4
      %v1832 = vshll.u32 %v1383, 16
      %v1834 = vrot.slane %v1832, 5
      %v1835 = vor.u32 %v1831, %v1834
      %v1836 = vrot.slane %v1835, 4
      %v1838 = vshll.u32 %v1384, 16
      %v1840 = vrot.slane %v1838, 5
      %v1841 = vsel %vm1467, %v1836, %v1840
      %v1842 = vshrl.u32 %v1384, 16
      %v1844 = vrot.slane %v1842, 4
      %v1845 = vor.u32 %v1844, %v1840
      %v1846 = vrot.slane %v1845, 4
      %v1848 = vshll.u32 %v1385, 16
      %v1850 = vrot.slane %v1848, 5
      %v1851 = vsel %vm1467, %v1846, %v1850
      %v1853 = vshrl.u32 %v1392, 16
      %v1855 = vrot.slane %v1853, 4
      %v1856 = vshll.u32 %v1392, 16
      %v1858 = vrot.slane %v1856, 5
      %v1859 = vor.u32 %v1855, %v1858
      %v1860 = vrot.slane %v1859, 4
      %v1862 = vshll.u32 %v1393, 16
      %v1864 = vrot.slane %v1862, 5
      %v1865 = vsel %vm1467, %v1860, %v1864
      %v1866 = vshrl.u32 %v1393, 16
      %v1868 = vrot.slane %v1866, 4
      %v1869 = vor.u32 %v1868, %v1864
      %v1870 = vrot.slane %v1869, 4
      %v1872 = vshll.u32 %v1394, 16
      %v1874 = vrot.slane %v1872, 5
      %v1875 = vsel %vm1467, %v1870, %v1874
      %v1877 = vshrl.u32 %v1395, 16
      %v1879 = vrot.slane %v1877, 4
      %v1880 = vshll.u32 %v1395, 16
      %v1882 = vrot.slane %v1880, 5
      %v1883 = vor.u32 %v1879, %v1882
      %v1884 = vrot.slane %v1883, 4
      %v1886 = vshll.u32 %v1396, 16
      %v1888 = vrot.slane %v1886, 5
      %v1889 = vsel %vm1467, %v1884, %v1888
      %v1890 = vshrl.u32 %v1396, 16
      %v1892 = vrot.slane %v1890, 4
      %v1893 = vor.u32 %v1892, %v1888
      %v1894 = vrot.slane %v1893, 4
      %v1896 = vshll.u32 %v1397, 16
      %v1898 = vrot.slane %v1896, 5
      %v1899 = vsel %vm1467, %v1894, %v1898
      %v1901 = vshrl.u32 %v1398, 16
      %v1903 = vrot.slane %v1901, 4
      %v1904 = vshll.u32 %v1398, 16
      %v1906 = vrot.slane %v1904, 5
      %v1907 = vor.u32 %v1903, %v1906
      %v1908 = vrot.slane %v1907, 4
      %v1910 = vshll.u32 %v1399, 16
      %v1912 = vrot.slane %v1910, 5
      %v1913 = vsel %vm1467, %v1908, %v1912
      %v1914 = vshrl.u32 %v1399, 16
      %v1916 = vrot.slane %v1914, 4
      %v1917 = vor.u32 %v1916, %v1912
      %v1918 = vrot.slane %v1917, 4
      %v1920 = vshll.u32 %v1400, 16
      %v1922 = vrot.slane %v1920, 5
      %v1923 = vsel %vm1467, %v1918, %v1922
      %v1925 = vshrl.u32 %v1401, 16
      %v1927 = vrot.slane %v1925, 4
      %v1928 = vshll.u32 %v1401, 16
      %v1930 = vrot.slane %v1928, 5
      %v1931 = vor.u32 %v1927, %v1930
      %v1932 = vrot.slane %v1931, 4
      %v1934 = vshll.u32 %v1402, 16
      %v1936 = vrot.slane %v1934, 5
      %v1937 = vsel %vm1467, %v1932, %v1936
      %v1938 = vshrl.u32 %v1402, 16
      %v1940 = vrot.slane %v1938, 4
      %v1941 = vor.u32 %v1940, %v1936
      %v1942 = vrot.slane %v1941, 4
      %v1944 = vshll.u32 %v1403, 16
      %v1946 = vrot.slane %v1944, 5
      %v1947 = vsel %vm1467, %v1942, %v1946
      %v1949 = vshrl.u32 %v1404, 16
      %v1951 = vrot.slane %v1949, 4
      %v1952 = vshll.u32 %v1404, 16
      %v1954 = vrot.slane %v1952, 5
      %v1955 = vor.u32 %v1951, %v1954
      %v1956 = vrot.slane %v1955, 4
      %v1958 = vshll.u32 %v1405, 16
      %v1960 = vrot.slane %v1958, 5
      %v1961 = vsel %vm1467, %v1956, %v1960
      %v1962 = vshrl.u32 %v1405, 16
      %v1964 = vrot.slane %v1962, 4
      %v1965 = vor.u32 %v1964, %v1960
      %v1966 = vrot.slane %v1965, 4
      %v1968 = vshll.u32 %v1406, 16
      %v1970 = vrot.slane %v1968, 5
      %v1971 = vsel %vm1467, %v1966, %v1970
      %v1973 = vshrl.u32 %v1407, 16
      %v1975 = vrot.slane %v1973, 4
      %v1976 = vshll.u32 %v1407, 16
      %v1978 = vrot.slane %v1976, 5
      %v1979 = vor.u32 %v1975, %v1978
      %v1980 = vrot.slane %v1979, 4
      %v1982 = vshll.u32 %v1408, 16
      %v1984 = vrot.slane %v1982, 5
      %v1985 = vsel %vm1467, %v1980, %v1984
      %v1986 = vshrl.u32 %v1408, 16
      %v1988 = vrot.slane %v1986, 4
      %v1989 = vor.u32 %v1988, %v1984
      %v1990 = vrot.slane %v1989, 4
      %v1992 = vshll.u32 %v1409, 16
      %v1994 = vrot.slane %v1992, 5
      %v1995 = vsel %vm1467, %v1990, %v1994
      %v1997 = vshrl.u32 %v1410, 16
      %v1999 = vrot.slane %v1997, 4
      %v2000 = vshll.u32 %v1410, 16
      %v2002 = vrot.slane %v2000, 5
      %v2003 = vor.u32 %v1999, %v2002
      %v2004 = vrot.slane %v2003, 4
      %v2006 = vshll.u32 %v1411, 16
      %v2008 = vrot.slane %v2006, 5
      %v2009 = vsel %vm1467, %v2004, %v2008
      %v2010 = vshrl.u32 %v1411, 16
      %v2012 = vrot.slane %v2010, 4
      %v2013 = vor.u32 %v2012, %v2008
      %v2014 = vrot.slane %v2013, 4
      %v2016 = vshll.u32 %v1412, 16
      %v2018 = vrot.slane %v2016, 5
      %v2019 = vsel %vm1467, %v2014, %v2018
      %v2021 = vshrl.u32 %v1413, 16
      %v2023 = vrot.slane %v2021, 4
      %v2024 = vshll.u32 %v1413, 16
      %v2026 = vrot.slane %v2024, 5
      %v2027 = vor.u32 %v2023, %v2026
      %v2028 = vrot.slane %v2027, 4
      %v2030 = vshll.u32 %v1414, 16
      %v2032 = vrot.slane %v2030, 5
      %v2033 = vsel %vm1467, %v2028, %v2032
      %v2034 = vshrl.u32 %v1414, 16
      %v2036 = vrot.slane %v2034, 4
      %v2037 = vor.u32 %v2036, %v2032
      %v2038 = vrot.slane %v2037, 4
      %v2040 = vshll.u32 %v1415, 16
      %v2042 = vrot.slane %v2040, 5
      %v2043 = vsel %vm1467, %v2038, %v2042
      %v2045 = vshrl.u32 %v1416, 16
      %v2047 = vrot.slane %v2045, 4
      %v2048 = vshll.u32 %v1416, 16
      %v2050 = vrot.slane %v2048, 5
      %v2051 = vor.u32 %v2047, %v2050
      %v2052 = vrot.slane %v2051, 4
      %v2054 = vshll.u32 %v1417, 16
      %v2056 = vrot.slane %v2054, 5
      %v2057 = vsel %vm1467, %v2052, %v2056
      %v2058 = vshrl.u32 %v1417, 16
      %v2060 = vrot.slane %v2058, 4
      %v2061 = vor.u32 %v2060, %v2056
      %v2062 = vrot.slane %v2061, 4
      %v2064 = vshll.u32 %v1418, 16
      %v2066 = vrot.slane %v2064, 5
      %v2067 = vsel %vm1467, %v2062, %v2066
      %v2069 = vshrl.u32 %v1419, 16
      %v2071 = vrot.slane %v2069, 4
      %v2072 = vshll.u32 %v1419, 16
      %v2074 = vrot.slane %v2072, 5
      %v2075 = vor.u32 %v2071, %v2074
      %v2076 = vrot.slane %v2075, 4
      %v2078 = vshll.u32 %v1420, 16
      %v2080 = vrot.slane %v2078, 5
      %v2081 = vsel %vm1467, %v2076, %v2080
      %v2082 = vshrl.u32 %v1420, 16
      %v2084 = vrot.slane %v2082, 4
      %v2085 = vor.u32 %v2084, %v2080
      %v2086 = vrot.slane %v2085, 4
      %v2088 = vshll.u32 %v1421, 16
      %v2090 = vrot.slane %v2088, 5
      %v2091 = vsel %vm1467, %v2086, %v2090
      %v2093 = vshrl.u32 %v1422, 16
      %v2095 = vrot.slane %v2093, 4
      %v2096 = vshll.u32 %v1422, 16
      %v2098 = vrot.slane %v2096, 5
      %v2099 = vor.u32 %v2095, %v2098
      %v2100 = vrot.slane %v2099, 4
      %v2102 = vshll.u32 %v1423, 16
      %v2104 = vrot.slane %v2102, 5
      %v2105 = vsel %vm1467, %v2100, %v2104
      %v2106 = vshrl.u32 %v1423, 16
      %v2108 = vrot.slane %v2106, 4
      %v2109 = vor.u32 %v2108, %v2104
      %v2110 = vrot.slane %v2109, 4
      %v2112 = vshll.u32 %v1424, 16
      %v2114 = vrot.slane %v2112, 5
      %v2115 = vsel %vm1467, %v2110, %v2114
      %v2117 = vshrl.u32 %v1425, 16
      %v2119 = vrot.slane %v2117, 4
      %v2120 = vshll.u32 %v1425, 16
      %v2122 = vrot.slane %v2120, 5
      %v2123 = vor.u32 %v2119, %v2122
      %v2124 = vrot.slane %v2123, 4
      %v2126 = vshll.u32 %v1426, 16
      %v2128 = vrot.slane %v2126, 5
      %v2129 = vsel %vm1467, %v2124, %v2128
      %v2130 = vshrl.u32 %v1426, 16
      %v2132 = vrot.slane %v2130, 4
      %v2133 = vor.u32 %v2132, %v2128
      %v2134 = vrot.slane %v2133, 4
      %v2136 = vshll.u32 %v1427, 16
      %v2138 = vrot.slane %v2136, 5
      %v2139 = vsel %vm1467, %v2134, %v2138
      %v2141 = vshrl.u32 %v1428, 16
      %v2143 = vrot.slane %v2141, 4
      %v2144 = vshll.u32 %v1428, 16
      %v2146 = vrot.slane %v2144, 5
      %v2147 = vor.u32 %v2143, %v2146
      %v2148 = vrot.slane %v2147, 4
      %v2150 = vshll.u32 %v1429, 16
      %v2152 = vrot.slane %v2150, 5
      %v2153 = vsel %vm1467, %v2148, %v2152
      %v2154 = vshrl.u32 %v1429, 16
      %v2156 = vrot.slane %v2154, 4
      %v2157 = vor.u32 %v2156, %v2152
      %v2158 = vrot.slane %v2157, 4
      %v2160 = vshll.u32 %v1430, 16
      %v2162 = vrot.slane %v2160, 5
      %v2163 = vsel %vm1467, %v2158, %v2162
      %v2165 = vshrl.u32 %v1431, 16
      %v2167 = vrot.slane %v2165, 4
      %v2168 = vshll.u32 %v1431, 16
      %v2170 = vrot.slane %v2168, 5
      %v2171 = vor.u32 %v2167, %v2170
      %v2172 = vrot.slane %v2171, 4
      %v2174 = vshll.u32 %v1432, 16
      %v2176 = vrot.slane %v2174, 5
      %v2177 = vsel %vm1467, %v2172, %v2176
      %v2178 = vshrl.u32 %v1432, 16
      %v2180 = vrot.slane %v2178, 4
      %v2181 = vor.u32 %v2180, %v2176
      %v2182 = vrot.slane %v2181, 4
      %v2184 = vshll.u32 %v1433, 16
      %v2186 = vrot.slane %v2184, 5
      %v2187 = vsel %vm1467, %v2182, %v2186
      %v2189 = vshrl.u32 %v1434, 16
      %v2191 = vrot.slane %v2189, 4
      %v2192 = vshll.u32 %v1434, 16
      %v2194 = vrot.slane %v2192, 5
      %v2195 = vor.u32 %v2191, %v2194
      %v2196 = vrot.slane %v2195, 4
      %v2198 = vshll.u32 %v1435, 16
      %v2200 = vrot.slane %v2198, 5
      %v2201 = vsel %vm1467, %v2196, %v2200
      %v2202 = vshrl.u32 %v1435, 16
      %v2204 = vrot.slane %v2202, 4
      %v2205 = vor.u32 %v2204, %v2200
      %v2206 = vrot.slane %v2205, 4
      %v2208 = vshll.u32 %v1436, 16
      %v2210 = vrot.slane %v2208, 5
      %v2211 = vsel %vm1467, %v2206, %v2210
      %v2213 = vshrl.u32 %v1437, 16
      %v2215 = vrot.slane %v2213, 4
      %v2216 = vshll.u32 %v1437, 16
      %v2218 = vrot.slane %v2216, 5
      %v2219 = vor.u32 %v2215, %v2218
      %v2220 = vrot.slane %v2219, 4
      %v2222 = vshll.u32 %v1438, 16
      %v2224 = vrot.slane %v2222, 5
      %v2225 = vsel %vm1467, %v2220, %v2224
      %v2226 = vshrl.u32 %v1438, 16
      %v2228 = vrot.slane %v2226, 4
      %v2229 = vor.u32 %v2228, %v2224
      %v2230 = vrot.slane %v2229, 4
      %v2232 = vshll.u32 %v1439, 16
      %v2234 = vrot.slane %v2232, 5
      %v2235 = vsel %vm1467, %v2230, %v2234
      %vm2284 = vcmask 1042432
      %vm2285 = vcmask 1046532
      %vm2286 = vmor %vm2284, %vm2285
      %v2287 = vrot.slane %v1338, 5
      %v2288 = vrot.slane %v2287, 4
      %v2289 = vrot.slane %v1339, 5
      %v2290 = vsel %vm2286, %v2288, %v2289
      %v2291 = vrot.slane %v2289, 4
      %v2292 = vrot.slane %v1340, 5
      %v2293 = vsel %vm2286, %v2291, %v2292
      %v2294 = vrot.slane %v1341, 5
      %v2295 = vrot.slane %v2294, 4
      %v2296 = vrot.slane %v1342, 5
      %v2297 = vsel %vm2286, %v2295, %v2296
      %v2298 = vrot.slane %v2296, 4
      %v2299 = vrot.slane %v1343, 5
      %v2300 = vsel %vm2286, %v2298, %v2299
      %v2301 = vrot.slane %v1344, 5
      %v2302 = vrot.slane %v2301, 4
      %v2303 = vrot.slane %v1345, 5
      %v2304 = vsel %vm2286, %v2302, %v2303
      %v2305 = vrot.slane %v2303, 4
      %v2306 = vrot.slane %v1346, 5
      %v2307 = vsel %vm2286, %v2305, %v2306
      %v2308 = vrot.slane %v1347, 5
      %v2309 = vrot.slane %v2308, 4
      %v2310 = vrot.slane %v1348, 5
      %v2311 = vsel %vm2286, %v2309, %v2310
      %v2312 = vrot.slane %v2310, 4
      %v2313 = vrot.slane %v1349, 5
      %v2314 = vsel %vm2286, %v2312, %v2313
      %v2315 = vrot.slane %v1350, 5
      %v2316 = vrot.slane %v2315, 4
      %v2317 = vrot.slane %v1351, 5
      %v2318 = vsel %vm2286, %v2316, %v2317
      %v2319 = vrot.slane %v2317, 4
      %v2320 = vrot.slane %v1352, 5
      %v2321 = vsel %vm2286, %v2319, %v2320
      %v2322 = vrot.slane %v1353, 5
      %v2323 = vrot.slane %v2322, 4
      %v2324 = vrot.slane %v1354, 5
      %v2325 = vsel %vm2286, %v2323, %v2324
      %v2326 = vrot.slane %v2324, 4
      %v2327 = vrot.slane %v1355, 5
      %v2328 = vsel %vm2286, %v2326, %v2327
      %v2329 = vrot.slane %v1356, 5
      %v2330 = vrot.slane %v2329, 4
      %v2331 = vrot.slane %v1357, 5
      %v2332 = vsel %vm2286, %v2330, %v2331
      %v2333 = vrot.slane %v2331, 4
      %v2334 = vrot.slane %v1358, 5
      %v2335 = vsel %vm2286, %v2333, %v2334
      %v2336 = vrot.slane %v1359, 5
      %v2337 = vrot.slane %v2336, 4
      %v2338 = vrot.slane %v1360, 5
      %v2339 = vsel %vm2286, %v2337, %v2338
      %v2340 = vrot.slane %v2338, 4
      %v2341 = vrot.slane %v1361, 5
      %v2342 = vsel %vm2286, %v2340, %v2341
      %v2343 = vrot.slane %v1362, 5
      %v2344 = vrot.slane %v2343, 4
      %v2345 = vrot.slane %v1363, 5
      %v2346 = vsel %vm2286, %v2344, %v2345
      %v2347 = vrot.slane %v2345, 4
      %v2348 = vrot.slane %v1364, 5
      %v2349 = vsel %vm2286, %v2347, %v2348
      %v2350 = vrot.slane %v1365, 5
      %v2351 = vrot.slane %v2350, 4
      %v2352 = vrot.slane %v1366, 5
      %v2353 = vsel %vm2286, %v2351, %v2352
      %v2354 = vrot.slane %v2352, 4
      %v2355 = vrot.slane %v1367, 5
      %v2356 = vsel %vm2286, %v2354, %v2355
      %v2357 = vrot.slane %v1368, 5
      %v2358 = vrot.slane %v2357, 4
      %v2359 = vrot.slane %v1369, 5
      %v2360 = vsel %vm2286, %v2358, %v2359
      %v2361 = vrot.slane %v2359, 4
      %v2362 = vrot.slane %v1370, 5
      %v2363 = vsel %vm2286, %v2361, %v2362
      %v2364 = vrot.slane %v1371, 5
      %v2365 = vrot.slane %v2364, 4
      %v2366 = vrot.slane %v1372, 5
      %v2367 = vsel %vm2286, %v2365, %v2366
      %v2368 = vrot.slane %v2366, 4
      %v2369 = vrot.slane %v1373, 5
      %v2370 = vsel %vm2286, %v2368, %v2369
      %v2371 = vrot.slane %v1374, 5
      %v2372 = vrot.slane %v2371, 4
      %v2373 = vrot.slane %v1375, 5
      %v2374 = vsel %vm2286, %v2372, %v2373
      %v2375 = vrot.slane %v2373, 4
      %v2376 = vrot.slane %v1376, 5
      %v2377 = vsel %vm2286, %v2375, %v2376
      %v2378 = vrot.slane %v1377, 5
      %v2379 = vrot.slane %v2378, 4
      %v2380 = vrot.slane %v1378, 5
      %v2381 = vsel %vm2286, %v2379, %v2380
      %v2382 = vrot.slane %v2380, 4
      %v2383 = vrot.slane %v1379, 5
      %v2384 = vsel %vm2286, %v2382, %v2383
      %v2385 = vrot.slane %v1380, 5
      %v2386 = vrot.slane %v2385, 4
      %v2387 = vrot.slane %v1381, 5
      %v2388 = vsel %vm2286, %v2386, %v2387
      %v2389 = vrot.slane %v2387, 4
      %v2390 = vrot.slane %v1382, 5
      %v2391 = vsel %vm2286, %v2389, %v2390
      %v2392 = vrot.slane %v1383, 5
      %v2393 = vrot.slane %v2392, 4
      %v2394 = vrot.slane %v1384, 5
      %v2395 = vsel %vm2286, %v2393, %v2394
      %v2396 = vrot.slane %v2394, 4
      %v2397 = vrot.slane %v1385, 5
      %v2398 = vsel %vm2286, %v2396, %v2397
      %v2447 = vrot.slane %v1392, 5
      %v2448 = vrot.slane %v2447, 4
      %v2449 = vrot.slane %v1393, 5
      %v2450 = vsel %vm2286, %v2448, %v2449
      %v2451 = vrot.slane %v2449, 4
      %v2452 = vrot.slane %v1394, 5
      %v2453 = vsel %vm2286, %v2451, %v2452
      %v2454 = vrot.slane %v1395, 5
      %v2455 = vrot.slane %v2454, 4
      %v2456 = vrot.slane %v1396, 5
      %v2457 = vsel %vm2286, %v2455, %v2456
      %v2458 = vrot.slane %v2456, 4
      %v2459 = vrot.slane %v1397, 5
      %v2460 = vsel %vm2286, %v2458, %v2459
      %v2461 = vrot.slane %v1398, 5
      %v2462 = vrot.slane %v2461, 4
      %v2463 = vrot.slane %v1399, 5
      %v2464 = vsel %vm2286, %v2462, %v2463
      %v2465 = vrot.slane %v2463, 4
      %v2466 = vrot.slane %v1400, 5
      %v2467 = vsel %vm2286, %v2465, %v2466
      %v2468 = vrot.slane %v1401, 5
      %v2469 = vrot.slane %v2468, 4
      %v2470 = vrot.slane %v1402, 5
      %v2471 = vsel %vm2286, %v2469, %v2470
      %v2472 = vrot.slane %v2470, 4
      %v2473 = vrot.slane %v1403, 5
      %v2474 = vsel %vm2286, %v2472, %v2473
      %v2475 = vrot.slane %v1404, 5
      %v2476 = vrot.slane %v2475, 4
      %v2477 = vrot.slane %v1405, 5
      %v2478 = vsel %vm2286, %v2476, %v2477
      %v2479 = vrot.slane %v2477, 4
      %v2480 = vrot.slane %v1406, 5
      %v2481 = vsel %vm2286, %v2479, %v2480
      %v2482 = vrot.slane %v1407, 5
      %v2483 = vrot.slane %v2482, 4
      %v2484 = vrot.slane %v1408, 5
      %v2485 = vsel %vm2286, %v2483, %v2484
      %v2486 = vrot.slane %v2484, 4
      %v2487 = vrot.slane %v1409, 5
      %v2488 = vsel %vm2286, %v2486, %v2487
      %v2489 = vrot.slane %v1410, 5
      %v2490 = vrot.slane %v2489, 4
      %v2491 = vrot.slane %v1411, 5
      %v2492 = vsel %vm2286, %v2490, %v2491
      %v2493 = vrot.slane %v2491, 4
      %v2494 = vrot.slane %v1412, 5
      %v2495 = vsel %vm2286, %v2493, %v2494
      %v2496 = vrot.slane %v1413, 5
      %v2497 = vrot.slane %v2496, 4
      %v2498 = vrot.slane %v1414, 5
      %v2499 = vsel %vm2286, %v2497, %v2498
      %v2500 = vrot.slane %v2498, 4
      %v2501 = vrot.slane %v1415, 5
      %v2502 = vsel %vm2286, %v2500, %v2501
      %v2503 = vrot.slane %v1416, 5
      %v2504 = vrot.slane %v2503, 4
      %v2505 = vrot.slane %v1417, 5
      %v2506 = vsel %vm2286, %v2504, %v2505
      %v2507 = vrot.slane %v2505, 4
      %v2508 = vrot.slane %v1418, 5
      %v2509 = vsel %vm2286, %v2507, %v2508
      %v2510 = vrot.slane %v1419, 5
      %v2511 = vrot.slane %v2510, 4
      %v2512 = vrot.slane %v1420, 5
      %v2513 = vsel %vm2286, %v2511, %v2512
      %v2514 = vrot.slane %v2512, 4
      %v2515 = vrot.slane %v1421, 5
      %v2516 = vsel %vm2286, %v2514, %v2515
      %v2517 = vrot.slane %v1422, 5
      %v2518 = vrot.slane %v2517, 4
      %v2519 = vrot.slane %v1423, 5
      %v2520 = vsel %vm2286, %v2518, %v2519
      %v2521 = vrot.slane %v2519, 4
      %v2522 = vrot.slane %v1424, 5
      %v2523 = vsel %vm2286, %v2521, %v2522
      %v2524 = vrot.slane %v1425, 5
      %v2525 = vrot.slane %v2524, 4
      %v2526 = vrot.slane %v1426, 5
      %v2527 = vsel %vm2286, %v2525, %v2526
      %v2528 = vrot.slane %v2526, 4
      %v2529 = vrot.slane %v1427, 5
      %v2530 = vsel %vm2286, %v2528, %v2529
      %v2531 = vrot.slane %v1428, 5
      %v2532 = vrot.slane %v2531, 4
      %v2533 = vrot.slane %v1429, 5
      %v2534 = vsel %vm2286, %v2532, %v2533
      %v2535 = vrot.slane %v2533, 4
      %v2536 = vrot.slane %v1430, 5
      %v2537 = vsel %vm2286, %v2535, %v2536
      %v2538 = vrot.slane %v1431, 5
      %v2539 = vrot.slane %v2538, 4
      %v2540 = vrot.slane %v1432, 5
      %v2541 = vsel %vm2286, %v2539, %v2540
      %v2542 = vrot.slane %v2540, 4
      %v2543 = vrot.slane %v1433, 5
      %v2544 = vsel %vm2286, %v2542, %v2543
      %v2545 = vrot.slane %v1434, 5
      %v2546 = vrot.slane %v2545, 4
      %v2547 = vrot.slane %v1435, 5
      %v2548 = vsel %vm2286, %v2546, %v2547
      %v2549 = vrot.slane %v2547, 4
      %v2550 = vrot.slane %v1436, 5
      %v2551 = vsel %vm2286, %v2549, %v2550
      %v2552 = vrot.slane %v1437, 5
      %v2553 = vrot.slane %v2552, 4
      %v2554 = vrot.slane %v1438, 5
      %v2555 = vsel %vm2286, %v2553, %v2554
      %v2556 = vrot.slane %v2554, 4
      %v2557 = vrot.slane %v1439, 5
      %v2558 = vsel %vm2286, %v2556, %v2557
      %v2560 = vshrl.u32 %v1386, 16
      %v2562 = vrot.slane %v2560, 4
      %v2563 = vshll.u32 %v1386, 16
      %v2565 = vrot.slane %v2563, 5
      %v2566 = vor.u32 %v2562, %v2565
      %v2567 = vrot.slane %v2566, 4
      %v2569 = vshll.u32 %v1387, 16
      %v2571 = vrot.slane %v2569, 5
      %v2572 = vsel %vm1467, %v2567, %v2571
      %v2573 = vshrl.u32 %v1387, 16
      %v2575 = vrot.slane %v2573, 4
      %v2576 = vor.u32 %v2575, %v2571
      %v2577 = vrot.slane %v2576, 4
      %v2579 = vshll.u32 %v1388, 16
      %v2581 = vrot.slane %v2579, 5
      %v2582 = vsel %vm1467, %v2577, %v2581
      %v2584 = vshrl.u32 %v1440, 16
      %v2586 = vrot.slane %v2584, 4
      %v2587 = vshll.u32 %v1440, 16
      %v2589 = vrot.slane %v2587, 5
      %v2590 = vor.u32 %v2586, %v2589
      %v2591 = vrot.slane %v2590, 4
      %v2593 = vshll.u32 %v1441, 16
      %v2595 = vrot.slane %v2593, 5
      %v2596 = vsel %vm1467, %v2591, %v2595
      %v2597 = vshrl.u32 %v1441, 16
      %v2599 = vrot.slane %v2597, 4
      %v2600 = vor.u32 %v2599, %v2595
      %v2601 = vrot.slane %v2600, 4
      %v2603 = vshll.u32 %v1442, 16
      %v2605 = vrot.slane %v2603, 5
      %v2606 = vsel %vm1467, %v2601, %v2605
      %v2610 = vrot.slane %v1386, 5
      %v2611 = vrot.slane %v2610, 4
      %v2612 = vrot.slane %v1387, 5
      %v2613 = vsel %vm2286, %v2611, %v2612
      %v2614 = vrot.slane %v2612, 4
      %v2615 = vrot.slane %v1388, 5
      %v2616 = vsel %vm2286, %v2614, %v2615
      %v2620 = vrot.slane %v1440, 5
      %v2621 = vrot.slane %v2620, 4
      %v2622 = vrot.slane %v1441, 5
      %v2623 = vsel %vm2286, %v2621, %v2622
      %v2624 = vrot.slane %v2622, 4
      %v2625 = vrot.slane %v1442, 5
      %v2626 = vsel %vm2286, %v2624, %v2625
      %v2628 = vshrl.u32 %v1389, 16
      %v2630 = vrot.slane %v2628, 4
      %v2631 = vshll.u32 %v1389, 16
      %v2633 = vrot.slane %v2631, 5
      %v2634 = vor.u32 %v2630, %v2633
      %v2635 = vrot.slane %v2634, 4
      %v2637 = vshll.u32 %v1390, 16
      %v2639 = vrot.slane %v2637, 5
      %v2640 = vsel %vm1467, %v2635, %v2639
      %v2641 = vshrl.u32 %v1390, 16
      %v2643 = vrot.slane %v2641, 4
      %v2644 = vor.u32 %v2643, %v2639
      %v2645 = vrot.slane %v2644, 4
      %v2647 = vshll.u32 %v1391, 16
      %v2649 = vrot.slane %v2647, 5
      %v2650 = vsel %vm1467, %v2645, %v2649
      %v2652 = vshrl.u32 %v1443, 16
      %v2654 = vrot.slane %v2652, 4
      %v2655 = vshll.u32 %v1443, 16
      %v2657 = vrot.slane %v2655, 5
      %v2658 = vor.u32 %v2654, %v2657
      %v2659 = vrot.slane %v2658, 4
      %v2661 = vshll.u32 %v1444, 16
      %v2663 = vrot.slane %v2661, 5
      %v2664 = vsel %vm1467, %v2659, %v2663
      %v2665 = vshrl.u32 %v1444, 16
      %v2667 = vrot.slane %v2665, 4
      %v2668 = vor.u32 %v2667, %v2663
      %v2669 = vrot.slane %v2668, 4
      %v2671 = vshll.u32 %v1445, 16
      %v2673 = vrot.slane %v2671, 5
      %v2674 = vsel %vm1467, %v2669, %v2673
      %v2678 = vrot.slane %v1389, 5
      %v2679 = vrot.slane %v2678, 4
      %v2680 = vrot.slane %v1390, 5
      %v2681 = vsel %vm2286, %v2679, %v2680
      %v2682 = vrot.slane %v2680, 4
      %v2683 = vrot.slane %v1391, 5
      %v2684 = vsel %vm2286, %v2682, %v2683
      %v2688 = vrot.slane %v1443, 5
      %v2689 = vrot.slane %v2688, 4
      %v2690 = vrot.slane %v1444, 5
      %v2691 = vsel %vm2286, %v2689, %v2690
      %v2692 = vrot.slane %v2690, 4
      %v2693 = vrot.slane %v1445, 5
      %v2694 = vsel %vm2286, %v2692, %v2693
      %v2695 = vunpack.c.l.b16 %v1338
      %v2696 = vunpack.c.l.b16 %v1339
      %v2697 = vunpack.c.l.b16 %v1341
      %v2698 = vunpack.c.l.b16 %v1342
      %v2699 = vunpack.c.l.b16 %v1344
      %v2700 = vunpack.c.l.b16 %v1345
      %v2701 = vunpack.c.l.b16 %v1347
      %v2702 = vunpack.c.l.b16 %v1348
      %v2703 = vunpack.c.l.b16 %v1350
      %v2704 = vunpack.c.l.b16 %v1351
      %v2705 = vunpack.c.l.b16 %v1353
      %v2706 = vunpack.c.l.b16 %v1354
      %v2707 = vunpack.c.l.b16 %v1356
      %v2708 = vunpack.c.l.b16 %v1357
      %v2709 = vunpack.c.l.b16 %v1359
      %v2710 = vunpack.c.l.b16 %v1360
      %v2711 = vunpack.c.l.b16 %v1362
      %v2712 = vunpack.c.l.b16 %v1363
      %v2713 = vunpack.c.l.b16 %v1365
      %v2714 = vunpack.c.l.b16 %v1366
      %v2715 = vunpack.c.l.b16 %v1368
      %v2716 = vunpack.c.l.b16 %v1369
      %v2717 = vunpack.c.l.b16 %v1371
      %v2718 = vunpack.c.l.b16 %v1372
      %v2719 = vunpack.c.l.b16 %v1374
      %v2720 = vunpack.c.l.b16 %v1375
      %v2721 = vunpack.c.l.b16 %v1377
      %v2722 = vunpack.c.l.b16 %v1378
      %v2723 = vunpack.c.l.b16 %v1380
      %v2724 = vunpack.c.l.b16 %v1381
      %v2725 = vunpack.c.l.b16 %v1383
      %v2726 = vunpack.c.l.b16 %v1384
      %v2727 = vpack.c.b16 %v2696, %v2695
      %v2728 = vpack.c.b16 %v2698, %v2697
      %v2729 = vpack.c.b16 %v2700, %v2699
      %v2730 = vpack.c.b16 %v2702, %v2701
      %v2731 = vpack.c.b16 %v2704, %v2703
      %v2732 = vpack.c.b16 %v2706, %v2705
      %v2733 = vpack.c.b16 %v2708, %v2707
      %v2734 = vpack.c.b16 %v2710, %v2709
      %v2735 = vpack.c.b16 %v2712, %v2711
      %v2736 = vpack.c.b16 %v2714, %v2713
      %v2737 = vpack.c.b16 %v2716, %v2715
      %v2738 = vpack.c.b16 %v2718, %v2717
      %v2739 = vpack.c.b16 %v2720, %v2719
      %v2740 = vpack.c.b16 %v2722, %v2721
      %v2741 = vpack.c.b16 %v2724, %v2723
      %v2742 = vpack.c.b16 %v2726, %v2725
      %v2743 = vunpack.c.l.b16 %v1392
      %v2744 = vunpack.c.l.b16 %v1393
      %v2745 = vunpack.c.l.b16 %v1395
      %v2746 = vunpack.c.l.b16 %v1396
      %v2747 = vunpack.c.l.b16 %v1398
      %v2748 = vunpack.c.l.b16 %v1399
      %v2749 = vunpack.c.l.b16 %v1401
      %v2750 = vunpack.c.l.b16 %v1402
      %v2751 = vunpack.c.l.b16 %v1404
      %v2752 = vunpack.c.l.b16 %v1405
      %v2753 = vunpack.c.l.b16 %v1407
      %v2754 = vunpack.c.l.b16 %v1408
      %v2755 = vunpack.c.l.b16 %v1410
      %v2756 = vunpack.c.l.b16 %v1411
      %v2757 = vunpack.c.l.b16 %v1413
      %v2758 = vunpack.c.l.b16 %v1414
      %v2759 = vunpack.c.l.b16 %v1416
      %v2760 = vunpack.c.l.b16 %v1417
      %v2761 = vunpack.c.l.b16 %v1419
      %v2762 = vunpack.c.l.b16 %v1420
      %v2763 = vunpack.c.l.b16 %v1422
      %v2764 = vunpack.c.l.b16 %v1423
      %v2765 = vunpack.c.l.b16 %v1425
      %v2766 = vunpack.c.l.b16 %v1426
      %v2767 = vunpack.c.l.b16 %v1428
      %v2768 = vunpack.c.l.b16 %v1429
      %v2769 = vunpack.c.l.b16 %v1431
      %v2770 = vunpack.c.l.b16 %v1432
      %v2771 = vunpack.c.l.b16 %v1434
      %v2772 = vunpack.c.l.b16 %v1435
      %v2773 = vunpack.c.l.b16 %v1437
      %v2774 = vunpack.c.l.b16 %v1438
      %v2775 = vpack.c.b16 %v2744, %v2743
      %v2776 = vpack.c.b16 %v2746, %v2745
      %v2777 = vpack.c.b16 %v2748, %v2747
      %v2778 = vpack.c.b16 %v2750, %v2749
      %v2779 = vpack.c.b16 %v2752, %v2751
      %v2780 = vpack.c.b16 %v2754, %v2753
      %v2781 = vpack.c.b16 %v2756, %v2755
      %v2782 = vpack.c.b16 %v2758, %v2757
      %v2783 = vpack.c.b16 %v2760, %v2759
      %v2784 = vpack.c.b16 %v2762, %v2761
      %v2785 = vpack.c.b16 %v2764, %v2763
      %v2786 = vpack.c.b16 %v2766, %v2765
      %v2787 = vpack.c.b16 %v2768, %v2767
      %v2788 = vpack.c.b16 %v2770, %v2769
      %v2789 = vpack.c.b16 %v2772, %v2771
      %v2790 = vpack.c.b16 %v2774, %v2773
      %2791 = vrot.lane.b32.xlu0 %v2775, 8
      %v2792 = vpop.permute.xlu0 %2791
      %2793 = vrot.lane.b32.xlu0 %v2776, 8
      %v2794 = vpop.permute.xlu0 %2793
      %2795 = vrot.lane.b32.xlu0 %v2777, 8
      %v2796 = vpop.permute.xlu0 %2795
      %2797 = vrot.lane.b32.xlu0 %v2778, 8
      %v2798 = vpop.permute.xlu0 %2797
      %2799 = vrot.lane.b32.xlu0 %v2779, 8
      %v2800 = vpop.permute.xlu0 %2799
      %2801 = vrot.lane.b32.xlu0 %v2780, 8
      %v2802 = vpop.permute.xlu0 %2801
      %2803 = vrot.lane.b32.xlu0 %v2781, 8
      %v2804 = vpop.permute.xlu0 %2803
      %2805 = vrot.lane.b32.xlu0 %v2782, 8
      %v2806 = vpop.permute.xlu0 %2805
      %2807 = vrot.lane.b32.xlu0 %v2783, 8
      %v2808 = vpop.permute.xlu0 %2807
      %2809 = vrot.lane.b32.xlu0 %v2784, 8
      %v2810 = vpop.permute.xlu0 %2809
      %2811 = vrot.lane.b32.xlu0 %v2785, 8
      %v2812 = vpop.permute.xlu0 %2811
      %2813 = vrot.lane.b32.xlu0 %v2786, 8
      %v2814 = vpop.permute.xlu0 %2813
      %2815 = vrot.lane.b32.xlu0 %v2787, 8
      %v2816 = vpop.permute.xlu0 %2815
      %2817 = vrot.lane.b32.xlu0 %v2788, 8
      %v2818 = vpop.permute.xlu0 %2817
      %2819 = vrot.lane.b32.xlu0 %v2789, 8
      %v2820 = vpop.permute.xlu0 %2819
      %2821 = vrot.lane.b32.xlu0 %v2790, 8
      %v2822 = vpop.permute.xlu0 %2821
      %v2823 = vunpack.c.l.b16 %v1481
      %v2824 = vunpack.c.l.b16 %v1491
      %v2825 = vunpack.c.l.b16 %v1505
      %v2826 = vunpack.c.l.b16 %v1515
      %v2827 = vunpack.c.l.b16 %v1529
      %v2828 = vunpack.c.l.b16 %v1539
      %v2829 = vunpack.c.l.b16 %v1553
      %v2830 = vunpack.c.l.b16 %v1563
      %v2831 = vunpack.c.l.b16 %v1577
      %v2832 = vunpack.c.l.b16 %v1587
      %v2833 = vunpack.c.l.b16 %v1601
      %v2834 = vunpack.c.l.b16 %v1611
      %v2835 = vunpack.c.l.b16 %v1625
      %v2836 = vunpack.c.l.b16 %v1635
      %v2837 = vunpack.c.l.b16 %v1649
      %v2838 = vunpack.c.l.b16 %v1659
      %v2839 = vunpack.c.l.b16 %v1673
      %v2840 = vunpack.c.l.b16 %v1683
      %v2841 = vunpack.c.l.b16 %v1697
      %v2842 = vunpack.c.l.b16 %v1707
      %v2843 = vunpack.c.l.b16 %v1721
      %v2844 = vunpack.c.l.b16 %v1731
      %v2845 = vunpack.c.l.b16 %v1745
      %v2846 = vunpack.c.l.b16 %v1755
      %v2847 = vunpack.c.l.b16 %v1769
      %v2848 = vunpack.c.l.b16 %v1779
      %v2849 = vunpack.c.l.b16 %v1793
      %v2850 = vunpack.c.l.b16 %v1803
      %v2851 = vunpack.c.l.b16 %v1817
      %v2852 = vunpack.c.l.b16 %v1827
      %v2853 = vunpack.c.l.b16 %v1841
      %v2854 = vunpack.c.l.b16 %v1851
      %v2855 = vpack.c.b16 %v2824, %v2823
      %v2856 = vpack.c.b16 %v2826, %v2825
      %v2857 = vpack.c.b16 %v2828, %v2827
      %v2858 = vpack.c.b16 %v2830, %v2829
      %v2859 = vpack.c.b16 %v2832, %v2831
      %v2860 = vpack.c.b16 %v2834, %v2833
      %v2861 = vpack.c.b16 %v2836, %v2835
      %v2862 = vpack.c.b16 %v2838, %v2837
      %v2863 = vpack.c.b16 %v2840, %v2839
      %v2864 = vpack.c.b16 %v2842, %v2841
      %v2865 = vpack.c.b16 %v2844, %v2843
      %v2866 = vpack.c.b16 %v2846, %v2845
      %v2867 = vpack.c.b16 %v2848, %v2847
      %v2868 = vpack.c.b16 %v2850, %v2849
      %v2869 = vpack.c.b16 %v2852, %v2851
      %v2870 = vpack.c.b16 %v2854, %v2853
      %2871 = vrot.lane.b32.xlu0 %v2855, 16
      %v2872 = vpop.permute.xlu0 %2871
      %2873 = vrot.lane.b32.xlu0 %v2856, 16
      %v2874 = vpop.permute.xlu0 %2873
      %2875 = vrot.lane.b32.xlu0 %v2857, 16
      %v2876 = vpop.permute.xlu0 %2875
      %2877 = vrot.lane.b32.xlu0 %v2858, 16
      %v2878 = vpop.permute.xlu0 %2877
      %2879 = vrot.lane.b32.xlu0 %v2859, 16
      %v2880 = vpop.permute.xlu0 %2879
      %2881 = vrot.lane.b32.xlu0 %v2860, 16
      %v2882 = vpop.permute.xlu0 %2881
      %2883 = vrot.lane.b32.xlu0 %v2861, 16
      %v2884 = vpop.permute.xlu0 %2883
      %2885 = vrot.lane.b32.xlu0 %v2862, 16
      %v2886 = vpop.permute.xlu0 %2885
      %2887 = vrot.lane.b32.xlu0 %v2863, 16
      %v2888 = vpop.permute.xlu0 %2887
      %2889 = vrot.lane.b32.xlu0 %v2864, 16
      %v2890 = vpop.permute.xlu0 %2889
      %2891 = vrot.lane.b32.xlu0 %v2865, 16
      %v2892 = vpop.permute.xlu0 %2891
      %2893 = vrot.lane.b32.xlu0 %v2866, 16
      %v2894 = vpop.permute.xlu0 %2893
      %2895 = vrot.lane.b32.xlu0 %v2867, 16
      %v2896 = vpop.permute.xlu0 %2895
      %2897 = vrot.lane.b32.xlu0 %v2868, 16
      %v2898 = vpop.permute.xlu0 %2897
      %2899 = vrot.lane.b32.xlu0 %v2869, 16
      %v2900 = vpop.permute.xlu0 %2899
      %2901 = vrot.lane.b32.xlu0 %v2870, 16
      %v2902 = vpop.permute.xlu0 %2901
      %v2903 = vunpack.c.l.b16 %v1865
      %v2904 = vunpack.c.l.b16 %v1875
      %v2905 = vunpack.c.l.b16 %v1889
      %v2906 = vunpack.c.l.b16 %v1899
      %v2907 = vunpack.c.l.b16 %v1913
      %v2908 = vunpack.c.l.b16 %v1923
      %v2909 = vunpack.c.l.b16 %v1937
      %v2910 = vunpack.c.l.b16 %v1947
      %v2911 = vunpack.c.l.b16 %v1961
      %v2912 = vunpack.c.l.b16 %v1971
      %v2913 = vunpack.c.l.b16 %v1985
      %v2914 = vunpack.c.l.b16 %v1995
      %v2915 = vunpack.c.l.b16 %v2009
      %v2916 = vunpack.c.l.b16 %v2019
      %v2917 = vunpack.c.l.b16 %v2033
      %v2918 = vunpack.c.l.b16 %v2043
      %v2919 = vunpack.c.l.b16 %v2057
      %v2920 = vunpack.c.l.b16 %v2067
      %v2921 = vunpack.c.l.b16 %v2081
      %v2922 = vunpack.c.l.b16 %v2091
      %v2923 = vunpack.c.l.b16 %v2105
      %v2924 = vunpack.c.l.b16 %v2115
      %v2925 = vunpack.c.l.b16 %v2129
      %v2926 = vunpack.c.l.b16 %v2139
      %v2927 = vunpack.c.l.b16 %v2153
      %v2928 = vunpack.c.l.b16 %v2163
      %v2929 = vunpack.c.l.b16 %v2177
      %v2930 = vunpack.c.l.b16 %v2187
      %v2931 = vunpack.c.l.b16 %v2201
      %v2932 = vunpack.c.l.b16 %v2211
      %v2933 = vunpack.c.l.b16 %v2225
      %v2934 = vunpack.c.l.b16 %v2235
      %v2935 = vpack.c.b16 %v2904, %v2903
      %v2936 = vpack.c.b16 %v2906, %v2905
      %v2937 = vpack.c.b16 %v2908, %v2907
      %v2938 = vpack.c.b16 %v2910, %v2909
      %v2939 = vpack.c.b16 %v2912, %v2911
      %v2940 = vpack.c.b16 %v2914, %v2913
      %v2941 = vpack.c.b16 %v2916, %v2915
      %v2942 = vpack.c.b16 %v2918, %v2917
      %v2943 = vpack.c.b16 %v2920, %v2919
      %v2944 = vpack.c.b16 %v2922, %v2921
      %v2945 = vpack.c.b16 %v2924, %v2923
      %v2946 = vpack.c.b16 %v2926, %v2925
      %v2947 = vpack.c.b16 %v2928, %v2927
      %v2948 = vpack.c.b16 %v2930, %v2929
      %v2949 = vpack.c.b16 %v2932, %v2931
      %v2950 = vpack.c.b16 %v2934, %v2933
      %2951 = vrot.lane.b32.xlu0 %v2935, 24
      %v2952 = vpop.permute.xlu0 %2951
      %2953 = vrot.lane.b32.xlu0 %v2936, 24
      %v2954 = vpop.permute.xlu0 %2953
      %2955 = vrot.lane.b32.xlu0 %v2937, 24
      %v2956 = vpop.permute.xlu0 %2955
      %2957 = vrot.lane.b32.xlu0 %v2938, 24
      %v2958 = vpop.permute.xlu0 %2957
      %2959 = vrot.lane.b32.xlu0 %v2939, 24
      %v2960 = vpop.permute.xlu0 %2959
      %2961 = vrot.lane.b32.xlu0 %v2940, 24
      %v2962 = vpop.permute.xlu0 %2961
      %2963 = vrot.lane.b32.xlu0 %v2941, 24
      %v2964 = vpop.permute.xlu0 %2963
      %2965 = vrot.lane.b32.xlu0 %v2942, 24
      %v2966 = vpop.permute.xlu0 %2965
      %2967 = vrot.lane.b32.xlu0 %v2943, 24
      %v2968 = vpop.permute.xlu0 %2967
      %2969 = vrot.lane.b32.xlu0 %v2944, 24
      %v2970 = vpop.permute.xlu0 %2969
      %2971 = vrot.lane.b32.xlu0 %v2945, 24
      %v2972 = vpop.permute.xlu0 %2971
      %2973 = vrot.lane.b32.xlu0 %v2946, 24
      %v2974 = vpop.permute.xlu0 %2973
      %2975 = vrot.lane.b32.xlu0 %v2947, 24
      %v2976 = vpop.permute.xlu0 %2975
      %2977 = vrot.lane.b32.xlu0 %v2948, 24
      %v2978 = vpop.permute.xlu0 %2977
      %2979 = vrot.lane.b32.xlu0 %v2949, 24
      %v2980 = vpop.permute.xlu0 %2979
      %2981 = vrot.lane.b32.xlu0 %v2950, 24
      %v2982 = vpop.permute.xlu0 %2981
      %v2983 = vunpack.c.l.b16 %v2290
      %v2984 = vunpack.c.l.b16 %v2293
      %v2985 = vunpack.c.l.b16 %v2297
      %v2986 = vunpack.c.l.b16 %v2300
      %v2987 = vunpack.c.l.b16 %v2304
      %v2988 = vunpack.c.l.b16 %v2307
      %v2989 = vunpack.c.l.b16 %v2311
      %v2990 = vunpack.c.l.b16 %v2314
      %v2991 = vunpack.c.l.b16 %v2318
      %v2992 = vunpack.c.l.b16 %v2321
      %v2993 = vunpack.c.l.b16 %v2325
      %v2994 = vunpack.c.l.b16 %v2328
      %v2995 = vunpack.c.l.b16 %v2332
      %v2996 = vunpack.c.l.b16 %v2335
      %v2997 = vunpack.c.l.b16 %v2339
      %v2998 = vunpack.c.l.b16 %v2342
      %v2999 = vunpack.c.l.b16 %v2346
      %v3000 = vunpack.c.l.b16 %v2349
      %v3001 = vunpack.c.l.b16 %v2353
      %v3002 = vunpack.c.l.b16 %v2356
      %v3003 = vunpack.c.l.b16 %v2360
      %v3004 = vunpack.c.l.b16 %v2363
      %v3005 = vunpack.c.l.b16 %v2367
      %v3006 = vunpack.c.l.b16 %v2370
      %v3007 = vunpack.c.l.b16 %v2374
      %v3008 = vunpack.c.l.b16 %v2377
      %v3009 = vunpack.c.l.b16 %v2381
      %v3010 = vunpack.c.l.b16 %v2384
      %v3011 = vunpack.c.l.b16 %v2388
      %v3012 = vunpack.c.l.b16 %v2391
      %v3013 = vunpack.c.l.b16 %v2395
      %v3014 = vunpack.c.l.b16 %v2398
      %v3015 = vpack.c.b16 %v2984, %v2983
      %v3016 = vpack.c.b16 %v2986, %v2985
      %v3017 = vpack.c.b16 %v2988, %v2987
      %v3018 = vpack.c.b16 %v2990, %v2989
      %v3019 = vpack.c.b16 %v2992, %v2991
      %v3020 = vpack.c.b16 %v2994, %v2993
      %v3021 = vpack.c.b16 %v2996, %v2995
      %v3022 = vpack.c.b16 %v2998, %v2997
      %v3023 = vpack.c.b16 %v3000, %v2999
      %v3024 = vpack.c.b16 %v3002, %v3001
      %v3025 = vpack.c.b16 %v3004, %v3003
      %v3026 = vpack.c.b16 %v3006, %v3005
      %v3027 = vpack.c.b16 %v3008, %v3007
      %v3028 = vpack.c.b16 %v3010, %v3009
      %v3029 = vpack.c.b16 %v3012, %v3011
      %v3030 = vpack.c.b16 %v3014, %v3013
      %3031 = vrot.lane.b32.xlu0 %v3015, 32
      %v3032 = vpop.permute.xlu0 %3031
      %3033 = vrot.lane.b32.xlu0 %v3016, 32
      %v3034 = vpop.permute.xlu0 %3033
      %3035 = vrot.lane.b32.xlu0 %v3017, 32
      %v3036 = vpop.permute.xlu0 %3035
      %3037 = vrot.lane.b32.xlu0 %v3018, 32
      %v3038 = vpop.permute.xlu0 %3037
      %3039 = vrot.lane.b32.xlu0 %v3019, 32
      %v3040 = vpop.permute.xlu0 %3039
      %3041 = vrot.lane.b32.xlu0 %v3020, 32
      %v3042 = vpop.permute.xlu0 %3041
      %3043 = vrot.lane.b32.xlu0 %v3021, 32
      %v3044 = vpop.permute.xlu0 %3043
      %3045 = vrot.lane.b32.xlu0 %v3022, 32
      %v3046 = vpop.permute.xlu0 %3045
      %3047 = vrot.lane.b32.xlu0 %v3023, 32
      %v3048 = vpop.permute.xlu0 %3047
      %3049 = vrot.lane.b32.xlu0 %v3024, 32
      %v3050 = vpop.permute.xlu0 %3049
      %3051 = vrot.lane.b32.xlu0 %v3025, 32
      %v3052 = vpop.permute.xlu0 %3051
      %3053 = vrot.lane.b32.xlu0 %v3026, 32
      %v3054 = vpop.permute.xlu0 %3053
      %3055 = vrot.lane.b32.xlu0 %v3027, 32
      %v3056 = vpop.permute.xlu0 %3055
      %3057 = vrot.lane.b32.xlu0 %v3028, 32
      %v3058 = vpop.permute.xlu0 %3057
      %3059 = vrot.lane.b32.xlu0 %v3029, 32
      %v3060 = vpop.permute.xlu0 %3059
      %3061 = vrot.lane.b32.xlu0 %v3030, 32
      %v3062 = vpop.permute.xlu0 %3061
      %v3063 = vunpack.c.l.b16 %v2450
      %v3064 = vunpack.c.l.b16 %v2453
      %v3065 = vunpack.c.l.b16 %v2457
      %v3066 = vunpack.c.l.b16 %v2460
      %v3067 = vunpack.c.l.b16 %v2464
      %v3068 = vunpack.c.l.b16 %v2467
      %v3069 = vunpack.c.l.b16 %v2471
      %v3070 = vunpack.c.l.b16 %v2474
      %v3071 = vunpack.c.l.b16 %v2478
      %v3072 = vunpack.c.l.b16 %v2481
      %v3073 = vunpack.c.l.b16 %v2485
      %v3074 = vunpack.c.l.b16 %v2488
      %v3075 = vunpack.c.l.b16 %v2492
      %v3076 = vunpack.c.l.b16 %v2495
      %v3077 = vunpack.c.l.b16 %v2499
      %v3078 = vunpack.c.l.b16 %v2502
      %v3079 = vunpack.c.l.b16 %v2506
      %v3080 = vunpack.c.l.b16 %v2509
      %v3081 = vunpack.c.l.b16 %v2513
      %v3082 = vunpack.c.l.b16 %v2516
      %v3083 = vunpack.c.l.b16 %v2520
      %v3084 = vunpack.c.l.b16 %v2523
      %v3085 = vunpack.c.l.b16 %v2527
      %v3086 = vunpack.c.l.b16 %v2530
      %v3087 = vunpack.c.l.b16 %v2534
      %v3088 = vunpack.c.l.b16 %v2537
      %v3089 = vunpack.c.l.b16 %v2541
      %v3090 = vunpack.c.l.b16 %v2544
      %v3091 = vunpack.c.l.b16 %v2548
      %v3092 = vunpack.c.l.b16 %v2551
      %v3093 = vunpack.c.l.b16 %v2555
      %v3094 = vunpack.c.l.b16 %v2558
      %v3095 = vpack.c.b16 %v3064, %v3063
      %v3096 = vpack.c.b16 %v3066, %v3065
      %v3097 = vpack.c.b16 %v3068, %v3067
      %v3098 = vpack.c.b16 %v3070, %v3069
      %v3099 = vpack.c.b16 %v3072, %v3071
      %v3100 = vpack.c.b16 %v3074, %v3073
      %v3101 = vpack.c.b16 %v3076, %v3075
      %v3102 = vpack.c.b16 %v3078, %v3077
      %v3103 = vpack.c.b16 %v3080, %v3079
      %v3104 = vpack.c.b16 %v3082, %v3081
      %v3105 = vpack.c.b16 %v3084, %v3083
      %v3106 = vpack.c.b16 %v3086, %v3085
      %v3107 = vpack.c.b16 %v3088, %v3087
      %v3108 = vpack.c.b16 %v3090, %v3089
      %v3109 = vpack.c.b16 %v3092, %v3091
      %v3110 = vpack.c.b16 %v3094, %v3093
      %3111 = vrot.lane.b32.xlu0 %v3095, 40
      %v3112 = vpop.permute.xlu0 %3111
      %3113 = vrot.lane.b32.xlu0 %v3096, 40
      %v3114 = vpop.permute.xlu0 %3113
      %3115 = vrot.lane.b32.xlu0 %v3097, 40
      %v3116 = vpop.permute.xlu0 %3115
      %3117 = vrot.lane.b32.xlu0 %v3098, 40
      %v3118 = vpop.permute.xlu0 %3117
      %3119 = vrot.lane.b32.xlu0 %v3099, 40
      %v3120 = vpop.permute.xlu0 %3119
      %3121 = vrot.lane.b32.xlu0 %v3100, 40
      %v3122 = vpop.permute.xlu0 %3121
      %3123 = vrot.lane.b32.xlu0 %v3101, 40
      %v3124 = vpop.permute.xlu0 %3123
      %3125 = vrot.lane.b32.xlu0 %v3102, 40
      %v3126 = vpop.permute.xlu0 %3125
      %3127 = vrot.lane.b32.xlu0 %v3103, 40
      %v3128 = vpop.permute.xlu0 %3127
      %3129 = vrot.lane.b32.xlu0 %v3104, 40
      %v3130 = vpop.permute.xlu0 %3129
      %3131 = vrot.lane.b32.xlu0 %v3105, 40
      %v3132 = vpop.permute.xlu0 %3131
      %3133 = vrot.lane.b32.xlu0 %v3106, 40
      %v3134 = vpop.permute.xlu0 %3133
      %3135 = vrot.lane.b32.xlu0 %v3107, 40
      %v3136 = vpop.permute.xlu0 %3135
      %3137 = vrot.lane.b32.xlu0 %v3108, 40
      %v3138 = vpop.permute.xlu0 %3137
      %3139 = vrot.lane.b32.xlu0 %v3109, 40
      %v3140 = vpop.permute.xlu0 %3139
      %3141 = vrot.lane.b32.xlu0 %v3110, 40
      %v3142 = vpop.permute.xlu0 %3141
      %v3143 = vunpack.c.l.b16 %v1386
      %v3144 = vunpack.c.l.b16 %v1387
      %v3145 = vpack.c.b16 %v3144, %v3143
      %3146 = vrot.lane.b32.xlu0 %v2728, 48
      %v3147 = vpop.permute.xlu0 %3146
      %3148 = vrot.lane.b32.xlu0 %v2729, 48
      %v3149 = vpop.permute.xlu0 %3148
      %3150 = vrot.lane.b32.xlu0 %v2730, 48
      %v3151 = vpop.permute.xlu0 %3150
      %3152 = vrot.lane.b32.xlu0 %v2731, 48
      %v3153 = vpop.permute.xlu0 %3152
      %3154 = vrot.lane.b32.xlu0 %v2732, 48
      %v3155 = vpop.permute.xlu0 %3154
      %3156 = vrot.lane.b32.xlu0 %v2733, 48
      %v3157 = vpop.permute.xlu0 %3156
      %3158 = vrot.lane.b32.xlu0 %v2734, 48
      %v3159 = vpop.permute.xlu0 %3158
      %3160 = vrot.lane.b32.xlu0 %v2735, 48
      %v3161 = vpop.permute.xlu0 %3160
      %3162 = vrot.lane.b32.xlu0 %v2736, 48
      %v3163 = vpop.permute.xlu0 %3162
      %3164 = vrot.lane.b32.xlu0 %v2737, 48
      %v3165 = vpop.permute.xlu0 %3164
      %3166 = vrot.lane.b32.xlu0 %v2738, 48
      %v3167 = vpop.permute.xlu0 %3166
      %3168 = vrot.lane.b32.xlu0 %v2739, 48
      %v3169 = vpop.permute.xlu0 %3168
      %3170 = vrot.lane.b32.xlu0 %v2740, 48
      %v3171 = vpop.permute.xlu0 %3170
      %3172 = vrot.lane.b32.xlu0 %v2741, 48
      %v3173 = vpop.permute.xlu0 %3172
      %3174 = vrot.lane.b32.xlu0 %v2742, 48
      %v3175 = vpop.permute.xlu0 %3174
      %3176 = vrot.lane.b32.xlu0 %v3145, 48
      %v3177 = vpop.permute.xlu0 %3176
      %v3178 = vunpack.c.l.b16 %v1440
      %v3179 = vunpack.c.l.b16 %v1441
      %v3180 = vpack.c.b16 %v3179, %v3178
      %3181 = vrot.lane.b32.xlu0 %v2776, 56
      %v3182 = vpop.permute.xlu0 %3181
      %3183 = vrot.lane.b32.xlu0 %v2777, 56
      %v3184 = vpop.permute.xlu0 %3183
      %3185 = vrot.lane.b32.xlu0 %v2778, 56
      %v3186 = vpop.permute.xlu0 %3185
      %3187 = vrot.lane.b32.xlu0 %v2779, 56
      %v3188 = vpop.permute.xlu0 %3187
      %3189 = vrot.lane.b32.xlu0 %v2780, 56
      %v3190 = vpop.permute.xlu0 %3189
      %3191 = vrot.lane.b32.xlu0 %v2781, 56
      %v3192 = vpop.permute.xlu0 %3191
      %3193 = vrot.lane.b32.xlu0 %v2782, 56
      %v3194 = vpop.permute.xlu0 %3193
      %3195 = vrot.lane.b32.xlu0 %v2783, 56
      %v3196 = vpop.permute.xlu0 %3195
      %3197 = vrot.lane.b32.xlu0 %v2784, 56
      %v3198 = vpop.permute.xlu0 %3197
      %3199 = vrot.lane.b32.xlu0 %v2785, 56
      %v3200 = vpop.permute.xlu0 %3199
      %3201 = vrot.lane.b32.xlu0 %v2786, 56
      %v3202 = vpop.permute.xlu0 %3201
      %3203 = vrot.lane.b32.xlu0 %v2787, 56
      %v3204 = vpop.permute.xlu0 %3203
      %3205 = vrot.lane.b32.xlu0 %v2788, 56
      %v3206 = vpop.permute.xlu0 %3205
      %3207 = vrot.lane.b32.xlu0 %v2789, 56
      %v3208 = vpop.permute.xlu0 %3207
      %3209 = vrot.lane.b32.xlu0 %v2790, 56
      %v3210 = vpop.permute.xlu0 %3209
      %3211 = vrot.lane.b32.xlu0 %v3180, 56
      %v3212 = vpop.permute.xlu0 %3211
      %v3213 = vunpack.c.l.b16 %v2572
      %v3214 = vunpack.c.l.b16 %v2582
      %v3215 = vpack.c.b16 %v3214, %v3213
      %3216 = vrot.lane.b32.xlu0 %v2856, 64
      %v3217 = vpop.permute.xlu0 %3216
      %3218 = vrot.lane.b32.xlu0 %v2857, 64
      %v3219 = vpop.permute.xlu0 %3218
      %3220 = vrot.lane.b32.xlu0 %v2858, 64
      %v3221 = vpop.permute.xlu0 %3220
      %3222 = vrot.lane.b32.xlu0 %v2859, 64
      %v3223 = vpop.permute.xlu0 %3222
      %3224 = vrot.lane.b32.xlu0 %v2860, 64
      %v3225 = vpop.permute.xlu0 %3224
      %3226 = vrot.lane.b32.xlu0 %v2861, 64
      %v3227 = vpop.permute.xlu0 %3226
      %3228 = vrot.lane.b32.xlu0 %v2862, 64
      %v3229 = vpop.permute.xlu0 %3228
      %3230 = vrot.lane.b32.xlu0 %v2863, 64
      %v3231 = vpop.permute.xlu0 %3230
      %3232 = vrot.lane.b32.xlu0 %v2864, 64
      %v3233 = vpop.permute.xlu0 %3232
      %3234 = vrot.lane.b32.xlu0 %v2865, 64
      %v3235 = vpop.permute.xlu0 %3234
      %3236 = vrot.lane.b32.xlu0 %v2866, 64
      %v3237 = vpop.permute.xlu0 %3236
      %3238 = vrot.lane.b32.xlu0 %v2867, 64
      %v3239 = vpop.permute.xlu0 %3238
      %3240 = vrot.lane.b32.xlu0 %v2868, 64
      %v3241 = vpop.permute.xlu0 %3240
      %3242 = vrot.lane.b32.xlu0 %v2869, 64
      %v3243 = vpop.permute.xlu0 %3242
      %3244 = vrot.lane.b32.xlu0 %v2870, 64
      %v3245 = vpop.permute.xlu0 %3244
      %3246 = vrot.lane.b32.xlu0 %v3215, 64
      %v3247 = vpop.permute.xlu0 %3246
      %v3248 = vunpack.c.l.b16 %v2596
      %v3249 = vunpack.c.l.b16 %v2606
      %v3250 = vpack.c.b16 %v3249, %v3248
      %3251 = vrot.lane.b32.xlu0 %v2936, 72
      %v3252 = vpop.permute.xlu0 %3251
      %3253 = vrot.lane.b32.xlu0 %v2937, 72
      %v3254 = vpop.permute.xlu0 %3253
      %3255 = vrot.lane.b32.xlu0 %v2938, 72
      %v3256 = vpop.permute.xlu0 %3255
      %3257 = vrot.lane.b32.xlu0 %v2939, 72
      %v3258 = vpop.permute.xlu0 %3257
      %3259 = vrot.lane.b32.xlu0 %v2940, 72
      %v3260 = vpop.permute.xlu0 %3259
      %3261 = vrot.lane.b32.xlu0 %v2941, 72
      %v3262 = vpop.permute.xlu0 %3261
      %3263 = vrot.lane.b32.xlu0 %v2942, 72
      %v3264 = vpop.permute.xlu0 %3263
      %3265 = vrot.lane.b32.xlu0 %v2943, 72
      %v3266 = vpop.permute.xlu0 %3265
      %3267 = vrot.lane.b32.xlu0 %v2944, 72
      %v3268 = vpop.permute.xlu0 %3267
      %3269 = vrot.lane.b32.xlu0 %v2945, 72
      %v3270 = vpop.permute.xlu0 %3269
      %3271 = vrot.lane.b32.xlu0 %v2946, 72
      %v3272 = vpop.permute.xlu0 %3271
      %3273 = vrot.lane.b32.xlu0 %v2947, 72
      %v3274 = vpop.permute.xlu0 %3273
      %3275 = vrot.lane.b32.xlu0 %v2948, 72
      %v3276 = vpop.permute.xlu0 %3275
      %3277 = vrot.lane.b32.xlu0 %v2949, 72
      %v3278 = vpop.permute.xlu0 %3277
      %3279 = vrot.lane.b32.xlu0 %v2950, 72
      %v3280 = vpop.permute.xlu0 %3279
      %3281 = vrot.lane.b32.xlu0 %v3250, 72
      %v3282 = vpop.permute.xlu0 %3281
      %v3283 = vunpack.c.l.b16 %v2613
      %v3284 = vunpack.c.l.b16 %v2616
      %v3285 = vpack.c.b16 %v3284, %v3283
      %3286 = vrot.lane.b32.xlu0 %v3016, 80
      %v3287 = vpop.permute.xlu0 %3286
      %3288 = vrot.lane.b32.xlu0 %v3017, 80
      %v3289 = vpop.permute.xlu0 %3288
      %3290 = vrot.lane.b32.xlu0 %v3018, 80
      %v3291 = vpop.permute.xlu0 %3290
      %3292 = vrot.lane.b32.xlu0 %v3019, 80
      %v3293 = vpop.permute.xlu0 %3292
      %3294 = vrot.lane.b32.xlu0 %v3020, 80
      %v3295 = vpop.permute.xlu0 %3294
      %3296 = vrot.lane.b32.xlu0 %v3021, 80
      %v3297 = vpop.permute.xlu0 %3296
      %3298 = vrot.lane.b32.xlu0 %v3022, 80
      %v3299 = vpop.permute.xlu0 %3298
      %3300 = vrot.lane.b32.xlu0 %v3023, 80
      %v3301 = vpop.permute.xlu0 %3300
      %3302 = vrot.lane.b32.xlu0 %v3024, 80
      %v3303 = vpop.permute.xlu0 %3302
      %3304 = vrot.lane.b32.xlu0 %v3025, 80
      %v3305 = vpop.permute.xlu0 %3304
      %3306 = vrot.lane.b32.xlu0 %v3026, 80
      %v3307 = vpop.permute.xlu0 %3306
      %3308 = vrot.lane.b32.xlu0 %v3027, 80
      %v3309 = vpop.permute.xlu0 %3308
      %3310 = vrot.lane.b32.xlu0 %v3028, 80
      %v3311 = vpop.permute.xlu0 %3310
      %3312 = vrot.lane.b32.xlu0 %v3029, 80
      %v3313 = vpop.permute.xlu0 %3312
      %3314 = vrot.lane.b32.xlu0 %v3030, 80
      %v3315 = vpop.permute.xlu0 %3314
      %3316 = vrot.lane.b32.xlu0 %v3285, 80
      %v3317 = vpop.permute.xlu0 %3316
      %v3318 = vunpack.c.l.b16 %v2623
      %v3319 = vunpack.c.l.b16 %v2626
      %v3320 = vpack.c.b16 %v3319, %v3318
      %3321 = vrot.lane.b32.xlu0 %v3096, 88
      %v3322 = vpop.permute.xlu0 %3321
      %3323 = vrot.lane.b32.xlu0 %v3097, 88
      %v3324 = vpop.permute.xlu0 %3323
      %3325 = vrot.lane.b32.xlu0 %v3098, 88
      %v3326 = vpop.permute.xlu0 %3325
      %3327 = vrot.lane.b32.xlu0 %v3099, 88
      %v3328 = vpop.permute.xlu0 %3327
      %3329 = vrot.lane.b32.xlu0 %v3100, 88
      %v3330 = vpop.permute.xlu0 %3329
      %3331 = vrot.lane.b32.xlu0 %v3101, 88
      %v3332 = vpop.permute.xlu0 %3331
      %3333 = vrot.lane.b32.xlu0 %v3102, 88
      %v3334 = vpop.permute.xlu0 %3333
      %3335 = vrot.lane.b32.xlu0 %v3103, 88
      %v3336 = vpop.permute.xlu0 %3335
      %3337 = vrot.lane.b32.xlu0 %v3104, 88
      %v3338 = vpop.permute.xlu0 %3337
      %3339 = vrot.lane.b32.xlu0 %v3105, 88
      %v3340 = vpop.permute.xlu0 %3339
      %3341 = vrot.lane.b32.xlu0 %v3106, 88
      %v3342 = vpop.permute.xlu0 %3341
      %3343 = vrot.lane.b32.xlu0 %v3107, 88
      %v3344 = vpop.permute.xlu0 %3343
      %3345 = vrot.lane.b32.xlu0 %v3108, 88
      %v3346 = vpop.permute.xlu0 %3345
      %3347 = vrot.lane.b32.xlu0 %v3109, 88
      %v3348 = vpop.permute.xlu0 %3347
      %3349 = vrot.lane.b32.xlu0 %v3110, 88
      %v3350 = vpop.permute.xlu0 %3349
      %3351 = vrot.lane.b32.xlu0 %v3320, 88
      %v3352 = vpop.permute.xlu0 %3351
      %v3353 = vunpack.c.l.b16 %v1389
      %v3354 = vunpack.c.l.b16 %v1390
      %v3355 = vpack.c.b16 %v3354, %v3353
      %3356 = vrot.lane.b32.xlu0 %v2729, 96
      %v3357 = vpop.permute.xlu0 %3356
      %3358 = vrot.lane.b32.xlu0 %v2730, 96
      %v3359 = vpop.permute.xlu0 %3358
      %3360 = vrot.lane.b32.xlu0 %v2731, 96
      %v3361 = vpop.permute.xlu0 %3360
      %3362 = vrot.lane.b32.xlu0 %v2732, 96
      %v3363 = vpop.permute.xlu0 %3362
      %3364 = vrot.lane.b32.xlu0 %v2733, 96
      %v3365 = vpop.permute.xlu0 %3364
      %3366 = vrot.lane.b32.xlu0 %v2734, 96
      %v3367 = vpop.permute.xlu0 %3366
      %3368 = vrot.lane.b32.xlu0 %v2735, 96
      %v3369 = vpop.permute.xlu0 %3368
      %3370 = vrot.lane.b32.xlu0 %v2736, 96
      %v3371 = vpop.permute.xlu0 %3370
      %3372 = vrot.lane.b32.xlu0 %v2737, 96
      %v3373 = vpop.permute.xlu0 %3372
      %3374 = vrot.lane.b32.xlu0 %v2738, 96
      %v3375 = vpop.permute.xlu0 %3374
      %3376 = vrot.lane.b32.xlu0 %v2739, 96
      %v3377 = vpop.permute.xlu0 %3376
      %3378 = vrot.lane.b32.xlu0 %v2740, 96
      %v3379 = vpop.permute.xlu0 %3378
      %3380 = vrot.lane.b32.xlu0 %v2741, 96
      %v3381 = vpop.permute.xlu0 %3380
      %3382 = vrot.lane.b32.xlu0 %v2742, 96
      %v3383 = vpop.permute.xlu0 %3382
      %3384 = vrot.lane.b32.xlu0 %v3145, 96
      %v3385 = vpop.permute.xlu0 %3384
      %3386 = vrot.lane.b32.xlu0 %v3355, 96
      %v3387 = vpop.permute.xlu0 %3386
      %v3388 = vunpack.c.l.b16 %v1443
      %v3389 = vunpack.c.l.b16 %v1444
      %v3390 = vpack.c.b16 %v3389, %v3388
      %3391 = vrot.lane.b32.xlu0 %v2777, 104
      %v3392 = vpop.permute.xlu0 %3391
      %3393 = vrot.lane.b32.xlu0 %v2778, 104
      %v3394 = vpop.permute.xlu0 %3393
      %3395 = vrot.lane.b32.xlu0 %v2779, 104
      %v3396 = vpop.permute.xlu0 %3395
      %3397 = vrot.lane.b32.xlu0 %v2780, 104
      %v3398 = vpop.permute.xlu0 %3397
      %3399 = vrot.lane.b32.xlu0 %v2781, 104
      %v3400 = vpop.permute.xlu0 %3399
      %3401 = vrot.lane.b32.xlu0 %v2782, 104
      %v3402 = vpop.permute.xlu0 %3401
      %3403 = vrot.lane.b32.xlu0 %v2783, 104
      %v3404 = vpop.permute.xlu0 %3403
      %3405 = vrot.lane.b32.xlu0 %v2784, 104
      %v3406 = vpop.permute.xlu0 %3405
      %3407 = vrot.lane.b32.xlu0 %v2785, 104
      %v3408 = vpop.permute.xlu0 %3407
      %3409 = vrot.lane.b32.xlu0 %v2786, 104
      %v3410 = vpop.permute.xlu0 %3409
      %3411 = vrot.lane.b32.xlu0 %v2787, 104
      %v3412 = vpop.permute.xlu0 %3411
      %3413 = vrot.lane.b32.xlu0 %v2788, 104
      %v3414 = vpop.permute.xlu0 %3413
      %3415 = vrot.lane.b32.xlu0 %v2789, 104
      %v3416 = vpop.permute.xlu0 %3415
      %3417 = vrot.lane.b32.xlu0 %v2790, 104
      %v3418 = vpop.permute.xlu0 %3417
      %3419 = vrot.lane.b32.xlu0 %v3180, 104
      %v3420 = vpop.permute.xlu0 %3419
      %3421 = vrot.lane.b32.xlu0 %v3390, 104
      %v3422 = vpop.permute.xlu0 %3421
      %v3423 = vunpack.c.l.b16 %v2640
      %v3424 = vunpack.c.l.b16 %v2650
      %v3425 = vpack.c.b16 %v3424, %v3423
      %3426 = vrot.lane.b32.xlu0 %v2857, 112
      %v3427 = vpop.permute.xlu0 %3426
      %3428 = vrot.lane.b32.xlu0 %v2858, 112
      %v3429 = vpop.permute.xlu0 %3428
      %3430 = vrot.lane.b32.xlu0 %v2859, 112
      %v3431 = vpop.permute.xlu0 %3430
      %3432 = vrot.lane.b32.xlu0 %v2860, 112
      %v3433 = vpop.permute.xlu0 %3432
      %3434 = vrot.lane.b32.xlu0 %v2861, 112
      %v3435 = vpop.permute.xlu0 %3434
      %3436 = vrot.lane.b32.xlu0 %v2862, 112
      %v3437 = vpop.permute.xlu0 %3436
      %3438 = vrot.lane.b32.xlu0 %v2863, 112
      %v3439 = vpop.permute.xlu0 %3438
      %3440 = vrot.lane.b32.xlu0 %v2864, 112
      %v3441 = vpop.permute.xlu0 %3440
      %3442 = vrot.lane.b32.xlu0 %v2865, 112
      %v3443 = vpop.permute.xlu0 %3442
      %3444 = vrot.lane.b32.xlu0 %v2866, 112
      %v3445 = vpop.permute.xlu0 %3444
      %3446 = vrot.lane.b32.xlu0 %v2867, 112
      %v3447 = vpop.permute.xlu0 %3446
      %3448 = vrot.lane.b32.xlu0 %v2868, 112
      %v3449 = vpop.permute.xlu0 %3448
      %3450 = vrot.lane.b32.xlu0 %v2869, 112
      %v3451 = vpop.permute.xlu0 %3450
      %3452 = vrot.lane.b32.xlu0 %v2870, 112
      %v3453 = vpop.permute.xlu0 %3452
      %3454 = vrot.lane.b32.xlu0 %v3215, 112
      %v3455 = vpop.permute.xlu0 %3454
      %3456 = vrot.lane.b32.xlu0 %v3425, 112
      %v3457 = vpop.permute.xlu0 %3456
      %v3458 = vunpack.c.l.b16 %v2664
      %v3459 = vunpack.c.l.b16 %v2674
      %v3460 = vpack.c.b16 %v3459, %v3458
      %3461 = vrot.lane.b32.xlu0 %v2937, 120
      %v3462 = vpop.permute.xlu0 %3461
      %3463 = vrot.lane.b32.xlu0 %v2938, 120
      %v3464 = vpop.permute.xlu0 %3463
      %3465 = vrot.lane.b32.xlu0 %v2939, 120
      %v3466 = vpop.permute.xlu0 %3465
      %3467 = vrot.lane.b32.xlu0 %v2940, 120
      %v3468 = vpop.permute.xlu0 %3467
      %3469 = vrot.lane.b32.xlu0 %v2941, 120
      %v3470 = vpop.permute.xlu0 %3469
      %3471 = vrot.lane.b32.xlu0 %v2942, 120
      %v3472 = vpop.permute.xlu0 %3471
      %3473 = vrot.lane.b32.xlu0 %v2943, 120
      %v3474 = vpop.permute.xlu0 %3473
      %3475 = vrot.lane.b32.xlu0 %v2944, 120
      %v3476 = vpop.permute.xlu0 %3475
      %3477 = vrot.lane.b32.xlu0 %v2945, 120
      %v3478 = vpop.permute.xlu0 %3477
      %3479 = vrot.lane.b32.xlu0 %v2946, 120
      %v3480 = vpop.permute.xlu0 %3479
      %3481 = vrot.lane.b32.xlu0 %v2947, 120
      %v3482 = vpop.permute.xlu0 %3481
      %3483 = vrot.lane.b32.xlu0 %v2948, 120
      %v3484 = vpop.permute.xlu0 %3483
      %3485 = vrot.lane.b32.xlu0 %v2949, 120
      %v3486 = vpop.permute.xlu0 %3485
      %3487 = vrot.lane.b32.xlu0 %v2950, 120
      %v3488 = vpop.permute.xlu0 %3487
      %3489 = vrot.lane.b32.xlu0 %v3250, 120
      %v3490 = vpop.permute.xlu0 %3489
      %3491 = vrot.lane.b32.xlu0 %v3460, 120
      %v3492 = vpop.permute.xlu0 %3491
      %vm3493 = vcmask 64512
      %v3496 = vsel %vm3493, %v2727, %v2792
      %v3499 = vsel %vm3493, %v2728, %v2794
      %v3502 = vsel %vm3493, %v2729, %v2796
      %v3505 = vsel %vm3493, %v2730, %v2798
      %v3508 = vsel %vm3493, %v2731, %v2800
      %v3511 = vsel %vm3493, %v2732, %v2802
      %v3514 = vsel %vm3493, %v2733, %v2804
      %v3517 = vsel %vm3493, %v2734, %v2806
      %v3520 = vsel %vm3493, %v2735, %v2808
      %v3523 = vsel %vm3493, %v2736, %v2810
      %v3526 = vsel %vm3493, %v2737, %v2812
      %v3529 = vsel %vm3493, %v2738, %v2814
      %v3532 = vsel %vm3493, %v2739, %v2816
      %v3535 = vsel %vm3493, %v2740, %v2818
      %v3538 = vsel %vm3493, %v2741, %v2820
      %v3541 = vsel %vm3493, %v2742, %v2822
      %vm3542 = vcmask 130048
      %v3544 = vsel %vm3542, %v3496, %v2872
      %v3546 = vsel %vm3542, %v3499, %v2874
      %v3548 = vsel %vm3542, %v3502, %v2876
      %v3550 = vsel %vm3542, %v3505, %v2878
      %v3552 = vsel %vm3542, %v3508, %v2880
      %v3554 = vsel %vm3542, %v3511, %v2882
      %v3556 = vsel %vm3542, %v3514, %v2884
      %v3558 = vsel %vm3542, %v3517, %v2886
      %v3560 = vsel %vm3542, %v3520, %v2888
      %v3562 = vsel %vm3542, %v3523, %v2890
      %v3564 = vsel %vm3542, %v3526, %v2892
      %v3566 = vsel %vm3542, %v3529, %v2894
      %v3568 = vsel %vm3542, %v3532, %v2896
      %v3570 = vsel %vm3542, %v3535, %v2898
      %v3572 = vsel %vm3542, %v3538, %v2900
      %v3574 = vsel %vm3542, %v3541, %v2902
      %vm3575 = vcmask 195584
      %v3577 = vsel %vm3575, %v3544, %v2952
      %v3579 = vsel %vm3575, %v3546, %v2954
      %v3581 = vsel %vm3575, %v3548, %v2956
      %v3583 = vsel %vm3575, %v3550, %v2958
      %v3585 = vsel %vm3575, %v3552, %v2960
      %v3587 = vsel %vm3575, %v3554, %v2962
      %v3589 = vsel %vm3575, %v3556, %v2964
      %v3591 = vsel %vm3575, %v3558, %v2966
      %v3593 = vsel %vm3575, %v3560, %v2968
      %v3595 = vsel %vm3575, %v3562, %v2970
      %v3597 = vsel %vm3575, %v3564, %v2972
      %v3599 = vsel %vm3575, %v3566, %v2974
      %v3601 = vsel %vm3575, %v3568, %v2976
      %v3603 = vsel %vm3575, %v3570, %v2978
      %v3605 = vsel %vm3575, %v3572, %v2980
      %v3607 = vsel %vm3575, %v3574, %v2982
      %vm3608 = vcmask 261120
      %v3610 = vsel %vm3608, %v3577, %v3032
      %v3612 = vsel %vm3608, %v3579, %v3034
      %v3614 = vsel %vm3608, %v3581, %v3036
      %v3616 = vsel %vm3608, %v3583, %v3038
      %v3618 = vsel %vm3608, %v3585, %v3040
      %v3620 = vsel %vm3608, %v3587, %v3042
      %v3622 = vsel %vm3608, %v3589, %v3044
      %v3624 = vsel %vm3608, %v3591, %v3046
      %v3626 = vsel %vm3608, %v3593, %v3048
      %v3628 = vsel %vm3608, %v3595, %v3050
      %v3630 = vsel %vm3608, %v3597, %v3052
      %v3632 = vsel %vm3608, %v3599, %v3054
      %v3634 = vsel %vm3608, %v3601, %v3056
      %v3636 = vsel %vm3608, %v3603, %v3058
      %v3638 = vsel %vm3608, %v3605, %v3060
      %v3640 = vsel %vm3608, %v3607, %v3062
      %vm3641 = vcmask 326656
      %v3643 = vsel %vm3641, %v3610, %v3112
      %v3645 = vsel %vm3641, %v3612, %v3114
      %v3647 = vsel %vm3641, %v3614, %v3116
      %v3649 = vsel %vm3641, %v3616, %v3118
      %v3651 = vsel %vm3641, %v3618, %v3120
      %v3653 = vsel %vm3641, %v3620, %v3122
      %v3655 = vsel %vm3641, %v3622, %v3124
      %v3657 = vsel %vm3641, %v3624, %v3126
      %v3659 = vsel %vm3641, %v3626, %v3128
      %v3661 = vsel %vm3641, %v3628, %v3130
      %v3663 = vsel %vm3641, %v3630, %v3132
      %v3665 = vsel %vm3641, %v3632, %v3134
      %v3667 = vsel %vm3641, %v3634, %v3136
      %v3669 = vsel %vm3641, %v3636, %v3138
      %v3671 = vsel %vm3641, %v3638, %v3140
      %v3673 = vsel %vm3641, %v3640, %v3142
      %vm3674 = vcmask 392192
      %v3676 = vsel %vm3674, %v3643, %v3147
      %v3678 = vsel %vm3674, %v3645, %v3149
      %v3680 = vsel %vm3674, %v3647, %v3151
      %v3682 = vsel %vm3674, %v3649, %v3153
      %v3684 = vsel %vm3674, %v3651, %v3155
      %v3686 = vsel %vm3674, %v3653, %v3157
      %v3688 = vsel %vm3674, %v3655, %v3159
      %v3690 = vsel %vm3674, %v3657, %v3161
      %v3692 = vsel %vm3674, %v3659, %v3163
      %v3694 = vsel %vm3674, %v3661, %v3165
      %v3696 = vsel %vm3674, %v3663, %v3167
      %v3698 = vsel %vm3674, %v3665, %v3169
      %v3700 = vsel %vm3674, %v3667, %v3171
      %v3702 = vsel %vm3674, %v3669, %v3173
      %v3704 = vsel %vm3674, %v3671, %v3175
      %v3706 = vsel %vm3674, %v3673, %v3177
      %vm3707 = vcmask 457728
      %v3709 = vsel %vm3707, %v3676, %v3182
      %v3711 = vsel %vm3707, %v3678, %v3184
      %v3713 = vsel %vm3707, %v3680, %v3186
      %v3715 = vsel %vm3707, %v3682, %v3188
      %v3717 = vsel %vm3707, %v3684, %v3190
      %v3719 = vsel %vm3707, %v3686, %v3192
      %v3721 = vsel %vm3707, %v3688, %v3194
      %v3723 = vsel %vm3707, %v3690, %v3196
      %v3725 = vsel %vm3707, %v3692, %v3198
      %v3727 = vsel %vm3707, %v3694, %v3200
      %v3729 = vsel %vm3707, %v3696, %v3202
      %v3731 = vsel %vm3707, %v3698, %v3204
      %v3733 = vsel %vm3707, %v3700, %v3206
      %v3735 = vsel %vm3707, %v3702, %v3208
      %v3737 = vsel %vm3707, %v3704, %v3210
      %v3739 = vsel %vm3707, %v3706, %v3212
      %vm3740 = vcmask 523264
      %v3742 = vsel %vm3740, %v3709, %v3217
      %v3744 = vsel %vm3740, %v3711, %v3219
      %v3746 = vsel %vm3740, %v3713, %v3221
      %v3748 = vsel %vm3740, %v3715, %v3223
      %v3750 = vsel %vm3740, %v3717, %v3225
      %v3752 = vsel %vm3740, %v3719, %v3227
      %v3754 = vsel %vm3740, %v3721, %v3229
      %v3756 = vsel %vm3740, %v3723, %v3231
      %v3758 = vsel %vm3740, %v3725, %v3233
      %v3760 = vsel %vm3740, %v3727, %v3235
      %v3762 = vsel %vm3740, %v3729, %v3237
      %v3764 = vsel %vm3740, %v3731, %v3239
      %v3766 = vsel %vm3740, %v3733, %v3241
      %v3768 = vsel %vm3740, %v3735, %v3243
      %v3770 = vsel %vm3740, %v3737, %v3245
      %v3772 = vsel %vm3740, %v3739, %v3247
      %vm3773 = vcmask 588800
      %v3775 = vsel %vm3773, %v3742, %v3252
      %v3777 = vsel %vm3773, %v3744, %v3254
      %v3779 = vsel %vm3773, %v3746, %v3256
      %v3781 = vsel %vm3773, %v3748, %v3258
      %v3783 = vsel %vm3773, %v3750, %v3260
      %v3785 = vsel %vm3773, %v3752, %v3262
      %v3787 = vsel %vm3773, %v3754, %v3264
      %v3789 = vsel %vm3773, %v3756, %v3266
      %v3791 = vsel %vm3773, %v3758, %v3268
      %v3793 = vsel %vm3773, %v3760, %v3270
      %v3795 = vsel %vm3773, %v3762, %v3272
      %v3797 = vsel %vm3773, %v3764, %v3274
      %v3799 = vsel %vm3773, %v3766, %v3276
      %v3801 = vsel %vm3773, %v3768, %v3278
      %v3803 = vsel %vm3773, %v3770, %v3280
      %v3805 = vsel %vm3773, %v3772, %v3282
      %vm3806 = vcmask 654336
      %v3808 = vsel %vm3806, %v3775, %v3287
      %v3810 = vsel %vm3806, %v3777, %v3289
      %v3812 = vsel %vm3806, %v3779, %v3291
      %v3814 = vsel %vm3806, %v3781, %v3293
      %v3816 = vsel %vm3806, %v3783, %v3295
      %v3818 = vsel %vm3806, %v3785, %v3297
      %v3820 = vsel %vm3806, %v3787, %v3299
      %v3822 = vsel %vm3806, %v3789, %v3301
      %v3824 = vsel %vm3806, %v3791, %v3303
      %v3826 = vsel %vm3806, %v3793, %v3305
      %v3828 = vsel %vm3806, %v3795, %v3307
      %v3830 = vsel %vm3806, %v3797, %v3309
      %v3832 = vsel %vm3806, %v3799, %v3311
      %v3834 = vsel %vm3806, %v3801, %v3313
      %v3836 = vsel %vm3806, %v3803, %v3315
      %v3838 = vsel %vm3806, %v3805, %v3317
      %vm3839 = vcmask 719872
      %v3841 = vsel %vm3839, %v3808, %v3322
      %v3843 = vsel %vm3839, %v3810, %v3324
      %v3845 = vsel %vm3839, %v3812, %v3326
      %v3847 = vsel %vm3839, %v3814, %v3328
      %v3849 = vsel %vm3839, %v3816, %v3330
      %v3851 = vsel %vm3839, %v3818, %v3332
      %v3853 = vsel %vm3839, %v3820, %v3334
      %v3855 = vsel %vm3839, %v3822, %v3336
      %v3857 = vsel %vm3839, %v3824, %v3338
      %v3859 = vsel %vm3839, %v3826, %v3340
      %v3861 = vsel %vm3839, %v3828, %v3342
      %v3863 = vsel %vm3839, %v3830, %v3344
      %v3865 = vsel %vm3839, %v3832, %v3346
      %v3867 = vsel %vm3839, %v3834, %v3348
      %v3869 = vsel %vm3839, %v3836, %v3350
      %v3871 = vsel %vm3839, %v3838, %v3352
      %vm3872 = vcmask 785408
      %v3874 = vsel %vm3872, %v3841, %v3357
      %v3876 = vsel %vm3872, %v3843, %v3359
      %v3878 = vsel %vm3872, %v3845, %v3361
      %v3880 = vsel %vm3872, %v3847, %v3363
      %v3882 = vsel %vm3872, %v3849, %v3365
      %v3884 = vsel %vm3872, %v3851, %v3367
      %v3886 = vsel %vm3872, %v3853, %v3369
      %v3888 = vsel %vm3872, %v3855, %v3371
      %v3890 = vsel %vm3872, %v3857, %v3373
      %v3892 = vsel %vm3872, %v3859, %v3375
      %v3894 = vsel %vm3872, %v3861, %v3377
      %v3896 = vsel %vm3872, %v3863, %v3379
      %v3898 = vsel %vm3872, %v3865, %v3381
      %v3900 = vsel %vm3872, %v3867, %v3383
      %v3902 = vsel %vm3872, %v3869, %v3385
      %v3904 = vsel %vm3872, %v3871, %v3387
      %vm3905 = vcmask 850944
      %v3907 = vsel %vm3905, %v3874, %v3392
      %v3909 = vsel %vm3905, %v3876, %v3394
      %v3911 = vsel %vm3905, %v3878, %v3396
      %v3913 = vsel %vm3905, %v3880, %v3398
      %v3915 = vsel %vm3905, %v3882, %v3400
      %v3917 = vsel %vm3905, %v3884, %v3402
      %v3919 = vsel %vm3905, %v3886, %v3404
      %v3921 = vsel %vm3905, %v3888, %v3406
      %v3923 = vsel %vm3905, %v3890, %v3408
      %v3925 = vsel %vm3905, %v3892, %v3410
      %v3927 = vsel %vm3905, %v3894, %v3412
      %v3929 = vsel %vm3905, %v3896, %v3414
      %v3931 = vsel %vm3905, %v3898, %v3416
      %v3933 = vsel %vm3905, %v3900, %v3418
      %v3935 = vsel %vm3905, %v3902, %v3420
      %v3937 = vsel %vm3905, %v3904, %v3422
      %vm3938 = vcmask 916480
      %v3940 = vsel %vm3938, %v3907, %v3427
      %v3942 = vsel %vm3938, %v3909, %v3429
      %v3944 = vsel %vm3938, %v3911, %v3431
      %v3946 = vsel %vm3938, %v3913, %v3433
      %v3948 = vsel %vm3938, %v3915, %v3435
      %v3950 = vsel %vm3938, %v3917, %v3437
      %v3952 = vsel %vm3938, %v3919, %v3439
      %v3954 = vsel %vm3938, %v3921, %v3441
      %v3956 = vsel %vm3938, %v3923, %v3443
      %v3958 = vsel %vm3938, %v3925, %v3445
      %v3960 = vsel %vm3938, %v3927, %v3447
      %v3962 = vsel %vm3938, %v3929, %v3449
      %v3964 = vsel %vm3938, %v3931, %v3451
      %v3966 = vsel %vm3938, %v3933, %v3453
      %v3968 = vsel %vm3938, %v3935, %v3455
      %v3970 = vsel %vm3938, %v3937, %v3457
      %vm3971 = vcmask 982016
      %v3973 = vsel %vm3971, %v3940, %v3462
      %v3976 = vsel %vm3971, %v3942, %v3464
      %v3979 = vsel %vm3971, %v3944, %v3466
      %v3982 = vsel %vm3971, %v3946, %v3468
      %v3985 = vsel %vm3971, %v3948, %v3470
      %v3988 = vsel %vm3971, %v3950, %v3472
      %v3991 = vsel %vm3971, %v3952, %v3474
      %v3994 = vsel %vm3971, %v3954, %v3476
      %v3997 = vsel %vm3971, %v3956, %v3478
      %v4000 = vsel %vm3971, %v3958, %v3480
      %v4003 = vsel %vm3971, %v3960, %v3482
      %v4006 = vsel %vm3971, %v3962, %v3484
      %v4009 = vsel %vm3971, %v3964, %v3486
      %v4012 = vsel %vm3971, %v3966, %v3488
      %v4015 = vsel %vm3971, %v3968, %v3490
      %v4018 = vsel %vm3971, %v3970, %v3492
      %v4020 = vunpack.c.l.b16 %v2681
      %v4021 = vunpack.c.l.b16 %v2684
      %v4022 = vpack.c.b16 %v4021, %v4020
      %v4023 = vunpack.c.l.b16 %v2691
      %v4024 = vunpack.c.l.b16 %v2694
      %v4025 = vpack.c.b16 %v4024, %v4023
      %4026 = vrot.lane.b32.xlu0 %v3097, 8
      %v4027 = vpop.permute.xlu0 %4026
      %4028 = vrot.lane.b32.xlu0 %v3098, 8
      %v4029 = vpop.permute.xlu0 %4028
      %4030 = vrot.lane.b32.xlu0 %v3099, 8
      %v4031 = vpop.permute.xlu0 %4030
      %4032 = vrot.lane.b32.xlu0 %v3100, 8
      %v4033 = vpop.permute.xlu0 %4032
      %4034 = vrot.lane.b32.xlu0 %v3101, 8
      %v4035 = vpop.permute.xlu0 %4034
      %4036 = vrot.lane.b32.xlu0 %v3102, 8
      %v4037 = vpop.permute.xlu0 %4036
      %4038 = vrot.lane.b32.xlu0 %v3103, 8
      %v4039 = vpop.permute.xlu0 %4038
      %4040 = vrot.lane.b32.xlu0 %v3104, 8
      %v4041 = vpop.permute.xlu0 %4040
      %4042 = vrot.lane.b32.xlu0 %v3105, 8
      %v4043 = vpop.permute.xlu0 %4042
      %4044 = vrot.lane.b32.xlu0 %v3106, 8
      %v4045 = vpop.permute.xlu0 %4044
      %4046 = vrot.lane.b32.xlu0 %v3107, 8
      %v4047 = vpop.permute.xlu0 %4046
      %4048 = vrot.lane.b32.xlu0 %v3108, 8
      %v4049 = vpop.permute.xlu0 %4048
      %4050 = vrot.lane.b32.xlu0 %v3109, 8
      %v4051 = vpop.permute.xlu0 %4050
      %4052 = vrot.lane.b32.xlu0 %v3110, 8
      %v4053 = vpop.permute.xlu0 %4052
      %4054 = vrot.lane.b32.xlu0 %v3320, 8
      %v4055 = vpop.permute.xlu0 %4054
      %4056 = vrot.lane.b32.xlu0 %v4025, 8
      %v4057 = vpop.permute.xlu0 %4056
      %v4060 = vsel %vm3493, %v3017, %v4027
      %v4063 = vsel %vm3493, %v3018, %v4029
      %v4066 = vsel %vm3493, %v3019, %v4031
      %v4069 = vsel %vm3493, %v3020, %v4033
      %v4072 = vsel %vm3493, %v3021, %v4035
      %v4075 = vsel %vm3493, %v3022, %v4037
      %v4078 = vsel %vm3493, %v3023, %v4039
      %v4081 = vsel %vm3493, %v3024, %v4041
      %v4084 = vsel %vm3493, %v3025, %v4043
      %v4087 = vsel %vm3493, %v3026, %v4045
      %v4090 = vsel %vm3493, %v3027, %v4047
      %v4093 = vsel %vm3493, %v3028, %v4049
      %v4096 = vsel %vm3493, %v3029, %v4051
      %v4099 = vsel %vm3493, %v3030, %v4053
      %v4102 = vsel %vm3493, %v3285, %v4055
      %v4105 = vsel %vm3493, %v4022, %v4057
      %v4107 = vlaneseq
      %v4108 = vshrl.u32 %v4107, 7
      %v4109 = vsub.s32 0, %v4108
      %v4110 = vrot.slane %v1464, %v4109
      %v4130 = vunpack.c.l.b16 %v1446
      %v4131 = vunpack.c.l.b16 %v1447
      %v4132 = vunpack.c.l.b16 %v1448
      %v4133 = vunpack.c.l.b16 %v1449
      %v4134 = vunpack.c.l.b16 %v1450
      %v4135 = vunpack.c.l.b16 %v1451
      %v4136 = vunpack.c.l.b16 %v1452
      %v4137 = vunpack.c.l.b16 %v1453
      %v4138 = vunpack.c.l.b16 %v1454
      %v4139 = vunpack.c.l.b16 %v1455
      %v4140 = vunpack.c.l.b16 %v1456
      %v4141 = vunpack.c.l.b16 %v1457
      %v4142 = vunpack.c.l.b16 %v1458
      %v4143 = vunpack.c.l.b16 %v1459
      %v4144 = vunpack.c.l.b16 %v1460
      %v4145 = vunpack.c.l.b16 %v1461
      %v4146 = vunpack.c.l.b16 %v1462
      %v4147 = vunpack.c.l.b16 %v1463
      %v4148 = vpack.c.b16 %v4131, %v4130
      %v4149 = vpack.c.b16 %v4133, %v4132
      %v4150 = vpack.c.b16 %v4135, %v4134
      %v4151 = vpack.c.b16 %v4137, %v4136
      %v4152 = vpack.c.b16 %v4139, %v4138
      %v4153 = vpack.c.b16 %v4141, %v4140
      %v4154 = vpack.c.b16 %v4143, %v4142
      %v4155 = vpack.c.b16 %v4145, %v4144
      %v4156 = vpack.c.b16 %v4147, %v4146
      %v4166 = vsel %vm3542, %v4060, 0
      %v4168 = vsel %vm3542, %v4063, 0
      %v4170 = vsel %vm3542, %v4066, 0
      %v4172 = vsel %vm3542, %v4069, 0
      %v4174 = vsel %vm3542, %v4072, 0
      %v4176 = vsel %vm3542, %v4075, 0
      %v4178 = vsel %vm3542, %v4078, 0
      %v4180 = vsel %vm3542, %v4081, 0
      %v4182 = vsel %vm3542, %v4084, 0
      %v4184 = vsel %vm3542, %v4087, 0
      %v4186 = vsel %vm3542, %v4090, 0
      %v4188 = vsel %vm3542, %v4093, 0
      %v4190 = vsel %vm3542, %v4096, 0
      %v4192 = vsel %vm3542, %v4099, 0
      %v4194 = vsel %vm3542, %v4102, 0
      %v4196 = vsel %vm3542, %v4105, 0
      %4198 = vmatprep.subr.bf16.mxu0 0
      %4199 = vmatpush1.bf16.msra.mxu0 %v4148
      %4200 = vmatprep.subr.bf16.mxu0 0
      %4201 = vmatpush1.bf16.msra.mxu0 %v4149
      %4202 = vmatprep.subr.bf16.mxu0 0
      %4203 = vmatpush1.bf16.msra.mxu0 %v4150
      %4204 = vmatprep.subr.bf16.mxu0 0
      %4205 = vmatpush1.bf16.msra.mxu0 %v4151
      %4206 = vmatprep.subr.bf16.mxu0 0
      %4207 = vmatpush1.bf16.msra.mxu0 %v4152
      %4208 = vmatprep.subr.bf16.mxu0 0
      %4209 = vmatpush1.bf16.msra.mxu0 %v4153
      %4210 = vmatprep.subr.bf16.mxu0 0
      %4211 = vmatpush1.bf16.msra.mxu0 %v4154
      %4212 = vmatprep.subr.bf16.mxu0 0
      %4213 = vmatpush1.bf16.msra.mxu0 %v4155
      %4214 = vmatprep.subr.bf16.mxu0 0
      %4215 = vmatpush1.bf16.msra.mxu0 %v4156
      %4216 = vmatprep.subr.bf16.mxu0 0
      %4217 = vmatpush1.bf16.msra.mxu0 0
      %4218 = vmatprep.subr.bf16.mxu0 0
      %4219 = vmatpush1.bf16.msra.mxu0 0
      %4220 = vmatprep.subr.bf16.mxu0 0
      %4221 = vmatpush1.bf16.msra.mxu0 0
      %4222 = vmatprep.subr.bf16.mxu0 0
      %4223 = vmatpush1.bf16.msra.mxu0 0
      %4224 = vmatprep.subr.bf16.mxu0 0
      %4225 = vmatpush1.bf16.msra.mxu0 0
      %4226 = vmatprep.subr.bf16.mxu0 0
      %4227 = vmatpush1.bf16.msra.mxu0 0
      %4228 = vmatprep.subr.bf16.mxu0 0
      %4229 = vmatpush1.bf16.msra.mxu0 0
      %4230 = vmatprep.mubr.bf16.mxu0 %v4166
      %4231 = vmatmul.mubr.bf16.gmra.mrb[0].mxu0 %v3973
      %v4232 = vpop.f32.mrb[0].mxu0
      %v4233 = vadd.f32 %v4110, %v4232
      %v4234 = vpop.f32.mrb[0].mxu0
      %v4235 = vpop.f32.mrb[0].mxu0
      %v4236 = vadd.f32 %v4110, %v4235
      %v4237 = vpop.f32.mrb[0].mxu0
      %4238 = vmatprep.mubr.bf16.mxu0 %v4168
      %4239 = vmatmul.mubr.bf16.gmra.mrb[0].mxu0 %v3976
      %v4240 = vpop.f32.mrb[0].mxu0
      %v4241 = vadd.f32 %v4110, %v4240
      %v4242 = vpop.f32.mrb[0].mxu0
      %v4243 = vpop.f32.mrb[0].mxu0
      %v4244 = vadd.f32 %v4110, %v4243
      %v4245 = vpop.f32.mrb[0].mxu0
      %4246 = vmatprep.mubr.bf16.mxu0 %v4170
      %4247 = vmatmul.mubr.bf16.gmra.mrb[0].mxu0 %v3979
      %v4248 = vpop.f32.mrb[0].mxu0
      %v4249 = vadd.f32 %v4110, %v4248
      %v4250 = vpop.f32.mrb[0].mxu0
      %v4251 = vpop.f32.mrb[0].mxu0
      %v4252 = vadd.f32 %v4110, %v4251
      %v4253 = vpop.f32.mrb[0].mxu0
      %4254 = vmatprep.mubr.bf16.mxu0 %v4172
      %4255 = vmatmul.mubr.bf16.gmra.mrb[0].mxu0 %v3982
      %v4256 = vpop.f32.mrb[0].mxu0
      %v4257 = vadd.f32 %v4110, %v4256
      %v4258 = vpop.f32.mrb[0].mxu0
      %v4259 = vpop.f32.mrb[0].mxu0
      %v4260 = vadd.f32 %v4110, %v4259
      %v4261 = vpop.f32.mrb[0].mxu0
      %4262 = vmatprep.mubr.bf16.mxu0 %v4174
      %4263 = vmatmul.mubr.bf16.gmra.mrb[0].mxu0 %v3985
      %v4264 = vpop.f32.mrb[0].mxu0
      %v4265 = vadd.f32 %v4110, %v4264
      %v4266 = vpop.f32.mrb[0].mxu0
      %v4267 = vpop.f32.mrb[0].mxu0
      %v4268 = vadd.f32 %v4110, %v4267
      %v4269 = vpop.f32.mrb[0].mxu0
      %4270 = vmatprep.mubr.bf16.mxu0 %v4176
      %4271 = vmatmul.mubr.bf16.gmra.mrb[0].mxu0 %v3988
      %v4272 = vpop.f32.mrb[0].mxu0
      %v4273 = vadd.f32 %v4110, %v4272
      %v4274 = vpop.f32.mrb[0].mxu0
      %v4275 = vpop.f32.mrb[0].mxu0
      %v4276 = vadd.f32 %v4110, %v4275
      %v4277 = vpop.f32.mrb[0].mxu0
      %4278 = vmatprep.mubr.bf16.mxu0 %v4178
      %4279 = vmatmul.mubr.bf16.gmra.mrb[0].mxu0 %v3991
      %v4280 = vpop.f32.mrb[0].mxu0
      %v4281 = vadd.f32 %v4110, %v4280
      %v4282 = vpop.f32.mrb[0].mxu0
      %v4283 = vpop.f32.mrb[0].mxu0
      %v4284 = vadd.f32 %v4110, %v4283
      %v4285 = vpop.f32.mrb[0].mxu0
      %4286 = vmatprep.mubr.bf16.mxu0 %v4180
      %4287 = vmatmul.mubr.bf16.gmra.mrb[0].mxu0 %v3994
      %v4288 = vpop.f32.mrb[0].mxu0
      %v4289 = vadd.f32 %v4110, %v4288
      %v4290 = vpop.f32.mrb[0].mxu0
      %v4291 = vpop.f32.mrb[0].mxu0
      %v4292 = vadd.f32 %v4110, %v4291
      %v4293 = vpop.f32.mrb[0].mxu0
      %4294 = vmatprep.mubr.bf16.mxu0 %v4182
      %4295 = vmatmul.mubr.bf16.gmra.mrb[0].mxu0 %v3997
      %v4296 = vpop.f32.mrb[0].mxu0
      %v4297 = vadd.f32 %v4110, %v4296
      %v4298 = vpop.f32.mrb[0].mxu0
      %v4299 = vpop.f32.mrb[0].mxu0
      %v4300 = vadd.f32 %v4110, %v4299
      %v4301 = vpop.f32.mrb[0].mxu0
      %4302 = vmatprep.mubr.bf16.mxu0 %v4184
      %4303 = vmatmul.mubr.bf16.gmra.mrb[0].mxu0 %v4000
      %v4304 = vpop.f32.mrb[0].mxu0
      %v4305 = vadd.f32 %v4110, %v4304
      %v4306 = vpop.f32.mrb[0].mxu0
      %v4307 = vpop.f32.mrb[0].mxu0
      %v4308 = vadd.f32 %v4110, %v4307
      %v4309 = vpop.f32.mrb[0].mxu0
      %4310 = vmatprep.mubr.bf16.mxu0 %v4186
      %4311 = vmatmul.mubr.bf16.gmra.mrb[0].mxu0 %v4003
      %v4312 = vpop.f32.mrb[0].mxu0
      %v4313 = vadd.f32 %v4110, %v4312
      %v4314 = vpop.f32.mrb[0].mxu0
      %v4315 = vpop.f32.mrb[0].mxu0
      %v4316 = vadd.f32 %v4110, %v4315
      %v4317 = vpop.f32.mrb[0].mxu0
      %4318 = vmatprep.mubr.bf16.mxu0 %v4188
      %4319 = vmatmul.mubr.bf16.gmra.mrb[0].mxu0 %v4006
      %v4320 = vpop.f32.mrb[0].mxu0
      %v4321 = vadd.f32 %v4110, %v4320
      %v4322 = vpop.f32.mrb[0].mxu0
      %v4323 = vpop.f32.mrb[0].mxu0
      %v4324 = vadd.f32 %v4110, %v4323
      %v4325 = vpop.f32.mrb[0].mxu0
      %4326 = vmatprep.mubr.bf16.mxu0 %v4190
      %4327 = vmatmul.mubr.bf16.gmra.mrb[0].mxu0 %v4009
      %v4328 = vpop.f32.mrb[0].mxu0
      %v4329 = vadd.f32 %v4110, %v4328
      %v4330 = vpop.f32.mrb[0].mxu0
      %v4331 = vpop.f32.mrb[0].mxu0
      %v4332 = vadd.f32 %v4110, %v4331
      %v4333 = vpop.f32.mrb[0].mxu0
      %4334 = vmatprep.mubr.bf16.mxu0 %v4192
      %4335 = vmatmul.mubr.bf16.gmra.mrb[0].mxu0 %v4012
      %v4336 = vpop.f32.mrb[0].mxu0
      %v4337 = vadd.f32 %v4110, %v4336
      %v4338 = vpop.f32.mrb[0].mxu0
      %v4339 = vpop.f32.mrb[0].mxu0
      %v4340 = vadd.f32 %v4110, %v4339
      %v4341 = vpop.f32.mrb[0].mxu0
      %4342 = vmatprep.mubr.bf16.mxu0 %v4194
      %4343 = vmatmul.mubr.bf16.gmra.mrb[0].mxu0 %v4015
      %v4344 = vpop.f32.mrb[0].mxu0
      %v4345 = vadd.f32 %v4110, %v4344
      %v4346 = vpop.f32.mrb[0].mxu0
      %v4347 = vpop.f32.mrb[0].mxu0
      %v4348 = vadd.f32 %v4110, %v4347
      %v4349 = vpop.f32.mrb[0].mxu0
      %4350 = vmatprep.mubr.bf16.mxu0 %v4196
      %4351 = vmatmul.mubr.bf16.gmra.mrb[0].mxu0 %v4018
      %v4352 = vpop.f32.mrb[0].mxu0
      %v4353 = vadd.f32 %v4110, %v4352
      %v4354 = vpop.f32.mrb[0].mxu0
      %v4355 = vpop.f32.mrb[0].mxu0
      %v4356 = vadd.f32 %v4110, %v4355
      %v4357 = vpop.f32.mrb[0].mxu0
      %4358 = vdwg.mxu0
      %v4359 = vpack.c.bf16 %v4236, %v4233
      %v4360 = vpack.c.bf16 %v4244, %v4241
      %v4361 = vpack.c.bf16 %v4252, %v4249
      %v4362 = vpack.c.bf16 %v4260, %v4257
      %v4363 = vpack.c.bf16 %v4268, %v4265
      %v4364 = vpack.c.bf16 %v4276, %v4273
      %v4365 = vpack.c.bf16 %v4284, %v4281
      %v4366 = vpack.c.bf16 %v4292, %v4289
      %v4367 = vpack.c.bf16 %v4300, %v4297
      %v4368 = vpack.c.bf16 %v4308, %v4305
      %v4369 = vpack.c.bf16 %v4316, %v4313
      %v4370 = vpack.c.bf16 %v4324, %v4321
      %v4371 = vpack.c.bf16 %v4332, %v4329
      %v4372 = vpack.c.bf16 %v4340, %v4337
      %v4373 = vpack.c.bf16 %v4348, %v4345
      %v4374 = vpack.c.bf16 %v4356, %v4353
      %v4391 = vunpack.c.l.b16 %v4359
      %v4392 = vunpack.c.h.b16 %v4359
      %v4393 = vunpack.c.l.b16 %v4360
      %v4394 = vunpack.c.h.b16 %v4360
      %v4395 = vunpack.c.l.b16 %v4361
      %v4396 = vunpack.c.h.b16 %v4361
      %v4397 = vunpack.c.l.b16 %v4362
      %v4398 = vunpack.c.h.b16 %v4362
      %v4399 = vunpack.c.l.b16 %v4363
      %v4400 = vunpack.c.h.b16 %v4363
      %v4401 = vunpack.c.l.b16 %v4364
      %v4402 = vunpack.c.h.b16 %v4364
      %v4403 = vunpack.c.l.b16 %v4365
      %v4404 = vunpack.c.h.b16 %v4365
      %v4405 = vunpack.c.l.b16 %v4366
      %v4406 = vunpack.c.h.b16 %v4366
      %v4407 = vunpack.c.l.b16 %v4367
      %v4408 = vunpack.c.h.b16 %v4367
      %v4409 = vunpack.c.l.b16 %v4368
      %v4410 = vunpack.c.h.b16 %v4368
      %v4411 = vunpack.c.l.b16 %v4369
      %v4412 = vunpack.c.h.b16 %v4369
      %v4413 = vunpack.c.l.b16 %v4370
      %v4414 = vunpack.c.h.b16 %v4370
      %v4415 = vunpack.c.l.b16 %v4371
      %v4416 = vunpack.c.h.b16 %v4371
      %v4417 = vunpack.c.l.b16 %v4372
      %v4418 = vunpack.c.h.b16 %v4372
      %v4419 = vunpack.c.l.b16 %v4373
      %v4420 = vunpack.c.h.b16 %v4373
      %v4421 = vunpack.c.l.b16 %v4374
      %v4422 = vunpack.c.h.b16 %v4374
      %v4423 = vpack.c.b16 %v4391, %v4391
      %v4424 = vpack.c.b16 %v4392, %v4392
      %v4425 = vpack.c.b16 %v4393, %v4393
      %v4426 = vpack.c.b16 %v4394, %v4394
      %v4427 = vpack.c.b16 %v4395, %v4395
      %v4428 = vpack.c.b16 %v4396, %v4396
      %v4429 = vpack.c.b16 %v4397, %v4397
      %v4430 = vpack.c.b16 %v4398, %v4398
      %v4431 = vpack.c.b16 %v4399, %v4399
      %v4432 = vpack.c.b16 %v4400, %v4400
      %v4433 = vpack.c.b16 %v4401, %v4401
      %v4434 = vpack.c.b16 %v4402, %v4402
      %v4435 = vpack.c.b16 %v4403, %v4403
      %v4436 = vpack.c.b16 %v4404, %v4404
      %v4437 = vpack.c.b16 %v4405, %v4405
      %v4438 = vpack.c.b16 %v4406, %v4406
      %v4439 = vpack.c.b16 %v4407, %v4407
      %v4440 = vpack.c.b16 %v4408, %v4408
      %v4441 = vpack.c.b16 %v4409, %v4409
      %v4442 = vpack.c.b16 %v4410, %v4410
      %v4443 = vpack.c.b16 %v4411, %v4411
      %v4444 = vpack.c.b16 %v4412, %v4412
      %v4445 = vpack.c.b16 %v4413, %v4413
      %v4446 = vpack.c.b16 %v4414, %v4414
      %v4447 = vpack.c.b16 %v4415, %v4415
      %v4448 = vpack.c.b16 %v4416, %v4416
      %v4449 = vpack.c.b16 %v4417, %v4417
      %v4450 = vpack.c.b16 %v4418, %v4418
      %v4451 = vpack.c.b16 %v4419, %v4419
      %v4452 = vpack.c.b16 %v4420, %v4420
      %v4453 = vpack.c.b16 %v4421, %v4421
      %v4454 = vpack.c.b16 %v4422, %v4422
      %vm4487 = vcmask 125952
      %4488 = vst.msk [vmem:[%s282] sm:$0xf] %vm4487, %v4423
      %4489 = vst.msk [vmem:[%s282 + $0x4] sm:$0xf] %vm4487, %v4424
      %4490 = vst.msk [vmem:[%s282 + $0x8] sm:$0xf] %vm4487, %v4425
      %4491 = vst.msk [vmem:[%s282 + $0xc] sm:$0xf] %vm4487, %v4426
      %4492 = vst.msk [vmem:[%s282 + $0x10] sm:$0xf] %vm4487, %v4427
      %4493 = vst.msk [vmem:[%s282 + $0x14] sm:$0xf] %vm4487, %v4428
      %4494 = vst.msk [vmem:[%s282 + $0x18] sm:$0xf] %vm4487, %v4429
      %4495 = vst.msk [vmem:[%s282 + $0x1c] sm:$0xf] %vm4487, %v4430
      %4496 = vst.msk [vmem:[%s282 + $0x20] sm:$0xf] %vm4487, %v4431
      %4497 = vst.msk [vmem:[%s282 + $0x24] sm:$0xf] %vm4487, %v4432
      %4498 = vst.msk [vmem:[%s282 + $0x28] sm:$0xf] %vm4487, %v4433
      %4499 = vst.msk [vmem:[%s282 + $0x2c] sm:$0xf] %vm4487, %v4434
      %4500 = vst.msk [vmem:[%s282 + $0x30] sm:$0xf] %vm4487, %v4435
      %4501 = vst.msk [vmem:[%s282 + $0x34] sm:$0xf] %vm4487, %v4436
      %4502 = vst.msk [vmem:[%s282 + $0x38] sm:$0xf] %vm4487, %v4437
      %4503 = vst.msk [vmem:[%s282 + $0x3c] sm:$0xf] %vm4487, %v4438
      %4504 = vst.msk [vmem:[%s282 + $0x40] sm:$0xf] %vm4487, %v4439
      %4505 = vst.msk [vmem:[%s282 + $0x44] sm:$0xf] %vm4487, %v4440
      %4506 = vst.msk [vmem:[%s282 + $0x48] sm:$0xf] %vm4487, %v4441
      %4507 = vst.msk [vmem:[%s282 + $0x4c] sm:$0xf] %vm4487, %v4442
      %4508 = vst.msk [vmem:[%s282 + $0x50] sm:$0xf] %vm4487, %v4443
      %4509 = vst.msk [vmem:[%s282 + $0x54] sm:$0xf] %vm4487, %v4444
      %4510 = vst.msk [vmem:[%s282 + $0x58] sm:$0xf] %vm4487, %v4445
      %4511 = vst.msk [vmem:[%s282 + $0x5c] sm:$0xf] %vm4487, %v4446
      %4512 = vst.msk [vmem:[%s282 + $0x60] sm:$0xf] %vm4487, %v4447
      %4513 = vst.msk [vmem:[%s282 + $0x64] sm:$0xf] %vm4487, %v4448
      %4514 = vst.msk [vmem:[%s282 + $0x68] sm:$0xf] %vm4487, %v4449
      %4515 = vst.msk [vmem:[%s282 + $0x6c] sm:$0xf] %vm4487, %v4450
      %4516 = vst.msk [vmem:[%s282 + $0x70] sm:$0xf] %vm4487, %v4451
      %4517 = vst.msk [vmem:[%s282 + $0x74] sm:$0xf] %vm4487, %v4452
      %4518 = vst.msk [vmem:[%s282 + $0x78] sm:$0xf] %vm4487, %v4453
      %4519 = vst.msk [vmem:[%s282 + $0x7c] sm:$0xf] %vm4487, %v4454
      %v4520 = vsel %vm3542, %v4233, 0.0
      %v4521 = vsel %vm3542, %v4236, 0.0
      %v4522 = vadd.f32 %v4520, %v4521
      %v4523 = vsel %vm3542, %v4241, 0.0
      %v4524 = vadd.f32 %v4522, %v4523
      %v4525 = vsel %vm3542, %v4244, 0.0
      %v4526 = vadd.f32 %v4524, %v4525
      %v4527 = vsel %vm3542, %v4249, 0.0
      %v4528 = vadd.f32 %v4526, %v4527
      %v4529 = vsel %vm3542, %v4252, 0.0
      %v4530 = vadd.f32 %v4528, %v4529
      %v4531 = vsel %vm3542, %v4257, 0.0
      %v4532 = vadd.f32 %v4530, %v4531
      %v4533 = vsel %vm3542, %v4260, 0.0
      %v4534 = vadd.f32 %v4532, %v4533
      %v4535 = vsel %vm3542, %v4265, 0.0
      %v4536 = vadd.f32 %v4534, %v4535
      %v4537 = vsel %vm3542, %v4268, 0.0
      %v4538 = vadd.f32 %v4536, %v4537
      %v4539 = vsel %vm3542, %v4273, 0.0
      %v4540 = vadd.f32 %v4538, %v4539
      %v4541 = vsel %vm3542, %v4276, 0.0
      %v4542 = vadd.f32 %v4540, %v4541
      %v4543 = vsel %vm3542, %v4281, 0.0
      %v4544 = vadd.f32 %v4542, %v4543
      %v4545 = vsel %vm3542, %v4284, 0.0
      %v4546 = vadd.f32 %v4544, %v4545
      %v4547 = vsel %vm3542, %v4289, 0.0
      %v4548 = vadd.f32 %v4546, %v4547
      %v4549 = vsel %vm3542, %v4292, 0.0
      %v4550 = vadd.f32 %v4548, %v4549
      %v4551 = vsel %vm3542, %v4297, 0.0
      %v4552 = vadd.f32 %v4550, %v4551
      %v4553 = vsel %vm3542, %v4300, 0.0
      %v4554 = vadd.f32 %v4552, %v4553
      %v4555 = vsel %vm3542, %v4305, 0.0
      %v4556 = vadd.f32 %v4554, %v4555
      %v4557 = vsel %vm3542, %v4308, 0.0
      %v4558 = vadd.f32 %v4556, %v4557
      %v4559 = vsel %vm3542, %v4313, 0.0
      %v4560 = vadd.f32 %v4558, %v4559
      %v4561 = vsel %vm3542, %v4316, 0.0
      %v4562 = vadd.f32 %v4560, %v4561
      %v4563 = vsel %vm3542, %v4321, 0.0
      %v4564 = vadd.f32 %v4562, %v4563
      %v4565 = vsel %vm3542, %v4324, 0.0
      %v4566 = vadd.f32 %v4564, %v4565
      %v4567 = vsel %vm3542, %v4329, 0.0
      %v4568 = vadd.f32 %v4566, %v4567
      %v4569 = vsel %vm3542, %v4332, 0.0
      %v4570 = vadd.f32 %v4568, %v4569
      %v4571 = vsel %vm3542, %v4337, 0.0
      %v4572 = vadd.f32 %v4570, %v4571
      %v4573 = vsel %vm3542, %v4340, 0.0
      %v4574 = vadd.f32 %v4572, %v4573
      %v4575 = vsel %vm3542, %v4345, 0.0
      %v4576 = vadd.f32 %v4574, %v4575
      %v4577 = vsel %vm3542, %v4348, 0.0
      %v4578 = vadd.f32 %v4576, %v4577
      %v4579 = vsel %vm3542, %v4353, 0.0
      %v4580 = vadd.f32 %v4578, %v4579
      %v4581 = vsel %vm3542, %v4356, 0.0
      %v4582 = vadd.f32 %v4580, %v4581
      %v4583 = vrot.slane %v4582, 4
      %v4584 = vadd.f32 %v4582, %v4583
      %v4585 = vrot.slane %v4584, 2
      %v4586 = vadd.f32 %v4584, %v4585
      %v4587 = vrot.slane %v4586, 1
      %v4588 = vadd.f32 %v4586, %v4587
      %v4589 = vmul.f32 %v4588, 0.00390625
      %vm4590 = vcmask 122880
      %4591 = vst.msk [vmem:[%s285] sm:$0x1] %vm4590, %v4588
      %v4592 = vsub.f32 %v4233, %v4589
      %v4593 = vsub.f32 %v4236, %v4589
      %v4594 = vsub.f32 %v4241, %v4589
      %v4595 = vsub.f32 %v4244, %v4589
      %v4596 = vsub.f32 %v4249, %v4589
      %v4597 = vsub.f32 %v4252, %v4589
      %v4598 = vsub.f32 %v4257, %v4589
      %v4599 = vsub.f32 %v4260, %v4589
      %v4600 = vsub.f32 %v4265, %v4589
      %v4601 = vsub.f32 %v4268, %v4589
      %v4602 = vsub.f32 %v4273, %v4589
      %v4603 = vsub.f32 %v4276, %v4589
      %v4604 = vsub.f32 %v4281, %v4589
      %v4605 = vsub.f32 %v4284, %v4589
      %v4606 = vsub.f32 %v4289, %v4589
      %v4607 = vsub.f32 %v4292, %v4589
      %v4608 = vsub.f32 %v4297, %v4589
      %v4609 = vsub.f32 %v4300, %v4589
      %v4610 = vsub.f32 %v4305, %v4589
      %v4611 = vsub.f32 %v4308, %v4589
      %v4612 = vsub.f32 %v4313, %v4589
      %v4613 = vsub.f32 %v4316, %v4589
      %v4614 = vsub.f32 %v4321, %v4589
      %v4615 = vsub.f32 %v4324, %v4589
      %v4616 = vsub.f32 %v4329, %v4589
      %v4617 = vsub.f32 %v4332, %v4589
      %v4618 = vsub.f32 %v4337, %v4589
      %v4619 = vsub.f32 %v4340, %v4589
      %v4620 = vsub.f32 %v4345, %v4589
      %v4621 = vsub.f32 %v4348, %v4589
      %v4622 = vsub.f32 %v4353, %v4589
      %v4623 = vsub.f32 %v4356, %v4589
      %v4624 = vmul.f32 %v4592, %v4592
      %v4625 = vmul.f32 %v4593, %v4593
      %v4626 = vmul.f32 %v4594, %v4594
      %v4627 = vmul.f32 %v4595, %v4595
      %v4628 = vmul.f32 %v4596, %v4596
      %v4629 = vmul.f32 %v4597, %v4597
      %v4630 = vmul.f32 %v4598, %v4598
      %v4631 = vmul.f32 %v4599, %v4599
      %v4632 = vmul.f32 %v4600, %v4600
      %v4633 = vmul.f32 %v4601, %v4601
      %v4634 = vmul.f32 %v4602, %v4602
      %v4635 = vmul.f32 %v4603, %v4603
      %v4636 = vmul.f32 %v4604, %v4604
      %v4637 = vmul.f32 %v4605, %v4605
      %v4638 = vmul.f32 %v4606, %v4606
      %v4639 = vmul.f32 %v4607, %v4607
      %v4640 = vmul.f32 %v4608, %v4608
      %v4641 = vmul.f32 %v4609, %v4609
      %v4642 = vmul.f32 %v4610, %v4610
      %v4643 = vmul.f32 %v4611, %v4611
      %v4644 = vmul.f32 %v4612, %v4612
      %v4645 = vmul.f32 %v4613, %v4613
      %v4646 = vmul.f32 %v4614, %v4614
      %v4647 = vmul.f32 %v4615, %v4615
      %v4648 = vmul.f32 %v4616, %v4616
      %v4649 = vmul.f32 %v4617, %v4617
      %v4650 = vmul.f32 %v4618, %v4618
      %v4651 = vmul.f32 %v4619, %v4619
      %v4652 = vmul.f32 %v4620, %v4620
      %v4653 = vmul.f32 %v4621, %v4621
      %v4654 = vmul.f32 %v4622, %v4622
      %v4655 = vmul.f32 %v4623, %v4623
      %v4656 = vsel %vm3542, %v4624, 0.0
      %v4657 = vsel %vm3542, %v4625, 0.0
      %v4658 = vadd.f32 %v4656, %v4657
      %v4659 = vsel %vm3542, %v4626, 0.0
      %v4660 = vadd.f32 %v4658, %v4659
      %v4661 = vsel %vm3542, %v4627, 0.0
      %v4662 = vadd.f32 %v4660, %v4661
      %v4663 = vsel %vm3542, %v4628, 0.0
      %v4664 = vadd.f32 %v4662, %v4663
      %v4665 = vsel %vm3542, %v4629, 0.0
      %v4666 = vadd.f32 %v4664, %v4665
      %v4667 = vsel %vm3542, %v4630, 0.0
      %v4668 = vadd.f32 %v4666, %v4667
      %v4669 = vsel %vm3542, %v4631, 0.0
      %v4670 = vadd.f32 %v4668, %v4669
      %v4671 = vsel %vm3542, %v4632, 0.0
      %v4672 = vadd.f32 %v4670, %v4671
      %v4673 = vsel %vm3542, %v4633, 0.0
      %v4674 = vadd.f32 %v4672, %v4673
      %v4675 = vsel %vm3542, %v4634, 0.0
      %v4676 = vadd.f32 %v4674, %v4675
      %v4677 = vsel %vm3542, %v4635, 0.0
      %v4678 = vadd.f32 %v4676, %v4677
      %v4679 = vsel %vm3542, %v4636, 0.0
      %v4680 = vadd.f32 %v4678, %v4679
      %v4681 = vsel %vm3542, %v4637, 0.0
      %v4682 = vadd.f32 %v4680, %v4681
      %v4683 = vsel %vm3542, %v4638, 0.0
      %v4684 = vadd.f32 %v4682, %v4683
      %v4685 = vsel %vm3542, %v4639, 0.0
      %v4686 = vadd.f32 %v4684, %v4685
      %v4687 = vsel %vm3542, %v4640, 0.0
      %v4688 = vadd.f32 %v4686, %v4687
      %v4689 = vsel %vm3542, %v4641, 0.0
      %v4690 = vadd.f32 %v4688, %v4689
      %v4691 = vsel %vm3542, %v4642, 0.0
      %v4692 = vadd.f32 %v4690, %v4691
      %v4693 = vsel %vm3542, %v4643, 0.0
      %v4694 = vadd.f32 %v4692, %v4693
      %v4695 = vsel %vm3542, %v4644, 0.0
      %v4696 = vadd.f32 %v4694, %v4695
      %v4697 = vsel %vm3542, %v4645, 0.0
      %v4698 = vadd.f32 %v4696, %v4697
      %v4699 = vsel %vm3542, %v4646, 0.0
      %v4700 = vadd.f32 %v4698, %v4699
      %v4701 = vsel %vm3542, %v4647, 0.0
      %v4702 = vadd.f32 %v4700, %v4701
      %v4703 = vsel %vm3542, %v4648, 0.0
      %v4704 = vadd.f32 %v4702, %v4703
      %v4705 = vsel %vm3542, %v4649, 0.0
      %v4706 = vadd.f32 %v4704, %v4705
      %v4707 = vsel %vm3542, %v4650, 0.0
      %v4708 = vadd.f32 %v4706, %v4707
      %v4709 = vsel %vm3542, %v4651, 0.0
      %v4710 = vadd.f32 %v4708, %v4709
      %v4711 = vsel %vm3542, %v4652, 0.0
      %v4712 = vadd.f32 %v4710, %v4711
      %v4713 = vsel %vm3542, %v4653, 0.0
      %v4714 = vadd.f32 %v4712, %v4713
      %v4715 = vsel %vm3542, %v4654, 0.0
      %v4716 = vadd.f32 %v4714, %v4715
      %v4717 = vsel %vm3542, %v4655, 0.0
      %v4718 = vadd.f32 %v4716, %v4717
      %v4719 = vrot.slane %v4718, 4
      %v4720 = vadd.f32 %v4718, %v4719
      %v4721 = vrot.slane %v4720, 2
      %v4722 = vadd.f32 %v4720, %v4721
      %v4723 = vrot.slane %v4722, 1
      %v4724 = vadd.f32 %v4722, %v4723
      %4725 = vst.msk [vmem:[%s288] sm:$0x1] %vm4590, %v4724
      %p4726 = scmp.lt.s32.totalorder %s18, 1
      %s4727 = scalar_select %p4726, %s18, 1
      %s4728 = smul.addr %s4727, 32
      %s4729 = smul.addr %s4728, 4
      %s4730 = scalar_lea.vmem %s4, %s4729
      %p4731 = scmp.lt.s32.totalorder %s18, 1
      %s4732 = scalar_select %p4731, %s18, 1
      %s4733 = scalar_lea.vmem %s5, %s4732
      %p4734 = scmp.lt.s32.totalorder %s18, 1
      %s4735 = scalar_select %p4734, %s18, 1
      %s4736 = scalar_lea.vmem %s6, %s4735
      // Predicated region
      $region37: #{decoder_block_forward.5} parent=35 // pred_check
        %p4737 = pneg %p130
      $region38: #{decoder_block_forward.5} parent=35 // pred_check_branch
        %4739 = sbr.rel (%p4737) target = $region40
      $region39: #{decoder_block_forward.5} parent=35 // pred_region
        _
      $region40: #{decoder_block_forward.5} parent=35 // pred_fallthru
        _
      // Predicated region
      $region41: #{decoder_block_forward.5} parent=35 // pred_check
        %p4740 = pneg %p156
      $region42: #{decoder_block_forward.5} parent=35 // pred_check_branch
        %4742 = sbr.rel (%p4740) target = $region44
      $region43: #{decoder_block_forward.5} parent=35 // pred_region
        _
      $region44: #{decoder_block_forward.5} parent=35 // pred_fallthru
        _
      // Predicated region
      $region45: #{decoder_block_forward.5} parent=35 // pred_check
        %p4743 = pneg %p182
      $region46: #{decoder_block_forward.5} parent=35 // pred_check_branch
        %4745 = sbr.rel (%p4743) target = $region48
      $region47: #{decoder_block_forward.5} parent=35 // pred_region
        _
      $region48: #{decoder_block_forward.5} parent=35 // pred_fallthru
        _
    $region36: #{decoder_block_forward.5} parent=5 // pred_fallthru
      _
    %p4746 = scmp.le.s32.totalorder 2, %s13
    // Predicated region
    $region49: #{decoder_block_forward.5} parent=5 // pred_check
      %p4747 = pneg %p4746
    $region50: #{decoder_block_forward.5} parent=5 // pred_check_branch
      %4749 = sbr.rel (%p4747) target = $region52
    $region51: #{decoder_block_forward.5} parent=5 // pred_region
      %s4750 = ssub.s32 %s13, 2
      // Predicated region
      $region53: #{decoder_block_forward.5} parent=51 // pred_check
        %p4751 = pneg %p136
      $region54: #{decoder_block_forward.5} parent=51 // pred_check_branch
        %4753 = sbr.rel (%p4751) target = $region56
      $region55: #{decoder_block_forward.5} parent=51 // pred_region
        %p4754 = scmp.lt.s32.totalorder %s19, 1
        %s4755 = scalar_select %p4754, %s19, 1
        %s4756 = smul.addr %s4755, 32
        %s4757 = smul.addr %s4756, 4
        %s4758 = scalar_lea.vmem %s4, %s4757
      $region56: #{decoder_block_forward.5} parent=51 // pred_fallthru
        _
      // Predicated region
      $region57: #{decoder_block_forward.5} parent=51 // pred_check
        %p4759 = pneg %p162
      $region58: #{decoder_block_forward.5} parent=51 // pred_check_branch
        %4761 = sbr.rel (%p4759) target = $region60
      $region59: #{decoder_block_forward.5} parent=51 // pred_region
        %p4762 = scmp.lt.s32.totalorder %s19, 1
        %s4763 = scalar_select %p4762, %s19, 1
        %s4764 = scalar_lea.vmem %s5, %s4763
      $region60: #{decoder_block_forward.5} parent=51 // pred_fallthru
        _
      // Predicated region
      $region61: #{decoder_block_forward.5} parent=51 // pred_check
        %p4765 = pneg %p188
      $region62: #{decoder_block_forward.5} parent=51 // pred_check_branch
        %4767 = sbr.rel (%p4765) target = $region64
      $region63: #{decoder_block_forward.5} parent=51 // pred_region
        %p4768 = scmp.lt.s32.totalorder %s19, 1
        %s4769 = scalar_select %p4768, %s19, 1
        %s4770 = scalar_lea.vmem %s6, %s4769
      $region64: #{decoder_block_forward.5} parent=51 // pred_fallthru
        _
    $region52: #{decoder_block_forward.5} parent=5 // pred_fallthru
      _
  $region6: #{decoder_block_forward.5} parent=0 // loop_footer
    %s17 = sadd.s32 1, %s13
  $region7: #{decoder_block_forward.5} parent=0 // loop_footer_branch
    %12 = sbr.rel target = $region3
  $region8: #{decoder_block_forward.5} parent=0 // loop_exit
    _

</llo_original>
